<compile_context>
chip_gen: v6e
topology: v6e:2x2x1
jax: 0.10.0
libtpu: 0.0.40
codegen_flags: <defaults>
</compile_context>

<pallas_src>
import functools

import jax
import jax.numpy as jnp
from jax import lax
from jax.experimental import pallas as pl
from jax.experimental.pallas import tpu as pltpu


# ----------------------------------------------------------------------------
# Fused Pallas kernel: all Postnet layers for one (batch, time-tile) block.
# ----------------------------------------------------------------------------
def postnet_fused_kernel(x_hbm, wf_ref, wm_ref, wl_ref, shift_pre_ref,
                         sinw_ref, shift_last_ref, o_ref,
                         xwin, sem, act_ref,
                         *, K, n_layers, T, tile_t, halo, n_tiles):
    pad = (K - 1) // 2
    win = tile_t + 2 * halo
    b = pl.program_id(0)
    j = pl.program_id(1)

    cin_p = xwin.shape[-1]          # padded input width (first layer)
    cm_p = wf_ref.shape[-1]         # padded hidden width
    cdt = act_ref.dtype             # compute / MXU-operand dtype

    def window_copy(tile_idx, slot):
        start = tile_idx * tile_t
        if not isinstance(start, int):
            start = pl.multiple_of(start, 8)
        return pltpu.make_async_copy(
            x_hbm.at[pl.ds(b, 1), pl.ds(start, win), :],
            xwin.at[slot], sem.at[slot])

    slot = j % 2
    # Prime the first window of this batch row; later windows were already
    # prefetched by the previous grid step (manual pl.ANY DMAs are not
    # auto-pipelined by Pallas).
    @pl.when(j == 0)
    def _():
        window_copy(0, 0).start()

    if n_tiles > 1:
        # Prefetch the NEXT tile's overlapping window into the other slot so
        # its HBM latency hides under this step's compute.
        @pl.when(j + 1 < n_tiles)
        def _():
            window_copy(j + 1, 1 - slot).start()

    window_copy(j, slot).wait()

    # Stage the (cast) input window into the activation scratch so every
    # layer's K shifted taps are *ref* loads at a sublane offset instead of
    # sublane-shifting value slices on the VPU.
    act_ref[0:win, 0:cin_p] = xwin[slot, 0].astype(cdt)

    # Hoisted out of the layer loop (JAX does not CSE broadcast/iota).
    row = lax.broadcasted_iota(jnp.int32, (win, 1), 0)

    cur_len = win
    for l in range(n_layers):
        out_len = cur_len - 2 * pad
        last = l == n_layers - 1
        if l == 0:
            in_cols, w_k = cin_p, (lambda k: wf_ref[k])
        elif last:
            in_cols, w_k = cm_p, (lambda k: wl_ref[k])
        else:
            in_cols, w_k = cm_p, (lambda k, _l=l: wm_ref[_l - 1, k])

        # K-tap "valid" conv == K shifted MXU matmuls with f32 accumulation.
        # The BN scale (and conv bias / BN shift) is already folded into the
        # weight columns / per-channel shift on the host.
        acc = jnp.dot(act_ref[0:out_len, 0:in_cols], w_k(0),
                      preferred_element_type=jnp.float32)
        for k in range(1, K):
            acc = acc + jnp.dot(act_ref[k:k + out_len, 0:in_cols], w_k(k),
                                preferred_element_type=jnp.float32)

        if last:
            # Final layer: conv + BN only; dropout is identity in eval mode.
            o_ref[...] = (acc + shift_last_ref[...]).astype(o_ref.dtype)
        else:
            acc = acc + shift_pre_ref[l]                   # folded bias + BN
            acc = jnp.sin(acc) * sinw_ref[l]               # PSine
            if l != 0:
                # Residual = this layer's input, still held in act_ref.
                acc = acc + act_ref[pad:pad + out_len, 0:cm_p].astype(
                    jnp.float32)
            act_ref[0:out_len, 0:cm_p] = acc.astype(cdt)

            # Re-impose the Conv1d zero padding: positions outside the true
            # sequence [0, T) must be exactly 0 before feeding the next conv.
            # Interior tiles skip this full-array select entirely.
            g0 = j * tile_t - halo + (l + 1) * pad
            needs_mask = jnp.logical_or(g0 < 0, g0 + out_len > T)

            @pl.when(needs_mask)
            def _(acc=acc, g0=g0, out_len=out_len):
                g = g0 + row[0:out_len]
                ok = jnp.logical_and(g >= 0, g < T)
                act_ref[0:out_len, 0:cm_p] = jnp.where(ok, acc, 0.0).astype(cdt)

        cur_len = out_len


def _round_up(x, m):
    return (x + m - 1) // m * m


def _resident_spec(block_shape, index_map):
    """BlockSpec for a block whose index never changes: single-buffer it.

    Default pipelining would allocate two VMEM buffers for zero benefit; with
    Buffered(1) the resident weight stack only costs its own size.  Falls back
    to a plain spec on jax versions without pipeline_mode.
    """
    buffered = getattr(pl, "Buffered", None)
    if buffered is not None:
        try:
            return pl.BlockSpec(block_shape, index_map,
                                pipeline_mode=buffered(1))
        except TypeError:
            pass
    return pl.BlockSpec(block_shape, index_map)


# ----------------------------------------------------------------------------
# Wrapper: layout prep (channels-last, per-tensor channel padding, single halo
# time-padding), BN/bias folding, and the pallas_call.
# ----------------------------------------------------------------------------
def postnet_forward(x_bct, layer_params, *, eps=1e-5, tile_t=None,
                    weight_dtype=jnp.bfloat16, out_dtype=None,
                    vmem_limit_bytes=48 * 1024 * 1024):
    """Fused Postnet forward. x_bct: (B, n_mel, T) NCL like the PyTorch module."""
    n_layers = len(layer_params)
    assert n_layers >= 2
    K = layer_params[0][0].shape[-1]
    assert K % 2 == 1, "Conv1d 'same' padding here assumes an odd kernel size."
    pad = (K - 1) // 2
    halo = n_layers * pad                        # total receptive-field halo

    B, c_in, T = x_bct.shape
    emb = layer_params[0][0].shape[0]            # hidden width (emb dim)
    c_out = layer_params[-1][0].shape[0]
    cin_p = _round_up(c_in, 128)                 # per-tensor channel padding
    cm_p = _round_up(emb, 128)
    cout_p = _round_up(c_out, 128)
    c_act = max(cin_p, cm_p)

    # Time tile: large tiles amortize per-step overhead and halo recompute;
    # the cap and the ">= 4 grid steps" heuristic keep several steps alive
    # for megacore (v7x: 2 TCs) and DMA/compute overlap, and bound VMEM.
    if tile_t is None:
        tile_t = min(_round_up(T, 8), 1024)
        while tile_t > 256 and B * ((T + tile_t - 1) // tile_t) < 4:
            tile_t //= 2
    tile_t = max(8, _round_up(tile_t, 8))
    t_pad = _round_up(T, tile_t)
    n_tiles = t_pad // tile_t
    win = tile_t + 2 * halo

    # Channels-last, f32 activations in HBM (only the in-kernel MXU operands
    # are cast to the compute dtype); the time axis is zero-padded ONCE by the
    # full receptive-field halo (+ round-up to the tile size).
    x_btc = jnp.transpose(x_bct, (0, 2, 1)).astype(jnp.float32)
    x_host = jnp.pad(x_btc, ((0, 0), (halo, halo + (t_pad - T)),
                             (0, cin_p - c_in)))

    # Fold conv bias + eval-mode BN:  BN(conv_W(x)+b) = conv_{W*s}(x) + shift
    # with s = gamma/sqrt(var+eps), shift = s*(b-mean)+beta.
    def pad_w(w_kio, rows, cols):
        return jnp.pad(w_kio, ((0, 0), (0, rows - w_kio.shape[1]),
                               (0, cols - w_kio.shape[2])))

    w_first = w_last = shift_last = None
    w_mids, shifts_pre, sinws_pre = [], [], []
    for i, (w_oik, bias, gamma, beta, mean, var, sinw) in enumerate(layer_params):
        cout = w_oik.shape[0]
        scale = gamma / jnp.sqrt(var + eps)                   # (cout,)
        shift = scale * (bias - mean) + beta                  # (cout,)
        w_kio = jnp.transpose(w_oik, (2, 1, 0)) * scale[None, None, :]
        if i == 0:
            w_first = pad_w(w_kio, cin_p, cm_p)
        elif i == n_layers - 1:
            w_last = pad_w(w_kio, cm_p, cout_p)
        else:
            w_mids.append(pad_w(w_kio, cm_p, cm_p))
        if i == n_layers - 1:
            shift_last = jnp.pad(shift, (0, cout_p - cout))[None, :]
        else:
            shifts_pre.append(jnp.pad(shift, (0, cm_p - cout)))
            sinws_pre.append(jnp.pad(sinw, (0, cm_p - cout)))

    n_mid = n_layers - 2
    w_first = w_first.astype(weight_dtype)
    w_last = w_last.astype(weight_dtype)
    if n_mid > 0:
        w_mid = jnp.stack(w_mids).astype(weight_dtype)
    else:  # dummy (never indexed) so the argument structure stays fixed
        w_mid = jnp.zeros((1, K, cm_p, cm_p), weight_dtype)
    shift_pre = jnp.stack(shifts_pre)[:, None, :].astype(jnp.float32)
    sinw_pre = jnp.stack(sinws_pre)[:, None, :].astype(jnp.float32)
    shift_last = shift_last.astype(jnp.float32)

    if out_dtype is None:
        out_dtype = x_bct.dtype      # pass jnp.bfloat16 to halve the writeback

    kernel = functools.partial(postnet_fused_kernel, K=K, n_layers=n_layers,
                               T=T, tile_t=tile_t, halo=halo, n_tiles=n_tiles)

    flops_per_row = 2 * K * (cin_p * cm_p + max(n_mid, 0) * cm_p * cm_p
                             + cm_p * cout_p)
    cost = pl.CostEstimate(
        flops=int(B * t_pad * flops_per_row),
        transcendentals=int(B * t_pad * (n_layers - 1) * cm_p),
        bytes_accessed=int(x_host.size * 4
                           + (w_first.size + w_mid.size + w_last.size)
                           * jnp.dtype(weight_dtype).itemsize
                           + B * t_pad * cout_p * jnp.dtype(out_dtype).itemsize))

    def _build_call(resident_params):
        def rspec(shape, index_map):
            if resident_params:
                return _resident_spec(shape, index_map)
            return pl.BlockSpec(shape, index_map)

        return pl.pallas_call(
            kernel,
            out_shape=jax.ShapeDtypeStruct((B, t_pad, cout_p), out_dtype),
            grid=(B, n_tiles),
            in_specs=[
                pl.BlockSpec(memory_space=pl.ANY),  # x: raw HBM, manual DMA
                rspec((K, cin_p, cm_p), lambda b, j: (0, 0, 0)),
                rspec((max(n_mid, 1), K, cm_p, cm_p),
                      lambda b, j: (0, 0, 0, 0)),
                rspec((K, cm_p, cout_p), lambda b, j: (0, 0, 0)),
                rspec((n_layers - 1, 1, cm_p), lambda b, j: (0, 0, 0)),
                rspec((n_layers - 1, 1, cm_p), lambda b, j: (0, 0, 0)),
                rspec((1, cout_p), lambda b, j: (0, 0)),
            ],
            out_specs=pl.BlockSpec((None, tile_t, cout_p),
                                   lambda b, j: (b, j, 0)),
            scratch_shapes=[
                pltpu.VMEM((2, 1, win, cin_p), jnp.float32),  # haloed input x2
                pltpu.SemaphoreType.DMA((2,)),
                pltpu.VMEM((win, c_act), weight_dtype),       # layer acts
            ],
            compiler_params=pltpu.CompilerParams(
                # j ("arbitrary") must stay a serial per-core loop so the
                # cross-step halo-DMA prefetch chain is valid; b is megacore-
                # parallel.
                dimension_semantics=("parallel", "arbitrary"),
                vmem_limit_bytes=int(vmem_limit_bytes)),
            cost_estimate=cost,
        )

    args = (x_host, w_first, w_mid, w_last, shift_pre, sinw_pre, shift_last)
    try:
        out = _build_call(True)(*args)
    except Exception:
        # Compatibility fallback: identical kernel, default (double) buffering
        # for the resident parameters.
        out = _build_call(False)(*args)

    # Drop the channel / time padding and return NCL like the PyTorch module.
    return jnp.transpose(out[:, :T, :c_out], (0, 2, 1))


# ----------------------------------------------------------------------------
# Pure-JAX reference (mirrors the PyTorch forward, eval mode) for verification
# ----------------------------------------------------------------------------
def postnet_reference(x_bct, layer_params, eps=1e-5):
    n_layers = len(layer_params)
    x = x_bct
    for i, p in enumerate(layer_params):
        w_oik, b, gamma, beta, mean, var, sinw = p
        K = w_oik.shape[-1]
        pad = (K - 1) // 2
        residual = x
        y = lax.conv_general_dilated(
            x, w_oik, window_strides=(1,), padding=[(pad, pad)],
            dimension_numbers=("NCH", "OIH", "NCH"),
        )
        y = y + b[None, :, None]
        y = (y - mean[None, :, None]) / jnp.sqrt(var[None, :, None] + eps)
        y = y * gamma[None, :, None] + beta[None, :, None]
        if i < n_layers - 1:
            y = jnp.sin(y) * sinw[None, :, None]   # PSine (permute path)
            if i != 0:
                y = y + residual
        x = y
    return x


# ----------------------------------------------------------------------------
# Deterministic parameter construction (synthetic; mirrors __init__ shapes)
# ----------------------------------------------------------------------------
def make_params(key, n_mel, emb, K, n_conv):
    def xavier(k, cout, cin, ksz, gain):
        limit = gain * jnp.sqrt(6.0 / (cin * ksz + cout * ksz))
        return jax.random.uniform(k, (cout, cin, ksz), jnp.float32, -limit, limit)

    gain_tanh = 5.0 / 3.0
    params = []
    dims = [(n_mel, emb)] + [(emb, emb)] * (n_conv - 2) + [(emb, n_mel)]
    for i, (cin, cout) in enumerate(dims):
        key, kw, kb, kg, kbe, km, kv = jax.random.split(key, 7)
        gain = 1.0 if i == n_conv - 1 else gain_tanh
        w = xavier(kw, cout, cin, K, gain)
        b = 0.1 * jax.random.normal(kb, (cout,), jnp.float32)
        gamma = 1.0 + 0.1 * jax.random.normal(kg, (cout,), jnp.float32)
        beta = 0.1 * jax.random.normal(kbe, (cout,), jnp.float32)
        mean = 0.1 * jax.random.normal(km, (cout,), jnp.float32)
        var = 0.5 + jnp.abs(jax.random.normal(kv, (cout,), jnp.float32))
        sinw = jnp.ones((cout,), jnp.float32)  # PSine init: ones * w (w=1)
        params.append((w, b, gamma, beta, mean, var, sinw))
    return params


if __name__ == "__main__":
    # Small hparams consistent with the module
    n_mel_channels = 12
    postnet_embedding_dim = 32
    postnet_kernel_size = 5
    postnet_n_convolutions = 3
    B, T = 2, 16  # note: T != embedding_dim so PSine takes its permute path

    key = jax.random.PRNGKey(0)
    key, kx = jax.random.split(key)
    x = jax.random.normal(kx, (B, n_mel_channels, T), jnp.float32)  # NCL

    params = make_params(key, n_mel_channels, postnet_embedding_dim,
                         postnet_kernel_size, postnet_n_convolutions)

    ref = postnet_reference(x, params)

    # (a) exact path: f32 weights / activations, single time tile per row.
    out = jax.block_until_ready(
        postnet_forward(x, params, weight_dtype=jnp.float32))
    assert out.shape == (B, n_mel_channels, T)
    assert jnp.allclose(out, ref, rtol=1e-4, atol=1e-4), (
        float(jnp.max(jnp.abs(out - ref))))

    # (b) T-tiled path (2 tiles -> exercises the double-buffered halo DMA
    #     prefetch and the boundary-only re-zeroing).
    out_tiled = jax.block_until_ready(
        postnet_forward(x, params, tile_t=8, weight_dtype=jnp.float32))
    assert jnp.allclose(out_tiled, ref, rtol=1e-4, atol=1e-4), (
        float(jnp.max(jnp.abs(out_tiled - ref))))

    # (c) ragged T (not a multiple of the tile size).
    x13 = x[:, :, :13]
    ref13 = postnet_reference(x13, params)
    out13 = jax.block_until_ready(
        postnet_forward(x13, params, tile_t=8, weight_dtype=jnp.float32))
    assert jnp.allclose(out13, ref13, rtol=1e-4, atol=1e-4), (
        float(jnp.max(jnp.abs(out13 - ref13))))

    # (d) default path: bf16 weights + bf16 inter-layer activations (f32 MXU
    #     accumulation, f32 epilogue, f32 activations in HBM): loose check.
    out_bf16 = jax.block_until_ready(postnet_forward(x, params, tile_t=8))
    assert out_bf16.shape == (B, n_mel_channels, T)
    assert bool(jnp.all(jnp.isfinite(out_bf16)))
    assert float(jnp.max(jnp.abs(out_bf16.astype(jnp.float32) - ref))) < 0.25

    print("KERNEL_OK")
</pallas_src>

<mosaic_0001>
module attributes {stable_mosaic.version = 11 : i64} {
  func.func @postnet_fused_kernel(%arg0: i32, %arg1: i32, %arg2: memref<2x28x128xf32, #tpu.memory_space<any>>, %arg3: memref<5x128x128xf32, #tpu.memory_space<vmem>>, %arg4: memref<1x5x128x128xf32, #tpu.memory_space<vmem>>, %arg5: memref<5x128x128xf32, #tpu.memory_space<vmem>>, %arg6: memref<2x1x128xf32, #tpu.memory_space<vmem>>, %arg7: memref<2x1x128xf32, #tpu.memory_space<vmem>>, %arg8: memref<1x128xf32, #tpu.memory_space<vmem>>, %arg9: memref<1x16x128xf32, #tpu.memory_space<vmem>>, %arg10: memref<2x1x28x128xf32, #tpu.memory_space<vmem>>, %arg11: memref<2x!tpu.dma_semaphore, #tpu.memory_space<semaphore_mem>>, %arg12: memref<28x128xf32, #tpu.memory_space<vmem>>) attributes {dimension_semantics = [#tpu.dimension_semantics<parallel>, #tpu.dimension_semantics<arbitrary>], iteration_bounds = array<i64: 2, 1>, scalar_prefetch = 0 : i64, scratch_operands = 3 : i64, tpu.core_type = #tpu.core_type<tc>, window_params = [{}, {pipeline_mode = #tpu.pipeline_mode<synchronous>, transform_indices = @transform_1, window_bounds = array<i64: 5, 128, 128>}, {pipeline_mode = #tpu.pipeline_mode<synchronous>, transform_indices = @transform_2, window_bounds = array<i64: 1, 5, 128, 128>}, {pipeline_mode = #tpu.pipeline_mode<synchronous>, transform_indices = @transform_3, window_bounds = array<i64: 5, 128, 128>}, {pipeline_mode = #tpu.pipeline_mode<synchronous>, transform_indices = @transform_4, window_bounds = array<i64: 2, 1, 128>}, {pipeline_mode = #tpu.pipeline_mode<synchronous>, transform_indices = @transform_5, window_bounds = array<i64: 2, 1, 128>}, {pipeline_mode = #tpu.pipeline_mode<synchronous>, transform_indices = @transform_6, window_bounds = array<i64: 1, 128>}, {transform_indices = @transform_7, window_bounds = array<i64: 1, 16, 128>}]} {
    %c2_i32 = arith.constant 2 : i32
    %c0_i32 = arith.constant 0 : i32
    %0 = arith.cmpi eq, %c2_i32, %c0_i32 : i32
    %c1_i32 = arith.constant 1 : i32
    %1 = arith.select %0, %c1_i32, %c2_i32 : i32
    %2 = arith.remsi %arg1, %1 : i32
    %c0_i32_0 = arith.constant 0 : i32
    %3 = arith.cmpi ne, %2, %c0_i32_0 : i32
    %c0_i32_1 = arith.constant 0 : i32
    %4 = arith.cmpi slt, %2, %c0_i32_1 : i32
    %c0_i32_2 = arith.constant 0 : i32
    %5 = arith.cmpi slt, %1, %c0_i32_2 : i32
    %6 = arith.xori %4, %5 : i1
    %7 = arith.andi %6, %3 : i1
    %8 = arith.addi %2, %1 : i32
    %9 = arith.select %7, %8, %2 : i32
    %c0_i32_3 = arith.constant 0 : i32
    %10 = arith.cmpi eq, %arg1, %c0_i32_3 : i32
    %11 = arith.extui %10 : i1 to i32
    %c0_i32_4 = arith.constant 0 : i32
    %12 = arith.cmpi ne, %11, %c0_i32_4 : i32
    scf.if %12 {
      %c0_i32_136 = arith.constant 0 : i32
      %c0_i32_137 = arith.constant 0 : i32
      %c0_i32_138 = arith.constant 0 : i32
      %c0_i32_139 = arith.constant 0 : i32
      %143 = tpu.memref_slice %arg2[%arg0, %c0_i32_138, %c0_i32_139] : memref<2x28x128xf32, #tpu.memory_space<any>> -> memref<1x28x128xf32, #tpu.memory_space<any>>
      %c0_i32_140 = arith.constant 0 : i32
      %c0_i32_141 = arith.constant 0 : i32
      %c0_i32_142 = arith.constant 0 : i32
      %144 = tpu.memref_slice %arg10[%c0_i32_136, %c0_i32_140, %c0_i32_141, %c0_i32_142] : memref<2x1x28x128xf32, #tpu.memory_space<vmem>> -> memref<1x1x28x128xf32, #tpu.memory_space<vmem>>
      %145 = tpu.memref_squeeze %144 : memref<1x1x28x128xf32, #tpu.memory_space<vmem>> -> memref<1x28x128xf32, #tpu.memory_space<vmem>>
      %146 = tpu.memref_slice %arg11[%c0_i32_137] : memref<2x!tpu.dma_semaphore, #tpu.memory_space<semaphore_mem>> -> memref<1x!tpu.dma_semaphore, #tpu.memory_space<semaphore_mem>>
      %147 = tpu.memref_squeeze %146 : memref<1x!tpu.dma_semaphore, #tpu.memory_space<semaphore_mem>> -> memref<!tpu.dma_semaphore, #tpu.memory_space<semaphore_mem>>
      tpu.enqueue_dma source(%143 : memref<1x28x128xf32, #tpu.memory_space<any>>) target(%145 : memref<1x28x128xf32, #tpu.memory_space<vmem>>) target_semaphore(%147 : memref<!tpu.dma_semaphore, #tpu.memory_space<semaphore_mem>>)
    } else {
    }
    %c16_i32 = arith.constant 16 : i32
    %13 = arith.muli %arg1, %c16_i32 : i32
    %14 = tpu.assume_multiple %13, 8 : i32
    %c0_i32_5 = arith.constant 0 : i32
    %15 = tpu.memref_slice %arg2[%arg0, %14, %c0_i32_5] : memref<2x28x128xf32, #tpu.memory_space<any>> -> memref<1x28x128xf32, #tpu.memory_space<any>>
    %c0_i32_6 = arith.constant 0 : i32
    %c0_i32_7 = arith.constant 0 : i32
    %c0_i32_8 = arith.constant 0 : i32
    %16 = tpu.memref_slice %arg10[%9, %c0_i32_6, %c0_i32_7, %c0_i32_8] : memref<2x1x28x128xf32, #tpu.memory_space<vmem>> -> memref<1x1x28x128xf32, #tpu.memory_space<vmem>>
    %17 = tpu.memref_squeeze %16 : memref<1x1x28x128xf32, #tpu.memory_space<vmem>> -> memref<1x28x128xf32, #tpu.memory_space<vmem>>
    %18 = tpu.memref_slice %arg11[%9] : memref<2x!tpu.dma_semaphore, #tpu.memory_space<semaphore_mem>> -> memref<1x!tpu.dma_semaphore, #tpu.memory_space<semaphore_mem>>
    %19 = tpu.memref_squeeze %18 : memref<1x!tpu.dma_semaphore, #tpu.memory_space<semaphore_mem>> -> memref<!tpu.dma_semaphore, #tpu.memory_space<semaphore_mem>>
    tpu.wait_dma2 semaphore(%19 : memref<!tpu.dma_semaphore, #tpu.memory_space<semaphore_mem>>) src(%15 : memref<1x28x128xf32, #tpu.memory_space<any>>) dst(%17 : memref<1x28x128xf32, #tpu.memory_space<vmem>>)
    %20 = arith.index_cast %9 : i32 to index
    %c0 = arith.constant 0 : index
    %c0_9 = arith.constant 0 : index
    %c0_10 = arith.constant 0 : index
    %21 = vector.load %arg10[%20, %c0, %c0_9, %c0_10] : memref<2x1x28x128xf32, #tpu.memory_space<vmem>>, vector<1x1x28x128xf32>
    %22 = vector.shape_cast %21 : vector<1x1x28x128xf32> to vector<28x128xf32>
    %c0_11 = arith.constant 0 : index
    %c0_12 = arith.constant 0 : index
    %23 = vector.load %arg12[%c0_11, %c0_12] : memref<28x128xf32, #tpu.memory_space<vmem>>, vector<28x128xf32>
    tpu.vector_store %arg12[%c0_11, %c0_12], %22 {strides = array<i32>} : memref<28x128xf32, #tpu.memory_space<vmem>>, vector<28x128xf32>,
    %24 = tpu.iota {dimensions = array<i32: 0>} : vector<28x1xi32>
    %c0_13 = arith.constant 0 : index
    %c0_14 = arith.constant 0 : index
    %25 = vector.load %arg12[%c0_13, %c0_14] : memref<28x128xf32, #tpu.memory_space<vmem>>, vector<24x128xf32>
    %c0_15 = arith.constant 0 : index
    %c0_16 = arith.constant 0 : index
    %c0_17 = arith.constant 0 : index
    %26 = vector.load %arg3[%c0_15, %c0_16, %c0_17] : memref<5x128x128xf32, #tpu.memory_space<vmem>>, vector<1x128x128xf32>
    %27 = vector.shape_cast %26 : vector<1x128x128xf32> to vector<128x128xf32>
    %cst = arith.constant dense<0.000000e+00> : vector<24x128xf32>
    %28 = tpu.matmul %25, %27, %cst {dimension_numbers = #tpu.dot_dimension_numbers<[1], [0], [0], [1], [0, 0, 1, 1], [], []>} : vector<24x128xf32>, vector<128x128xf32>, vector<24x128xf32> -> vector<24x128xf32>
    %c1 = arith.constant 1 : index
    %c0_18 = arith.constant 0 : index
    %29 = vector.load %arg12[%c1, %c0_18] : memref<28x128xf32, #tpu.memory_space<vmem>>, vector<24x128xf32>
    %c1_19 = arith.constant 1 : index
    %c0_20 = arith.constant 0 : index
    %c0_21 = arith.constant 0 : index
    %30 = vector.load %arg3[%c1_19, %c0_20, %c0_21] : memref<5x128x128xf32, #tpu.memory_space<vmem>>, vector<1x128x128xf32>
    %31 = vector.shape_cast %30 : vector<1x128x128xf32> to vector<128x128xf32>
    %cst_22 = arith.constant dense<0.000000e+00> : vector<24x128xf32>
    %32 = tpu.matmul %29, %31, %cst_22 {dimension_numbers = #tpu.dot_dimension_numbers<[1], [0], [0], [1], [0, 0, 1, 1], [], []>} : vector<24x128xf32>, vector<128x128xf32>, vector<24x128xf32> -> vector<24x128xf32>
    %33 = arith.addf %28, %32 : vector<24x128xf32>
    %c2 = arith.constant 2 : index
    %c0_23 = arith.constant 0 : index
    %34 = vector.load %arg12[%c2, %c0_23] : memref<28x128xf32, #tpu.memory_space<vmem>>, vector<24x128xf32>
    %c2_24 = arith.constant 2 : index
    %c0_25 = arith.constant 0 : index
    %c0_26 = arith.constant 0 : index
    %35 = vector.load %arg3[%c2_24, %c0_25, %c0_26] : memref<5x128x128xf32, #tpu.memory_space<vmem>>, vector<1x128x128xf32>
    %36 = vector.shape_cast %35 : vector<1x128x128xf32> to vector<128x128xf32>
    %cst_27 = arith.constant dense<0.000000e+00> : vector<24x128xf32>
    %37 = tpu.matmul %34, %36, %cst_27 {dimension_numbers = #tpu.dot_dimension_numbers<[1], [0], [0], [1], [0, 0, 1, 1], [], []>} : vector<24x128xf32>, vector<128x128xf32>, vector<24x128xf32> -> vector<24x128xf32>
    %38 = arith.addf %33, %37 : vector<24x128xf32>
    %c3 = arith.constant 3 : index
    %c0_28 = arith.constant 0 : index
    %39 = vector.load %arg12[%c3, %c0_28] : memref<28x128xf32, #tpu.memory_space<vmem>>, vector<24x128xf32>
    %c3_29 = arith.constant 3 : index
    %c0_30 = arith.constant 0 : index
    %c0_31 = arith.constant 0 : index
    %40 = vector.load %arg3[%c3_29, %c0_30, %c0_31] : memref<5x128x128xf32, #tpu.memory_space<vmem>>, vector<1x128x128xf32>
    %41 = vector.shape_cast %40 : vector<1x128x128xf32> to vector<128x128xf32>
    %cst_32 = arith.constant dense<0.000000e+00> : vector<24x128xf32>
    %42 = tpu.matmul %39, %41, %cst_32 {dimension_numbers = #tpu.dot_dimension_numbers<[1], [0], [0], [1], [0, 0, 1, 1], [], []>} : vector<24x128xf32>, vector<128x128xf32>, vector<24x128xf32> -> vector<24x128xf32>
    %43 = arith.addf %38, %42 : vector<24x128xf32>
    %c4 = arith.constant 4 : index
    %c0_33 = arith.constant 0 : index
    %44 = vector.load %arg12[%c4, %c0_33] : memref<28x128xf32, #tpu.memory_space<vmem>>, vector<24x128xf32>
    %c4_34 = arith.constant 4 : index
    %c0_35 = arith.constant 0 : index
    %c0_36 = arith.constant 0 : index
    %45 = vector.load %arg3[%c4_34, %c0_35, %c0_36] : memref<5x128x128xf32, #tpu.memory_space<vmem>>, vector<1x128x128xf32>
    %46 = vector.shape_cast %45 : vector<1x128x128xf32> to vector<128x128xf32>
    %cst_37 = arith.constant dense<0.000000e+00> : vector<24x128xf32>
    %47 = tpu.matmul %44, %46, %cst_37 {dimension_numbers = #tpu.dot_dimension_numbers<[1], [0], [0], [1], [0, 0, 1, 1], [], []>} : vector<24x128xf32>, vector<128x128xf32>, vector<24x128xf32> -> vector<24x128xf32>
    %48 = arith.addf %43, %47 : vector<24x128xf32>
    %c0_38 = arith.constant 0 : index
    %c0_39 = arith.constant 0 : index
    %c0_40 = arith.constant 0 : index
    %49 = vector.load %arg6[%c0_38, %c0_39, %c0_40] : memref<2x1x128xf32, #tpu.memory_space<vmem>>, vector<1x1x128xf32>
    %50 = vector.shape_cast %49 : vector<1x1x128xf32> to vector<1x128xf32>
    %51 = vector.broadcast %50 : vector<1x128xf32> to vector<24x128xf32>
    %52 = arith.addf %48, %51 : vector<24x128xf32>
    %53 = math.sin %52 : vector<24x128xf32>
    %c0_41 = arith.constant 0 : index
    %c0_42 = arith.constant 0 : index
    %c0_43 = arith.constant 0 : index
    %54 = vector.load %arg7[%c0_41, %c0_42, %c0_43] : memref<2x1x128xf32, #tpu.memory_space<vmem>>, vector<1x1x128xf32>
    %55 = vector.shape_cast %54 : vector<1x1x128xf32> to vector<1x128xf32>
    %56 = vector.broadcast %55 : vector<1x128xf32> to vector<24x128xf32>
    %57 = arith.mulf %53, %56 : vector<24x128xf32>
    %c0_44 = arith.constant 0 : index
    %c0_45 = arith.constant 0 : index
    %58 = vector.load %arg12[%c0_44, %c0_45] : memref<28x128xf32, #tpu.memory_space<vmem>>, vector<24x128xf32>
    tpu.vector_store %arg12[%c0_44, %c0_45], %57 {strides = array<i32>} : memref<28x128xf32, #tpu.memory_space<vmem>>, vector<24x128xf32>,
    %c16_i32_46 = arith.constant 16 : i32
    %59 = arith.muli %arg1, %c16_i32_46 : i32
    %c6_i32 = arith.constant 6 : i32
    %60 = arith.subi %59, %c6_i32 : i32
    %c2_i32_47 = arith.constant 2 : i32
    %61 = arith.addi %60, %c2_i32_47 : i32
    %c0_i32_48 = arith.constant 0 : i32
    %62 = arith.cmpi slt, %61, %c0_i32_48 : i32
    %c24_i32 = arith.constant 24 : i32
    %63 = arith.addi %61, %c24_i32 : i32
    %c16_i32_49 = arith.constant 16 : i32
    %64 = arith.cmpi sgt, %63, %c16_i32_49 : i32
    %65 = arith.ori %62, %64 : i1
    %66 = arith.extui %65 : i1 to i32
    %c0_i32_50 = arith.constant 0 : i32
    %67 = arith.cmpi ne, %66, %c0_i32_50 : i32
    scf.if %67 {
      %143 = vector.extract_strided_slice %24 {offsets = [0, 0], sizes = [24, 1], strides = [1, 1]} : vector<28x1xi32> to vector<24x1xi32>
      %144 = vector.broadcast %61 : i32 to vector<24x1xi32>
      %145 = arith.addi %144, %143 : vector<24x1xi32>
      %c0_i32_136 = arith.constant 0 : i32
      %146 = vector.broadcast %c0_i32_136 : i32 to vector<24x1xi32>
      %147 = arith.cmpi sge, %145, %146 : vector<24x1xi32>
      %c16_i32_137 = arith.constant 16 : i32
      %148 = vector.broadcast %c16_i32_137 : i32 to vector<24x1xi32>
      %149 = arith.cmpi slt, %145, %148 : vector<24x1xi32>
      %150 = arith.andi %147, %149 : vector<24x1xi1>
      %cst_138 = arith.constant 0.000000e+00 : f32
      %151 = vector.shape_cast %150 : vector<24x1xi1> to vector<24x1xi1>
      %152 = vector.broadcast %151 : vector<24x1xi1> to vector<24x128xi1>
      %153 = vector.broadcast %cst_138 : f32 to vector<24x128xf32>
      %154 = arith.select %152, %57, %153 : vector<24x128xi1>, vector<24x128xf32>
      %c0_139 = arith.constant 0 : index
      %c0_140 = arith.constant 0 : index
      %155 = vector.load %arg12[%c0_139, %c0_140] : memref<28x128xf32, #tpu.memory_space<vmem>>, vector<24x128xf32>
      tpu.vector_store %arg12[%c0_139, %c0_140], %154 {strides = array<i32>} : memref<28x128xf32, #tpu.memory_space<vmem>>, vector<24x128xf32>,
    } else {
    }
    %c0_51 = arith.constant 0 : index
    %c0_52 = arith.constant 0 : index
    %68 = vector.load %arg12[%c0_51, %c0_52] : memref<28x128xf32, #tpu.memory_space<vmem>>, vector<20x128xf32>
    %c0_53 = arith.constant 0 : index
    %c0_54 = arith.constant 0 : index
    %c0_55 = arith.constant 0 : index
    %c0_56 = arith.constant 0 : index
    %69 = vector.load %arg4[%c0_53, %c0_54, %c0_55, %c0_56] : memref<1x5x128x128xf32, #tpu.memory_space<vmem>>, vector<1x1x128x128xf32>
    %70 = vector.shape_cast %69 : vector<1x1x128x128xf32> to vector<128x128xf32>
    %cst_57 = arith.constant dense<0.000000e+00> : vector<20x128xf32>
    %71 = tpu.matmul %68, %70, %cst_57 {dimension_numbers = #tpu.dot_dimension_numbers<[1], [0], [0], [1], [0, 0, 1, 1], [], []>} : vector<20x128xf32>, vector<128x128xf32>, vector<20x128xf32> -> vector<20x128xf32>
    %c1_58 = arith.constant 1 : index
    %c0_59 = arith.constant 0 : index
    %72 = vector.load %arg12[%c1_58, %c0_59] : memref<28x128xf32, #tpu.memory_space<vmem>>, vector<20x128xf32>
    %c0_60 = arith.constant 0 : index
    %c1_61 = arith.constant 1 : index
    %c0_62 = arith.constant 0 : index
    %c0_63 = arith.constant 0 : index
    %73 = vector.load %arg4[%c0_60, %c1_61, %c0_62, %c0_63] : memref<1x5x128x128xf32, #tpu.memory_space<vmem>>, vector<1x1x128x128xf32>
    %74 = vector.shape_cast %73 : vector<1x1x128x128xf32> to vector<128x128xf32>
    %cst_64 = arith.constant dense<0.000000e+00> : vector<20x128xf32>
    %75 = tpu.matmul %72, %74, %cst_64 {dimension_numbers = #tpu.dot_dimension_numbers<[1], [0], [0], [1], [0, 0, 1, 1], [], []>} : vector<20x128xf32>, vector<128x128xf32>, vector<20x128xf32> -> vector<20x128xf32>
    %76 = arith.addf %71, %75 : vector<20x128xf32>
    %c2_65 = arith.constant 2 : index
    %c0_66 = arith.constant 0 : index
    %77 = vector.load %arg12[%c2_65, %c0_66] : memref<28x128xf32, #tpu.memory_space<vmem>>, vector<20x128xf32>
    %c0_67 = arith.constant 0 : index
    %c2_68 = arith.constant 2 : index
    %c0_69 = arith.constant 0 : index
    %c0_70 = arith.constant 0 : index
    %78 = vector.load %arg4[%c0_67, %c2_68, %c0_69, %c0_70] : memref<1x5x128x128xf32, #tpu.memory_space<vmem>>, vector<1x1x128x128xf32>
    %79 = vector.shape_cast %78 : vector<1x1x128x128xf32> to vector<128x128xf32>
    %cst_71 = arith.constant dense<0.000000e+00> : vector<20x128xf32>
    %80 = tpu.matmul %77, %79, %cst_71 {dimension_numbers = #tpu.dot_dimension_numbers<[1], [0], [0], [1], [0, 0, 1, 1], [], []>} : vector<20x128xf32>, vector<128x128xf32>, vector<20x128xf32> -> vector<20x128xf32>
    %81 = arith.addf %76, %80 : vector<20x128xf32>
    %c3_72 = arith.constant 3 : index
    %c0_73 = arith.constant 0 : index
    %82 = vector.load %arg12[%c3_72, %c0_73] : memref<28x128xf32, #tpu.memory_space<vmem>>, vector<20x128xf32>
    %c0_74 = arith.constant 0 : index
    %c3_75 = arith.constant 3 : index
    %c0_76 = arith.constant 0 : index
    %c0_77 = arith.constant 0 : index
    %83 = vector.load %arg4[%c0_74, %c3_75, %c0_76, %c0_77] : memref<1x5x128x128xf32, #tpu.memory_space<vmem>>, vector<1x1x128x128xf32>
    %84 = vector.shape_cast %83 : vector<1x1x128x128xf32> to vector<128x128xf32>
    %cst_78 = arith.constant dense<0.000000e+00> : vector<20x128xf32>
    %85 = tpu.matmul %82, %84, %cst_78 {dimension_numbers = #tpu.dot_dimension_numbers<[1], [0], [0], [1], [0, 0, 1, 1], [], []>} : vector<20x128xf32>, vector<128x128xf32>, vector<20x128xf32> -> vector<20x128xf32>
    %86 = arith.addf %81, %85 : vector<20x128xf32>
    %c4_79 = arith.constant 4 : index
    %c0_80 = arith.constant 0 : index
    %87 = vector.load %arg12[%c4_79, %c0_80] : memref<28x128xf32, #tpu.memory_space<vmem>>, vector<20x128xf32>
    %c0_81 = arith.constant 0 : index
    %c4_82 = arith.constant 4 : index
    %c0_83 = arith.constant 0 : index
    %c0_84 = arith.constant 0 : index
    %88 = vector.load %arg4[%c0_81, %c4_82, %c0_83, %c0_84] : memref<1x5x128x128xf32, #tpu.memory_space<vmem>>, vector<1x1x128x128xf32>
    %89 = vector.shape_cast %88 : vector<1x1x128x128xf32> to vector<128x128xf32>
    %cst_85 = arith.constant dense<0.000000e+00> : vector<20x128xf32>
    %90 = tpu.matmul %87, %89, %cst_85 {dimension_numbers = #tpu.dot_dimension_numbers<[1], [0], [0], [1], [0, 0, 1, 1], [], []>} : vector<20x128xf32>, vector<128x128xf32>, vector<20x128xf32> -> vector<20x128xf32>
    %91 = arith.addf %86, %90 : vector<20x128xf32>
    %c1_86 = arith.constant 1 : index
    %c0_87 = arith.constant 0 : index
    %c0_88 = arith.constant 0 : index
    %92 = vector.load %arg6[%c1_86, %c0_87, %c0_88] : memref<2x1x128xf32, #tpu.memory_space<vmem>>, vector<1x1x128xf32>
    %93 = vector.shape_cast %92 : vector<1x1x128xf32> to vector<1x128xf32>
    %94 = vector.broadcast %93 : vector<1x128xf32> to vector<20x128xf32>
    %95 = arith.addf %91, %94 : vector<20x128xf32>
    %96 = math.sin %95 : vector<20x128xf32>
    %c1_89 = arith.constant 1 : index
    %c0_90 = arith.constant 0 : index
    %c0_91 = arith.constant 0 : index
    %97 = vector.load %arg7[%c1_89, %c0_90, %c0_91] : memref<2x1x128xf32, #tpu.memory_space<vmem>>, vector<1x1x128xf32>
    %98 = vector.shape_cast %97 : vector<1x1x128xf32> to vector<1x128xf32>
    %99 = vector.broadcast %98 : vector<1x128xf32> to vector<20x128xf32>
    %100 = arith.mulf %96, %99 : vector<20x128xf32>
    %c2_92 = arith.constant 2 : index
    %c0_93 = arith.constant 0 : index
    %101 = vector.load %arg12[%c2_92, %c0_93] : memref<28x128xf32, #tpu.memory_space<vmem>>, vector<20x128xf32>
    %102 = arith.addf %100, %101 : vector<20x128xf32>
    %c0_94 = arith.constant 0 : index
    %c0_95 = arith.constant 0 : index
    %103 = vector.load %arg12[%c0_94, %c0_95] : memref<28x128xf32, #tpu.memory_space<vmem>>, vector<20x128xf32>
    tpu.vector_store %arg12[%c0_94, %c0_95], %102 {strides = array<i32>} : memref<28x128xf32, #tpu.memory_space<vmem>>, vector<20x128xf32>,
    %c16_i32_96 = arith.constant 16 : i32
    %104 = arith.muli %arg1, %c16_i32_96 : i32
    %c6_i32_97 = arith.constant 6 : i32
    %105 = arith.subi %104, %c6_i32_97 : i32
    %c4_i32 = arith.constant 4 : i32
    %106 = arith.addi %105, %c4_i32 : i32
    %c0_i32_98 = arith.constant 0 : i32
    %107 = arith.cmpi slt, %106, %c0_i32_98 : i32
    %c20_i32 = arith.constant 20 : i32
    %108 = arith.addi %106, %c20_i32 : i32
    %c16_i32_99 = arith.constant 16 : i32
    %109 = arith.cmpi sgt, %108, %c16_i32_99 : i32
    %110 = arith.ori %107, %109 : i1
    %111 = arith.extui %110 : i1 to i32
    %c0_i32_100 = arith.constant 0 : i32
    %112 = arith.cmpi ne, %111, %c0_i32_100 : i32
    scf.if %112 {
      %143 = vector.extract_strided_slice %24 {offsets = [0, 0], sizes = [20, 1], strides = [1, 1]} : vector<28x1xi32> to vector<20x1xi32>
      %144 = vector.broadcast %106 : i32 to vector<20x1xi32>
      %145 = arith.addi %144, %143 : vector<20x1xi32>
      %c0_i32_136 = arith.constant 0 : i32
      %146 = vector.broadcast %c0_i32_136 : i32 to vector<20x1xi32>
      %147 = arith.cmpi sge, %145, %146 : vector<20x1xi32>
      %c16_i32_137 = arith.constant 16 : i32
      %148 = vector.broadcast %c16_i32_137 : i32 to vector<20x1xi32>
      %149 = arith.cmpi slt, %145, %148 : vector<20x1xi32>
      %150 = arith.andi %147, %149 : vector<20x1xi1>
      %cst_138 = arith.constant 0.000000e+00 : f32
      %151 = vector.shape_cast %150 : vector<20x1xi1> to vector<20x1xi1>
      %152 = vector.broadcast %151 : vector<20x1xi1> to vector<20x128xi1>
      %153 = vector.broadcast %cst_138 : f32 to vector<20x128xf32>
      %154 = arith.select %152, %102, %153 : vector<20x128xi1>, vector<20x128xf32>
      %c0_139 = arith.constant 0 : index
      %c0_140 = arith.constant 0 : index
      %155 = vector.load %arg12[%c0_139, %c0_140] : memref<28x128xf32, #tpu.memory_space<vmem>>, vector<20x128xf32>
      tpu.vector_store %arg12[%c0_139, %c0_140], %154 {strides = array<i32>} : memref<28x128xf32, #tpu.memory_space<vmem>>, vector<20x128xf32>,
    } else {
    }
    %c0_101 = arith.constant 0 : index
    %c0_102 = arith.constant 0 : index
    %113 = vector.load %arg12[%c0_101, %c0_102] : memref<28x128xf32, #tpu.memory_space<vmem>>, vector<16x128xf32>
    %c0_103 = arith.constant 0 : index
    %c0_104 = arith.constant 0 : index
    %c0_105 = arith.constant 0 : index
    %114 = vector.load %arg5[%c0_103, %c0_104, %c0_105] : memref<5x128x128xf32, #tpu.memory_space<vmem>>, vector<1x128x128xf32>
    %115 = vector.shape_cast %114 : vector<1x128x128xf32> to vector<128x128xf32>
    %cst_106 = arith.constant dense<0.000000e+00> : vector<16x128xf32>
    %116 = tpu.matmul %113, %115, %cst_106 {dimension_numbers = #tpu.dot_dimension_numbers<[1], [0], [0], [1], [0, 0, 1, 1], [], []>} : vector<16x128xf32>, vector<128x128xf32>, vector<16x128xf32> -> vector<16x128xf32>
    %c1_107 = arith.constant 1 : index
    %c0_108 = arith.constant 0 : index
    %117 = vector.load %arg12[%c1_107, %c0_108] : memref<28x128xf32, #tpu.memory_space<vmem>>, vector<16x128xf32>
    %c1_109 = arith.constant 1 : index
    %c0_110 = arith.constant 0 : index
    %c0_111 = arith.constant 0 : index
    %118 = vector.load %arg5[%c1_109, %c0_110, %c0_111] : memref<5x128x128xf32, #tpu.memory_space<vmem>>, vector<1x128x128xf32>
    %119 = vector.shape_cast %118 : vector<1x128x128xf32> to vector<128x128xf32>
    %cst_112 = arith.constant dense<0.000000e+00> : vector<16x128xf32>
    %120 = tpu.matmul %117, %119, %cst_112 {dimension_numbers = #tpu.dot_dimension_numbers<[1], [0], [0], [1], [0, 0, 1, 1], [], []>} : vector<16x128xf32>, vector<128x128xf32>, vector<16x128xf32> -> vector<16x128xf32>
    %121 = arith.addf %116, %120 : vector<16x128xf32>
    %c2_113 = arith.constant 2 : index
    %c0_114 = arith.constant 0 : index
    %122 = vector.load %arg12[%c2_113, %c0_114] : memref<28x128xf32, #tpu.memory_space<vmem>>, vector<16x128xf32>
    %c2_115 = arith.constant 2 : index
    %c0_116 = arith.constant 0 : index
    %c0_117 = arith.constant 0 : index
    %123 = vector.load %arg5[%c2_115, %c0_116, %c0_117] : memref<5x128x128xf32, #tpu.memory_space<vmem>>, vector<1x128x128xf32>
    %124 = vector.shape_cast %123 : vector<1x128x128xf32> to vector<128x128xf32>
    %cst_118 = arith.constant dense<0.000000e+00> : vector<16x128xf32>
    %125 = tpu.matmul %122, %124, %cst_118 {dimension_numbers = #tpu.dot_dimension_numbers<[1], [0], [0], [1], [0, 0, 1, 1], [], []>} : vector<16x128xf32>, vector<128x128xf32>, vector<16x128xf32> -> vector<16x128xf32>
    %126 = arith.addf %121, %125 : vector<16x128xf32>
    %c3_119 = arith.constant 3 : index
    %c0_120 = arith.constant 0 : index
    %127 = vector.load %arg12[%c3_119, %c0_120] : memref<28x128xf32, #tpu.memory_space<vmem>>, vector<16x128xf32>
    %c3_121 = arith.constant 3 : index
    %c0_122 = arith.constant 0 : index
    %c0_123 = arith.constant 0 : index
    %128 = vector.load %arg5[%c3_121, %c0_122, %c0_123] : memref<5x128x128xf32, #tpu.memory_space<vmem>>, vector<1x128x128xf32>
    %129 = vector.shape_cast %128 : vector<1x128x128xf32> to vector<128x128xf32>
    %cst_124 = arith.constant dense<0.000000e+00> : vector<16x128xf32>
    %130 = tpu.matmul %127, %129, %cst_124 {dimension_numbers = #tpu.dot_dimension_numbers<[1], [0], [0], [1], [0, 0, 1, 1], [], []>} : vector<16x128xf32>, vector<128x128xf32>, vector<16x128xf32> -> vector<16x128xf32>
    %131 = arith.addf %126, %130 : vector<16x128xf32>
    %c4_125 = arith.constant 4 : index
    %c0_126 = arith.constant 0 : index
    %132 = vector.load %arg12[%c4_125, %c0_126] : memref<28x128xf32, #tpu.memory_space<vmem>>, vector<16x128xf32>
    %c4_127 = arith.constant 4 : index
    %c0_128 = arith.constant 0 : index
    %c0_129 = arith.constant 0 : index
    %133 = vector.load %arg5[%c4_127, %c0_128, %c0_129] : memref<5x128x128xf32, #tpu.memory_space<vmem>>, vector<1x128x128xf32>
    %134 = vector.shape_cast %133 : vector<1x128x128xf32> to vector<128x128xf32>
    %cst_130 = arith.constant dense<0.000000e+00> : vector<16x128xf32>
    %135 = tpu.matmul %132, %134, %cst_130 {dimension_numbers = #tpu.dot_dimension_numbers<[1], [0], [0], [1], [0, 0, 1, 1], [], []>} : vector<16x128xf32>, vector<128x128xf32>, vector<16x128xf32> -> vector<16x128xf32>
    %136 = arith.addf %131, %135 : vector<16x128xf32>
    %c0_131 = arith.constant 0 : index
    %c0_132 = arith.constant 0 : index
    %137 = vector.load %arg8[%c0_131, %c0_132] : memref<1x128xf32, #tpu.memory_space<vmem>>, vector<1x128xf32>
    %138 = vector.broadcast %137 : vector<1x128xf32> to vector<16x128xf32>
    %139 = arith.addf %136, %138 : vector<16x128xf32>
    %c0_133 = arith.constant 0 : index
    %c0_134 = arith.constant 0 : index
    %c0_135 = arith.constant 0 : index
    %140 = vector.load %arg9[%c0_133, %c0_134, %c0_135] : memref<1x16x128xf32, #tpu.memory_space<vmem>>, vector<1x16x128xf32>
    %141 = vector.shape_cast %140 : vector<1x16x128xf32> to vector<16x128xf32>
    %142 = vector.shape_cast %139 : vector<16x128xf32> to vector<1x16x128xf32>
    tpu.vector_store %arg9[%c0_133, %c0_134, %c0_135], %142 {strides = array<i32>} : memref<1x16x128xf32, #tpu.memory_space<vmem>>, vector<1x16x128xf32>,
    return
  }
  func.func @transform_1(%arg0: i32, %arg1: i32) -> (i32, i32, i32) {
    %c0_i32 = arith.constant 0 : i32
    %c0_i32_0 = arith.constant 0 : i32
    %c0_i32_1 = arith.constant 0 : i32
    %c0_i32_2 = arith.constant 0 : i32
    return %c0_i32, %c0_i32_0, %c0_i32_1 : i32, i32, i32
  }
  func.func @transform_2(%arg0: i32, %arg1: i32) -> (i32, i32, i32, i32) {
    %c0_i32 = arith.constant 0 : i32
    %c0_i32_0 = arith.constant 0 : i32
    %c0_i32_1 = arith.constant 0 : i32
    %c0_i32_2 = arith.constant 0 : i32
    %c0_i32_3 = arith.constant 0 : i32
    return %c0_i32, %c0_i32_0, %c0_i32_1, %c0_i32_2 : i32, i32, i32, i32
  }
  func.func @transform_3(%arg0: i32, %arg1: i32) -> (i32, i32, i32) {
    %c0_i32 = arith.constant 0 : i32
    %c0_i32_0 = arith.constant 0 : i32
    %c0_i32_1 = arith.constant 0 : i32
    %c0_i32_2 = arith.constant 0 : i32
    return %c0_i32, %c0_i32_0, %c0_i32_1 : i32, i32, i32
  }
  func.func @transform_4(%arg0: i32, %arg1: i32) -> (i32, i32, i32) {
    %c0_i32 = arith.constant 0 : i32
    %c0_i32_0 = arith.constant 0 : i32
    %c0_i32_1 = arith.constant 0 : i32
    %c0_i32_2 = arith.constant 0 : i32
    return %c0_i32, %c0_i32_0, %c0_i32_1 : i32, i32, i32
  }
  func.func @transform_5(%arg0: i32, %arg1: i32) -> (i32, i32, i32) {
    %c0_i32 = arith.constant 0 : i32
    %c0_i32_0 = arith.constant 0 : i32
    %c0_i32_1 = arith.constant 0 : i32
    %c0_i32_2 = arith.constant 0 : i32
    return %c0_i32, %c0_i32_0, %c0_i32_1 : i32, i32, i32
  }
  func.func @transform_6(%arg0: i32, %arg1: i32) -> (i32, i32) {
    %c0_i32 = arith.constant 0 : i32
    %c0_i32_0 = arith.constant 0 : i32
    %c0_i32_1 = arith.constant 0 : i32
    return %c0_i32, %c0_i32_0 : i32, i32
  }
  func.func @transform_7(%arg0: i32, %arg1: i32) -> (i32, i32, i32) {
    %c0_i32 = arith.constant 0 : i32
    %c0_i32_0 = arith.constant 0 : i32
    return %arg0, %arg1, %c0_i32 : i32, i32, i32
  }
}

module attributes {stable_mosaic.version = 11 : i64} {
  func.func @postnet_fused_kernel(%arg0: i32, %arg1: i32, %arg2: memref<2x28x128xf32, #tpu.memory_space<any>>, %arg3: memref<5x128x128xf32, #tpu.memory_space<vmem>>, %arg4: memref<1x5x128x128xf32, #tpu.memory_space<vmem>>, %arg5: memref<5x128x128xf32, #tpu.memory_space<vmem>>, %arg6: memref<2x1x128xf32, #tpu.memory_space<vmem>>, %arg7: memref<2x1x128xf32, #tpu.memory_space<vmem>>, %arg8: memref<1x128xf32, #tpu.memory_space<vmem>>, %arg9: memref<1x16x128xf32, #tpu.memory_space<vmem>>, %arg10: memref<2x1x28x128xf32, #tpu.memory_space<vmem>>, %arg11: memref<2x!tpu.dma_semaphore, #tpu.memory_space<semaphore_mem>>, %arg12: memref<28x128xf32, #tpu.memory_space<vmem>>) attributes {dimension_semantics = [#tpu.dimension_semantics<parallel>, #tpu.dimension_semantics<arbitrary>], iteration_bounds = array<i64: 2, 1>, scalar_prefetch = 0 : i64, scratch_operands = 3 : i64, tpu.core_type = #tpu.core_type<tc>, window_params = [{}, {pipeline_mode = #tpu.pipeline_mode<synchronous>, transform_indices = @transform_1, window_bounds = array<i64: 5, 128, 128>}, {pipeline_mode = #tpu.pipeline_mode<synchronous>, transform_indices = @transform_2, window_bounds = array<i64: 1, 5, 128, 128>}, {pipeline_mode = #tpu.pipeline_mode<synchronous>, transform_indices = @transform_3, window_bounds = array<i64: 5, 128, 128>}, {pipeline_mode = #tpu.pipeline_mode<synchronous>, transform_indices = @transform_4, window_bounds = array<i64: 2, 1, 128>}, {pipeline_mode = #tpu.pipeline_mode<synchronous>, transform_indices = @transform_5, window_bounds = array<i64: 2, 1, 128>}, {pipeline_mode = #tpu.pipeline_mode<synchronous>, transform_indices = @transform_6, window_bounds = array<i64: 1, 128>}, {transform_indices = @transform_7, window_bounds = array<i64: 1, 16, 128>}]} {
    %c2_i32 = arith.constant 2 : i32
    %c0_i32 = arith.constant 0 : i32
    %0 = arith.cmpi eq, %c2_i32, %c0_i32 : i32
    %c1_i32 = arith.constant 1 : i32
    %1 = arith.select %0, %c1_i32, %c2_i32 : i32
    %2 = arith.remsi %arg1, %1 : i32
    %c0_i32_0 = arith.constant 0 : i32
    %3 = arith.cmpi ne, %2, %c0_i32_0 : i32
    %c0_i32_1 = arith.constant 0 : i32
    %4 = arith.cmpi slt, %2, %c0_i32_1 : i32
    %c0_i32_2 = arith.constant 0 : i32
    %5 = arith.cmpi slt, %1, %c0_i32_2 : i32
    %6 = arith.xori %4, %5 : i1
    %7 = arith.andi %6, %3 : i1
    %8 = arith.addi %2, %1 : i32
    %9 = arith.select %7, %8, %2 : i32
    %c0_i32_3 = arith.constant 0 : i32
    %10 = arith.cmpi eq, %arg1, %c0_i32_3 : i32
    %11 = arith.extui %10 : i1 to i32
    %c0_i32_4 = arith.constant 0 : i32
    %12 = arith.cmpi ne, %11, %c0_i32_4 : i32
    scf.if %12 {
      %c0_i32_136 = arith.constant 0 : i32
      %c0_i32_137 = arith.constant 0 : i32
      %c0_i32_138 = arith.constant 0 : i32
      %c0_i32_139 = arith.constant 0 : i32
      %143 = tpu.memref_slice %arg2[%arg0, %c0_i32_138, %c0_i32_139] : memref<2x28x128xf32, #tpu.memory_space<any>> -> memref<1x28x128xf32, #tpu.memory_space<any>>
      %c0_i32_140 = arith.constant 0 : i32
      %c0_i32_141 = arith.constant 0 : i32
      %c0_i32_142 = arith.constant 0 : i32
      %144 = tpu.memref_slice %arg10[%c0_i32_136, %c0_i32_140, %c0_i32_141, %c0_i32_142] : memref<2x1x28x128xf32, #tpu.memory_space<vmem>> -> memref<1x1x28x128xf32, #tpu.memory_space<vmem>>
      %145 = tpu.memref_squeeze %144 : memref<1x1x28x128xf32, #tpu.memory_space<vmem>> -> memref<1x28x128xf32, #tpu.memory_space<vmem>>
      %146 = tpu.memref_slice %arg11[%c0_i32_137] : memref<2x!tpu.dma_semaphore, #tpu.memory_space<semaphore_mem>> -> memref<1x!tpu.dma_semaphore, #tpu.memory_space<semaphore_mem>>
      %147 = tpu.memref_squeeze %146 : memref<1x!tpu.dma_semaphore, #tpu.memory_space<semaphore_mem>> -> memref<!tpu.dma_semaphore, #tpu.memory_space<semaphore_mem>>
      tpu.enqueue_dma source(%143 : memref<1x28x128xf32, #tpu.memory_space<any>>) target(%145 : memref<1x28x128xf32, #tpu.memory_space<vmem>>) target_semaphore(%147 : memref<!tpu.dma_semaphore, #tpu.memory_space<semaphore_mem>>)
    } else {
    }
    %c16_i32 = arith.constant 16 : i32
    %13 = arith.muli %arg1, %c16_i32 : i32
    %14 = tpu.assume_multiple %13, 8 : i32
    %c0_i32_5 = arith.constant 0 : i32
    %15 = tpu.memref_slice %arg2[%arg0, %14, %c0_i32_5] : memref<2x28x128xf32, #tpu.memory_space<any>> -> memref<1x28x128xf32, #tpu.memory_space<any>>
    %c0_i32_6 = arith.constant 0 : i32
    %c0_i32_7 = arith.constant 0 : i32
    %c0_i32_8 = arith.constant 0 : i32
    %16 = tpu.memref_slice %arg10[%9, %c0_i32_6, %c0_i32_7, %c0_i32_8] : memref<2x1x28x128xf32, #tpu.memory_space<vmem>> -> memref<1x1x28x128xf32, #tpu.memory_space<vmem>>
    %17 = tpu.memref_squeeze %16 : memref<1x1x28x128xf32, #tpu.memory_space<vmem>> -> memref<1x28x128xf32, #tpu.memory_space<vmem>>
    %18 = tpu.memref_slice %arg11[%9] : memref<2x!tpu.dma_semaphore, #tpu.memory_space<semaphore_mem>> -> memref<1x!tpu.dma_semaphore, #tpu.memory_space<semaphore_mem>>
    %19 = tpu.memref_squeeze %18 : memref<1x!tpu.dma_semaphore, #tpu.memory_space<semaphore_mem>> -> memref<!tpu.dma_semaphore, #tpu.memory_space<semaphore_mem>>
    tpu.wait_dma2 semaphore(%19 : memref<!tpu.dma_semaphore, #tpu.memory_space<semaphore_mem>>) src(%15 : memref<1x28x128xf32, #tpu.memory_space<any>>) dst(%17 : memref<1x28x128xf32, #tpu.memory_space<vmem>>)
    %20 = arith.index_cast %9 : i32 to index
    %c0 = arith.constant 0 : index
    %c0_9 = arith.constant 0 : index
    %c0_10 = arith.constant 0 : index
    %21 = vector.load %arg10[%20, %c0, %c0_9, %c0_10] : memref<2x1x28x128xf32, #tpu.memory_space<vmem>>, vector<1x1x28x128xf32>
    %22 = vector.shape_cast %21 : vector<1x1x28x128xf32> to vector<28x128xf32>
    %c0_11 = arith.constant 0 : index
    %c0_12 = arith.constant 0 : index
    %23 = vector.load %arg12[%c0_11, %c0_12] : memref<28x128xf32, #tpu.memory_space<vmem>>, vector<28x128xf32>
    tpu.vector_store %arg12[%c0_11, %c0_12], %22 {strides = array<i32>} : memref<28x128xf32, #tpu.memory_space<vmem>>, vector<28x128xf32>,
    %24 = tpu.iota {dimensions = array<i32: 0>} : vector<28x1xi32>
    %c0_13 = arith.constant 0 : index
    %c0_14 = arith.constant 0 : index
    %25 = vector.load %arg12[%c0_13, %c0_14] : memref<28x128xf32, #tpu.memory_space<vmem>>, vector<24x128xf32>
    %c0_15 = arith.constant 0 : index
    %c0_16 = arith.constant 0 : index
    %c0_17 = arith.constant 0 : index
    %26 = vector.load %arg3[%c0_15, %c0_16, %c0_17] : memref<5x128x128xf32, #tpu.memory_space<vmem>>, vector<1x128x128xf32>
    %27 = vector.shape_cast %26 : vector<1x128x128xf32> to vector<128x128xf32>
    %cst = arith.constant dense<0.000000e+00> : vector<24x128xf32>
    %28 = tpu.matmul %25, %27, %cst {dimension_numbers = #tpu.dot_dimension_numbers<[1], [0], [0], [1], [0, 0, 1, 1], [], []>} : vector<24x128xf32>, vector<128x128xf32>, vector<24x128xf32> -> vector<24x128xf32>
    %c1 = arith.constant 1 : index
    %c0_18 = arith.constant 0 : index
    %29 = vector.load %arg12[%c1, %c0_18] : memref<28x128xf32, #tpu.memory_space<vmem>>, vector<24x128xf32>
    %c1_19 = arith.constant 1 : index
    %c0_20 = arith.constant 0 : index
    %c0_21 = arith.constant 0 : index
    %30 = vector.load %arg3[%c1_19, %c0_20, %c0_21] : memref<5x128x128xf32, #tpu.memory_space<vmem>>, vector<1x128x128xf32>
    %31 = vector.shape_cast %30 : vector<1x128x128xf32> to vector<128x128xf32>
    %cst_22 = arith.constant dense<0.000000e+00> : vector<24x128xf32>
    %32 = tpu.matmul %29, %31, %cst_22 {dimension_numbers = #tpu.dot_dimension_numbers<[1], [0], [0], [1], [0, 0, 1, 1], [], []>} : vector<24x128xf32>, vector<128x128xf32>, vector<24x128xf32> -> vector<24x128xf32>
    %33 = arith.addf %28, %32 : vector<24x128xf32>
    %c2 = arith.constant 2 : index
    %c0_23 = arith.constant 0 : index
    %34 = vector.load %arg12[%c2, %c0_23] : memref<28x128xf32, #tpu.memory_space<vmem>>, vector<24x128xf32>
    %c2_24 = arith.constant 2 : index
    %c0_25 = arith.constant 0 : index
    %c0_26 = arith.constant 0 : index
    %35 = vector.load %arg3[%c2_24, %c0_25, %c0_26] : memref<5x128x128xf32, #tpu.memory_space<vmem>>, vector<1x128x128xf32>
    %36 = vector.shape_cast %35 : vector<1x128x128xf32> to vector<128x128xf32>
    %cst_27 = arith.constant dense<0.000000e+00> : vector<24x128xf32>
    %37 = tpu.matmul %34, %36, %cst_27 {dimension_numbers = #tpu.dot_dimension_numbers<[1], [0], [0], [1], [0, 0, 1, 1], [], []>} : vector<24x128xf32>, vector<128x128xf32>, vector<24x128xf32> -> vector<24x128xf32>
    %38 = arith.addf %33, %37 : vector<24x128xf32>
    %c3 = arith.constant 3 : index
    %c0_28 = arith.constant 0 : index
    %39 = vector.load %arg12[%c3, %c0_28] : memref<28x128xf32, #tpu.memory_space<vmem>>, vector<24x128xf32>
    %c3_29 = arith.constant 3 : index
    %c0_30 = arith.constant 0 : index
    %c0_31 = arith.constant 0 : index
    %40 = vector.load %arg3[%c3_29, %c0_30, %c0_31] : memref<5x128x128xf32, #tpu.memory_space<vmem>>, vector<1x128x128xf32>
    %41 = vector.shape_cast %40 : vector<1x128x128xf32> to vector<128x128xf32>
    %cst_32 = arith.constant dense<0.000000e+00> : vector<24x128xf32>
    %42 = tpu.matmul %39, %41, %cst_32 {dimension_numbers = #tpu.dot_dimension_numbers<[1], [0], [0], [1], [0, 0, 1, 1], [], []>} : vector<24x128xf32>, vector<128x128xf32>, vector<24x128xf32> -> vector<24x128xf32>
    %43 = arith.addf %38, %42 : vector<24x128xf32>
    %c4 = arith.constant 4 : index
    %c0_33 = arith.constant 0 : index
    %44 = vector.load %arg12[%c4, %c0_33] : memref<28x128xf32, #tpu.memory_space<vmem>>, vector<24x128xf32>
    %c4_34 = arith.constant 4 : index
    %c0_35 = arith.constant 0 : index
    %c0_36 = arith.constant 0 : index
    %45 = vector.load %arg3[%c4_34, %c0_35, %c0_36] : memref<5x128x128xf32, #tpu.memory_space<vmem>>, vector<1x128x128xf32>
    %46 = vector.shape_cast %45 : vector<1x128x128xf32> to vector<128x128xf32>
    %cst_37 = arith.constant dense<0.000000e+00> : vector<24x128xf32>
    %47 = tpu.matmul %44, %46, %cst_37 {dimension_numbers = #tpu.dot_dimension_numbers<[1], [0], [0], [1], [0, 0, 1, 1], [], []>} : vector<24x128xf32>, vector<128x128xf32>, vector<24x128xf32> -> vector<24x128xf32>
    %48 = arith.addf %43, %47 : vector<24x128xf32>
    %c0_38 = arith.constant 0 : index
    %c0_39 = arith.constant 0 : index
    %c0_40 = arith.constant 0 : index
    %49 = vector.load %arg6[%c0_38, %c0_39, %c0_40] : memref<2x1x128xf32, #tpu.memory_space<vmem>>, vector<1x1x128xf32>
    %50 = vector.shape_cast %49 : vector<1x1x128xf32> to vector<1x128xf32>
    %51 = vector.broadcast %50 : vector<1x128xf32> to vector<24x128xf32>
    %52 = arith.addf %48, %51 : vector<24x128xf32>
    %53 = math.sin %52 : vector<24x128xf32>
    %c0_41 = arith.constant 0 : index
    %c0_42 = arith.constant 0 : index
    %c0_43 = arith.constant 0 : index
    %54 = vector.load %arg7[%c0_41, %c0_42, %c0_43] : memref<2x1x128xf32, #tpu.memory_space<vmem>>, vector<1x1x128xf32>
    %55 = vector.shape_cast %54 : vector<1x1x128xf32> to vector<1x128xf32>
    %56 = vector.broadcast %55 : vector<1x128xf32> to vector<24x128xf32>
    %57 = arith.mulf %53, %56 : vector<24x128xf32>
    %c0_44 = arith.constant 0 : index
    %c0_45 = arith.constant 0 : index
    %58 = vector.load %arg12[%c0_44, %c0_45] : memref<28x128xf32, #tpu.memory_space<vmem>>, vector<24x128xf32>
    tpu.vector_store %arg12[%c0_44, %c0_45], %57 {strides = array<i32>} : memref<28x128xf32, #tpu.memory_space<vmem>>, vector<24x128xf32>,
    %c16_i32_46 = arith.constant 16 : i32
    %59 = arith.muli %arg1, %c16_i32_46 : i32
    %c6_i32 = arith.constant 6 : i32
    %60 = arith.subi %59, %c6_i32 : i32
    %c2_i32_47 = arith.constant 2 : i32
    %61 = arith.addi %60, %c2_i32_47 : i32
    %c0_i32_48 = arith.constant 0 : i32
    %62 = arith.cmpi slt, %61, %c0_i32_48 : i32
    %c24_i32 = arith.constant 24 : i32
    %63 = arith.addi %61, %c24_i32 : i32
    %c16_i32_49 = arith.constant 16 : i32
    %64 = arith.cmpi sgt, %63, %c16_i32_49 : i32
    %65 = arith.ori %62, %64 : i1
    %66 = arith.extui %65 : i1 to i32
    %c0_i32_50 = arith.constant 0 : i32
    %67 = arith.cmpi ne, %66, %c0_i32_50 : i32
    scf.if %67 {
      %143 = vector.extract_strided_slice %24 {offsets = [0, 0], sizes = [24, 1], strides = [1, 1]} : vector<28x1xi32> to vector<24x1xi32>
      %144 = vector.broadcast %61 : i32 to vector<24x1xi32>
      %145 = arith.addi %144, %143 : vector<24x1xi32>
      %c0_i32_136 = arith.constant 0 : i32
      %146 = vector.broadcast %c0_i32_136 : i32 to vector<24x1xi32>
      %147 = arith.cmpi sge, %145, %146 : vector<24x1xi32>
      %c16_i32_137 = arith.constant 16 : i32
      %148 = vector.broadcast %c16_i32_137 : i32 to vector<24x1xi32>
      %149 = arith.cmpi slt, %145, %148 : vector<24x1xi32>
      %150 = arith.andi %147, %149 : vector<24x1xi1>
      %cst_138 = arith.constant 0.000000e+00 : f32
      %151 = vector.shape_cast %150 : vector<24x1xi1> to vector<24x1xi1>
      %152 = vector.broadcast %151 : vector<24x1xi1> to vector<24x128xi1>
      %153 = vector.broadcast %cst_138 : f32 to vector<24x128xf32>
      %154 = arith.select %152, %57, %153 : vector<24x128xi1>, vector<24x128xf32>
      %c0_139 = arith.constant 0 : index
      %c0_140 = arith.constant 0 : index
      %155 = vector.load %arg12[%c0_139, %c0_140] : memref<28x128xf32, #tpu.memory_space<vmem>>, vector<24x128xf32>
      tpu.vector_store %arg12[%c0_139, %c0_140], %154 {strides = array<i32>} : memref<28x128xf32, #tpu.memory_space<vmem>>, vector<24x128xf32>,
    } else {
    }
    %c0_51 = arith.constant 0 : index
    %c0_52 = arith.constant 0 : index
    %68 = vector.load %arg12[%c0_51, %c0_52] : memref<28x128xf32, #tpu.memory_space<vmem>>, vector<20x128xf32>
    %c0_53 = arith.constant 0 : index
    %c0_54 = arith.constant 0 : index
    %c0_55 = arith.constant 0 : index
    %c0_56 = arith.constant 0 : index
    %69 = vector.load %arg4[%c0_53, %c0_54, %c0_55, %c0_56] : memref<1x5x128x128xf32, #tpu.memory_space<vmem>>, vector<1x1x128x128xf32>
    %70 = vector.shape_cast %69 : vector<1x1x128x128xf32> to vector<128x128xf32>
    %cst_57 = arith.constant dense<0.000000e+00> : vector<20x128xf32>
    %71 = tpu.matmul %68, %70, %cst_57 {dimension_numbers = #tpu.dot_dimension_numbers<[1], [0], [0], [1], [0, 0, 1, 1], [], []>} : vector<20x128xf32>, vector<128x128xf32>, vector<20x128xf32> -> vector<20x128xf32>
    %c1_58 = arith.constant 1 : index
    %c0_59 = arith.constant 0 : index
    %72 = vector.load %arg12[%c1_58, %c0_59] : memref<28x128xf32, #tpu.memory_space<vmem>>, vector<20x128xf32>
    %c0_60 = arith.constant 0 : index
    %c1_61 = arith.constant 1 : index
    %c0_62 = arith.constant 0 : index
    %c0_63 = arith.constant 0 : index
    %73 = vector.load %arg4[%c0_60, %c1_61, %c0_62, %c0_63] : memref<1x5x128x128xf32, #tpu.memory_space<vmem>>, vector<1x1x128x128xf32>
    %74 = vector.shape_cast %73 : vector<1x1x128x128xf32> to vector<128x128xf32>
    %cst_64 = arith.constant dense<0.000000e+00> : vector<20x128xf32>
    %75 = tpu.matmul %72, %74, %cst_64 {dimension_numbers = #tpu.dot_dimension_numbers<[1], [0], [0], [1], [0, 0, 1, 1], [], []>} : vector<20x128xf32>, vector<128x128xf32>, vector<20x128xf32> -> vector<20x128xf32>
    %76 = arith.addf %71, %75 : vector<20x128xf32>
    %c2_65 = arith.constant 2 : index
    %c0_66 = arith.constant 0 : index
    %77 = vector.load %arg12[%c2_65, %c0_66] : memref<28x128xf32, #tpu.memory_space<vmem>>, vector<20x128xf32>
    %c0_67 = arith.constant 0 : index
    %c2_68 = arith.constant 2 : index
    %c0_69 = arith.constant 0 : index
    %c0_70 = arith.constant 0 : index
    %78 = vector.load %arg4[%c0_67, %c2_68, %c0_69, %c0_70] : memref<1x5x128x128xf32, #tpu.memory_space<vmem>>, vector<1x1x128x128xf32>
    %79 = vector.shape_cast %78 : vector<1x1x128x128xf32> to vector<128x128xf32>
    %cst_71 = arith.constant dense<0.000000e+00> : vector<20x128xf32>
    %80 = tpu.matmul %77, %79, %cst_71 {dimension_numbers = #tpu.dot_dimension_numbers<[1], [0], [0], [1], [0, 0, 1, 1], [], []>} : vector<20x128xf32>, vector<128x128xf32>, vector<20x128xf32> -> vector<20x128xf32>
    %81 = arith.addf %76, %80 : vector<20x128xf32>
    %c3_72 = arith.constant 3 : index
    %c0_73 = arith.constant 0 : index
    %82 = vector.load %arg12[%c3_72, %c0_73] : memref<28x128xf32, #tpu.memory_space<vmem>>, vector<20x128xf32>
    %c0_74 = arith.constant 0 : index
    %c3_75 = arith.constant 3 : index
    %c0_76 = arith.constant 0 : index
    %c0_77 = arith.constant 0 : index
    %83 = vector.load %arg4[%c0_74, %c3_75, %c0_76, %c0_77] : memref<1x5x128x128xf32, #tpu.memory_space<vmem>>, vector<1x1x128x128xf32>
    %84 = vector.shape_cast %83 : vector<1x1x128x128xf32> to vector<128x128xf32>
    %cst_78 = arith.constant dense<0.000000e+00> : vector<20x128xf32>
    %85 = tpu.matmul %82, %84, %cst_78 {dimension_numbers = #tpu.dot_dimension_numbers<[1], [0], [0], [1], [0, 0, 1, 1], [], []>} : vector<20x128xf32>, vector<128x128xf32>, vector<20x128xf32> -> vector<20x128xf32>
    %86 = arith.addf %81, %85 : vector<20x128xf32>
    %c4_79 = arith.constant 4 : index
    %c0_80 = arith.constant 0 : index
    %87 = vector.load %arg12[%c4_79, %c0_80] : memref<28x128xf32, #tpu.memory_space<vmem>>, vector<20x128xf32>
    %c0_81 = arith.constant 0 : index
    %c4_82 = arith.constant 4 : index
    %c0_83 = arith.constant 0 : index
    %c0_84 = arith.constant 0 : index
    %88 = vector.load %arg4[%c0_81, %c4_82, %c0_83, %c0_84] : memref<1x5x128x128xf32, #tpu.memory_space<vmem>>, vector<1x1x128x128xf32>
    %89 = vector.shape_cast %88 : vector<1x1x128x128xf32> to vector<128x128xf32>
    %cst_85 = arith.constant dense<0.000000e+00> : vector<20x128xf32>
    %90 = tpu.matmul %87, %89, %cst_85 {dimension_numbers = #tpu.dot_dimension_numbers<[1], [0], [0], [1], [0, 0, 1, 1], [], []>} : vector<20x128xf32>, vector<128x128xf32>, vector<20x128xf32> -> vector<20x128xf32>
    %91 = arith.addf %86, %90 : vector<20x128xf32>
    %c1_86 = arith.constant 1 : index
    %c0_87 = arith.constant 0 : index
    %c0_88 = arith.constant 0 : index
    %92 = vector.load %arg6[%c1_86, %c0_87, %c0_88] : memref<2x1x128xf32, #tpu.memory_space<vmem>>, vector<1x1x128xf32>
    %93 = vector.shape_cast %92 : vector<1x1x128xf32> to vector<1x128xf32>
    %94 = vector.broadcast %93 : vector<1x128xf32> to vector<20x128xf32>
    %95 = arith.addf %91, %94 : vector<20x128xf32>
    %96 = math.sin %95 : vector<20x128xf32>
    %c1_89 = arith.constant 1 : index
    %c0_90 = arith.constant 0 : index
    %c0_91 = arith.constant 0 : index
    %97 = vector.load %arg7[%c1_89, %c0_90, %c0_91] : memref<2x1x128xf32, #tpu.memory_space<vmem>>, vector<1x1x128xf32>
    %98 = vector.shape_cast %97 : vector<1x1x128xf32> to vector<1x128xf32>
    %99 = vector.broadcast %98 : vector<1x128xf32> to vector<20x128xf32>
    %100 = arith.mulf %96, %99 : vector<20x128xf32>
    %c2_92 = arith.constant 2 : index
    %c0_93 = arith.constant 0 : index
    %101 = vector.load %arg12[%c2_92, %c0_93] : memref<28x128xf32, #tpu.memory_space<vmem>>, vector<20x128xf32>
    %102 = arith.addf %100, %101 : vector<20x128xf32>
    %c0_94 = arith.constant 0 : index
    %c0_95 = arith.constant 0 : index
    %103 = vector.load %arg12[%c0_94, %c0_95] : memref<28x128xf32, #tpu.memory_space<vmem>>, vector<20x128xf32>
    tpu.vector_store %arg12[%c0_94, %c0_95], %102 {strides = array<i32>} : memref<28x128xf32, #tpu.memory_space<vmem>>, vector<20x128xf32>,
    %c16_i32_96 = arith.constant 16 : i32
    %104 = arith.muli %arg1, %c16_i32_96 : i32
    %c6_i32_97 = arith.constant 6 : i32
    %105 = arith.subi %104, %c6_i32_97 : i32
    %c4_i32 = arith.constant 4 : i32
    %106 = arith.addi %105, %c4_i32 : i32
    %c0_i32_98 = arith.constant 0 : i32
    %107 = arith.cmpi slt, %106, %c0_i32_98 : i32
    %c20_i32 = arith.constant 20 : i32
    %108 = arith.addi %106, %c20_i32 : i32
    %c16_i32_99 = arith.constant 16 : i32
    %109 = arith.cmpi sgt, %108, %c16_i32_99 : i32
    %110 = arith.ori %107, %109 : i1
    %111 = arith.extui %110 : i1 to i32
    %c0_i32_100 = arith.constant 0 : i32
    %112 = arith.cmpi ne, %111, %c0_i32_100 : i32
    scf.if %112 {
      %143 = vector.extract_strided_slice %24 {offsets = [0, 0], sizes = [20, 1], strides = [1, 1]} : vector<28x1xi32> to vector<20x1xi32>
      %144 = vector.broadcast %106 : i32 to vector<20x1xi32>
      %145 = arith.addi %144, %143 : vector<20x1xi32>
      %c0_i32_136 = arith.constant 0 : i32
      %146 = vector.broadcast %c0_i32_136 : i32 to vector<20x1xi32>
      %147 = arith.cmpi sge, %145, %146 : vector<20x1xi32>
      %c16_i32_137 = arith.constant 16 : i32
      %148 = vector.broadcast %c16_i32_137 : i32 to vector<20x1xi32>
      %149 = arith.cmpi slt, %145, %148 : vector<20x1xi32>
      %150 = arith.andi %147, %149 : vector<20x1xi1>
      %cst_138 = arith.constant 0.000000e+00 : f32
      %151 = vector.shape_cast %150 : vector<20x1xi1> to vector<20x1xi1>
      %152 = vector.broadcast %151 : vector<20x1xi1> to vector<20x128xi1>
      %153 = vector.broadcast %cst_138 : f32 to vector<20x128xf32>
      %154 = arith.select %152, %102, %153 : vector<20x128xi1>, vector<20x128xf32>
      %c0_139 = arith.constant 0 : index
      %c0_140 = arith.constant 0 : index
      %155 = vector.load %arg12[%c0_139, %c0_140] : memref<28x128xf32, #tpu.memory_space<vmem>>, vector<20x128xf32>
      tpu.vector_store %arg12[%c0_139, %c0_140], %154 {strides = array<i32>} : memref<28x128xf32, #tpu.memory_space<vmem>>, vector<20x128xf32>,
    } else {
    }
    %c0_101 = arith.constant 0 : index
    %c0_102 = arith.constant 0 : index
    %113 = vector.load %arg12[%c0_101, %c0_102] : memref<28x128xf32, #tpu.memory_space<vmem>>, vector<16x128xf32>
    %c0_103 = arith.constant 0 : index
    %c0_104 = arith.constant 0 : index
    %c0_105 = arith.constant 0 : index
    %114 = vector.load %arg5[%c0_103, %c0_104, %c0_105] : memref<5x128x128xf32, #tpu.memory_space<vmem>>, vector<1x128x128xf32>
    %115 = vector.shape_cast %114 : vector<1x128x128xf32> to vector<128x128xf32>
    %cst_106 = arith.constant dense<0.000000e+00> : vector<16x128xf32>
    %116 = tpu.matmul %113, %115, %cst_106 {dimension_numbers = #tpu.dot_dimension_numbers<[1], [0], [0], [1], [0, 0, 1, 1], [], []>} : vector<16x128xf32>, vector<128x128xf32>, vector<16x128xf32> -> vector<16x128xf32>
    %c1_107 = arith.constant 1 : index
    %c0_108 = arith.constant 0 : index
    %117 = vector.load %arg12[%c1_107, %c0_108] : memref<28x128xf32, #tpu.memory_space<vmem>>, vector<16x128xf32>
    %c1_109 = arith.constant 1 : index
    %c0_110 = arith.constant 0 : index
    %c0_111 = arith.constant 0 : index
    %118 = vector.load %arg5[%c1_109, %c0_110, %c0_111] : memref<5x128x128xf32, #tpu.memory_space<vmem>>, vector<1x128x128xf32>
    %119 = vector.shape_cast %118 : vector<1x128x128xf32> to vector<128x128xf32>
    %cst_112 = arith.constant dense<0.000000e+00> : vector<16x128xf32>
    %120 = tpu.matmul %117, %119, %cst_112 {dimension_numbers = #tpu.dot_dimension_numbers<[1], [0], [0], [1], [0, 0, 1, 1], [], []>} : vector<16x128xf32>, vector<128x128xf32>, vector<16x128xf32> -> vector<16x128xf32>
    %121 = arith.addf %116, %120 : vector<16x128xf32>
    %c2_113 = arith.constant 2 : index
    %c0_114 = arith.constant 0 : index
    %122 = vector.load %arg12[%c2_113, %c0_114] : memref<28x128xf32, #tpu.memory_space<vmem>>, vector<16x128xf32>
    %c2_115 = arith.constant 2 : index
    %c0_116 = arith.constant 0 : index
    %c0_117 = arith.constant 0 : index
    %123 = vector.load %arg5[%c2_115, %c0_116, %c0_117] : memref<5x128x128xf32, #tpu.memory_space<vmem>>, vector<1x128x128xf32>
    %124 = vector.shape_cast %123 : vector<1x128x128xf32> to vector<128x128xf32>
    %cst_118 = arith.constant dense<0.000000e+00> : vector<16x128xf32>
    %125 = tpu.matmul %122, %124, %cst_118 {dimension_numbers = #tpu.dot_dimension_numbers<[1], [0], [0], [1], [0, 0, 1, 1], [], []>} : vector<16x128xf32>, vector<128x128xf32>, vector<16x128xf32> -> vector<16x128xf32>
    %126 = arith.addf %121, %125 : vector<16x128xf32>
    %c3_119 = arith.constant 3 : index
    %c0_120 = arith.constant 0 : index
    %127 = vector.load %arg12[%c3_119, %c0_120] : memref<28x128xf32, #tpu.memory_space<vmem>>, vector<16x128xf32>
    %c3_121 = arith.constant 3 : index
    %c0_122 = arith.constant 0 : index
    %c0_123 = arith.constant 0 : index
    %128 = vector.load %arg5[%c3_121, %c0_122, %c0_123] : memref<5x128x128xf32, #tpu.memory_space<vmem>>, vector<1x128x128xf32>
    %129 = vector.shape_cast %128 : vector<1x128x128xf32> to vector<128x128xf32>
    %cst_124 = arith.constant dense<0.000000e+00> : vector<16x128xf32>
    %130 = tpu.matmul %127, %129, %cst_124 {dimension_numbers = #tpu.dot_dimension_numbers<[1], [0], [0], [1], [0, 0, 1, 1], [], []>} : vector<16x128xf32>, vector<128x128xf32>, vector<16x128xf32> -> vector<16x128xf32>
    %131 = arith.addf %126, %130 : vector<16x128xf32>
    %c4_125 = arith.constant 4 : index
    %c0_126 = arith.constant 0 : index
    %132 = vector.load %arg12[%c4_125, %c0_126] : memref<28x128xf32, #tpu.memory_space<vmem>>, vector<16x128xf32>
    %c4_127 = arith.constant 4 : index
    %c0_128 = arith.constant 0 : index
    %c0_129 = arith.constant 0 : index
    %133 = vector.load %arg5[%c4_127, %c0_128, %c0_129] : memref<5x128x128xf32, #tpu.memory_space<vmem>>, vector<1x128x128xf32>
    %134 = vector.shape_cast %133 : vector<1x128x128xf32> to vector<128x128xf32>
    %cst_130 = arith.constant dense<0.000000e+00> : vector<16x128xf32>
    %135 = tpu.matmul %132, %134, %cst_130 {dimension_numbers = #tpu.dot_dimension_numbers<[1], [0], [0], [1], [0, 0, 1, 1], [], []>} : vector<16x128xf32>, vector<128x128xf32>, vector<16x128xf32> -> vector<16x128xf32>
    %136 = arith.addf %131, %135 : vector<16x128xf32>
    %c0_131 = arith.constant 0 : index
    %c0_132 = arith.constant 0 : index
    %137 = vector.load %arg8[%c0_131, %c0_132] : memref<1x128xf32, #tpu.memory_space<vmem>>, vector<1x128xf32>
    %138 = vector.broadcast %137 : vector<1x128xf32> to vector<16x128xf32>
    %139 = arith.addf %136, %138 : vector<16x128xf32>
    %c0_133 = arith.constant 0 : index
    %c0_134 = arith.constant 0 : index
    %c0_135 = arith.constant 0 : index
    %140 = vector.load %arg9[%c0_133, %c0_134, %c0_135] : memref<1x16x128xf32, #tpu.memory_space<vmem>>, vector<1x16x128xf32>
    %141 = vector.shape_cast %140 : vector<1x16x128xf32> to vector<16x128xf32>
    %142 = vector.shape_cast %139 : vector<16x128xf32> to vector<1x16x128xf32>
    tpu.vector_store %arg9[%c0_133, %c0_134, %c0_135], %142 {strides = array<i32>} : memref<1x16x128xf32, #tpu.memory_space<vmem>>, vector<1x16x128xf32>,
    return
  }
  func.func @transform_1(%arg0: i32, %arg1: i32) -> (i32, i32, i32) {
    %c0_i32 = arith.constant 0 : i32
    %c0_i32_0 = arith.constant 0 : i32
    %c0_i32_1 = arith.constant 0 : i32
    %c0_i32_2 = arith.constant 0 : i32
    return %c0_i32, %c0_i32_0, %c0_i32_1 : i32, i32, i32
  }
  func.func @transform_2(%arg0: i32, %arg1: i32) -> (i32, i32, i32, i32) {
    %c0_i32 = arith.constant 0 : i32
    %c0_i32_0 = arith.constant 0 : i32
    %c0_i32_1 = arith.constant 0 : i32
    %c0_i32_2 = arith.constant 0 : i32
    %c0_i32_3 = arith.constant 0 : i32
    return %c0_i32, %c0_i32_0, %c0_i32_1, %c0_i32_2 : i32, i32, i32, i32
  }
  func.func @transform_3(%arg0: i32, %arg1: i32) -> (i32, i32, i32) {
    %c0_i32 = arith.constant 0 : i32
    %c0_i32_0 = arith.constant 0 : i32
    %c0_i32_1 = arith.constant 0 : i32
    %c0_i32_2 = arith.constant 0 : i32
    return %c0_i32, %c0_i32_0, %c0_i32_1 : i32, i32, i32
  }
  func.func @transform_4(%arg0: i32, %arg1: i32) -> (i32, i32, i32) {
    %c0_i32 = arith.constant 0 : i32
    %c0_i32_0 = arith.constant 0 : i32
    %c0_i32_1 = arith.constant 0 : i32
    %c0_i32_2 = arith.constant 0 : i32
    return %c0_i32, %c0_i32_0, %c0_i32_1 : i32, i32, i32
  }
  func.func @transform_5(%arg0: i32, %arg1: i32) -> (i32, i32, i32) {
    %c0_i32 = arith.constant 0 : i32
    %c0_i32_0 = arith.constant 0 : i32
    %c0_i32_1 = arith.constant 0 : i32
    %c0_i32_2 = arith.constant 0 : i32
    return %c0_i32, %c0_i32_0, %c0_i32_1 : i32, i32, i32
  }
  func.func @transform_6(%arg0: i32, %arg1: i32) -> (i32, i32) {
    %c0_i32 = arith.constant 0 : i32
    %c0_i32_0 = arith.constant 0 : i32
    %c0_i32_1 = arith.constant 0 : i32
    return %c0_i32, %c0_i32_0 : i32, i32
  }
  func.func @transform_7(%arg0: i32, %arg1: i32) -> (i32, i32, i32) {
    %c0_i32 = arith.constant 0 : i32
    %c0_i32_0 = arith.constant 0 : i32
    return %arg0, %arg1, %c0_i32 : i32, i32, i32
  }
}

</mosaic_0001>

<llo_original>
// kernel: tpu_custom_call.1
$region0: #{tpu_custom_call.1}
  #allocation0 [shape = 'u32[]', space=smem, size = 0x4, offset = 0x4, fixed_abs, tag = 'smem constant byte address 0x4 - core index']
  #allocation1 [shape = 'u32[144,128]{1,0:T(1,128)}', space=vmem, size = 0x12000, scoped, tag = 'internal scratch']
  #allocation2 [shape = 'f32[2,1,28,128]{3,2,1,0:T(8,128)}', space=vmem, size = 0x8000, scoped, tag = 'scratch operand']
  #allocation3 [shape = 's32[2]{0}', space=sflag, size = 0x8, scoped, tag = 'scratch operand']
  #allocation4 [shape = 'f32[28,128]{1,0:T(8,128)}', space=vmem, size = 0x4000, scoped, tag = 'scratch operand']
  #allocation12 [shape = 's32[]', space=sflag, size = 0x4, offset = 0, fixed_abs, tag = 'sflag constant byte address 0x0 - dummy sync flag']
  %s0 = inlined_call_operand.vmem [shape: f32[2,28,128], index: 0, kind: input, shape index: {}]
  %s1 = inlined_call_operand.hbm [shape: f32[5,128,128], index: 1, kind: input, shape index: {}]
  %s2 = inlined_call_operand.hbm [shape: f32[1,5,128,128], index: 2, kind: input, shape index: {}]
  %s3 = inlined_call_operand.hbm [shape: f32[5,128,128], index: 3, kind: input, shape index: {}]
  %s4 = inlined_call_operand.vmem [shape: f32[2,1,128], index: 4, kind: input, shape index: {}]
  %s5 = inlined_call_operand.vmem [shape: f32[2,1,128], index: 5, kind: input, shape index: {}]
  %s6 = inlined_call_operand.vmem [shape: f32[1,128], index: 6, kind: input, shape index: {}]
  %s7 = inlined_call_operand.hbm [shape: f32[2,16,128], index: 7, kind: output, shape index: {}]
  %s8 = sld [smem:[#allocation0]]
  $region118: #{tpu_custom_call.1} parent=0
    _
  %s10 = ssub.s32 1, %s8
  %s11 = scalar_select 0, %s10, %s8
  $region1: #{tpu_custom_call.1} parent=0
    #allocation5 [shape = 'u8[327680]{0}', space=vmem, size = 0x50000, scoped, tag = 'input window, operand 1, single buffered']
    #allocation6 [shape = 's32[2]{0}', space=sflag, size = 0x8, scoped, tag = 'scoped memory for tpu_custom_call.1']
    #allocation7 [shape = 's32[2]{0}', space=sflag, size = 0x8, scoped, tag = 'scoped memory for tpu_custom_call.1']
    #allocation8 [shape = 'u8[327680]{0}', space=vmem, size = 0x50000, scoped, tag = 'input window, operand 2, single buffered']
    #allocation9 [shape = 's32[1]{0}', space=sflag, size = 0x4, scoped, tag = 'scoped memory for tpu_custom_call.1']
    #allocation10 [shape = 'u8[327680]{0}', space=vmem, size = 0x50000, scoped, tag = 'input window, operand 3, single buffered']
    #allocation11 [shape = 'u8[16384]{0}', space=vmem, size = 0x4000, scoped, tag = 'output window, operand 0']
    %12 = vsyncpa [#allocation6], 0
    %13 = vsyncpa [#allocation9], 0
    %14 = vsyncpa [#allocation7], 0
    %s15 = scalar_lea.sflag [#allocation7], 1
    %16 = vsyncpa %s15, 0
    loop: start=0, step=1, limit=4
    $region2: #{tpu_custom_call.1} parent=1 // loop_pre_header
      _
    $region3: #{tpu_custom_call.1} parent=1 // loop_header
      %s18 = sphi 0, %s22
      %p19 = scmp.ge.s32.totalorder %s18, 4
      %s25 = sphi 0, %s37
      %s26 = sphi 0, %s33
      %s27 = sphi 0, %s25
      %s28 = sphi 0, %s26
      %s29 = sphi 0, %s27
      %s30 = sphi 0, %s28
      %s38 = sphi 0, %s38
      %s40 = sphi 0, %s38
      %s41 = sphi 0, %s40
      %s55 = sphi 0, %s41
      %s59 = sphi 0, %s59
      %s61 = sphi 0, %s59
      %s62 = sphi 0, %s61
      %s76 = sphi 0, %s62
      %s80 = sphi 0, %s80
      %s82 = sphi 0, %s80
      %s83 = sphi 0, %s82
      %s97 = sphi 0, %s83
      %s101 = sphi 0, %s101
      %s103 = sphi 0, %s101
      %s104 = sphi 0, %s103
      %s118 = sphi 0, %s104
      %s122 = sphi 0, %s122
      %s124 = sphi 0, %s122
      %s125 = sphi 0, %s124
      %s139 = sphi 0, %s125
      %s143 = sphi 0, %s143
      %s145 = sphi 0, %s143
      %s146 = sphi 0, %s145
      %s160 = sphi 0, %s146
      %s168 = sphi 0, %s170
      %s171 = sphi 0, %s168
      %s172 = sphi 0, %s171
      %s188 = sphi 0, %s172
    $region4: #{tpu_custom_call.1} parent=1 // loop_header_branch
      %21 = sbr.rel (%p19) target = $region8
    $region5: #{tpu_custom_call.1} parent=1 // loop_body
      %s23 = ssub.s32 %s18, 1
      %s24 = ssub.s32 %s18, 2
      %s31 = sadd.s32 1, %s26
      %p32 = scmp.ge.s32.totalorder %s31, 1
      %s33 = scalar_select %p32, 0, %s31
      %s34 = sadd.s32 1, %s25
      %s35 = scalar_select %p32, %s34, %s25
      %p36 = scmp.ge.s32.totalorder %s35, 2
      %s37 = scalar_select %p36, 0, %s35
      %s39 = sadd.s32 %s38, 1
      %p42 = scmp.eq.s32.totalorder %s18, 1
      %p43 = scmp.ne.s32.totalorder %s38, %s40
      %p44 = scmp.eq.s32.totalorder %s18, 0
      %p45 = por %p43, %p44
      %p46 = scmp.ne.s32.totalorder %s38, %s40
      %p47 = scmp.eq.s32.totalorder %s23, 1
      %p48 = por %p46, %p47
      %p49 = scmp.ne.s32.totalorder %s40, %s41
      %p50 = scmp.eq.s32.totalorder %s23, 0
      %p51 = por %p49, %p50
      %p52 = scmp.ne.s32.totalorder %s40, %s41
      %p53 = scmp.eq.s32.totalorder %s24, 1
      %p54 = por %p52, %p53
      %p56 = scmp.ne.s32.totalorder %s41, %s55
      %p57 = scmp.eq.s32.totalorder %s24, 0
      %p58 = por %p56, %p57
      %s60 = sadd.s32 %s59, 1
      %p63 = scmp.eq.s32.totalorder %s18, 1
      %p64 = scmp.ne.s32.totalorder %s59, %s61
      %p65 = scmp.eq.s32.totalorder %s18, 0
      %p66 = por %p64, %p65
      %p67 = scmp.ne.s32.totalorder %s59, %s61
      %p68 = scmp.eq.s32.totalorder %s23, 1
      %p69 = por %p67, %p68
      %p70 = scmp.ne.s32.totalorder %s61, %s62
      %p71 = scmp.eq.s32.totalorder %s23, 0
      %p72 = por %p70, %p71
      %p73 = scmp.ne.s32.totalorder %s61, %s62
      %p74 = scmp.eq.s32.totalorder %s24, 1
      %p75 = por %p73, %p74
      %p77 = scmp.ne.s32.totalorder %s62, %s76
      %p78 = scmp.eq.s32.totalorder %s24, 0
      %p79 = por %p77, %p78
      %s81 = sadd.s32 %s80, 1
      %p84 = scmp.eq.s32.totalorder %s18, 1
      %p85 = scmp.ne.s32.totalorder %s80, %s82
      %p86 = scmp.eq.s32.totalorder %s18, 0
      %p87 = por %p85, %p86
      %p88 = scmp.ne.s32.totalorder %s80, %s82
      %p89 = scmp.eq.s32.totalorder %s23, 1
      %p90 = por %p88, %p89
      %p91 = scmp.ne.s32.totalorder %s82, %s83
      %p92 = scmp.eq.s32.totalorder %s23, 0
      %p93 = por %p91, %p92
      %p94 = scmp.ne.s32.totalorder %s82, %s83
      %p95 = scmp.eq.s32.totalorder %s24, 1
      %p96 = por %p94, %p95
      %p98 = scmp.ne.s32.totalorder %s83, %s97
      %p99 = scmp.eq.s32.totalorder %s24, 0
      %p100 = por %p98, %p99
      %s102 = sadd.s32 %s101, 1
      %p105 = scmp.eq.s32.totalorder %s18, 1
      %p106 = scmp.ne.s32.totalorder %s101, %s103
      %p107 = scmp.eq.s32.totalorder %s18, 0
      %p108 = por %p106, %p107
      %p109 = scmp.ne.s32.totalorder %s101, %s103
      %p110 = scmp.eq.s32.totalorder %s23, 1
      %p111 = por %p109, %p110
      %p112 = scmp.ne.s32.totalorder %s103, %s104
      %p113 = scmp.eq.s32.totalorder %s23, 0
      %p114 = por %p112, %p113
      %p115 = scmp.ne.s32.totalorder %s103, %s104
      %p116 = scmp.eq.s32.totalorder %s24, 1
      %p117 = por %p115, %p116
      %p119 = scmp.ne.s32.totalorder %s104, %s118
      %p120 = scmp.eq.s32.totalorder %s24, 0
      %p121 = por %p119, %p120
      %s123 = sadd.s32 %s122, 1
      %p126 = scmp.eq.s32.totalorder %s18, 1
      %p127 = scmp.ne.s32.totalorder %s122, %s124
      %p128 = scmp.eq.s32.totalorder %s18, 0
      %p129 = por %p127, %p128
      %p130 = scmp.ne.s32.totalorder %s122, %s124
      %p131 = scmp.eq.s32.totalorder %s23, 1
      %p132 = por %p130, %p131
      %p133 = scmp.ne.s32.totalorder %s124, %s125
      %p134 = scmp.eq.s32.totalorder %s23, 0
      %p135 = por %p133, %p134
      %p136 = scmp.ne.s32.totalorder %s124, %s125
      %p137 = scmp.eq.s32.totalorder %s24, 1
      %p138 = por %p136, %p137
      %p140 = scmp.ne.s32.totalorder %s125, %s139
      %p141 = scmp.eq.s32.totalorder %s24, 0
      %p142 = por %p140, %p141
      %s144 = sadd.s32 %s143, 1
      %p147 = scmp.eq.s32.totalorder %s18, 1
      %p148 = scmp.ne.s32.totalorder %s143, %s145
      %p149 = scmp.eq.s32.totalorder %s18, 0
      %p150 = por %p148, %p149
      %p151 = scmp.ne.s32.totalorder %s143, %s145
      %p152 = scmp.eq.s32.totalorder %s23, 1
      %p153 = por %p151, %p152
      %p154 = scmp.ne.s32.totalorder %s145, %s146
      %p155 = scmp.eq.s32.totalorder %s23, 0
      %p156 = por %p154, %p155
      %p157 = scmp.ne.s32.totalorder %s145, %s146
      %p158 = scmp.eq.s32.totalorder %s24, 1
      %p159 = por %p157, %p158
      %p161 = scmp.ne.s32.totalorder %s146, %s160
      %p162 = scmp.eq.s32.totalorder %s24, 0
      %p163 = por %p161, %p162
      %s164 = ssub.s32 %s25, %s37
      %s165 = ssub.s32 %s26, %s33
      %s166 = sor.u32 %s164, %s165
      %p167 = scmp.eq.s32.totalorder %s166, 0
      %s169 = sadd.s32 %s168, 1
      %s170 = scalar_select %p167, %s168, %s169
      %p173 = pneg %p167
      %p174 = scmp.eq.s32.totalorder %s18, 1
      %p175 = por %p173, %p174
      %p176 = scmp.ne.s32.totalorder %s168, %s171
      %p177 = scmp.eq.s32.totalorder %s18, 0
      %p178 = por %p176, %p177
      %p179 = scmp.ne.s32.totalorder %s168, %s171
      %p180 = scmp.eq.s32.totalorder %s23, 1
      %p181 = por %p179, %p180
      %p182 = scmp.ne.s32.totalorder %s171, %s172
      %p183 = scmp.eq.s32.totalorder %s23, 0
      %p184 = por %p182, %p183
      %p185 = scmp.ne.s32.totalorder %s171, %s172
      %p186 = scmp.eq.s32.totalorder %s24, 1
      %p187 = por %p185, %p186
      %p189 = scmp.ne.s32.totalorder %s172, %s188
      %p190 = scmp.eq.s32.totalorder %s24, 0
      %p191 = por %p189, %p190
      %p192 = scmp.le.s32.totalorder 1, %s18
      %p193 = scmp.lt.s32.totalorder %s18, 3
      %p194 = pnand %p192, %p193
      %p195 = pneg %p194
      // Predicated region
      $region9: #{tpu_custom_call.1} parent=5 // pred_check
        _
      $region10: #{tpu_custom_call.1} parent=5 // pred_check_branch
        %197 = sbr.rel (%p194) target = $region12
      $region11: #{tpu_custom_call.1} parent=5 // pred_region
        %s198 = ssub.s32 %s18, 1
        // Predicated region
        $region13: #{tpu_custom_call.1} parent=11 // pred_check
          %p199 = pneg %p51
        $region14: #{tpu_custom_call.1} parent=11 // pred_check_branch
          %201 = sbr.rel (%p199) target = $region16
        $region15: #{tpu_custom_call.1} parent=11 // pred_region
          %s203 = ssub.s32 10240, 10240
          %204 = vsyncadd [#allocation6], %s203
          %s205 = sshll.u32 [#allocation5], 4
          %s206 = int_to_ptr.vmem [resolvable:$true] %s205
          %211 = dma.hbm_to_vmem [thread:$0]  %s1, 10240, %s206, [#allocation6], 128, 128, 8
        $region16: #{tpu_custom_call.1} parent=11 // pred_fallthru
          _
        // Predicated region
        $region17: #{tpu_custom_call.1} parent=11 // pred_check
          %p212 = pneg %p72
        $region18: #{tpu_custom_call.1} parent=11 // pred_check_branch
          %214 = sbr.rel (%p212) target = $region20
        $region19: #{tpu_custom_call.1} parent=11 // pred_region
          %s216 = ssub.s32 10240, 10240
          %217 = vsyncadd [#allocation9], %s216
          %s218 = sshll.u32 [#allocation8], 4
          %s219 = int_to_ptr.vmem [resolvable:$true] %s218
          %224 = dma.hbm_to_vmem [thread:$0]  %s2, 10240, %s219, [#allocation9], 128, 128, 8
        $region20: #{tpu_custom_call.1} parent=11 // pred_fallthru
          _
        // Predicated region
        $region21: #{tpu_custom_call.1} parent=11 // pred_check
          %p225 = pneg %p93
        $region22: #{tpu_custom_call.1} parent=11 // pred_check_branch
          %227 = sbr.rel (%p225) target = $region24
        $region23: #{tpu_custom_call.1} parent=11 // pred_region
          %s229 = ssub.s32 10240, 10240
          %230 = vsyncadd [#allocation9], %s229
          %s231 = sshll.u32 [#allocation10], 4
          %s232 = int_to_ptr.vmem [resolvable:$true] %s231
          %237 = dma.hbm_to_vmem [thread:$0]  %s3, 10240, %s232, [#allocation9], 128, 128, 8
        $region24: #{tpu_custom_call.1} parent=11 // pred_fallthru
          _
        // Predicated region
        $region25: #{tpu_custom_call.1} parent=11 // pred_check
          %p238 = pneg %p114
        $region26: #{tpu_custom_call.1} parent=11 // pred_check_branch
          %240 = sbr.rel (%p238) target = $region28
        $region27: #{tpu_custom_call.1} parent=11 // pred_region
          _
        $region28: #{tpu_custom_call.1} parent=11 // pred_fallthru
          _
        // Predicated region
        $region29: #{tpu_custom_call.1} parent=11 // pred_check
          %p241 = pneg %p135
        $region30: #{tpu_custom_call.1} parent=11 // pred_check_branch
          %243 = sbr.rel (%p241) target = $region32
        $region31: #{tpu_custom_call.1} parent=11 // pred_region
          _
        $region32: #{tpu_custom_call.1} parent=11 // pred_fallthru
          _
        // Predicated region
        $region33: #{tpu_custom_call.1} parent=11 // pred_check
          %p244 = pneg %p156
        $region34: #{tpu_custom_call.1} parent=11 // pred_check_branch
          %246 = sbr.rel (%p244) target = $region36
        $region35: #{tpu_custom_call.1} parent=11 // pred_region
          _
        $region36: #{tpu_custom_call.1} parent=11 // pred_fallthru
          _
      $region12: #{tpu_custom_call.1} parent=5 // pred_fallthru
        _
      %p247 = scmp.lt.s32.totalorder %s18, 2
      // Predicated region
      $region37: #{tpu_custom_call.1} parent=5 // pred_check
        %p248 = pneg %p247
      $region38: #{tpu_custom_call.1} parent=5 // pred_check_branch
        %250 = sbr.rel (%p248) target = $region40
      $region39: #{tpu_custom_call.1} parent=5 // pred_region
        _
      $region40: #{tpu_custom_call.1} parent=5 // pred_fallthru
        _
      %p251 = scmp.le.s32.totalorder 1, %s18
      %p252 = scmp.lt.s32.totalorder %s18, 3
      %p253 = pnand %p251, %p252
      %p254 = pneg %p253
      // Predicated region
      $region41: #{tpu_custom_call.1} parent=5 // pred_check
        _
      $region42: #{tpu_custom_call.1} parent=5 // pred_check_branch
        %256 = sbr.rel (%p253) target = $region44
      $region43: #{tpu_custom_call.1} parent=5 // pred_region
        %s257 = ssub.s32 %s18, 1
        // Predicated region
        $region45: #{tpu_custom_call.1} parent=43 // pred_check
          %p258 = pneg %p51
        $region46: #{tpu_custom_call.1} parent=43 // pred_check_branch
          %260 = sbr.rel (%p258) target = $region48
        $region47: #{tpu_custom_call.1} parent=43 // pred_region
          %261 = dma.done [#allocation6], 10240
        $region48: #{tpu_custom_call.1} parent=43 // pred_fallthru
          _
        // Predicated region
        $region49: #{tpu_custom_call.1} parent=43 // pred_check
          %p262 = pneg %p72
        $region50: #{tpu_custom_call.1} parent=43 // pred_check_branch
          %264 = sbr.rel (%p262) target = $region52
        $region51: #{tpu_custom_call.1} parent=43 // pred_region
          %265 = dma.done [#allocation9], 10240
        $region52: #{tpu_custom_call.1} parent=43 // pred_fallthru
          _
        // Predicated region
        $region53: #{tpu_custom_call.1} parent=43 // pred_check
          %p266 = pneg %p93
        $region54: #{tpu_custom_call.1} parent=43 // pred_check_branch
          %268 = sbr.rel (%p266) target = $region56
        $region55: #{tpu_custom_call.1} parent=43 // pred_region
          %269 = dma.done [#allocation9], 10240
        $region56: #{tpu_custom_call.1} parent=43 // pred_fallthru
          _
        %p270 = pneg %p51
        %p271 = pneg %p48
        %p272 = pneg %p72
        %p273 = pneg %p69
        %p274 = pneg %p93
        %p275 = pneg %p90
        %p276 = pneg %p114
        %p277 = pneg %p111
        %p278 = pneg %p135
        %p279 = pneg %p132
        %p280 = pneg %p156
        %p281 = pneg %p153
        %p282 = pneg %p184
        %p283 = pneg %p181
        %s284 = sand.u32 %s171, 1
        %s285 = scalar_lea.sflag [#allocation7], %s284
        %s286 = sand.u32 %s171, 1
        %s287 = smul.addr %s286, 16
        %s288 = scalar_lea.vmem [#allocation11], %s287
        %s289 = smul.u32 2, %s28
        %p290 = scmp.lt.s32.totalorder %s28, 0
        %s291 = ssub.s32 0, %s28
        %s292 = scalar_select %p290, %s291, %s28
        %s293 = sand.u32 %s292, 1
        %s294 = ssub.s32 0, %s293
        %s295 = scalar_select %p290, %s294, %s293
        %p296 = scmp.ne.s32.totalorder %s295, 0
        %p297 = scmp.lt.s32.totalorder %s295, 0
        %p298 = pnand %p297, %p296
        %p299 = pneg %p298
        %s300 = sadd.s32 %s295, 2
        %s301 = scalar_select %p299, %s300, %s295
        %p302 = scmp.eq.s32.totalorder %s28, 0
        // Predicated region
        $region57: #{tpu_custom_call.1} parent=43 // pred_check
          %p303 = pneg %p302
        $region58: #{tpu_custom_call.1} parent=43 // pred_check_branch
          %305 = sbr.rel (%p303) target = $region60
        $region59: #{tpu_custom_call.1} parent=43 // pred_region
          %s306 = smul.u32 %s27, 32
          %s307 = scalar_lea.vmem %s0, %s306
          %p309 = scmp.lt.u32.totalorder 28, 8
          %p310 = pneg %p309
          // Predicated region
          $region61: #{tpu_custom_call.1} parent=59 // pred_check
            _
          $region62: #{tpu_custom_call.1} parent=59 // pred_check_branch
            %312 = sbr.rel (%p309) target = $region64
          $region63: #{tpu_custom_call.1} parent=59 // pred_region
            %s328 = sand.u32 28, 7
            %p329 = scmp.eq.s32.totalorder %s328, 0
            %p330 = pneg %p329
            // Predicated region
            $region76: #{tpu_custom_call.1} parent=63 // pred_check
              _
            $region77: #{tpu_custom_call.1} parent=63 // pred_check_branch
              %332 = sbr.rel (%p329) target = $region79
            $region78: #{tpu_custom_call.1} parent=63 // pred_region
              %s333 = sand.u32 28, 7
              %s334 = ssub.s32 28, %s333
              %s335 = scalar_lea.vmem %s307, %s334
              %s336 = ssub.s32 28, %s333
              %s337 = scalar_lea.vmem [#allocation2], %s336
              loop: start=0, step=1, limit=1
              $region80: #{tpu_custom_call.1} parent=78 // loop_pre_header
                _
              $region81: #{tpu_custom_call.1} parent=78 // loop_header
                %s339 = sphi 0, %s343
                %p340 = scmp.ge.s32.totalorder %s339, 1
                %s344 = sphi %s307, %s307
                %s345 = sphi [#allocation2], [#allocation2]
              $region82: #{tpu_custom_call.1} parent=78 // loop_header_branch
                %342 = sbr.rel (%p340) target = $region86
              $region83: #{tpu_custom_call.1} parent=78 // loop_body
                %v346 = vld [vmem:[%s344] sm:$0xff]
                %347 = vst [vmem:[%s345] sm:$0xff] %v346
                %v348 = vld [vmem:[%s344 + $0x8] sm:$0xff]
                %349 = vst [vmem:[%s345 + $0x8] sm:$0xff] %v348
                %v350 = vld [vmem:[%s344 + $0x10] sm:$0xff]
                %351 = vst [vmem:[%s345 + $0x10] sm:$0xff] %v350
              $region84: #{tpu_custom_call.1} parent=78 // loop_footer
                %s343 = sadd.s32 1, %s339
              $region85: #{tpu_custom_call.1} parent=78 // loop_footer_branch
                %338 = sbr.rel target = $region81
              $region86: #{tpu_custom_call.1} parent=78 // loop_exit
                _
              %s352 = sshll.u32 1, %s333
              %s353 = ssub.s32 %s352, 1
              loop: start=0, step=1, limit=1
              $region87: #{tpu_custom_call.1} parent=78 // loop_pre_header
                _
              $region88: #{tpu_custom_call.1} parent=78 // loop_header
                %s355 = sphi 0, %s359
                %p356 = scmp.ge.s32.totalorder %s355, 1
                %s360 = sphi %s335, %s335
                %s361 = sphi %s337, %s337
              $region89: #{tpu_custom_call.1} parent=78 // loop_header_branch
                %358 = sbr.rel (%p356) target = $region93
              $region90: #{tpu_custom_call.1} parent=78 // loop_body
                %v362 = vld [vmem:[%s360] sm:%s353]
                %363 = vst [vmem:[%s361] sm:%s353] %v362
              $region91: #{tpu_custom_call.1} parent=78 // loop_footer
                %s359 = sadd.s32 1, %s355
              $region92: #{tpu_custom_call.1} parent=78 // loop_footer_branch
                %354 = sbr.rel target = $region88
              $region93: #{tpu_custom_call.1} parent=78 // loop_exit
                _
            $region79: #{tpu_custom_call.1} parent=63 // pred_fallthru
              _
          $region64: #{tpu_custom_call.1} parent=59 // pred_fallthru
            _
          // Predicated region
          $region65: #{tpu_custom_call.1} parent=59 // pred_check
            %p313 = pneg %p309
          $region66: #{tpu_custom_call.1} parent=59 // pred_check_branch
            %315 = sbr.rel (%p313) target = $region68
          $region67: #{tpu_custom_call.1} parent=59 // pred_region
            %s316 = sshll.u32 1, 28
            %s317 = ssub.s32 %s316, 1
            loop: start=0, step=1, limit=1
            $region69: #{tpu_custom_call.1} parent=67 // loop_pre_header
              _
            $region70: #{tpu_custom_call.1} parent=67 // loop_header
              %s319 = sphi 0, %s323
              %p320 = scmp.ge.s32.totalorder %s319, 1
              %s324 = sphi %s307, %s307
              %s325 = sphi [#allocation2], [#allocation2]
            $region71: #{tpu_custom_call.1} parent=67 // loop_header_branch
              %322 = sbr.rel (%p320) target = $region75
            $region72: #{tpu_custom_call.1} parent=67 // loop_body
              %v326 = vld [vmem:[%s324] sm:%s317]
              %327 = vst [vmem:[%s325] sm:%s317] %v326
            $region73: #{tpu_custom_call.1} parent=67 // loop_footer
              %s323 = sadd.s32 1, %s319
            $region74: #{tpu_custom_call.1} parent=67 // loop_footer_branch
              %318 = sbr.rel target = $region70
            $region75: #{tpu_custom_call.1} parent=67 // loop_exit
              _
          $region68: #{tpu_custom_call.1} parent=59 // pred_fallthru
            _
          // Predicated region
          $region94: #{tpu_custom_call.1} parent=59 // pred_check
            _
          $region95: #{tpu_custom_call.1} parent=59 // pred_check_branch
            %366 = sbr.rel (0) target = $region97
          $region96: #{tpu_custom_call.1} parent=59 // pred_region
            %367 = vsyncadd [#allocation3], 448
          $region97: #{tpu_custom_call.1} parent=59 // pred_fallthru
            _
        $region60: #{tpu_custom_call.1} parent=43 // pred_fallthru
          _
        %s368 = smul.u32 %s28, 16
        %s369 = smul.u32 %s301, 32
        %s370 = scalar_lea.vmem [#allocation2], %s369
        %s371 = scalar_lea.sflag [#allocation3], %s301
        %s372 = smul.u32 1, 28
        %s373 = smul.u32 %s372, 1
        %s374 = sshll.u32 %s373, 4
        %375 = dma.done %s371, %s374
        %v376 = vld [vmem:[%s370] sm:$0xff]
        %v377 = vld [vmem:[%s370 + $0x8] sm:$0xff]
        %v378 = vld [vmem:[%s370 + $0x10] sm:$0xff]
        %v379 = vld [vmem:[%s370 + $0x18] sm:$0xf]
        %380 = vst [vmem:[#allocation4] sm:$0xff] %v376
        %381 = vst [vmem:[#allocation4 + $0x8] sm:$0xff] %v377
        %382 = vst [vmem:[#allocation4 + $0x10] sm:$0xff] %v378
        %383 = vst [vmem:[#allocation4 + $0x18] sm:$0xf] %v379
        %v384 = vlaneseq
        %v385 = vshrl.u32 %v384, 7
        %v386 = vadd.s32 %v385, 8
        %v387 = vadd.s32 %v385, 16
        %v388 = vld [vmem:[#allocation4] sm:$0xff]
        %v389 = vld [vmem:[#allocation4 + $0x8] sm:$0xff]
        %v390 = vld [vmem:[#allocation4 + $0x10] sm:$0xff]
        %v391 = vld [vmem:[#allocation5] sm:$0xff]
        %v392 = vld [vmem:[#allocation5 + $0x8] sm:$0xff]
        %v393 = vld [vmem:[#allocation5 + $0x10] sm:$0xff]
        %v394 = vld [vmem:[#allocation5 + $0x18] sm:$0xff]
        %v395 = vld [vmem:[#allocation5 + $0x20] sm:$0xff]
        %v396 = vld [vmem:[#allocation5 + $0x28] sm:$0xff]
        %v397 = vld [vmem:[#allocation5 + $0x30] sm:$0xff]
        %v398 = vld [vmem:[#allocation5 + $0x38] sm:$0xff]
        %v399 = vld [vmem:[#allocation5 + $0x40] sm:$0xff]
        %v400 = vld [vmem:[#allocation5 + $0x48] sm:$0xff]
        %v401 = vld [vmem:[#allocation5 + $0x50] sm:$0xff]
        %v402 = vld [vmem:[#allocation5 + $0x58] sm:$0xff]
        %v403 = vld [vmem:[#allocation5 + $0x60] sm:$0xff]
        %v404 = vld [vmem:[#allocation5 + $0x68] sm:$0xff]
        %v405 = vld [vmem:[#allocation5 + $0x70] sm:$0xff]
        %v406 = vld [vmem:[#allocation5 + $0x78] sm:$0xff]
        %v407 = vld [vmem:[#allocation4 + $0x1] sm:$0xff]
        %v408 = vld [vmem:[#allocation4 + $0x9] sm:$0xff]
        %v409 = vld [vmem:[#allocation4 + $0x11] sm:$0xff]
        %s410 = scalar_lea.vmem [#allocation5], 128
        %v411 = vld [vmem:[%s410] sm:$0xff]
        %v412 = vld [vmem:[%s410 + $0x8] sm:$0xff]
        %v413 = vld [vmem:[%s410 + $0x10] sm:$0xff]
        %v414 = vld [vmem:[%s410 + $0x18] sm:$0xff]
        %v415 = vld [vmem:[%s410 + $0x20] sm:$0xff]
        %v416 = vld [vmem:[%s410 + $0x28] sm:$0xff]
        %v417 = vld [vmem:[%s410 + $0x30] sm:$0xff]
        %v418 = vld [vmem:[%s410 + $0x38] sm:$0xff]
        %v419 = vld [vmem:[%s410 + $0x40] sm:$0xff]
        %v420 = vld [vmem:[%s410 + $0x48] sm:$0xff]
        %v421 = vld [vmem:[%s410 + $0x50] sm:$0xff]
        %v422 = vld [vmem:[%s410 + $0x58] sm:$0xff]
        %v423 = vld [vmem:[%s410 + $0x60] sm:$0xff]
        %v424 = vld [vmem:[%s410 + $0x68] sm:$0xff]
        %v425 = vld [vmem:[%s410 + $0x70] sm:$0xff]
        %v426 = vld [vmem:[%s410 + $0x78] sm:$0xff]
        %427 = vmatprep.subr.mxu0 0.0
        %428 = vmatpush1.msra.mxu0 %v426
        %429 = vmatprep.subr.mxu0 0.0
        %430 = vmatpush1.msra.mxu0 %v425
        %431 = vmatprep.subr.mxu0 0.0
        %432 = vmatpush1.msra.mxu0 %v424
        %433 = vmatprep.subr.mxu0 0.0
        %434 = vmatpush1.msra.mxu0 %v423
        %435 = vmatprep.subr.mxu0 0.0
        %436 = vmatpush1.msra.mxu0 %v422
        %437 = vmatprep.subr.mxu0 0.0
        %438 = vmatpush1.msra.mxu0 %v421
        %439 = vmatprep.subr.mxu0 0.0
        %440 = vmatpush1.msra.mxu0 %v420
        %441 = vmatprep.subr.mxu0 0.0
        %442 = vmatpush1.msra.mxu0 %v419
        %443 = vmatprep.subr.mxu0 0.0
        %444 = vmatpush1.msra.mxu0 %v418
        %445 = vmatprep.subr.mxu0 0.0
        %446 = vmatpush1.msra.mxu0 %v417
        %447 = vmatprep.subr.mxu0 0.0
        %448 = vmatpush1.msra.mxu0 %v416
        %449 = vmatprep.subr.mxu0 0.0
        %450 = vmatpush1.msra.mxu0 %v415
        %451 = vmatprep.subr.mxu0 0.0
        %452 = vmatpush1.msra.mxu0 %v414
        %453 = vmatprep.subr.mxu0 0.0
        %454 = vmatpush1.msra.mxu0 %v413
        %455 = vmatprep.subr.mxu0 0.0
        %456 = vmatpush1.msra.mxu0 %v412
        %457 = vmatprep.subr.mxu0 0.0
        %458 = vmatpush1.msra.mxu0 %v411
        %459 = vmatprep.subr.mxu0 0.0
        %460 = vmatpush2.msra.mxu0 0.0
        %461 = vmatprep.subr.mxu0 0.0
        %462 = vmatpush2.msra.mxu0 0.0
        %463 = vmatprep.subr.mxu0 0.0
        %464 = vmatpush2.msra.mxu0 0.0
        %465 = vmatprep.subr.mxu0 0.0
        %466 = vmatpush2.msra.mxu0 0.0
        %467 = vmatprep.subr.mxu0 0.0
        %468 = vmatpush2.msra.mxu0 0.0
        %469 = vmatprep.subr.mxu0 0.0
        %470 = vmatpush2.msra.mxu0 0.0
        %471 = vmatprep.subr.mxu0 0.0
        %472 = vmatpush2.msra.mxu0 0.0
        %473 = vmatprep.subr.mxu0 0.0
        %474 = vmatpush2.msra.mxu0 0.0
        %475 = vmatprep.subr.mxu0 0.0
        %476 = vmatpush2.msra.mxu0 0.0
        %477 = vmatprep.subr.mxu0 0.0
        %478 = vmatpush2.msra.mxu0 0.0
        %479 = vmatprep.subr.mxu0 0.0
        %480 = vmatpush2.msra.mxu0 0.0
        %481 = vmatprep.subr.mxu0 0.0
        %482 = vmatpush2.msra.mxu0 0.0
        %483 = vmatprep.subr.mxu0 0.0
        %484 = vmatpush2.msra.mxu0 0.0
        %485 = vmatprep.subr.mxu0 0.0
        %486 = vmatpush2.msra.mxu0 0.0
        %487 = vmatprep.subr.mxu0 0.0
        %488 = vmatpush2.msra.mxu0 0.0
        %489 = vmatprep.subr.mxu0 0.0
        %490 = vmatpush2.msra.mxu0 0.0
        %491 = vmatprep.mubr.f32.mxu0 0.0
        %492 = vmatmul.mubr.f32.gmra.mxu0 %v407
        %v493 = vpop.f32.mrf.mxu0
        %v494 = vadd.f32 0.0, %v493
        %v495 = vpop.f32.mrf.mxu0
        %496 = vmatprep.mubr.f32.mxu0 0.0
        %497 = vmatmul.mubr.f32.gmra.mxu0 %v408
        %v498 = vpop.f32.mrf.mxu0
        %v499 = vadd.f32 0.0, %v498
        %v500 = vpop.f32.mrf.mxu0
        %501 = vmatprep.mubr.f32.mxu0 0.0
        %502 = vmatmul.mubr.f32.gmra.mxu0 %v409
        %v503 = vpop.f32.mrf.mxu0
        %v504 = vadd.f32 0.0, %v503
        %v505 = vpop.f32.mrf.mxu0
        %506 = vdwg.mxu0
        %507 = vmatprep.subr.mxu0 0.0
        %508 = vmatpush1.msra.mxu0 %v406
        %509 = vmatprep.subr.mxu0 0.0
        %510 = vmatpush1.msra.mxu0 %v405
        %511 = vmatprep.subr.mxu0 0.0
        %512 = vmatpush1.msra.mxu0 %v404
        %513 = vmatprep.subr.mxu0 0.0
        %514 = vmatpush1.msra.mxu0 %v403
        %515 = vmatprep.subr.mxu0 0.0
        %516 = vmatpush1.msra.mxu0 %v402
        %517 = vmatprep.subr.mxu0 0.0
        %518 = vmatpush1.msra.mxu0 %v401
        %519 = vmatprep.subr.mxu0 0.0
        %520 = vmatpush1.msra.mxu0 %v400
        %521 = vmatprep.subr.mxu0 0.0
        %522 = vmatpush1.msra.mxu0 %v399
        %523 = vmatprep.subr.mxu0 0.0
        %524 = vmatpush1.msra.mxu0 %v398
        %525 = vmatprep.subr.mxu0 0.0
        %526 = vmatpush1.msra.mxu0 %v397
        %527 = vmatprep.subr.mxu0 0.0
        %528 = vmatpush1.msra.mxu0 %v396
        %529 = vmatprep.subr.mxu0 0.0
        %530 = vmatpush1.msra.mxu0 %v395
        %531 = vmatprep.subr.mxu0 0.0
        %532 = vmatpush1.msra.mxu0 %v394
        %533 = vmatprep.subr.mxu0 0.0
        %534 = vmatpush1.msra.mxu0 %v393
        %535 = vmatprep.subr.mxu0 0.0
        %536 = vmatpush1.msra.mxu0 %v392
        %537 = vmatprep.subr.mxu0 0.0
        %538 = vmatpush1.msra.mxu0 %v391
        %539 = vmatprep.subr.mxu0 0.0
        %540 = vmatpush2.msra.mxu0 0.0
        %541 = vmatprep.subr.mxu0 0.0
        %542 = vmatpush2.msra.mxu0 0.0
        %543 = vmatprep.subr.mxu0 0.0
        %544 = vmatpush2.msra.mxu0 0.0
        %545 = vmatprep.subr.mxu0 0.0
        %546 = vmatpush2.msra.mxu0 0.0
        %547 = vmatprep.subr.mxu0 0.0
        %548 = vmatpush2.msra.mxu0 0.0
        %549 = vmatprep.subr.mxu0 0.0
        %550 = vmatpush2.msra.mxu0 0.0
        %551 = vmatprep.subr.mxu0 0.0
        %552 = vmatpush2.msra.mxu0 0.0
        %553 = vmatprep.subr.mxu0 0.0
        %554 = vmatpush2.msra.mxu0 0.0
        %555 = vmatprep.subr.mxu0 0.0
        %556 = vmatpush2.msra.mxu0 0.0
        %557 = vmatprep.subr.mxu0 0.0
        %558 = vmatpush2.msra.mxu0 0.0
        %559 = vmatprep.subr.mxu0 0.0
        %560 = vmatpush2.msra.mxu0 0.0
        %561 = vmatprep.subr.mxu0 0.0
        %562 = vmatpush2.msra.mxu0 0.0
        %563 = vmatprep.subr.mxu0 0.0
        %564 = vmatpush2.msra.mxu0 0.0
        %565 = vmatprep.subr.mxu0 0.0
        %566 = vmatpush2.msra.mxu0 0.0
        %567 = vmatprep.subr.mxu0 0.0
        %568 = vmatpush2.msra.mxu0 0.0
        %569 = vmatprep.subr.mxu0 0.0
        %570 = vmatpush2.msra.mxu0 0.0
        %571 = vmatprep.mubr.f32.mxu0 0.0
        %572 = vmatmul.mubr.f32.gmra.mxu0 %v388
        %v573 = vpop.f32.mrf.mxu0
        %v574 = vadd.f32 %v494, %v573
        %v575 = vpop.f32.mrf.mxu0
        %576 = vmatprep.mubr.f32.mxu0 0.0
        %577 = vmatmul.mubr.f32.gmra.mxu0 %v389
        %v578 = vpop.f32.mrf.mxu0
        %v579 = vadd.f32 %v499, %v578
        %v580 = vpop.f32.mrf.mxu0
        %581 = vmatprep.mubr.f32.mxu0 0.0
        %582 = vmatmul.mubr.f32.gmra.mxu0 %v390
        %v583 = vpop.f32.mrf.mxu0
        %v584 = vadd.f32 %v504, %v583
        %v585 = vpop.f32.mrf.mxu0
        %586 = vdwg.mxu0
        %v587 = vld [vmem:[#allocation4 + $0x2] sm:$0xff]
        %v588 = vld [vmem:[#allocation4 + $0xa] sm:$0xff]
        %v589 = vld [vmem:[#allocation4 + $0x12] sm:$0xff]
        %s590 = scalar_lea.vmem [#allocation5], 256
        %v591 = vld [vmem:[%s590] sm:$0xff]
        %v592 = vld [vmem:[%s590 + $0x8] sm:$0xff]
        %v593 = vld [vmem:[%s590 + $0x10] sm:$0xff]
        %v594 = vld [vmem:[%s590 + $0x18] sm:$0xff]
        %v595 = vld [vmem:[%s590 + $0x20] sm:$0xff]
        %v596 = vld [vmem:[%s590 + $0x28] sm:$0xff]
        %v597 = vld [vmem:[%s590 + $0x30] sm:$0xff]
        %v598 = vld [vmem:[%s590 + $0x38] sm:$0xff]
        %v599 = vld [vmem:[%s590 + $0x40] sm:$0xff]
        %v600 = vld [vmem:[%s590 + $0x48] sm:$0xff]
        %v601 = vld [vmem:[%s590 + $0x50] sm:$0xff]
        %v602 = vld [vmem:[%s590 + $0x58] sm:$0xff]
        %v603 = vld [vmem:[%s590 + $0x60] sm:$0xff]
        %v604 = vld [vmem:[%s590 + $0x68] sm:$0xff]
        %v605 = vld [vmem:[%s590 + $0x70] sm:$0xff]
        %v606 = vld [vmem:[%s590 + $0x78] sm:$0xff]
        %607 = vmatprep.subr.mxu0 0.0
        %608 = vmatpush1.msra.mxu0 %v606
        %609 = vmatprep.subr.mxu0 0.0
        %610 = vmatpush1.msra.mxu0 %v605
        %611 = vmatprep.subr.mxu0 0.0
        %612 = vmatpush1.msra.mxu0 %v604
        %613 = vmatprep.subr.mxu0 0.0
        %614 = vmatpush1.msra.mxu0 %v603
        %615 = vmatprep.subr.mxu0 0.0
        %616 = vmatpush1.msra.mxu0 %v602
        %617 = vmatprep.subr.mxu0 0.0
        %618 = vmatpush1.msra.mxu0 %v601
        %619 = vmatprep.subr.mxu0 0.0
        %620 = vmatpush1.msra.mxu0 %v600
        %621 = vmatprep.subr.mxu0 0.0
        %622 = vmatpush1.msra.mxu0 %v599
        %623 = vmatprep.subr.mxu0 0.0
        %624 = vmatpush1.msra.mxu0 %v598
        %625 = vmatprep.subr.mxu0 0.0
        %626 = vmatpush1.msra.mxu0 %v597
        %627 = vmatprep.subr.mxu0 0.0
        %628 = vmatpush1.msra.mxu0 %v596
        %629 = vmatprep.subr.mxu0 0.0
        %630 = vmatpush1.msra.mxu0 %v595
        %631 = vmatprep.subr.mxu0 0.0
        %632 = vmatpush1.msra.mxu0 %v594
        %633 = vmatprep.subr.mxu0 0.0
        %634 = vmatpush1.msra.mxu0 %v593
        %635 = vmatprep.subr.mxu0 0.0
        %636 = vmatpush1.msra.mxu0 %v592
        %637 = vmatprep.subr.mxu0 0.0
        %638 = vmatpush1.msra.mxu0 %v591
        %639 = vmatprep.subr.mxu0 0.0
        %640 = vmatpush2.msra.mxu0 0.0
        %641 = vmatprep.subr.mxu0 0.0
        %642 = vmatpush2.msra.mxu0 0.0
        %643 = vmatprep.subr.mxu0 0.0
        %644 = vmatpush2.msra.mxu0 0.0
        %645 = vmatprep.subr.mxu0 0.0
        %646 = vmatpush2.msra.mxu0 0.0
        %647 = vmatprep.subr.mxu0 0.0
        %648 = vmatpush2.msra.mxu0 0.0
        %649 = vmatprep.subr.mxu0 0.0
        %650 = vmatpush2.msra.mxu0 0.0
        %651 = vmatprep.subr.mxu0 0.0
        %652 = vmatpush2.msra.mxu0 0.0
        %653 = vmatprep.subr.mxu0 0.0
        %654 = vmatpush2.msra.mxu0 0.0
        %655 = vmatprep.subr.mxu0 0.0
        %656 = vmatpush2.msra.mxu0 0.0
        %657 = vmatprep.subr.mxu0 0.0
        %658 = vmatpush2.msra.mxu0 0.0
        %659 = vmatprep.subr.mxu0 0.0
        %660 = vmatpush2.msra.mxu0 0.0
        %661 = vmatprep.subr.mxu0 0.0
        %662 = vmatpush2.msra.mxu0 0.0
        %663 = vmatprep.subr.mxu0 0.0
        %664 = vmatpush2.msra.mxu0 0.0
        %665 = vmatprep.subr.mxu0 0.0
        %666 = vmatpush2.msra.mxu0 0.0
        %667 = vmatprep.subr.mxu0 0.0
        %668 = vmatpush2.msra.mxu0 0.0
        %669 = vmatprep.subr.mxu0 0.0
        %670 = vmatpush2.msra.mxu0 0.0
        %671 = vmatprep.mubr.f32.mxu0 0.0
        %672 = vmatmul.mubr.f32.gmra.mxu0 %v587
        %v673 = vpop.f32.mrf.mxu0
        %v674 = vadd.f32 0.0, %v673
        %v675 = vpop.f32.mrf.mxu0
        %676 = vmatprep.mubr.f32.mxu0 0.0
        %677 = vmatmul.mubr.f32.gmra.mxu0 %v588
        %v678 = vpop.f32.mrf.mxu0
        %v679 = vadd.f32 0.0, %v678
        %v680 = vpop.f32.mrf.mxu0
        %681 = vmatprep.mubr.f32.mxu0 0.0
        %682 = vmatmul.mubr.f32.gmra.mxu0 %v589
        %v683 = vpop.f32.mrf.mxu0
        %v684 = vadd.f32 0.0, %v683
        %v685 = vpop.f32.mrf.mxu0
        %686 = vdwg.mxu0
        %v687 = vadd.f32 %v574, %v674
        %v688 = vadd.f32 %v579, %v679
        %v689 = vadd.f32 %v584, %v684
        %v690 = vld [vmem:[#allocation4 + $0x3] sm:$0xff]
        %v691 = vld [vmem:[#allocation4 + $0xb] sm:$0xff]
        %v692 = vld [vmem:[#allocation4 + $0x13] sm:$0xff]
        %s693 = scalar_lea.vmem [#allocation5], 384
        %v694 = vld [vmem:[%s693] sm:$0xff]
        %v695 = vld [vmem:[%s693 + $0x8] sm:$0xff]
        %v696 = vld [vmem:[%s693 + $0x10] sm:$0xff]
        %v697 = vld [vmem:[%s693 + $0x18] sm:$0xff]
        %v698 = vld [vmem:[%s693 + $0x20] sm:$0xff]
        %v699 = vld [vmem:[%s693 + $0x28] sm:$0xff]
        %v700 = vld [vmem:[%s693 + $0x30] sm:$0xff]
        %v701 = vld [vmem:[%s693 + $0x38] sm:$0xff]
        %v702 = vld [vmem:[%s693 + $0x40] sm:$0xff]
        %v703 = vld [vmem:[%s693 + $0x48] sm:$0xff]
        %v704 = vld [vmem:[%s693 + $0x50] sm:$0xff]
        %v705 = vld [vmem:[%s693 + $0x58] sm:$0xff]
        %v706 = vld [vmem:[%s693 + $0x60] sm:$0xff]
        %v707 = vld [vmem:[%s693 + $0x68] sm:$0xff]
        %v708 = vld [vmem:[%s693 + $0x70] sm:$0xff]
        %v709 = vld [vmem:[%s693 + $0x78] sm:$0xff]
        %710 = vmatprep.subr.mxu0 0.0
        %711 = vmatpush1.msra.mxu0 %v709
        %712 = vmatprep.subr.mxu0 0.0
        %713 = vmatpush1.msra.mxu0 %v708
        %714 = vmatprep.subr.mxu0 0.0
        %715 = vmatpush1.msra.mxu0 %v707
        %716 = vmatprep.subr.mxu0 0.0
        %717 = vmatpush1.msra.mxu0 %v706
        %718 = vmatprep.subr.mxu0 0.0
        %719 = vmatpush1.msra.mxu0 %v705
        %720 = vmatprep.subr.mxu0 0.0
        %721 = vmatpush1.msra.mxu0 %v704
        %722 = vmatprep.subr.mxu0 0.0
        %723 = vmatpush1.msra.mxu0 %v703
        %724 = vmatprep.subr.mxu0 0.0
        %725 = vmatpush1.msra.mxu0 %v702
        %726 = vmatprep.subr.mxu0 0.0
        %727 = vmatpush1.msra.mxu0 %v701
        %728 = vmatprep.subr.mxu0 0.0
        %729 = vmatpush1.msra.mxu0 %v700
        %730 = vmatprep.subr.mxu0 0.0
        %731 = vmatpush1.msra.mxu0 %v699
        %732 = vmatprep.subr.mxu0 0.0
        %733 = vmatpush1.msra.mxu0 %v698
        %734 = vmatprep.subr.mxu0 0.0
        %735 = vmatpush1.msra.mxu0 %v697
        %736 = vmatprep.subr.mxu0 0.0
        %737 = vmatpush1.msra.mxu0 %v696
        %738 = vmatprep.subr.mxu0 0.0
        %739 = vmatpush1.msra.mxu0 %v695
        %740 = vmatprep.subr.mxu0 0.0
        %741 = vmatpush1.msra.mxu0 %v694
        %742 = vmatprep.subr.mxu0 0.0
        %743 = vmatpush2.msra.mxu0 0.0
        %744 = vmatprep.subr.mxu0 0.0
        %745 = vmatpush2.msra.mxu0 0.0
        %746 = vmatprep.subr.mxu0 0.0
        %747 = vmatpush2.msra.mxu0 0.0
        %748 = vmatprep.subr.mxu0 0.0
        %749 = vmatpush2.msra.mxu0 0.0
        %750 = vmatprep.subr.mxu0 0.0
        %751 = vmatpush2.msra.mxu0 0.0
        %752 = vmatprep.subr.mxu0 0.0
        %753 = vmatpush2.msra.mxu0 0.0
        %754 = vmatprep.subr.mxu0 0.0
        %755 = vmatpush2.msra.mxu0 0.0
        %756 = vmatprep.subr.mxu0 0.0
        %757 = vmatpush2.msra.mxu0 0.0
        %758 = vmatprep.subr.mxu0 0.0
        %759 = vmatpush2.msra.mxu0 0.0
        %760 = vmatprep.subr.mxu0 0.0
        %761 = vmatpush2.msra.mxu0 0.0
        %762 = vmatprep.subr.mxu0 0.0
        %763 = vmatpush2.msra.mxu0 0.0
        %764 = vmatprep.subr.mxu0 0.0
        %765 = vmatpush2.msra.mxu0 0.0
        %766 = vmatprep.subr.mxu0 0.0
        %767 = vmatpush2.msra.mxu0 0.0
        %768 = vmatprep.subr.mxu0 0.0
        %769 = vmatpush2.msra.mxu0 0.0
        %770 = vmatprep.subr.mxu0 0.0
        %771 = vmatpush2.msra.mxu0 0.0
        %772 = vmatprep.subr.mxu0 0.0
        %773 = vmatpush2.msra.mxu0 0.0
        %774 = vmatprep.mubr.f32.mxu0 0.0
        %775 = vmatmul.mubr.f32.gmra.mxu0 %v690
        %v776 = vpop.f32.mrf.mxu0
        %v777 = vadd.f32 0.0, %v776
        %v778 = vpop.f32.mrf.mxu0
        %779 = vmatprep.mubr.f32.mxu0 0.0
        %780 = vmatmul.mubr.f32.gmra.mxu0 %v691
        %v781 = vpop.f32.mrf.mxu0
        %v782 = vadd.f32 0.0, %v781
        %v783 = vpop.f32.mrf.mxu0
        %784 = vmatprep.mubr.f32.mxu0 0.0
        %785 = vmatmul.mubr.f32.gmra.mxu0 %v692
        %v786 = vpop.f32.mrf.mxu0
        %v787 = vadd.f32 0.0, %v786
        %v788 = vpop.f32.mrf.mxu0
        %789 = vdwg.mxu0
        %v790 = vadd.f32 %v687, %v777
        %v791 = vadd.f32 %v688, %v782
        %v792 = vadd.f32 %v689, %v787
        %v793 = vld [vmem:[#allocation4 + $0x4] sm:$0xff]
        %v794 = vld [vmem:[#allocation4 + $0xc] sm:$0xff]
        %v795 = vld [vmem:[#allocation4 + $0x14] sm:$0xff]
        %s796 = scalar_lea.vmem [#allocation5], 512
        %v797 = vld [vmem:[%s796] sm:$0xff]
        %v798 = vld [vmem:[%s796 + $0x8] sm:$0xff]
        %v799 = vld [vmem:[%s796 + $0x10] sm:$0xff]
        %v800 = vld [vmem:[%s796 + $0x18] sm:$0xff]
        %v801 = vld [vmem:[%s796 + $0x20] sm:$0xff]
        %v802 = vld [vmem:[%s796 + $0x28] sm:$0xff]
        %v803 = vld [vmem:[%s796 + $0x30] sm:$0xff]
        %v804 = vld [vmem:[%s796 + $0x38] sm:$0xff]
        %v805 = vld [vmem:[%s796 + $0x40] sm:$0xff]
        %v806 = vld [vmem:[%s796 + $0x48] sm:$0xff]
        %v807 = vld [vmem:[%s796 + $0x50] sm:$0xff]
        %v808 = vld [vmem:[%s796 + $0x58] sm:$0xff]
        %v809 = vld [vmem:[%s796 + $0x60] sm:$0xff]
        %v810 = vld [vmem:[%s796 + $0x68] sm:$0xff]
        %v811 = vld [vmem:[%s796 + $0x70] sm:$0xff]
        %v812 = vld [vmem:[%s796 + $0x78] sm:$0xff]
        %813 = vmatprep.subr.mxu0 0.0
        %814 = vmatpush1.msra.mxu0 %v812
        %815 = vmatprep.subr.mxu0 0.0
        %816 = vmatpush1.msra.mxu0 %v811
        %817 = vmatprep.subr.mxu0 0.0
        %818 = vmatpush1.msra.mxu0 %v810
        %819 = vmatprep.subr.mxu0 0.0
        %820 = vmatpush1.msra.mxu0 %v809
        %821 = vmatprep.subr.mxu0 0.0
        %822 = vmatpush1.msra.mxu0 %v808
        %823 = vmatprep.subr.mxu0 0.0
        %824 = vmatpush1.msra.mxu0 %v807
        %825 = vmatprep.subr.mxu0 0.0
        %826 = vmatpush1.msra.mxu0 %v806
        %827 = vmatprep.subr.mxu0 0.0
        %828 = vmatpush1.msra.mxu0 %v805
        %829 = vmatprep.subr.mxu0 0.0
        %830 = vmatpush1.msra.mxu0 %v804
        %831 = vmatprep.subr.mxu0 0.0
        %832 = vmatpush1.msra.mxu0 %v803
        %833 = vmatprep.subr.mxu0 0.0
        %834 = vmatpush1.msra.mxu0 %v802
        %835 = vmatprep.subr.mxu0 0.0
        %836 = vmatpush1.msra.mxu0 %v801
        %837 = vmatprep.subr.mxu0 0.0
        %838 = vmatpush1.msra.mxu0 %v800
        %839 = vmatprep.subr.mxu0 0.0
        %840 = vmatpush1.msra.mxu0 %v799
        %841 = vmatprep.subr.mxu0 0.0
        %842 = vmatpush1.msra.mxu0 %v798
        %843 = vmatprep.subr.mxu0 0.0
        %844 = vmatpush1.msra.mxu0 %v797
        %845 = vmatprep.subr.mxu0 0.0
        %846 = vmatpush2.msra.mxu0 0.0
        %847 = vmatprep.subr.mxu0 0.0
        %848 = vmatpush2.msra.mxu0 0.0
        %849 = vmatprep.subr.mxu0 0.0
        %850 = vmatpush2.msra.mxu0 0.0
        %851 = vmatprep.subr.mxu0 0.0
        %852 = vmatpush2.msra.mxu0 0.0
        %853 = vmatprep.subr.mxu0 0.0
        %854 = vmatpush2.msra.mxu0 0.0
        %855 = vmatprep.subr.mxu0 0.0
        %856 = vmatpush2.msra.mxu0 0.0
        %857 = vmatprep.subr.mxu0 0.0
        %858 = vmatpush2.msra.mxu0 0.0
        %859 = vmatprep.subr.mxu0 0.0
        %860 = vmatpush2.msra.mxu0 0.0
        %861 = vmatprep.subr.mxu0 0.0
        %862 = vmatpush2.msra.mxu0 0.0
        %863 = vmatprep.subr.mxu0 0.0
        %864 = vmatpush2.msra.mxu0 0.0
        %865 = vmatprep.subr.mxu0 0.0
        %866 = vmatpush2.msra.mxu0 0.0
        %867 = vmatprep.subr.mxu0 0.0
        %868 = vmatpush2.msra.mxu0 0.0
        %869 = vmatprep.subr.mxu0 0.0
        %870 = vmatpush2.msra.mxu0 0.0
        %871 = vmatprep.subr.mxu0 0.0
        %872 = vmatpush2.msra.mxu0 0.0
        %873 = vmatprep.subr.mxu0 0.0
        %874 = vmatpush2.msra.mxu0 0.0
        %875 = vmatprep.subr.mxu0 0.0
        %876 = vmatpush2.msra.mxu0 0.0
        %877 = vmatprep.mubr.f32.mxu0 0.0
        %878 = vmatmul.mubr.f32.gmra.mxu0 %v793
        %v879 = vpop.f32.mrf.mxu0
        %v880 = vadd.f32 0.0, %v879
        %v881 = vpop.f32.mrf.mxu0
        %882 = vmatprep.mubr.f32.mxu0 0.0
        %883 = vmatmul.mubr.f32.gmra.mxu0 %v794
        %v884 = vpop.f32.mrf.mxu0
        %v885 = vadd.f32 0.0, %v884
        %v886 = vpop.f32.mrf.mxu0
        %887 = vmatprep.mubr.f32.mxu0 0.0
        %888 = vmatmul.mubr.f32.gmra.mxu0 %v795
        %v889 = vpop.f32.mrf.mxu0
        %v890 = vadd.f32 0.0, %v889
        %v891 = vpop.f32.mrf.mxu0
        %892 = vdwg.mxu0
        %v893 = vadd.f32 %v790, %v880
        %v894 = vadd.f32 %v791, %v885
        %v895 = vadd.f32 %v792, %v890
        %v896 = vld [vmem:[%s4] sm:$0x1]
        %v898 = vlaneseq
        %v899 = vshrl.u32 %v898, 7
        %v900 = vsub.s32 0, %v899
        %v901 = vrot.slane %v896, %v900
        %v903 = vadd.f32 %v893, %v901
        %v904 = vadd.f32 %v894, %v901
        %v905 = vadd.f32 %v895, %v901
        %v906 = vand.u32 2147483647, %v903
        %vm907 = vcmp.le.f32.partialorder %v906, 0.7853982
        %vm908 = vcmp.lt.s32.totalorder %v903, 0
        %v909 = vand.u32 %v903, 2139095040
        %v910 = vshrl.u32 %v909, 23
        %v911 = vsub.s32 %v910, 127
        %v912 = vand.u32 2147483647, %v903
        %v913 = vand.u32 %v912, 8388607
        %v914 = vor.u32 %v913, 8388608
        %v915 = vsub.s32 0, %v914
        %v916 = vadd.s32 %v911, 1
        %vm917 = vcmp.gt.s32.totalorder %v916, 0
        %v918 = vsel %vm917, %v916, 0
        %v919 = vshrl.u32 %v918, 5
        %v920 = vand.u32 %v918, 31
        %v921 = vsub.s32 32, %v920
        %v922 = vshrl.u32 683565275, %v921
        %v923 = vshll.u32 683565275, %v920
        %v924 = vshrl.u32 2475754826, %v921
        %v925 = vor.u32 %v923, %v924
        %v926 = vshll.u32 2475754826, %v920
        %v927 = vshrl.u32 2131351028, %v921
        %v928 = vor.u32 %v926, %v927
        %v929 = vshll.u32 2131351028, %v920
        %v930 = vshrl.u32 2102212464, %v921
        %v931 = vor.u32 %v929, %v930
        %v932 = vshll.u32 2102212464, %v920
        %v933 = vshrl.u32 920167782, %v921
        %v934 = vor.u32 %v932, %v933
        %v935 = vshll.u32 920167782, %v920
        %v936 = vshrl.u32 1326507024, %v921
        %v937 = vor.u32 %v935, %v936
        %vm938 = vcmp.lt.s32.totalorder %v919, 1
        %vm939 = vcmp.lt.s32.totalorder %v919, 2
        %vm940 = vcmp.lt.s32.totalorder %v919, 3
        %vm941 = vcmp.lt.s32.totalorder %v919, 4
        %v942 = vsel %vm938, %v922, %v925
        %v943 = vsel %vm941, %v931, 2102212464
        %v944 = vsel %vm940, %v928, %v943
        %v945 = vsel %vm939, %v942, %v944
        %v946 = vsel %vm938, %v925, %v928
        %v947 = vsel %vm941, %v934, 920167782
        %v948 = vsel %vm940, %v931, %v947
        %v949 = vsel %vm939, %v946, %v948
        %v950 = vsel %vm938, %v928, %v931
        %v951 = vsel %vm941, %v937, 1326507024
        %v952 = vsel %vm940, %v934, %v951
        %v953 = vsel %vm939, %v950, %v952
        %v954 = vshll.u32 %v914, 8
        %v955 = vmul.u32.u64.compose %v954, %v953
        %v956 = vextract.low.u32 %v955
        %v957 = vextract.high.u32 %v955
        %v958 = vmul.u32.u64.compose %v954, %v949
        %v959 = vextract.low.u32 %v958
        %v960 = vextract.high.u32 %v958
        %v961 = vmul.u32 %v954, %v945
        %v962 = vadd.s32 %v957, %v959
        %vm963 = vc.u32 %v957, %v959
        %v964 = vadd.s32 %v960, 1
        %v965 = vsel %vm963, %v964, %v960
        %v966 = vadd.s32 %v961, %v965
        %v967 = vadd.s32 %v966, 536870912
        %v968 = vshrl.u32 %v967, 30
        %v969 = vshll.u32 %v968, 30
        %v970 = vsub.s32 %v966, %v969
        %vm971 = vcmp.lt.s32.totalorder %v970, 0
        %v972 = vsub.s32 0, %v970
        %v973 = vsel %vm971, %v972, %v970
        %v974 = vclz %v973
        %v975 = vsub.s32 %v974, 2
        %vm976 = vcmp.gt.s32.totalorder 0, %v975
        %v977 = vsel %vm976, 0, %v975
        %v978 = vsub.s32 32, %v977
        %v979 = vshll.u32 %v970, %v977
        %v980 = vshrl.u32 %v962, %v978
        %v981 = vor.u32 %v979, %v980
        %v982 = vsub.s32 4294967266, %v977
        %v983 = vadd.s32 %v982, 127
        %v984 = vshll.u32 %v983, 23
        %v985 = vor.u32 4788187, %v984
        %v986 = vand.u32 2147483647, %v985
        %v988 = vcvt.s32.f32 %v981
        %v989 = vmul.f32 %v988, %v986
        %v990 = vxor.u32 %v989, 2147483648
        %v991 = vsel %vm908, %v990, %v989
        %v992 = vsub.s32 4, %v968
        %v993 = vsel %vm908, %v992, %v968
        %v994 = vsel %vm907, %v903, %v991
        %v995 = vsel %vm907, 0, %v993
        %v996 = vcosq.f32.pop %v994
        %v997 = vsinq.f32.pop %v994
        %vm998 = vweird.f32 %v903
        %v999 = vadd.s32 %v995, 3
        %v1000 = vand.u32 %v999, 3
        %vm1001 = vcmp.lt.s32.totalorder %v1000, 2
        %vm1002 = vcmp.eq.s32.totalorder %v1000, 0
        %v1003 = vxor.u32 %v997, 2147483648
        %v1004 = vsel %vm1002, %v996, %v1003
        %vm1005 = vcmp.eq.s32.totalorder %v1000, 2
        %v1006 = vxor.u32 %v996, 2147483648
        %v1007 = vsel %vm1005, %v1006, %v997
        %v1008 = vsel %vm1001, %v1004, %v1007
        %v1009 = vsel %vm998, nan, %v1008
        %v1010 = vand.u32 2147483647, %v904
        %vm1011 = vcmp.le.f32.partialorder %v1010, 0.7853982
        %vm1012 = vcmp.lt.s32.totalorder %v904, 0
        %v1013 = vand.u32 %v904, 2139095040
        %v1014 = vshrl.u32 %v1013, 23
        %v1015 = vsub.s32 %v1014, 127
        %v1016 = vand.u32 2147483647, %v904
        %v1017 = vand.u32 %v1016, 8388607
        %v1018 = vor.u32 %v1017, 8388608
        %v1019 = vsub.s32 0, %v1018
        %v1020 = vadd.s32 %v1015, 1
        %vm1021 = vcmp.gt.s32.totalorder %v1020, 0
        %v1022 = vsel %vm1021, %v1020, 0
        %v1023 = vshrl.u32 %v1022, 5
        %v1024 = vand.u32 %v1022, 31
        %v1025 = vsub.s32 32, %v1024
        %v1026 = vshrl.u32 683565275, %v1025
        %v1027 = vshll.u32 683565275, %v1024
        %v1028 = vshrl.u32 2475754826, %v1025
        %v1029 = vor.u32 %v1027, %v1028
        %v1030 = vshll.u32 2475754826, %v1024
        %v1031 = vshrl.u32 2131351028, %v1025
        %v1032 = vor.u32 %v1030, %v1031
        %v1033 = vshll.u32 2131351028, %v1024
        %v1034 = vshrl.u32 2102212464, %v1025
        %v1035 = vor.u32 %v1033, %v1034
        %v1036 = vshll.u32 2102212464, %v1024
        %v1037 = vshrl.u32 920167782, %v1025
        %v1038 = vor.u32 %v1036, %v1037
        %v1039 = vshll.u32 920167782, %v1024
        %v1040 = vshrl.u32 1326507024, %v1025
        %v1041 = vor.u32 %v1039, %v1040
        %vm1042 = vcmp.lt.s32.totalorder %v1023, 1
        %vm1043 = vcmp.lt.s32.totalorder %v1023, 2
        %vm1044 = vcmp.lt.s32.totalorder %v1023, 3
        %vm1045 = vcmp.lt.s32.totalorder %v1023, 4
        %v1046 = vsel %vm1042, %v1026, %v1029
        %v1047 = vsel %vm1045, %v1035, 2102212464
        %v1048 = vsel %vm1044, %v1032, %v1047
        %v1049 = vsel %vm1043, %v1046, %v1048
        %v1050 = vsel %vm1042, %v1029, %v1032
        %v1051 = vsel %vm1045, %v1038, 920167782
        %v1052 = vsel %vm1044, %v1035, %v1051
        %v1053 = vsel %vm1043, %v1050, %v1052
        %v1054 = vsel %vm1042, %v1032, %v1035
        %v1055 = vsel %vm1045, %v1041, 1326507024
        %v1056 = vsel %vm1044, %v1038, %v1055
        %v1057 = vsel %vm1043, %v1054, %v1056
        %v1058 = vshll.u32 %v1018, 8
        %v1059 = vmul.u32.u64.compose %v1058, %v1057
        %v1060 = vextract.low.u32 %v1059
        %v1061 = vextract.high.u32 %v1059
        %v1062 = vmul.u32.u64.compose %v1058, %v1053
        %v1063 = vextract.low.u32 %v1062
        %v1064 = vextract.high.u32 %v1062
        %v1065 = vmul.u32 %v1058, %v1049
        %v1066 = vadd.s32 %v1061, %v1063
        %vm1067 = vc.u32 %v1061, %v1063
        %v1068 = vadd.s32 %v1064, 1
        %v1069 = vsel %vm1067, %v1068, %v1064
        %v1070 = vadd.s32 %v1065, %v1069
        %v1071 = vadd.s32 %v1070, 536870912
        %v1072 = vshrl.u32 %v1071, 30
        %v1073 = vshll.u32 %v1072, 30
        %v1074 = vsub.s32 %v1070, %v1073
        %vm1075 = vcmp.lt.s32.totalorder %v1074, 0
        %v1076 = vsub.s32 0, %v1074
        %v1077 = vsel %vm1075, %v1076, %v1074
        %v1078 = vclz %v1077
        %v1079 = vsub.s32 %v1078, 2
        %vm1080 = vcmp.gt.s32.totalorder 0, %v1079
        %v1081 = vsel %vm1080, 0, %v1079
        %v1082 = vsub.s32 32, %v1081
        %v1083 = vshll.u32 %v1074, %v1081
        %v1084 = vshrl.u32 %v1066, %v1082
        %v1085 = vor.u32 %v1083, %v1084
        %v1086 = vsub.s32 4294967266, %v1081
        %v1087 = vadd.s32 %v1086, 127
        %v1088 = vshll.u32 %v1087, 23
        %v1089 = vor.u32 4788187, %v1088
        %v1090 = vand.u32 2147483647, %v1089
        %v1092 = vcvt.s32.f32 %v1085
        %v1093 = vmul.f32 %v1092, %v1090
        %v1094 = vxor.u32 %v1093, 2147483648
        %v1095 = vsel %vm1012, %v1094, %v1093
        %v1096 = vsub.s32 4, %v1072
        %v1097 = vsel %vm1012, %v1096, %v1072
        %v1098 = vsel %vm1011, %v904, %v1095
        %v1099 = vsel %vm1011, 0, %v1097
        %v1100 = vcosq.f32.pop %v1098
        %v1101 = vsinq.f32.pop %v1098
        %vm1102 = vweird.f32 %v904
        %v1103 = vadd.s32 %v1099, 3
        %v1104 = vand.u32 %v1103, 3
        %vm1105 = vcmp.lt.s32.totalorder %v1104, 2
        %vm1106 = vcmp.eq.s32.totalorder %v1104, 0
        %v1107 = vxor.u32 %v1101, 2147483648
        %v1108 = vsel %vm1106, %v1100, %v1107
        %vm1109 = vcmp.eq.s32.totalorder %v1104, 2
        %v1110 = vxor.u32 %v1100, 2147483648
        %v1111 = vsel %vm1109, %v1110, %v1101
        %v1112 = vsel %vm1105, %v1108, %v1111
        %v1113 = vsel %vm1102, nan, %v1112
        %v1114 = vand.u32 2147483647, %v905
        %vm1115 = vcmp.le.f32.partialorder %v1114, 0.7853982
        %vm1116 = vcmp.lt.s32.totalorder %v905, 0
        %v1117 = vand.u32 %v905, 2139095040
        %v1118 = vshrl.u32 %v1117, 23
        %v1119 = vsub.s32 %v1118, 127
        %v1120 = vand.u32 2147483647, %v905
        %v1121 = vand.u32 %v1120, 8388607
        %v1122 = vor.u32 %v1121, 8388608
        %v1123 = vsub.s32 0, %v1122
        %v1124 = vadd.s32 %v1119, 1
        %vm1125 = vcmp.gt.s32.totalorder %v1124, 0
        %v1126 = vsel %vm1125, %v1124, 0
        %v1127 = vshrl.u32 %v1126, 5
        %v1128 = vand.u32 %v1126, 31
        %v1129 = vsub.s32 32, %v1128
        %v1130 = vshrl.u32 683565275, %v1129
        %v1131 = vshll.u32 683565275, %v1128
        %v1132 = vshrl.u32 2475754826, %v1129
        %v1133 = vor.u32 %v1131, %v1132
        %v1134 = vshll.u32 2475754826, %v1128
        %v1135 = vshrl.u32 2131351028, %v1129
        %v1136 = vor.u32 %v1134, %v1135
        %v1137 = vshll.u32 2131351028, %v1128
        %v1138 = vshrl.u32 2102212464, %v1129
        %v1139 = vor.u32 %v1137, %v1138
        %v1140 = vshll.u32 2102212464, %v1128
        %v1141 = vshrl.u32 920167782, %v1129
        %v1142 = vor.u32 %v1140, %v1141
        %v1143 = vshll.u32 920167782, %v1128
        %v1144 = vshrl.u32 1326507024, %v1129
        %v1145 = vor.u32 %v1143, %v1144
        %vm1146 = vcmp.lt.s32.totalorder %v1127, 1
        %vm1147 = vcmp.lt.s32.totalorder %v1127, 2
        %vm1148 = vcmp.lt.s32.totalorder %v1127, 3
        %vm1149 = vcmp.lt.s32.totalorder %v1127, 4
        %v1150 = vsel %vm1146, %v1130, %v1133
        %v1151 = vsel %vm1149, %v1139, 2102212464
        %v1152 = vsel %vm1148, %v1136, %v1151
        %v1153 = vsel %vm1147, %v1150, %v1152
        %v1154 = vsel %vm1146, %v1133, %v1136
        %v1155 = vsel %vm1149, %v1142, 920167782
        %v1156 = vsel %vm1148, %v1139, %v1155
        %v1157 = vsel %vm1147, %v1154, %v1156
        %v1158 = vsel %vm1146, %v1136, %v1139
        %v1159 = vsel %vm1149, %v1145, 1326507024
        %v1160 = vsel %vm1148, %v1142, %v1159
        %v1161 = vsel %vm1147, %v1158, %v1160
        %v1162 = vshll.u32 %v1122, 8
        %v1163 = vmul.u32.u64.compose %v1162, %v1161
        %v1164 = vextract.low.u32 %v1163
        %v1165 = vextract.high.u32 %v1163
        %v1166 = vmul.u32.u64.compose %v1162, %v1157
        %v1167 = vextract.low.u32 %v1166
        %v1168 = vextract.high.u32 %v1166
        %v1169 = vmul.u32 %v1162, %v1153
        %v1170 = vadd.s32 %v1165, %v1167
        %vm1171 = vc.u32 %v1165, %v1167
        %v1172 = vadd.s32 %v1168, 1
        %v1173 = vsel %vm1171, %v1172, %v1168
        %v1174 = vadd.s32 %v1169, %v1173
        %v1175 = vadd.s32 %v1174, 536870912
        %v1176 = vshrl.u32 %v1175, 30
        %v1177 = vshll.u32 %v1176, 30
        %v1178 = vsub.s32 %v1174, %v1177
        %vm1179 = vcmp.lt.s32.totalorder %v1178, 0
        %v1180 = vsub.s32 0, %v1178
        %v1181 = vsel %vm1179, %v1180, %v1178
        %v1182 = vclz %v1181
        %v1183 = vsub.s32 %v1182, 2
        %vm1184 = vcmp.gt.s32.totalorder 0, %v1183
        %v1185 = vsel %vm1184, 0, %v1183
        %v1186 = vsub.s32 32, %v1185
        %v1187 = vshll.u32 %v1178, %v1185
        %v1188 = vshrl.u32 %v1170, %v1186
        %v1189 = vor.u32 %v1187, %v1188
        %v1190 = vsub.s32 4294967266, %v1185
        %v1191 = vadd.s32 %v1190, 127
        %v1192 = vshll.u32 %v1191, 23
        %v1193 = vor.u32 4788187, %v1192
        %v1194 = vand.u32 2147483647, %v1193
        %v1196 = vcvt.s32.f32 %v1189
        %v1197 = vmul.f32 %v1196, %v1194
        %v1198 = vxor.u32 %v1197, 2147483648
        %v1199 = vsel %vm1116, %v1198, %v1197
        %v1200 = vsub.s32 4, %v1176
        %v1201 = vsel %vm1116, %v1200, %v1176
        %v1202 = vsel %vm1115, %v905, %v1199
        %v1203 = vsel %vm1115, 0, %v1201
        %v1204 = vcosq.f32.pop %v1202
        %v1205 = vsinq.f32.pop %v1202
        %vm1206 = vweird.f32 %v905
        %v1207 = vadd.s32 %v1203, 3
        %v1208 = vand.u32 %v1207, 3
        %vm1209 = vcmp.lt.s32.totalorder %v1208, 2
        %vm1210 = vcmp.eq.s32.totalorder %v1208, 0
        %v1211 = vxor.u32 %v1205, 2147483648
        %v1212 = vsel %vm1210, %v1204, %v1211
        %vm1213 = vcmp.eq.s32.totalorder %v1208, 2
        %v1214 = vxor.u32 %v1204, 2147483648
        %v1215 = vsel %vm1213, %v1214, %v1205
        %v1216 = vsel %vm1209, %v1212, %v1215
        %v1217 = vsel %vm1206, nan, %v1216
        %v1218 = vld [vmem:[%s5] sm:$0x1]
        %v1220 = vlaneseq
        %v1221 = vshrl.u32 %v1220, 7
        %v1222 = vsub.s32 0, %v1221
        %v1223 = vrot.slane %v1218, %v1222
        %v1225 = vmul.f32 %v1009, %v1223
        %v1226 = vmul.f32 %v1113, %v1223
        %v1227 = vmul.f32 %v1217, %v1223
        %1228 = vst [vmem:[#allocation4] sm:$0xff] %v1225
        %1229 = vst [vmem:[#allocation4 + $0x8] sm:$0xff] %v1226
        %1230 = vst [vmem:[#allocation4 + $0x10] sm:$0xff] %v1227
        %s1231 = sadd.s32 %s368, 4294967292
        %p1232 = scmp.lt.s32.totalorder %s1231, 0
        %s1233 = sadd.s32 %s368, 20
        %p1234 = scmp.gt.s32.totalorder %s1233, 16
        %p1235 = por %p1232, %p1234
        // Predicated region
        $region98: #{tpu_custom_call.1} parent=43 // pred_check
          %p1236 = pneg %p1235
        $region99: #{tpu_custom_call.1} parent=43 // pred_check_branch
          %1238 = sbr.rel (%p1236) target = $region101
        $region100: #{tpu_custom_call.1} parent=43 // pred_region
          %v1239 = vstv %s1231
          %v1240 = vadd.s32 %v1239, %v385
          %v1241 = vadd.s32 %v1239, %v386
          %v1242 = vadd.s32 %v1239, %v387
          %vm1243 = vcmp.ge.s32.totalorder %v1240, 0
          %vm1244 = vcmp.ge.s32.totalorder %v1241, 0
          %vm1245 = vcmp.ge.s32.totalorder %v1242, 0
          %vm1246 = vcmp.lt.s32.totalorder %v1240, 16
          %vm1247 = vcmp.lt.s32.totalorder %v1241, 16
          %vm1248 = vcmp.lt.s32.totalorder %v1242, 16
          %vm1249 = vmand %vm1243, %vm1246
          %vm1250 = vmand %vm1244, %vm1247
          %vm1251 = vmand %vm1245, %vm1248
          %v1252 = vsel %vm1249, 1, 0
          %v1253 = vsel %vm1250, 1, 0
          %v1254 = vsel %vm1251, 1, 0
          %vm1255 = vcmp.eq.s32.totalorder %v1252, 1
          %vm1256 = vcmp.eq.s32.totalorder %v1253, 1
          %vm1257 = vcmp.eq.s32.totalorder %v1254, 1
          %v1258 = vsel %vm1255, %v1225, 0.0
          %v1259 = vsel %vm1256, %v1226, 0.0
          %v1260 = vsel %vm1257, %v1227, 0.0
          %1261 = vst [vmem:[#allocation4] sm:$0xff] %v1258
          %1262 = vst [vmem:[#allocation4 + $0x8] sm:$0xff] %v1259
          %1263 = vst [vmem:[#allocation4 + $0x10] sm:$0xff] %v1260
        $region101: #{tpu_custom_call.1} parent=43 // pred_fallthru
          _
        %v1264 = vld [vmem:[#allocation4] sm:$0xff]
        %v1265 = vld [vmem:[#allocation4 + $0x8] sm:$0xff]
        %v1266 = vld [vmem:[#allocation4 + $0x10] sm:$0xf]
        %v1267 = vld [vmem:[#allocation8] sm:$0xff]
        %v1268 = vld [vmem:[#allocation8 + $0x8] sm:$0xff]
        %v1269 = vld [vmem:[#allocation8 + $0x10] sm:$0xff]
        %v1270 = vld [vmem:[#allocation8 + $0x18] sm:$0xff]
        %v1271 = vld [vmem:[#allocation8 + $0x20] sm:$0xff]
        %v1272 = vld [vmem:[#allocation8 + $0x28] sm:$0xff]
        %v1273 = vld [vmem:[#allocation8 + $0x30] sm:$0xff]
        %v1274 = vld [vmem:[#allocation8 + $0x38] sm:$0xff]
        %v1275 = vld [vmem:[#allocation8 + $0x40] sm:$0xff]
        %v1276 = vld [vmem:[#allocation8 + $0x48] sm:$0xff]
        %v1277 = vld [vmem:[#allocation8 + $0x50] sm:$0xff]
        %v1278 = vld [vmem:[#allocation8 + $0x58] sm:$0xff]
        %v1279 = vld [vmem:[#allocation8 + $0x60] sm:$0xff]
        %v1280 = vld [vmem:[#allocation8 + $0x68] sm:$0xff]
        %v1281 = vld [vmem:[#allocation8 + $0x70] sm:$0xff]
        %v1282 = vld [vmem:[#allocation8 + $0x78] sm:$0xff]
        %v1283 = vld [vmem:[#allocation4 + $0x1] sm:$0xff]
        %v1284 = vld [vmem:[#allocation4 + $0x9] sm:$0xff]
        %v1285 = vld [vmem:[#allocation4 + $0x11] sm:$0xf]
        %s1286 = scalar_lea.vmem [#allocation8], 128
        %v1287 = vld [vmem:[%s1286] sm:$0xff]
        %v1288 = vld [vmem:[%s1286 + $0x8] sm:$0xff]
        %v1289 = vld [vmem:[%s1286 + $0x10] sm:$0xff]
        %v1290 = vld [vmem:[%s1286 + $0x18] sm:$0xff]
        %v1291 = vld [vmem:[%s1286 + $0x20] sm:$0xff]
        %v1292 = vld [vmem:[%s1286 + $0x28] sm:$0xff]
        %v1293 = vld [vmem:[%s1286 + $0x30] sm:$0xff]
        %v1294 = vld [vmem:[%s1286 + $0x38] sm:$0xff]
        %v1295 = vld [vmem:[%s1286 + $0x40] sm:$0xff]
        %v1296 = vld [vmem:[%s1286 + $0x48] sm:$0xff]
        %v1297 = vld [vmem:[%s1286 + $0x50] sm:$0xff]
        %v1298 = vld [vmem:[%s1286 + $0x58] sm:$0xff]
        %v1299 = vld [vmem:[%s1286 + $0x60] sm:$0xff]
        %v1300 = vld [vmem:[%s1286 + $0x68] sm:$0xff]
        %v1301 = vld [vmem:[%s1286 + $0x70] sm:$0xff]
        %v1302 = vld [vmem:[%s1286 + $0x78] sm:$0xff]
        %1303 = vmatprep.subr.mxu0 0.0
        %1304 = vmatpush1.msra.mxu0 %v1302
        %1305 = vmatprep.subr.mxu0 0.0
        %1306 = vmatpush1.msra.mxu0 %v1301
        %1307 = vmatprep.subr.mxu0 0.0
        %1308 = vmatpush1.msra.mxu0 %v1300
        %1309 = vmatprep.subr.mxu0 0.0
        %1310 = vmatpush1.msra.mxu0 %v1299
        %1311 = vmatprep.subr.mxu0 0.0
        %1312 = vmatpush1.msra.mxu0 %v1298
        %1313 = vmatprep.subr.mxu0 0.0
        %1314 = vmatpush1.msra.mxu0 %v1297
        %1315 = vmatprep.subr.mxu0 0.0
        %1316 = vmatpush1.msra.mxu0 %v1296
        %1317 = vmatprep.subr.mxu0 0.0
        %1318 = vmatpush1.msra.mxu0 %v1295
        %1319 = vmatprep.subr.mxu0 0.0
        %1320 = vmatpush1.msra.mxu0 %v1294
        %1321 = vmatprep.subr.mxu0 0.0
        %1322 = vmatpush1.msra.mxu0 %v1293
        %1323 = vmatprep.subr.mxu0 0.0
        %1324 = vmatpush1.msra.mxu0 %v1292
        %1325 = vmatprep.subr.mxu0 0.0
        %1326 = vmatpush1.msra.mxu0 %v1291
        %1327 = vmatprep.subr.mxu0 0.0
        %1328 = vmatpush1.msra.mxu0 %v1290
        %1329 = vmatprep.subr.mxu0 0.0
        %1330 = vmatpush1.msra.mxu0 %v1289
        %1331 = vmatprep.subr.mxu0 0.0
        %1332 = vmatpush1.msra.mxu0 %v1288
        %1333 = vmatprep.subr.mxu0 0.0
        %1334 = vmatpush1.msra.mxu0 %v1287
        %1335 = vmatprep.subr.mxu0 0.0
        %1336 = vmatpush2.msra.mxu0 0.0
        %1337 = vmatprep.subr.mxu0 0.0
        %1338 = vmatpush2.msra.mxu0 0.0
        %1339 = vmatprep.subr.mxu0 0.0
        %1340 = vmatpush2.msra.mxu0 0.0
        %1341 = vmatprep.subr.mxu0 0.0
        %1342 = vmatpush2.msra.mxu0 0.0
        %1343 = vmatprep.subr.mxu0 0.0
        %1344 = vmatpush2.msra.mxu0 0.0
        %1345 = vmatprep.subr.mxu0 0.0
        %1346 = vmatpush2.msra.mxu0 0.0
        %1347 = vmatprep.subr.mxu0 0.0
        %1348 = vmatpush2.msra.mxu0 0.0
        %1349 = vmatprep.subr.mxu0 0.0
        %1350 = vmatpush2.msra.mxu0 0.0
        %1351 = vmatprep.subr.mxu0 0.0
        %1352 = vmatpush2.msra.mxu0 0.0
        %1353 = vmatprep.subr.mxu0 0.0
        %1354 = vmatpush2.msra.mxu0 0.0
        %1355 = vmatprep.subr.mxu0 0.0
        %1356 = vmatpush2.msra.mxu0 0.0
        %1357 = vmatprep.subr.mxu0 0.0
        %1358 = vmatpush2.msra.mxu0 0.0
        %1359 = vmatprep.subr.mxu0 0.0
        %1360 = vmatpush2.msra.mxu0 0.0
        %1361 = vmatprep.subr.mxu0 0.0
        %1362 = vmatpush2.msra.mxu0 0.0
        %1363 = vmatprep.subr.mxu0 0.0
        %1364 = vmatpush2.msra.mxu0 0.0
        %1365 = vmatprep.subr.mxu0 0.0
        %1366 = vmatpush2.msra.mxu0 0.0
        %1367 = vmatprep.mubr.f32.mxu0 0.0
        %1368 = vmatmul.mubr.f32.gmra.mxu0 %v1283
        %v1369 = vpop.f32.mrf.mxu0
        %v1370 = vadd.f32 0.0, %v1369
        %v1371 = vpop.f32.mrf.mxu0
        %1372 = vmatprep.mubr.f32.mxu0 0.0
        %1373 = vmatmul.mubr.f32.gmra.mxu0 %v1284
        %v1374 = vpop.f32.mrf.mxu0
        %v1375 = vadd.f32 0.0, %v1374
        %v1376 = vpop.f32.mrf.mxu0
        %1377 = vmatprep.mubr.f32.mxu0 0.0
        %1378 = vmatmul.mubr.f32.gmra.mxu0 %v1285
        %v1379 = vpop.f32.mrf.mxu0
        %v1380 = vadd.f32 0.0, %v1379
        %v1381 = vpop.f32.mrf.mxu0
        %1382 = vdwg.mxu0
        %1383 = vmatprep.subr.mxu0 0.0
        %1384 = vmatpush1.msra.mxu0 %v1282
        %1385 = vmatprep.subr.mxu0 0.0
        %1386 = vmatpush1.msra.mxu0 %v1281
        %1387 = vmatprep.subr.mxu0 0.0
        %1388 = vmatpush1.msra.mxu0 %v1280
        %1389 = vmatprep.subr.mxu0 0.0
        %1390 = vmatpush1.msra.mxu0 %v1279
        %1391 = vmatprep.subr.mxu0 0.0
        %1392 = vmatpush1.msra.mxu0 %v1278
        %1393 = vmatprep.subr.mxu0 0.0
        %1394 = vmatpush1.msra.mxu0 %v1277
        %1395 = vmatprep.subr.mxu0 0.0
        %1396 = vmatpush1.msra.mxu0 %v1276
        %1397 = vmatprep.subr.mxu0 0.0
        %1398 = vmatpush1.msra.mxu0 %v1275
        %1399 = vmatprep.subr.mxu0 0.0
        %1400 = vmatpush1.msra.mxu0 %v1274
        %1401 = vmatprep.subr.mxu0 0.0
        %1402 = vmatpush1.msra.mxu0 %v1273
        %1403 = vmatprep.subr.mxu0 0.0
        %1404 = vmatpush1.msra.mxu0 %v1272
        %1405 = vmatprep.subr.mxu0 0.0
        %1406 = vmatpush1.msra.mxu0 %v1271
        %1407 = vmatprep.subr.mxu0 0.0
        %1408 = vmatpush1.msra.mxu0 %v1270
        %1409 = vmatprep.subr.mxu0 0.0
        %1410 = vmatpush1.msra.mxu0 %v1269
        %1411 = vmatprep.subr.mxu0 0.0
        %1412 = vmatpush1.msra.mxu0 %v1268
        %1413 = vmatprep.subr.mxu0 0.0
        %1414 = vmatpush1.msra.mxu0 %v1267
        %1415 = vmatprep.subr.mxu0 0.0
        %1416 = vmatpush2.msra.mxu0 0.0
        %1417 = vmatprep.subr.mxu0 0.0
        %1418 = vmatpush2.msra.mxu0 0.0
        %1419 = vmatprep.subr.mxu0 0.0
        %1420 = vmatpush2.msra.mxu0 0.0
        %1421 = vmatprep.subr.mxu0 0.0
        %1422 = vmatpush2.msra.mxu0 0.0
        %1423 = vmatprep.subr.mxu0 0.0
        %1424 = vmatpush2.msra.mxu0 0.0
        %1425 = vmatprep.subr.mxu0 0.0
        %1426 = vmatpush2.msra.mxu0 0.0
        %1427 = vmatprep.subr.mxu0 0.0
        %1428 = vmatpush2.msra.mxu0 0.0
        %1429 = vmatprep.subr.mxu0 0.0
        %1430 = vmatpush2.msra.mxu0 0.0
        %1431 = vmatprep.subr.mxu0 0.0
        %1432 = vmatpush2.msra.mxu0 0.0
        %1433 = vmatprep.subr.mxu0 0.0
        %1434 = vmatpush2.msra.mxu0 0.0
        %1435 = vmatprep.subr.mxu0 0.0
        %1436 = vmatpush2.msra.mxu0 0.0
        %1437 = vmatprep.subr.mxu0 0.0
        %1438 = vmatpush2.msra.mxu0 0.0
        %1439 = vmatprep.subr.mxu0 0.0
        %1440 = vmatpush2.msra.mxu0 0.0
        %1441 = vmatprep.subr.mxu0 0.0
        %1442 = vmatpush2.msra.mxu0 0.0
        %1443 = vmatprep.subr.mxu0 0.0
        %1444 = vmatpush2.msra.mxu0 0.0
        %1445 = vmatprep.subr.mxu0 0.0
        %1446 = vmatpush2.msra.mxu0 0.0
        %1447 = vmatprep.mubr.f32.mxu0 0.0
        %1448 = vmatmul.mubr.f32.gmra.mxu0 %v1264
        %v1449 = vpop.f32.mrf.mxu0
        %v1450 = vadd.f32 %v1370, %v1449
        %v1451 = vpop.f32.mrf.mxu0
        %1452 = vmatprep.mubr.f32.mxu0 0.0
        %1453 = vmatmul.mubr.f32.gmra.mxu0 %v1265
        %v1454 = vpop.f32.mrf.mxu0
        %v1455 = vadd.f32 %v1375, %v1454
        %v1456 = vpop.f32.mrf.mxu0
        %1457 = vmatprep.mubr.f32.mxu0 0.0
        %1458 = vmatmul.mubr.f32.gmra.mxu0 %v1266
        %v1459 = vpop.f32.mrf.mxu0
        %v1460 = vadd.f32 %v1380, %v1459
        %v1461 = vpop.f32.mrf.mxu0
        %1462 = vdwg.mxu0
        %v1463 = vld [vmem:[#allocation4 + $0x2] sm:$0xff]
        %v1464 = vld [vmem:[#allocation4 + $0xa] sm:$0xff]
        %v1465 = vld [vmem:[#allocation4 + $0x12] sm:$0xf]
        %s1466 = scalar_lea.vmem [#allocation8], 256
        %v1467 = vld [vmem:[%s1466] sm:$0xff]
        %v1468 = vld [vmem:[%s1466 + $0x8] sm:$0xff]
        %v1469 = vld [vmem:[%s1466 + $0x10] sm:$0xff]
        %v1470 = vld [vmem:[%s1466 + $0x18] sm:$0xff]
        %v1471 = vld [vmem:[%s1466 + $0x20] sm:$0xff]
        %v1472 = vld [vmem:[%s1466 + $0x28] sm:$0xff]
        %v1473 = vld [vmem:[%s1466 + $0x30] sm:$0xff]
        %v1474 = vld [vmem:[%s1466 + $0x38] sm:$0xff]
        %v1475 = vld [vmem:[%s1466 + $0x40] sm:$0xff]
        %v1476 = vld [vmem:[%s1466 + $0x48] sm:$0xff]
        %v1477 = vld [vmem:[%s1466 + $0x50] sm:$0xff]
        %v1478 = vld [vmem:[%s1466 + $0x58] sm:$0xff]
        %v1479 = vld [vmem:[%s1466 + $0x60] sm:$0xff]
        %v1480 = vld [vmem:[%s1466 + $0x68] sm:$0xff]
        %v1481 = vld [vmem:[%s1466 + $0x70] sm:$0xff]
        %v1482 = vld [vmem:[%s1466 + $0x78] sm:$0xff]
        %1483 = vmatprep.subr.mxu0 0.0
        %1484 = vmatpush1.msra.mxu0 %v1482
        %1485 = vmatprep.subr.mxu0 0.0
        %1486 = vmatpush1.msra.mxu0 %v1481
        %1487 = vmatprep.subr.mxu0 0.0
        %1488 = vmatpush1.msra.mxu0 %v1480
        %1489 = vmatprep.subr.mxu0 0.0
        %1490 = vmatpush1.msra.mxu0 %v1479
        %1491 = vmatprep.subr.mxu0 0.0
        %1492 = vmatpush1.msra.mxu0 %v1478
        %1493 = vmatprep.subr.mxu0 0.0
        %1494 = vmatpush1.msra.mxu0 %v1477
        %1495 = vmatprep.subr.mxu0 0.0
        %1496 = vmatpush1.msra.mxu0 %v1476
        %1497 = vmatprep.subr.mxu0 0.0
        %1498 = vmatpush1.msra.mxu0 %v1475
        %1499 = vmatprep.subr.mxu0 0.0
        %1500 = vmatpush1.msra.mxu0 %v1474
        %1501 = vmatprep.subr.mxu0 0.0
        %1502 = vmatpush1.msra.mxu0 %v1473
        %1503 = vmatprep.subr.mxu0 0.0
        %1504 = vmatpush1.msra.mxu0 %v1472
        %1505 = vmatprep.subr.mxu0 0.0
        %1506 = vmatpush1.msra.mxu0 %v1471
        %1507 = vmatprep.subr.mxu0 0.0
        %1508 = vmatpush1.msra.mxu0 %v1470
        %1509 = vmatprep.subr.mxu0 0.0
        %1510 = vmatpush1.msra.mxu0 %v1469
        %1511 = vmatprep.subr.mxu0 0.0
        %1512 = vmatpush1.msra.mxu0 %v1468
        %1513 = vmatprep.subr.mxu0 0.0
        %1514 = vmatpush1.msra.mxu0 %v1467
        %1515 = vmatprep.subr.mxu0 0.0
        %1516 = vmatpush2.msra.mxu0 0.0
        %1517 = vmatprep.subr.mxu0 0.0
        %1518 = vmatpush2.msra.mxu0 0.0
        %1519 = vmatprep.subr.mxu0 0.0
        %1520 = vmatpush2.msra.mxu0 0.0
        %1521 = vmatprep.subr.mxu0 0.0
        %1522 = vmatpush2.msra.mxu0 0.0
        %1523 = vmatprep.subr.mxu0 0.0
        %1524 = vmatpush2.msra.mxu0 0.0
        %1525 = vmatprep.subr.mxu0 0.0
        %1526 = vmatpush2.msra.mxu0 0.0
        %1527 = vmatprep.subr.mxu0 0.0
        %1528 = vmatpush2.msra.mxu0 0.0
        %1529 = vmatprep.subr.mxu0 0.0
        %1530 = vmatpush2.msra.mxu0 0.0
        %1531 = vmatprep.subr.mxu0 0.0
        %1532 = vmatpush2.msra.mxu0 0.0
        %1533 = vmatprep.subr.mxu0 0.0
        %1534 = vmatpush2.msra.mxu0 0.0
        %1535 = vmatprep.subr.mxu0 0.0
        %1536 = vmatpush2.msra.mxu0 0.0
        %1537 = vmatprep.subr.mxu0 0.0
        %1538 = vmatpush2.msra.mxu0 0.0
        %1539 = vmatprep.subr.mxu0 0.0
        %1540 = vmatpush2.msra.mxu0 0.0
        %1541 = vmatprep.subr.mxu0 0.0
        %1542 = vmatpush2.msra.mxu0 0.0
        %1543 = vmatprep.subr.mxu0 0.0
        %1544 = vmatpush2.msra.mxu0 0.0
        %1545 = vmatprep.subr.mxu0 0.0
        %1546 = vmatpush2.msra.mxu0 0.0
        %1547 = vmatprep.mubr.f32.mxu0 0.0
        %1548 = vmatmul.mubr.f32.gmra.mxu0 %v1463
        %v1549 = vpop.f32.mrf.mxu0
        %v1550 = vadd.f32 0.0, %v1549
        %v1551 = vpop.f32.mrf.mxu0
        %1552 = vmatprep.mubr.f32.mxu0 0.0
        %1553 = vmatmul.mubr.f32.gmra.mxu0 %v1464
        %v1554 = vpop.f32.mrf.mxu0
        %v1555 = vadd.f32 0.0, %v1554
        %v1556 = vpop.f32.mrf.mxu0
        %1557 = vmatprep.mubr.f32.mxu0 0.0
        %1558 = vmatmul.mubr.f32.gmra.mxu0 %v1465
        %v1559 = vpop.f32.mrf.mxu0
        %v1560 = vadd.f32 0.0, %v1559
        %v1561 = vpop.f32.mrf.mxu0
        %1562 = vdwg.mxu0
        %v1563 = vadd.f32 %v1450, %v1550
        %v1564 = vadd.f32 %v1455, %v1555
        %v1565 = vadd.f32 %v1460, %v1560
        %v1566 = vld [vmem:[#allocation4 + $0x3] sm:$0xff]
        %v1567 = vld [vmem:[#allocation4 + $0xb] sm:$0xff]
        %v1568 = vld [vmem:[#allocation4 + $0x13] sm:$0xf]
        %s1569 = scalar_lea.vmem [#allocation8], 384
        %v1570 = vld [vmem:[%s1569] sm:$0xff]
        %v1571 = vld [vmem:[%s1569 + $0x8] sm:$0xff]
        %v1572 = vld [vmem:[%s1569 + $0x10] sm:$0xff]
        %v1573 = vld [vmem:[%s1569 + $0x18] sm:$0xff]
        %v1574 = vld [vmem:[%s1569 + $0x20] sm:$0xff]
        %v1575 = vld [vmem:[%s1569 + $0x28] sm:$0xff]
        %v1576 = vld [vmem:[%s1569 + $0x30] sm:$0xff]
        %v1577 = vld [vmem:[%s1569 + $0x38] sm:$0xff]
        %v1578 = vld [vmem:[%s1569 + $0x40] sm:$0xff]
        %v1579 = vld [vmem:[%s1569 + $0x48] sm:$0xff]
        %v1580 = vld [vmem:[%s1569 + $0x50] sm:$0xff]
        %v1581 = vld [vmem:[%s1569 + $0x58] sm:$0xff]
        %v1582 = vld [vmem:[%s1569 + $0x60] sm:$0xff]
        %v1583 = vld [vmem:[%s1569 + $0x68] sm:$0xff]
        %v1584 = vld [vmem:[%s1569 + $0x70] sm:$0xff]
        %v1585 = vld [vmem:[%s1569 + $0x78] sm:$0xff]
        %1586 = vmatprep.subr.mxu0 0.0
        %1587 = vmatpush1.msra.mxu0 %v1585
        %1588 = vmatprep.subr.mxu0 0.0
        %1589 = vmatpush1.msra.mxu0 %v1584
        %1590 = vmatprep.subr.mxu0 0.0
        %1591 = vmatpush1.msra.mxu0 %v1583
        %1592 = vmatprep.subr.mxu0 0.0
        %1593 = vmatpush1.msra.mxu0 %v1582
        %1594 = vmatprep.subr.mxu0 0.0
        %1595 = vmatpush1.msra.mxu0 %v1581
        %1596 = vmatprep.subr.mxu0 0.0
        %1597 = vmatpush1.msra.mxu0 %v1580
        %1598 = vmatprep.subr.mxu0 0.0
        %1599 = vmatpush1.msra.mxu0 %v1579
        %1600 = vmatprep.subr.mxu0 0.0
        %1601 = vmatpush1.msra.mxu0 %v1578
        %1602 = vmatprep.subr.mxu0 0.0
        %1603 = vmatpush1.msra.mxu0 %v1577
        %1604 = vmatprep.subr.mxu0 0.0
        %1605 = vmatpush1.msra.mxu0 %v1576
        %1606 = vmatprep.subr.mxu0 0.0
        %1607 = vmatpush1.msra.mxu0 %v1575
        %1608 = vmatprep.subr.mxu0 0.0
        %1609 = vmatpush1.msra.mxu0 %v1574
        %1610 = vmatprep.subr.mxu0 0.0
        %1611 = vmatpush1.msra.mxu0 %v1573
        %1612 = vmatprep.subr.mxu0 0.0
        %1613 = vmatpush1.msra.mxu0 %v1572
        %1614 = vmatprep.subr.mxu0 0.0
        %1615 = vmatpush1.msra.mxu0 %v1571
        %1616 = vmatprep.subr.mxu0 0.0
        %1617 = vmatpush1.msra.mxu0 %v1570
        %1618 = vmatprep.subr.mxu0 0.0
        %1619 = vmatpush2.msra.mxu0 0.0
        %1620 = vmatprep.subr.mxu0 0.0
        %1621 = vmatpush2.msra.mxu0 0.0
        %1622 = vmatprep.subr.mxu0 0.0
        %1623 = vmatpush2.msra.mxu0 0.0
        %1624 = vmatprep.subr.mxu0 0.0
        %1625 = vmatpush2.msra.mxu0 0.0
        %1626 = vmatprep.subr.mxu0 0.0
        %1627 = vmatpush2.msra.mxu0 0.0
        %1628 = vmatprep.subr.mxu0 0.0
        %1629 = vmatpush2.msra.mxu0 0.0
        %1630 = vmatprep.subr.mxu0 0.0
        %1631 = vmatpush2.msra.mxu0 0.0
        %1632 = vmatprep.subr.mxu0 0.0
        %1633 = vmatpush2.msra.mxu0 0.0
        %1634 = vmatprep.subr.mxu0 0.0
        %1635 = vmatpush2.msra.mxu0 0.0
        %1636 = vmatprep.subr.mxu0 0.0
        %1637 = vmatpush2.msra.mxu0 0.0
        %1638 = vmatprep.subr.mxu0 0.0
        %1639 = vmatpush2.msra.mxu0 0.0
        %1640 = vmatprep.subr.mxu0 0.0
        %1641 = vmatpush2.msra.mxu0 0.0
        %1642 = vmatprep.subr.mxu0 0.0
        %1643 = vmatpush2.msra.mxu0 0.0
        %1644 = vmatprep.subr.mxu0 0.0
        %1645 = vmatpush2.msra.mxu0 0.0
        %1646 = vmatprep.subr.mxu0 0.0
        %1647 = vmatpush2.msra.mxu0 0.0
        %1648 = vmatprep.subr.mxu0 0.0
        %1649 = vmatpush2.msra.mxu0 0.0
        %1650 = vmatprep.mubr.f32.mxu0 0.0
        %1651 = vmatmul.mubr.f32.gmra.mxu0 %v1566
        %v1652 = vpop.f32.mrf.mxu0
        %v1653 = vadd.f32 0.0, %v1652
        %v1654 = vpop.f32.mrf.mxu0
        %1655 = vmatprep.mubr.f32.mxu0 0.0
        %1656 = vmatmul.mubr.f32.gmra.mxu0 %v1567
        %v1657 = vpop.f32.mrf.mxu0
        %v1658 = vadd.f32 0.0, %v1657
        %v1659 = vpop.f32.mrf.mxu0
        %1660 = vmatprep.mubr.f32.mxu0 0.0
        %1661 = vmatmul.mubr.f32.gmra.mxu0 %v1568
        %v1662 = vpop.f32.mrf.mxu0
        %v1663 = vadd.f32 0.0, %v1662
        %v1664 = vpop.f32.mrf.mxu0
        %1665 = vdwg.mxu0
        %v1666 = vadd.f32 %v1563, %v1653
        %v1667 = vadd.f32 %v1564, %v1658
        %v1668 = vadd.f32 %v1565, %v1663
        %v1669 = vld [vmem:[#allocation4 + $0x4] sm:$0xff]
        %v1670 = vld [vmem:[#allocation4 + $0xc] sm:$0xff]
        %v1671 = vld [vmem:[#allocation4 + $0x14] sm:$0xf]
        %s1672 = scalar_lea.vmem [#allocation8], 512
        %v1673 = vld [vmem:[%s1672] sm:$0xff]
        %v1674 = vld [vmem:[%s1672 + $0x8] sm:$0xff]
        %v1675 = vld [vmem:[%s1672 + $0x10] sm:$0xff]
        %v1676 = vld [vmem:[%s1672 + $0x18] sm:$0xff]
        %v1677 = vld [vmem:[%s1672 + $0x20] sm:$0xff]
        %v1678 = vld [vmem:[%s1672 + $0x28] sm:$0xff]
        %v1679 = vld [vmem:[%s1672 + $0x30] sm:$0xff]
        %v1680 = vld [vmem:[%s1672 + $0x38] sm:$0xff]
        %v1681 = vld [vmem:[%s1672 + $0x40] sm:$0xff]
        %v1682 = vld [vmem:[%s1672 + $0x48] sm:$0xff]
        %v1683 = vld [vmem:[%s1672 + $0x50] sm:$0xff]
        %v1684 = vld [vmem:[%s1672 + $0x58] sm:$0xff]
        %v1685 = vld [vmem:[%s1672 + $0x60] sm:$0xff]
        %v1686 = vld [vmem:[%s1672 + $0x68] sm:$0xff]
        %v1687 = vld [vmem:[%s1672 + $0x70] sm:$0xff]
        %v1688 = vld [vmem:[%s1672 + $0x78] sm:$0xff]
        %1689 = vmatprep.subr.mxu0 0.0
        %1690 = vmatpush1.msra.mxu0 %v1688
        %1691 = vmatprep.subr.mxu0 0.0
        %1692 = vmatpush1.msra.mxu0 %v1687
        %1693 = vmatprep.subr.mxu0 0.0
        %1694 = vmatpush1.msra.mxu0 %v1686
        %1695 = vmatprep.subr.mxu0 0.0
        %1696 = vmatpush1.msra.mxu0 %v1685
        %1697 = vmatprep.subr.mxu0 0.0
        %1698 = vmatpush1.msra.mxu0 %v1684
        %1699 = vmatprep.subr.mxu0 0.0
        %1700 = vmatpush1.msra.mxu0 %v1683
        %1701 = vmatprep.subr.mxu0 0.0
        %1702 = vmatpush1.msra.mxu0 %v1682
        %1703 = vmatprep.subr.mxu0 0.0
        %1704 = vmatpush1.msra.mxu0 %v1681
        %1705 = vmatprep.subr.mxu0 0.0
        %1706 = vmatpush1.msra.mxu0 %v1680
        %1707 = vmatprep.subr.mxu0 0.0
        %1708 = vmatpush1.msra.mxu0 %v1679
        %1709 = vmatprep.subr.mxu0 0.0
        %1710 = vmatpush1.msra.mxu0 %v1678
        %1711 = vmatprep.subr.mxu0 0.0
        %1712 = vmatpush1.msra.mxu0 %v1677
        %1713 = vmatprep.subr.mxu0 0.0
        %1714 = vmatpush1.msra.mxu0 %v1676
        %1715 = vmatprep.subr.mxu0 0.0
        %1716 = vmatpush1.msra.mxu0 %v1675
        %1717 = vmatprep.subr.mxu0 0.0
        %1718 = vmatpush1.msra.mxu0 %v1674
        %1719 = vmatprep.subr.mxu0 0.0
        %1720 = vmatpush1.msra.mxu0 %v1673
        %1721 = vmatprep.subr.mxu0 0.0
        %1722 = vmatpush2.msra.mxu0 0.0
        %1723 = vmatprep.subr.mxu0 0.0
        %1724 = vmatpush2.msra.mxu0 0.0
        %1725 = vmatprep.subr.mxu0 0.0
        %1726 = vmatpush2.msra.mxu0 0.0
        %1727 = vmatprep.subr.mxu0 0.0
        %1728 = vmatpush2.msra.mxu0 0.0
        %1729 = vmatprep.subr.mxu0 0.0
        %1730 = vmatpush2.msra.mxu0 0.0
        %1731 = vmatprep.subr.mxu0 0.0
        %1732 = vmatpush2.msra.mxu0 0.0
        %1733 = vmatprep.subr.mxu0 0.0
        %1734 = vmatpush2.msra.mxu0 0.0
        %1735 = vmatprep.subr.mxu0 0.0
        %1736 = vmatpush2.msra.mxu0 0.0
        %1737 = vmatprep.subr.mxu0 0.0
        %1738 = vmatpush2.msra.mxu0 0.0
        %1739 = vmatprep.subr.mxu0 0.0
        %1740 = vmatpush2.msra.mxu0 0.0
        %1741 = vmatprep.subr.mxu0 0.0
        %1742 = vmatpush2.msra.mxu0 0.0
        %1743 = vmatprep.subr.mxu0 0.0
        %1744 = vmatpush2.msra.mxu0 0.0
        %1745 = vmatprep.subr.mxu0 0.0
        %1746 = vmatpush2.msra.mxu0 0.0
        %1747 = vmatprep.subr.mxu0 0.0
        %1748 = vmatpush2.msra.mxu0 0.0
        %1749 = vmatprep.subr.mxu0 0.0
        %1750 = vmatpush2.msra.mxu0 0.0
        %1751 = vmatprep.subr.mxu0 0.0
        %1752 = vmatpush2.msra.mxu0 0.0
        %1753 = vmatprep.mubr.f32.mxu0 0.0
        %1754 = vmatmul.mubr.f32.gmra.mxu0 %v1669
        %v1755 = vpop.f32.mrf.mxu0
        %v1756 = vadd.f32 0.0, %v1755
        %v1757 = vpop.f32.mrf.mxu0
        %1758 = vmatprep.mubr.f32.mxu0 0.0
        %1759 = vmatmul.mubr.f32.gmra.mxu0 %v1670
        %v1760 = vpop.f32.mrf.mxu0
        %v1761 = vadd.f32 0.0, %v1760
        %v1762 = vpop.f32.mrf.mxu0
        %1763 = vmatprep.mubr.f32.mxu0 0.0
        %1764 = vmatmul.mubr.f32.gmra.mxu0 %v1671
        %v1765 = vpop.f32.mrf.mxu0
        %v1766 = vadd.f32 0.0, %v1765
        %v1767 = vpop.f32.mrf.mxu0
        %1768 = vdwg.mxu0
        %v1769 = vadd.f32 %v1666, %v1756
        %v1770 = vadd.f32 %v1667, %v1761
        %v1771 = vadd.f32 %v1668, %v1766
        %s1772 = scalar_lea.vmem %s4, 1
        %v1773 = vld [vmem:[%s1772] sm:$0x1]
        %v1775 = vlaneseq
        %v1776 = vshrl.u32 %v1775, 7
        %v1777 = vsub.s32 0, %v1776
        %v1778 = vrot.slane %v1773, %v1777
        %v1780 = vadd.f32 %v1769, %v1778
        %v1781 = vadd.f32 %v1770, %v1778
        %v1782 = vadd.f32 %v1771, %v1778
        %v1783 = vand.u32 2147483647, %v1780
        %vm1784 = vcmp.le.f32.partialorder %v1783, 0.7853982
        %vm1785 = vcmp.lt.s32.totalorder %v1780, 0
        %v1786 = vand.u32 %v1780, 2139095040
        %v1787 = vshrl.u32 %v1786, 23
        %v1788 = vsub.s32 %v1787, 127
        %v1789 = vand.u32 2147483647, %v1780
        %v1790 = vand.u32 %v1789, 8388607
        %v1791 = vor.u32 %v1790, 8388608
        %v1792 = vsub.s32 0, %v1791
        %v1793 = vadd.s32 %v1788, 1
        %vm1794 = vcmp.gt.s32.totalorder %v1793, 0
        %v1795 = vsel %vm1794, %v1793, 0
        %v1796 = vshrl.u32 %v1795, 5
        %v1797 = vand.u32 %v1795, 31
        %v1798 = vsub.s32 32, %v1797
        %v1799 = vshrl.u32 683565275, %v1798
        %v1800 = vshll.u32 683565275, %v1797
        %v1801 = vshrl.u32 2475754826, %v1798
        %v1802 = vor.u32 %v1800, %v1801
        %v1803 = vshll.u32 2475754826, %v1797
        %v1804 = vshrl.u32 2131351028, %v1798
        %v1805 = vor.u32 %v1803, %v1804
        %v1806 = vshll.u32 2131351028, %v1797
        %v1807 = vshrl.u32 2102212464, %v1798
        %v1808 = vor.u32 %v1806, %v1807
        %v1809 = vshll.u32 2102212464, %v1797
        %v1810 = vshrl.u32 920167782, %v1798
        %v1811 = vor.u32 %v1809, %v1810
        %v1812 = vshll.u32 920167782, %v1797
        %v1813 = vshrl.u32 1326507024, %v1798
        %v1814 = vor.u32 %v1812, %v1813
        %vm1815 = vcmp.lt.s32.totalorder %v1796, 1
        %vm1816 = vcmp.lt.s32.totalorder %v1796, 2
        %vm1817 = vcmp.lt.s32.totalorder %v1796, 3
        %vm1818 = vcmp.lt.s32.totalorder %v1796, 4
        %v1819 = vsel %vm1815, %v1799, %v1802
        %v1820 = vsel %vm1818, %v1808, 2102212464
        %v1821 = vsel %vm1817, %v1805, %v1820
        %v1822 = vsel %vm1816, %v1819, %v1821
        %v1823 = vsel %vm1815, %v1802, %v1805
        %v1824 = vsel %vm1818, %v1811, 920167782
        %v1825 = vsel %vm1817, %v1808, %v1824
        %v1826 = vsel %vm1816, %v1823, %v1825
        %v1827 = vsel %vm1815, %v1805, %v1808
        %v1828 = vsel %vm1818, %v1814, 1326507024
        %v1829 = vsel %vm1817, %v1811, %v1828
        %v1830 = vsel %vm1816, %v1827, %v1829
        %v1831 = vshll.u32 %v1791, 8
        %v1832 = vmul.u32.u64.compose %v1831, %v1830
        %v1833 = vextract.low.u32 %v1832
        %v1834 = vextract.high.u32 %v1832
        %v1835 = vmul.u32.u64.compose %v1831, %v1826
        %v1836 = vextract.low.u32 %v1835
        %v1837 = vextract.high.u32 %v1835
        %v1838 = vmul.u32 %v1831, %v1822
        %v1839 = vadd.s32 %v1834, %v1836
        %vm1840 = vc.u32 %v1834, %v1836
        %v1841 = vadd.s32 %v1837, 1
        %v1842 = vsel %vm1840, %v1841, %v1837
        %v1843 = vadd.s32 %v1838, %v1842
        %v1844 = vadd.s32 %v1843, 536870912
        %v1845 = vshrl.u32 %v1844, 30
        %v1846 = vshll.u32 %v1845, 30
        %v1847 = vsub.s32 %v1843, %v1846
        %vm1848 = vcmp.lt.s32.totalorder %v1847, 0
        %v1849 = vsub.s32 0, %v1847
        %v1850 = vsel %vm1848, %v1849, %v1847
        %v1851 = vclz %v1850
        %v1852 = vsub.s32 %v1851, 2
        %vm1853 = vcmp.gt.s32.totalorder 0, %v1852
        %v1854 = vsel %vm1853, 0, %v1852
        %v1855 = vsub.s32 32, %v1854
        %v1856 = vshll.u32 %v1847, %v1854
        %v1857 = vshrl.u32 %v1839, %v1855
        %v1858 = vor.u32 %v1856, %v1857
        %v1859 = vsub.s32 4294967266, %v1854
        %v1860 = vadd.s32 %v1859, 127
        %v1861 = vshll.u32 %v1860, 23
        %v1862 = vor.u32 4788187, %v1861
        %v1863 = vand.u32 2147483647, %v1862
        %v1865 = vcvt.s32.f32 %v1858
        %v1866 = vmul.f32 %v1865, %v1863
        %v1867 = vxor.u32 %v1866, 2147483648
        %v1868 = vsel %vm1785, %v1867, %v1866
        %v1869 = vsub.s32 4, %v1845
        %v1870 = vsel %vm1785, %v1869, %v1845
        %v1871 = vsel %vm1784, %v1780, %v1868
        %v1872 = vsel %vm1784, 0, %v1870
        %v1873 = vcosq.f32.pop %v1871
        %v1874 = vsinq.f32.pop %v1871
        %vm1875 = vweird.f32 %v1780
        %v1876 = vadd.s32 %v1872, 3
        %v1877 = vand.u32 %v1876, 3
        %vm1878 = vcmp.lt.s32.totalorder %v1877, 2
        %vm1879 = vcmp.eq.s32.totalorder %v1877, 0
        %v1880 = vxor.u32 %v1874, 2147483648
        %v1881 = vsel %vm1879, %v1873, %v1880
        %vm1882 = vcmp.eq.s32.totalorder %v1877, 2
        %v1883 = vxor.u32 %v1873, 2147483648
        %v1884 = vsel %vm1882, %v1883, %v1874
        %v1885 = vsel %vm1878, %v1881, %v1884
        %v1886 = vsel %vm1875, nan, %v1885
        %v1887 = vand.u32 2147483647, %v1781
        %vm1888 = vcmp.le.f32.partialorder %v1887, 0.7853982
        %vm1889 = vcmp.lt.s32.totalorder %v1781, 0
        %v1890 = vand.u32 %v1781, 2139095040
        %v1891 = vshrl.u32 %v1890, 23
        %v1892 = vsub.s32 %v1891, 127
        %v1893 = vand.u32 2147483647, %v1781
        %v1894 = vand.u32 %v1893, 8388607
        %v1895 = vor.u32 %v1894, 8388608
        %v1896 = vsub.s32 0, %v1895
        %v1897 = vadd.s32 %v1892, 1
        %vm1898 = vcmp.gt.s32.totalorder %v1897, 0
        %v1899 = vsel %vm1898, %v1897, 0
        %v1900 = vshrl.u32 %v1899, 5
        %v1901 = vand.u32 %v1899, 31
        %v1902 = vsub.s32 32, %v1901
        %v1903 = vshrl.u32 683565275, %v1902
        %v1904 = vshll.u32 683565275, %v1901
        %v1905 = vshrl.u32 2475754826, %v1902
        %v1906 = vor.u32 %v1904, %v1905
        %v1907 = vshll.u32 2475754826, %v1901
        %v1908 = vshrl.u32 2131351028, %v1902
        %v1909 = vor.u32 %v1907, %v1908
        %v1910 = vshll.u32 2131351028, %v1901
        %v1911 = vshrl.u32 2102212464, %v1902
        %v1912 = vor.u32 %v1910, %v1911
        %v1913 = vshll.u32 2102212464, %v1901
        %v1914 = vshrl.u32 920167782, %v1902
        %v1915 = vor.u32 %v1913, %v1914
        %v1916 = vshll.u32 920167782, %v1901
        %v1917 = vshrl.u32 1326507024, %v1902
        %v1918 = vor.u32 %v1916, %v1917
        %vm1919 = vcmp.lt.s32.totalorder %v1900, 1
        %vm1920 = vcmp.lt.s32.totalorder %v1900, 2
        %vm1921 = vcmp.lt.s32.totalorder %v1900, 3
        %vm1922 = vcmp.lt.s32.totalorder %v1900, 4
        %v1923 = vsel %vm1919, %v1903, %v1906
        %v1924 = vsel %vm1922, %v1912, 2102212464
        %v1925 = vsel %vm1921, %v1909, %v1924
        %v1926 = vsel %vm1920, %v1923, %v1925
        %v1927 = vsel %vm1919, %v1906, %v1909
        %v1928 = vsel %vm1922, %v1915, 920167782
        %v1929 = vsel %vm1921, %v1912, %v1928
        %v1930 = vsel %vm1920, %v1927, %v1929
        %v1931 = vsel %vm1919, %v1909, %v1912
        %v1932 = vsel %vm1922, %v1918, 1326507024
        %v1933 = vsel %vm1921, %v1915, %v1932
        %v1934 = vsel %vm1920, %v1931, %v1933
        %v1935 = vshll.u32 %v1895, 8
        %v1936 = vmul.u32.u64.compose %v1935, %v1934
        %v1937 = vextract.low.u32 %v1936
        %v1938 = vextract.high.u32 %v1936
        %v1939 = vmul.u32.u64.compose %v1935, %v1930
        %v1940 = vextract.low.u32 %v1939
        %v1941 = vextract.high.u32 %v1939
        %v1942 = vmul.u32 %v1935, %v1926
        %v1943 = vadd.s32 %v1938, %v1940
        %vm1944 = vc.u32 %v1938, %v1940
        %v1945 = vadd.s32 %v1941, 1
        %v1946 = vsel %vm1944, %v1945, %v1941
        %v1947 = vadd.s32 %v1942, %v1946
        %v1948 = vadd.s32 %v1947, 536870912
        %v1949 = vshrl.u32 %v1948, 30
        %v1950 = vshll.u32 %v1949, 30
        %v1951 = vsub.s32 %v1947, %v1950
        %vm1952 = vcmp.lt.s32.totalorder %v1951, 0
        %v1953 = vsub.s32 0, %v1951
        %v1954 = vsel %vm1952, %v1953, %v1951
        %v1955 = vclz %v1954
        %v1956 = vsub.s32 %v1955, 2
        %vm1957 = vcmp.gt.s32.totalorder 0, %v1956
        %v1958 = vsel %vm1957, 0, %v1956
        %v1959 = vsub.s32 32, %v1958
        %v1960 = vshll.u32 %v1951, %v1958
        %v1961 = vshrl.u32 %v1943, %v1959
        %v1962 = vor.u32 %v1960, %v1961
        %v1963 = vsub.s32 4294967266, %v1958
        %v1964 = vadd.s32 %v1963, 127
        %v1965 = vshll.u32 %v1964, 23
        %v1966 = vor.u32 4788187, %v1965
        %v1967 = vand.u32 2147483647, %v1966
        %v1969 = vcvt.s32.f32 %v1962
        %v1970 = vmul.f32 %v1969, %v1967
        %v1971 = vxor.u32 %v1970, 2147483648
        %v1972 = vsel %vm1889, %v1971, %v1970
        %v1973 = vsub.s32 4, %v1949
        %v1974 = vsel %vm1889, %v1973, %v1949
        %v1975 = vsel %vm1888, %v1781, %v1972
        %v1976 = vsel %vm1888, 0, %v1974
        %v1977 = vcosq.f32.pop %v1975
        %v1978 = vsinq.f32.pop %v1975
        %vm1979 = vweird.f32 %v1781
        %v1980 = vadd.s32 %v1976, 3
        %v1981 = vand.u32 %v1980, 3
        %vm1982 = vcmp.lt.s32.totalorder %v1981, 2
        %vm1983 = vcmp.eq.s32.totalorder %v1981, 0
        %v1984 = vxor.u32 %v1978, 2147483648
        %v1985 = vsel %vm1983, %v1977, %v1984
        %vm1986 = vcmp.eq.s32.totalorder %v1981, 2
        %v1987 = vxor.u32 %v1977, 2147483648
        %v1988 = vsel %vm1986, %v1987, %v1978
        %v1989 = vsel %vm1982, %v1985, %v1988
        %v1990 = vsel %vm1979, nan, %v1989
        %v1991 = vand.u32 2147483647, %v1782
        %vm1992 = vcmp.le.f32.partialorder %v1991, 0.7853982
        %vm1993 = vcmp.lt.s32.totalorder %v1782, 0
        %v1994 = vand.u32 %v1782, 2139095040
        %v1995 = vshrl.u32 %v1994, 23
        %v1996 = vsub.s32 %v1995, 127
        %v1997 = vand.u32 2147483647, %v1782
        %v1998 = vand.u32 %v1997, 8388607
        %v1999 = vor.u32 %v1998, 8388608
        %v2000 = vsub.s32 0, %v1999
        %v2001 = vadd.s32 %v1996, 1
        %vm2002 = vcmp.gt.s32.totalorder %v2001, 0
        %v2003 = vsel %vm2002, %v2001, 0
        %v2004 = vshrl.u32 %v2003, 5
        %v2005 = vand.u32 %v2003, 31
        %v2006 = vsub.s32 32, %v2005
        %v2007 = vshrl.u32 683565275, %v2006
        %v2008 = vshll.u32 683565275, %v2005
        %v2009 = vshrl.u32 2475754826, %v2006
        %v2010 = vor.u32 %v2008, %v2009
        %v2011 = vshll.u32 2475754826, %v2005
        %v2012 = vshrl.u32 2131351028, %v2006
        %v2013 = vor.u32 %v2011, %v2012
        %v2014 = vshll.u32 2131351028, %v2005
        %v2015 = vshrl.u32 2102212464, %v2006
        %v2016 = vor.u32 %v2014, %v2015
        %v2017 = vshll.u32 2102212464, %v2005
        %v2018 = vshrl.u32 920167782, %v2006
        %v2019 = vor.u32 %v2017, %v2018
        %v2020 = vshll.u32 920167782, %v2005
        %v2021 = vshrl.u32 1326507024, %v2006
        %v2022 = vor.u32 %v2020, %v2021
        %vm2023 = vcmp.lt.s32.totalorder %v2004, 1
        %vm2024 = vcmp.lt.s32.totalorder %v2004, 2
        %vm2025 = vcmp.lt.s32.totalorder %v2004, 3
        %vm2026 = vcmp.lt.s32.totalorder %v2004, 4
        %v2027 = vsel %vm2023, %v2007, %v2010
        %v2028 = vsel %vm2026, %v2016, 2102212464
        %v2029 = vsel %vm2025, %v2013, %v2028
        %v2030 = vsel %vm2024, %v2027, %v2029
        %v2031 = vsel %vm2023, %v2010, %v2013
        %v2032 = vsel %vm2026, %v2019, 920167782
        %v2033 = vsel %vm2025, %v2016, %v2032
        %v2034 = vsel %vm2024, %v2031, %v2033
        %v2035 = vsel %vm2023, %v2013, %v2016
        %v2036 = vsel %vm2026, %v2022, 1326507024
        %v2037 = vsel %vm2025, %v2019, %v2036
        %v2038 = vsel %vm2024, %v2035, %v2037
        %v2039 = vshll.u32 %v1999, 8
        %v2040 = vmul.u32.u64.compose %v2039, %v2038
        %v2041 = vextract.low.u32 %v2040
        %v2042 = vextract.high.u32 %v2040
        %v2043 = vmul.u32.u64.compose %v2039, %v2034
        %v2044 = vextract.low.u32 %v2043
        %v2045 = vextract.high.u32 %v2043
        %v2046 = vmul.u32 %v2039, %v2030
        %v2047 = vadd.s32 %v2042, %v2044
        %vm2048 = vc.u32 %v2042, %v2044
        %v2049 = vadd.s32 %v2045, 1
        %v2050 = vsel %vm2048, %v2049, %v2045
        %v2051 = vadd.s32 %v2046, %v2050
        %v2052 = vadd.s32 %v2051, 536870912
        %v2053 = vshrl.u32 %v2052, 30
        %v2054 = vshll.u32 %v2053, 30
        %v2055 = vsub.s32 %v2051, %v2054
        %vm2056 = vcmp.lt.s32.totalorder %v2055, 0
        %v2057 = vsub.s32 0, %v2055
        %v2058 = vsel %vm2056, %v2057, %v2055
        %v2059 = vclz %v2058
        %v2060 = vsub.s32 %v2059, 2
        %vm2061 = vcmp.gt.s32.totalorder 0, %v2060
        %v2062 = vsel %vm2061, 0, %v2060
        %v2063 = vsub.s32 32, %v2062
        %v2064 = vshll.u32 %v2055, %v2062
        %v2065 = vshrl.u32 %v2047, %v2063
        %v2066 = vor.u32 %v2064, %v2065
        %v2067 = vsub.s32 4294967266, %v2062
        %v2068 = vadd.s32 %v2067, 127
        %v2069 = vshll.u32 %v2068, 23
        %v2070 = vor.u32 4788187, %v2069
        %v2071 = vand.u32 2147483647, %v2070
        %v2073 = vcvt.s32.f32 %v2066
        %v2074 = vmul.f32 %v2073, %v2071
        %v2075 = vxor.u32 %v2074, 2147483648
        %v2076 = vsel %vm1993, %v2075, %v2074
        %v2077 = vsub.s32 4, %v2053
        %v2078 = vsel %vm1993, %v2077, %v2053
        %v2079 = vsel %vm1992, %v1782, %v2076
        %v2080 = vsel %vm1992, 0, %v2078
        %v2081 = vcosq.f32.pop %v2079
        %v2082 = vsinq.f32.pop %v2079
        %vm2083 = vweird.f32 %v1782
        %v2084 = vadd.s32 %v2080, 3
        %v2085 = vand.u32 %v2084, 3
        %vm2086 = vcmp.lt.s32.totalorder %v2085, 2
        %vm2087 = vcmp.eq.s32.totalorder %v2085, 0
        %v2088 = vxor.u32 %v2082, 2147483648
        %v2089 = vsel %vm2087, %v2081, %v2088
        %vm2090 = vcmp.eq.s32.totalorder %v2085, 2
        %v2091 = vxor.u32 %v2081, 2147483648
        %v2092 = vsel %vm2090, %v2091, %v2082
        %v2093 = vsel %vm2086, %v2089, %v2092
        %v2094 = vsel %vm2083, nan, %v2093
        %s2095 = scalar_lea.vmem %s5, 1
        %v2096 = vld [vmem:[%s2095] sm:$0x1]
        %v2098 = vlaneseq
        %v2099 = vshrl.u32 %v2098, 7
        %v2100 = vsub.s32 0, %v2099
        %v2101 = vrot.slane %v2096, %v2100
        %v2103 = vmul.f32 %v1886, %v2101
        %v2104 = vmul.f32 %v1990, %v2101
        %v2105 = vmul.f32 %v2094, %v2101
        %v2106 = vadd.f32 %v2103, %v1463
        %v2107 = vadd.f32 %v2104, %v1464
        %v2108 = vadd.f32 %v2105, %v1465
        %2109 = vst [vmem:[#allocation4] sm:$0xff] %v2106
        %2110 = vst [vmem:[#allocation4 + $0x8] sm:$0xff] %v2107
        %2111 = vst [vmem:[#allocation4 + $0x10] sm:$0xf] %v2108
        %s2112 = sadd.s32 %s368, 4294967294
        %p2113 = scmp.lt.s32.totalorder %s2112, 0
        %s2114 = sadd.s32 %s368, 18
        %p2115 = scmp.gt.s32.totalorder %s2114, 16
        %p2116 = por %p2113, %p2115
        // Predicated region
        $region102: #{tpu_custom_call.1} parent=43 // pred_check
          %p2117 = pneg %p2116
        $region103: #{tpu_custom_call.1} parent=43 // pred_check_branch
          %2119 = sbr.rel (%p2117) target = $region105
        $region104: #{tpu_custom_call.1} parent=43 // pred_region
          %v2120 = vstv %s2112
          %v2121 = vadd.s32 %v2120, %v385
          %v2122 = vadd.s32 %v2120, %v386
          %v2123 = vadd.s32 %v2120, %v387
          %vm2124 = vcmp.ge.s32.totalorder %v2121, 0
          %vm2125 = vcmp.ge.s32.totalorder %v2122, 0
          %vm2126 = vcmp.ge.s32.totalorder %v2123, 0
          %vm2127 = vcmp.lt.s32.totalorder %v2121, 16
          %vm2128 = vcmp.lt.s32.totalorder %v2122, 16
          %vm2129 = vcmp.lt.s32.totalorder %v2123, 16
          %vm2130 = vmand %vm2124, %vm2127
          %vm2131 = vmand %vm2125, %vm2128
          %vm2132 = vmand %vm2126, %vm2129
          %v2133 = vsel %vm2130, 1, 0
          %v2134 = vsel %vm2131, 1, 0
          %v2135 = vsel %vm2132, 1, 0
          %vm2136 = vcmp.eq.s32.totalorder %v2133, 1
          %vm2137 = vcmp.eq.s32.totalorder %v2134, 1
          %vm2138 = vcmp.eq.s32.totalorder %v2135, 1
          %v2139 = vsel %vm2136, %v2106, 0.0
          %v2140 = vsel %vm2137, %v2107, 0.0
          %v2141 = vsel %vm2138, %v2108, 0.0
          %2142 = vst [vmem:[#allocation4] sm:$0xff] %v2139
          %2143 = vst [vmem:[#allocation4 + $0x8] sm:$0xff] %v2140
          %2144 = vst [vmem:[#allocation4 + $0x10] sm:$0xf] %v2141
        $region105: #{tpu_custom_call.1} parent=43 // pred_fallthru
          _
        %v2145 = vld [vmem:[#allocation4] sm:$0xff]
        %v2146 = vld [vmem:[#allocation4 + $0x8] sm:$0xff]
        %v2147 = vld [vmem:[#allocation10] sm:$0xff]
        %v2148 = vld [vmem:[#allocation10 + $0x8] sm:$0xff]
        %v2149 = vld [vmem:[#allocation10 + $0x10] sm:$0xff]
        %v2150 = vld [vmem:[#allocation10 + $0x18] sm:$0xff]
        %v2151 = vld [vmem:[#allocation10 + $0x20] sm:$0xff]
        %v2152 = vld [vmem:[#allocation10 + $0x28] sm:$0xff]
        %v2153 = vld [vmem:[#allocation10 + $0x30] sm:$0xff]
        %v2154 = vld [vmem:[#allocation10 + $0x38] sm:$0xff]
        %v2155 = vld [vmem:[#allocation10 + $0x40] sm:$0xff]
        %v2156 = vld [vmem:[#allocation10 + $0x48] sm:$0xff]
        %v2157 = vld [vmem:[#allocation10 + $0x50] sm:$0xff]
        %v2158 = vld [vmem:[#allocation10 + $0x58] sm:$0xff]
        %v2159 = vld [vmem:[#allocation10 + $0x60] sm:$0xff]
        %v2160 = vld [vmem:[#allocation10 + $0x68] sm:$0xff]
        %v2161 = vld [vmem:[#allocation10 + $0x70] sm:$0xff]
        %v2162 = vld [vmem:[#allocation10 + $0x78] sm:$0xff]
        %v2163 = vld [vmem:[#allocation4 + $0x1] sm:$0xff]
        %v2164 = vld [vmem:[#allocation4 + $0x9] sm:$0xff]
        %s2165 = scalar_lea.vmem [#allocation10], 128
        %v2166 = vld [vmem:[%s2165] sm:$0xff]
        %v2167 = vld [vmem:[%s2165 + $0x8] sm:$0xff]
        %v2168 = vld [vmem:[%s2165 + $0x10] sm:$0xff]
        %v2169 = vld [vmem:[%s2165 + $0x18] sm:$0xff]
        %v2170 = vld [vmem:[%s2165 + $0x20] sm:$0xff]
        %v2171 = vld [vmem:[%s2165 + $0x28] sm:$0xff]
        %v2172 = vld [vmem:[%s2165 + $0x30] sm:$0xff]
        %v2173 = vld [vmem:[%s2165 + $0x38] sm:$0xff]
        %v2174 = vld [vmem:[%s2165 + $0x40] sm:$0xff]
        %v2175 = vld [vmem:[%s2165 + $0x48] sm:$0xff]
        %v2176 = vld [vmem:[%s2165 + $0x50] sm:$0xff]
        %v2177 = vld [vmem:[%s2165 + $0x58] sm:$0xff]
        %v2178 = vld [vmem:[%s2165 + $0x60] sm:$0xff]
        %v2179 = vld [vmem:[%s2165 + $0x68] sm:$0xff]
        %v2180 = vld [vmem:[%s2165 + $0x70] sm:$0xff]
        %v2181 = vld [vmem:[%s2165 + $0x78] sm:$0xff]
        %2182 = vmatprep.subr.mxu0 0.0
        %2183 = vmatpush1.msra.mxu0 %v2181
        %2184 = vmatprep.subr.mxu0 0.0
        %2185 = vmatpush1.msra.mxu0 %v2180
        %2186 = vmatprep.subr.mxu0 0.0
        %2187 = vmatpush1.msra.mxu0 %v2179
        %2188 = vmatprep.subr.mxu0 0.0
        %2189 = vmatpush1.msra.mxu0 %v2178
        %2190 = vmatprep.subr.mxu0 0.0
        %2191 = vmatpush1.msra.mxu0 %v2177
        %2192 = vmatprep.subr.mxu0 0.0
        %2193 = vmatpush1.msra.mxu0 %v2176
        %2194 = vmatprep.subr.mxu0 0.0
        %2195 = vmatpush1.msra.mxu0 %v2175
        %2196 = vmatprep.subr.mxu0 0.0
        %2197 = vmatpush1.msra.mxu0 %v2174
        %2198 = vmatprep.subr.mxu0 0.0
        %2199 = vmatpush1.msra.mxu0 %v2173
        %2200 = vmatprep.subr.mxu0 0.0
        %2201 = vmatpush1.msra.mxu0 %v2172
        %2202 = vmatprep.subr.mxu0 0.0
        %2203 = vmatpush1.msra.mxu0 %v2171
        %2204 = vmatprep.subr.mxu0 0.0
        %2205 = vmatpush1.msra.mxu0 %v2170
        %2206 = vmatprep.subr.mxu0 0.0
        %2207 = vmatpush1.msra.mxu0 %v2169
        %2208 = vmatprep.subr.mxu0 0.0
        %2209 = vmatpush1.msra.mxu0 %v2168
        %2210 = vmatprep.subr.mxu0 0.0
        %2211 = vmatpush1.msra.mxu0 %v2167
        %2212 = vmatprep.subr.mxu0 0.0
        %2213 = vmatpush1.msra.mxu0 %v2166
        %2214 = vmatprep.subr.mxu0 0.0
        %2215 = vmatpush2.msra.mxu0 0.0
        %2216 = vmatprep.subr.mxu0 0.0
        %2217 = vmatpush2.msra.mxu0 0.0
        %2218 = vmatprep.subr.mxu0 0.0
        %2219 = vmatpush2.msra.mxu0 0.0
        %2220 = vmatprep.subr.mxu0 0.0
        %2221 = vmatpush2.msra.mxu0 0.0
        %2222 = vmatprep.subr.mxu0 0.0
        %2223 = vmatpush2.msra.mxu0 0.0
        %2224 = vmatprep.subr.mxu0 0.0
        %2225 = vmatpush2.msra.mxu0 0.0
        %2226 = vmatprep.subr.mxu0 0.0
        %2227 = vmatpush2.msra.mxu0 0.0
        %2228 = vmatprep.subr.mxu0 0.0
        %2229 = vmatpush2.msra.mxu0 0.0
        %2230 = vmatprep.subr.mxu0 0.0
        %2231 = vmatpush2.msra.mxu0 0.0
        %2232 = vmatprep.subr.mxu0 0.0
        %2233 = vmatpush2.msra.mxu0 0.0
        %2234 = vmatprep.subr.mxu0 0.0
        %2235 = vmatpush2.msra.mxu0 0.0
        %2236 = vmatprep.subr.mxu0 0.0
        %2237 = vmatpush2.msra.mxu0 0.0
        %2238 = vmatprep.subr.mxu0 0.0
        %2239 = vmatpush2.msra.mxu0 0.0
        %2240 = vmatprep.subr.mxu0 0.0
        %2241 = vmatpush2.msra.mxu0 0.0
        %2242 = vmatprep.subr.mxu0 0.0
        %2243 = vmatpush2.msra.mxu0 0.0
        %2244 = vmatprep.subr.mxu0 0.0
        %2245 = vmatpush2.msra.mxu0 0.0
        %2246 = vmatprep.mubr.f32.mxu0 0.0
        %2247 = vmatmul.mubr.f32.gmra.mxu0 %v2163
        %v2248 = vpop.f32.mrf.mxu0
        %v2249 = vadd.f32 0.0, %v2248
        %v2250 = vpop.f32.mrf.mxu0
        %2251 = vmatprep.mubr.f32.mxu0 0.0
        %2252 = vmatmul.mubr.f32.gmra.mxu0 %v2164
        %v2253 = vpop.f32.mrf.mxu0
        %v2254 = vadd.f32 0.0, %v2253
        %v2255 = vpop.f32.mrf.mxu0
        %2256 = vdwg.mxu0
        %2257 = vmatprep.subr.mxu0 0.0
        %2258 = vmatpush1.msra.mxu0 %v2162
        %2259 = vmatprep.subr.mxu0 0.0
        %2260 = vmatpush1.msra.mxu0 %v2161
        %2261 = vmatprep.subr.mxu0 0.0
        %2262 = vmatpush1.msra.mxu0 %v2160
        %2263 = vmatprep.subr.mxu0 0.0
        %2264 = vmatpush1.msra.mxu0 %v2159
        %2265 = vmatprep.subr.mxu0 0.0
        %2266 = vmatpush1.msra.mxu0 %v2158
        %2267 = vmatprep.subr.mxu0 0.0
        %2268 = vmatpush1.msra.mxu0 %v2157
        %2269 = vmatprep.subr.mxu0 0.0
        %2270 = vmatpush1.msra.mxu0 %v2156
        %2271 = vmatprep.subr.mxu0 0.0
        %2272 = vmatpush1.msra.mxu0 %v2155
        %2273 = vmatprep.subr.mxu0 0.0
        %2274 = vmatpush1.msra.mxu0 %v2154
        %2275 = vmatprep.subr.mxu0 0.0
        %2276 = vmatpush1.msra.mxu0 %v2153
        %2277 = vmatprep.subr.mxu0 0.0
        %2278 = vmatpush1.msra.mxu0 %v2152
        %2279 = vmatprep.subr.mxu0 0.0
        %2280 = vmatpush1.msra.mxu0 %v2151
        %2281 = vmatprep.subr.mxu0 0.0
        %2282 = vmatpush1.msra.mxu0 %v2150
        %2283 = vmatprep.subr.mxu0 0.0
        %2284 = vmatpush1.msra.mxu0 %v2149
        %2285 = vmatprep.subr.mxu0 0.0
        %2286 = vmatpush1.msra.mxu0 %v2148
        %2287 = vmatprep.subr.mxu0 0.0
        %2288 = vmatpush1.msra.mxu0 %v2147
        %2289 = vmatprep.subr.mxu0 0.0
        %2290 = vmatpush2.msra.mxu0 0.0
        %2291 = vmatprep.subr.mxu0 0.0
        %2292 = vmatpush2.msra.mxu0 0.0
        %2293 = vmatprep.subr.mxu0 0.0
        %2294 = vmatpush2.msra.mxu0 0.0
        %2295 = vmatprep.subr.mxu0 0.0
        %2296 = vmatpush2.msra.mxu0 0.0
        %2297 = vmatprep.subr.mxu0 0.0
        %2298 = vmatpush2.msra.mxu0 0.0
        %2299 = vmatprep.subr.mxu0 0.0
        %2300 = vmatpush2.msra.mxu0 0.0
        %2301 = vmatprep.subr.mxu0 0.0
        %2302 = vmatpush2.msra.mxu0 0.0
        %2303 = vmatprep.subr.mxu0 0.0
        %2304 = vmatpush2.msra.mxu0 0.0
        %2305 = vmatprep.subr.mxu0 0.0
        %2306 = vmatpush2.msra.mxu0 0.0
        %2307 = vmatprep.subr.mxu0 0.0
        %2308 = vmatpush2.msra.mxu0 0.0
        %2309 = vmatprep.subr.mxu0 0.0
        %2310 = vmatpush2.msra.mxu0 0.0
        %2311 = vmatprep.subr.mxu0 0.0
        %2312 = vmatpush2.msra.mxu0 0.0
        %2313 = vmatprep.subr.mxu0 0.0
        %2314 = vmatpush2.msra.mxu0 0.0
        %2315 = vmatprep.subr.mxu0 0.0
        %2316 = vmatpush2.msra.mxu0 0.0
        %2317 = vmatprep.subr.mxu0 0.0
        %2318 = vmatpush2.msra.mxu0 0.0
        %2319 = vmatprep.subr.mxu0 0.0
        %2320 = vmatpush2.msra.mxu0 0.0
        %2321 = vmatprep.mubr.f32.mxu0 0.0
        %2322 = vmatmul.mubr.f32.gmra.mxu0 %v2145
        %v2323 = vpop.f32.mrf.mxu0
        %v2324 = vadd.f32 %v2249, %v2323
        %v2325 = vpop.f32.mrf.mxu0
        %2326 = vmatprep.mubr.f32.mxu0 0.0
        %2327 = vmatmul.mubr.f32.gmra.mxu0 %v2146
        %v2328 = vpop.f32.mrf.mxu0
        %v2329 = vadd.f32 %v2254, %v2328
        %v2330 = vpop.f32.mrf.mxu0
        %2331 = vdwg.mxu0
        %v2332 = vld [vmem:[#allocation4 + $0x2] sm:$0xff]
        %v2333 = vld [vmem:[#allocation4 + $0xa] sm:$0xff]
        %s2334 = scalar_lea.vmem [#allocation10], 256
        %v2335 = vld [vmem:[%s2334] sm:$0xff]
        %v2336 = vld [vmem:[%s2334 + $0x8] sm:$0xff]
        %v2337 = vld [vmem:[%s2334 + $0x10] sm:$0xff]
        %v2338 = vld [vmem:[%s2334 + $0x18] sm:$0xff]
        %v2339 = vld [vmem:[%s2334 + $0x20] sm:$0xff]
        %v2340 = vld [vmem:[%s2334 + $0x28] sm:$0xff]
        %v2341 = vld [vmem:[%s2334 + $0x30] sm:$0xff]
        %v2342 = vld [vmem:[%s2334 + $0x38] sm:$0xff]
        %v2343 = vld [vmem:[%s2334 + $0x40] sm:$0xff]
        %v2344 = vld [vmem:[%s2334 + $0x48] sm:$0xff]
        %v2345 = vld [vmem:[%s2334 + $0x50] sm:$0xff]
        %v2346 = vld [vmem:[%s2334 + $0x58] sm:$0xff]
        %v2347 = vld [vmem:[%s2334 + $0x60] sm:$0xff]
        %v2348 = vld [vmem:[%s2334 + $0x68] sm:$0xff]
        %v2349 = vld [vmem:[%s2334 + $0x70] sm:$0xff]
        %v2350 = vld [vmem:[%s2334 + $0x78] sm:$0xff]
        %2351 = vmatprep.subr.mxu0 0.0
        %2352 = vmatpush1.msra.mxu0 %v2350
        %2353 = vmatprep.subr.mxu0 0.0
        %2354 = vmatpush1.msra.mxu0 %v2349
        %2355 = vmatprep.subr.mxu0 0.0
        %2356 = vmatpush1.msra.mxu0 %v2348
        %2357 = vmatprep.subr.mxu0 0.0
        %2358 = vmatpush1.msra.mxu0 %v2347
        %2359 = vmatprep.subr.mxu0 0.0
        %2360 = vmatpush1.msra.mxu0 %v2346
        %2361 = vmatprep.subr.mxu0 0.0
        %2362 = vmatpush1.msra.mxu0 %v2345
        %2363 = vmatprep.subr.mxu0 0.0
        %2364 = vmatpush1.msra.mxu0 %v2344
        %2365 = vmatprep.subr.mxu0 0.0
        %2366 = vmatpush1.msra.mxu0 %v2343
        %2367 = vmatprep.subr.mxu0 0.0
        %2368 = vmatpush1.msra.mxu0 %v2342
        %2369 = vmatprep.subr.mxu0 0.0
        %2370 = vmatpush1.msra.mxu0 %v2341
        %2371 = vmatprep.subr.mxu0 0.0
        %2372 = vmatpush1.msra.mxu0 %v2340
        %2373 = vmatprep.subr.mxu0 0.0
        %2374 = vmatpush1.msra.mxu0 %v2339
        %2375 = vmatprep.subr.mxu0 0.0
        %2376 = vmatpush1.msra.mxu0 %v2338
        %2377 = vmatprep.subr.mxu0 0.0
        %2378 = vmatpush1.msra.mxu0 %v2337
        %2379 = vmatprep.subr.mxu0 0.0
        %2380 = vmatpush1.msra.mxu0 %v2336
        %2381 = vmatprep.subr.mxu0 0.0
        %2382 = vmatpush1.msra.mxu0 %v2335
        %2383 = vmatprep.subr.mxu0 0.0
        %2384 = vmatpush2.msra.mxu0 0.0
        %2385 = vmatprep.subr.mxu0 0.0
        %2386 = vmatpush2.msra.mxu0 0.0
        %2387 = vmatprep.subr.mxu0 0.0
        %2388 = vmatpush2.msra.mxu0 0.0
        %2389 = vmatprep.subr.mxu0 0.0
        %2390 = vmatpush2.msra.mxu0 0.0
        %2391 = vmatprep.subr.mxu0 0.0
        %2392 = vmatpush2.msra.mxu0 0.0
        %2393 = vmatprep.subr.mxu0 0.0
        %2394 = vmatpush2.msra.mxu0 0.0
        %2395 = vmatprep.subr.mxu0 0.0
        %2396 = vmatpush2.msra.mxu0 0.0
        %2397 = vmatprep.subr.mxu0 0.0
        %2398 = vmatpush2.msra.mxu0 0.0
        %2399 = vmatprep.subr.mxu0 0.0
        %2400 = vmatpush2.msra.mxu0 0.0
        %2401 = vmatprep.subr.mxu0 0.0
        %2402 = vmatpush2.msra.mxu0 0.0
        %2403 = vmatprep.subr.mxu0 0.0
        %2404 = vmatpush2.msra.mxu0 0.0
        %2405 = vmatprep.subr.mxu0 0.0
        %2406 = vmatpush2.msra.mxu0 0.0
        %2407 = vmatprep.subr.mxu0 0.0
        %2408 = vmatpush2.msra.mxu0 0.0
        %2409 = vmatprep.subr.mxu0 0.0
        %2410 = vmatpush2.msra.mxu0 0.0
        %2411 = vmatprep.subr.mxu0 0.0
        %2412 = vmatpush2.msra.mxu0 0.0
        %2413 = vmatprep.subr.mxu0 0.0
        %2414 = vmatpush2.msra.mxu0 0.0
        %2415 = vmatprep.mubr.f32.mxu0 0.0
        %2416 = vmatmul.mubr.f32.gmra.mxu0 %v2332
        %v2417 = vpop.f32.mrf.mxu0
        %v2418 = vadd.f32 0.0, %v2417
        %v2419 = vpop.f32.mrf.mxu0
        %2420 = vmatprep.mubr.f32.mxu0 0.0
        %2421 = vmatmul.mubr.f32.gmra.mxu0 %v2333
        %v2422 = vpop.f32.mrf.mxu0
        %v2423 = vadd.f32 0.0, %v2422
        %v2424 = vpop.f32.mrf.mxu0
        %2425 = vdwg.mxu0
        %v2426 = vadd.f32 %v2324, %v2418
        %v2427 = vadd.f32 %v2329, %v2423
        %v2428 = vld [vmem:[#allocation4 + $0x3] sm:$0xff]
        %v2429 = vld [vmem:[#allocation4 + $0xb] sm:$0xff]
        %s2430 = scalar_lea.vmem [#allocation10], 384
        %v2431 = vld [vmem:[%s2430] sm:$0xff]
        %v2432 = vld [vmem:[%s2430 + $0x8] sm:$0xff]
        %v2433 = vld [vmem:[%s2430 + $0x10] sm:$0xff]
        %v2434 = vld [vmem:[%s2430 + $0x18] sm:$0xff]
        %v2435 = vld [vmem:[%s2430 + $0x20] sm:$0xff]
        %v2436 = vld [vmem:[%s2430 + $0x28] sm:$0xff]
        %v2437 = vld [vmem:[%s2430 + $0x30] sm:$0xff]
        %v2438 = vld [vmem:[%s2430 + $0x38] sm:$0xff]
        %v2439 = vld [vmem:[%s2430 + $0x40] sm:$0xff]
        %v2440 = vld [vmem:[%s2430 + $0x48] sm:$0xff]
        %v2441 = vld [vmem:[%s2430 + $0x50] sm:$0xff]
        %v2442 = vld [vmem:[%s2430 + $0x58] sm:$0xff]
        %v2443 = vld [vmem:[%s2430 + $0x60] sm:$0xff]
        %v2444 = vld [vmem:[%s2430 + $0x68] sm:$0xff]
        %v2445 = vld [vmem:[%s2430 + $0x70] sm:$0xff]
        %v2446 = vld [vmem:[%s2430 + $0x78] sm:$0xff]
        %2447 = vmatprep.subr.mxu0 0.0
        %2448 = vmatpush1.msra.mxu0 %v2446
        %2449 = vmatprep.subr.mxu0 0.0
        %2450 = vmatpush1.msra.mxu0 %v2445
        %2451 = vmatprep.subr.mxu0 0.0
        %2452 = vmatpush1.msra.mxu0 %v2444
        %2453 = vmatprep.subr.mxu0 0.0
        %2454 = vmatpush1.msra.mxu0 %v2443
        %2455 = vmatprep.subr.mxu0 0.0
        %2456 = vmatpush1.msra.mxu0 %v2442
        %2457 = vmatprep.subr.mxu0 0.0
        %2458 = vmatpush1.msra.mxu0 %v2441
        %2459 = vmatprep.subr.mxu0 0.0
        %2460 = vmatpush1.msra.mxu0 %v2440
        %2461 = vmatprep.subr.mxu0 0.0
        %2462 = vmatpush1.msra.mxu0 %v2439
        %2463 = vmatprep.subr.mxu0 0.0
        %2464 = vmatpush1.msra.mxu0 %v2438
        %2465 = vmatprep.subr.mxu0 0.0
        %2466 = vmatpush1.msra.mxu0 %v2437
        %2467 = vmatprep.subr.mxu0 0.0
        %2468 = vmatpush1.msra.mxu0 %v2436
        %2469 = vmatprep.subr.mxu0 0.0
        %2470 = vmatpush1.msra.mxu0 %v2435
        %2471 = vmatprep.subr.mxu0 0.0
        %2472 = vmatpush1.msra.mxu0 %v2434
        %2473 = vmatprep.subr.mxu0 0.0
        %2474 = vmatpush1.msra.mxu0 %v2433
        %2475 = vmatprep.subr.mxu0 0.0
        %2476 = vmatpush1.msra.mxu0 %v2432
        %2477 = vmatprep.subr.mxu0 0.0
        %2478 = vmatpush1.msra.mxu0 %v2431
        %2479 = vmatprep.subr.mxu0 0.0
        %2480 = vmatpush2.msra.mxu0 0.0
        %2481 = vmatprep.subr.mxu0 0.0
        %2482 = vmatpush2.msra.mxu0 0.0
        %2483 = vmatprep.subr.mxu0 0.0
        %2484 = vmatpush2.msra.mxu0 0.0
        %2485 = vmatprep.subr.mxu0 0.0
        %2486 = vmatpush2.msra.mxu0 0.0
        %2487 = vmatprep.subr.mxu0 0.0
        %2488 = vmatpush2.msra.mxu0 0.0
        %2489 = vmatprep.subr.mxu0 0.0
        %2490 = vmatpush2.msra.mxu0 0.0
        %2491 = vmatprep.subr.mxu0 0.0
        %2492 = vmatpush2.msra.mxu0 0.0
        %2493 = vmatprep.subr.mxu0 0.0
        %2494 = vmatpush2.msra.mxu0 0.0
        %2495 = vmatprep.subr.mxu0 0.0
        %2496 = vmatpush2.msra.mxu0 0.0
        %2497 = vmatprep.subr.mxu0 0.0
        %2498 = vmatpush2.msra.mxu0 0.0
        %2499 = vmatprep.subr.mxu0 0.0
        %2500 = vmatpush2.msra.mxu0 0.0
        %2501 = vmatprep.subr.mxu0 0.0
        %2502 = vmatpush2.msra.mxu0 0.0
        %2503 = vmatprep.subr.mxu0 0.0
        %2504 = vmatpush2.msra.mxu0 0.0
        %2505 = vmatprep.subr.mxu0 0.0
        %2506 = vmatpush2.msra.mxu0 0.0
        %2507 = vmatprep.subr.mxu0 0.0
        %2508 = vmatpush2.msra.mxu0 0.0
        %2509 = vmatprep.subr.mxu0 0.0
        %2510 = vmatpush2.msra.mxu0 0.0
        %2511 = vmatprep.mubr.f32.mxu0 0.0
        %2512 = vmatmul.mubr.f32.gmra.mxu0 %v2428
        %v2513 = vpop.f32.mrf.mxu0
        %v2514 = vadd.f32 0.0, %v2513
        %v2515 = vpop.f32.mrf.mxu0
        %2516 = vmatprep.mubr.f32.mxu0 0.0
        %2517 = vmatmul.mubr.f32.gmra.mxu0 %v2429
        %v2518 = vpop.f32.mrf.mxu0
        %v2519 = vadd.f32 0.0, %v2518
        %v2520 = vpop.f32.mrf.mxu0
        %2521 = vdwg.mxu0
        %v2522 = vadd.f32 %v2426, %v2514
        %v2523 = vadd.f32 %v2427, %v2519
        %v2524 = vld [vmem:[#allocation4 + $0x4] sm:$0xff]
        %v2525 = vld [vmem:[#allocation4 + $0xc] sm:$0xff]
        %s2526 = scalar_lea.vmem [#allocation10], 512
        %v2527 = vld [vmem:[%s2526] sm:$0xff]
        %v2528 = vld [vmem:[%s2526 + $0x8] sm:$0xff]
        %v2529 = vld [vmem:[%s2526 + $0x10] sm:$0xff]
        %v2530 = vld [vmem:[%s2526 + $0x18] sm:$0xff]
        %v2531 = vld [vmem:[%s2526 + $0x20] sm:$0xff]
        %v2532 = vld [vmem:[%s2526 + $0x28] sm:$0xff]
        %v2533 = vld [vmem:[%s2526 + $0x30] sm:$0xff]
        %v2534 = vld [vmem:[%s2526 + $0x38] sm:$0xff]
        %v2535 = vld [vmem:[%s2526 + $0x40] sm:$0xff]
        %v2536 = vld [vmem:[%s2526 + $0x48] sm:$0xff]
        %v2537 = vld [vmem:[%s2526 + $0x50] sm:$0xff]
        %v2538 = vld [vmem:[%s2526 + $0x58] sm:$0xff]
        %v2539 = vld [vmem:[%s2526 + $0x60] sm:$0xff]
        %v2540 = vld [vmem:[%s2526 + $0x68] sm:$0xff]
        %v2541 = vld [vmem:[%s2526 + $0x70] sm:$0xff]
        %v2542 = vld [vmem:[%s2526 + $0x78] sm:$0xff]
        %2543 = vmatprep.subr.mxu0 0.0
        %2544 = vmatpush1.msra.mxu0 %v2542
        %2545 = vmatprep.subr.mxu0 0.0
        %2546 = vmatpush1.msra.mxu0 %v2541
        %2547 = vmatprep.subr.mxu0 0.0
        %2548 = vmatpush1.msra.mxu0 %v2540
        %2549 = vmatprep.subr.mxu0 0.0
        %2550 = vmatpush1.msra.mxu0 %v2539
        %2551 = vmatprep.subr.mxu0 0.0
        %2552 = vmatpush1.msra.mxu0 %v2538
        %2553 = vmatprep.subr.mxu0 0.0
        %2554 = vmatpush1.msra.mxu0 %v2537
        %2555 = vmatprep.subr.mxu0 0.0
        %2556 = vmatpush1.msra.mxu0 %v2536
        %2557 = vmatprep.subr.mxu0 0.0
        %2558 = vmatpush1.msra.mxu0 %v2535
        %2559 = vmatprep.subr.mxu0 0.0
        %2560 = vmatpush1.msra.mxu0 %v2534
        %2561 = vmatprep.subr.mxu0 0.0
        %2562 = vmatpush1.msra.mxu0 %v2533
        %2563 = vmatprep.subr.mxu0 0.0
        %2564 = vmatpush1.msra.mxu0 %v2532
        %2565 = vmatprep.subr.mxu0 0.0
        %2566 = vmatpush1.msra.mxu0 %v2531
        %2567 = vmatprep.subr.mxu0 0.0
        %2568 = vmatpush1.msra.mxu0 %v2530
        %2569 = vmatprep.subr.mxu0 0.0
        %2570 = vmatpush1.msra.mxu0 %v2529
        %2571 = vmatprep.subr.mxu0 0.0
        %2572 = vmatpush1.msra.mxu0 %v2528
        %2573 = vmatprep.subr.mxu0 0.0
        %2574 = vmatpush1.msra.mxu0 %v2527
        %2575 = vmatprep.subr.mxu0 0.0
        %2576 = vmatpush2.msra.mxu0 0.0
        %2577 = vmatprep.subr.mxu0 0.0
        %2578 = vmatpush2.msra.mxu0 0.0
        %2579 = vmatprep.subr.mxu0 0.0
        %2580 = vmatpush2.msra.mxu0 0.0
        %2581 = vmatprep.subr.mxu0 0.0
        %2582 = vmatpush2.msra.mxu0 0.0
        %2583 = vmatprep.subr.mxu0 0.0
        %2584 = vmatpush2.msra.mxu0 0.0
        %2585 = vmatprep.subr.mxu0 0.0
        %2586 = vmatpush2.msra.mxu0 0.0
        %2587 = vmatprep.subr.mxu0 0.0
        %2588 = vmatpush2.msra.mxu0 0.0
        %2589 = vmatprep.subr.mxu0 0.0
        %2590 = vmatpush2.msra.mxu0 0.0
        %2591 = vmatprep.subr.mxu0 0.0
        %2592 = vmatpush2.msra.mxu0 0.0
        %2593 = vmatprep.subr.mxu0 0.0
        %2594 = vmatpush2.msra.mxu0 0.0
        %2595 = vmatprep.subr.mxu0 0.0
        %2596 = vmatpush2.msra.mxu0 0.0
        %2597 = vmatprep.subr.mxu0 0.0
        %2598 = vmatpush2.msra.mxu0 0.0
        %2599 = vmatprep.subr.mxu0 0.0
        %2600 = vmatpush2.msra.mxu0 0.0
        %2601 = vmatprep.subr.mxu0 0.0
        %2602 = vmatpush2.msra.mxu0 0.0
        %2603 = vmatprep.subr.mxu0 0.0
        %2604 = vmatpush2.msra.mxu0 0.0
        %2605 = vmatprep.subr.mxu0 0.0
        %2606 = vmatpush2.msra.mxu0 0.0
        %2607 = vmatprep.mubr.f32.mxu0 0.0
        %2608 = vmatmul.mubr.f32.gmra.mxu0 %v2524
        %v2609 = vpop.f32.mrf.mxu0
        %v2610 = vadd.f32 0.0, %v2609
        %v2611 = vpop.f32.mrf.mxu0
        %2612 = vmatprep.mubr.f32.mxu0 0.0
        %2613 = vmatmul.mubr.f32.gmra.mxu0 %v2525
        %v2614 = vpop.f32.mrf.mxu0
        %v2615 = vadd.f32 0.0, %v2614
        %v2616 = vpop.f32.mrf.mxu0
        %2617 = vdwg.mxu0
        %v2618 = vadd.f32 %v2522, %v2610
        %v2619 = vadd.f32 %v2523, %v2615
        %v2620 = vld [vmem:[%s6] sm:$0x1]
        %v2622 = vlaneseq
        %v2623 = vshrl.u32 %v2622, 7
        %v2624 = vsub.s32 0, %v2623
        %v2625 = vrot.slane %v2620, %v2624
        %v2627 = vadd.f32 %v2618, %v2625
        %v2628 = vadd.f32 %v2619, %v2625
        %2629 = vst [vmem:[%s288] sm:$0xff] %v2627
        %2630 = vst [vmem:[%s288 + $0x8] sm:$0xff] %v2628
        %s2631 = sand.u32 %s171, 1
        %s2632 = scalar_lea.sflag [#allocation7], %s2631
        %s2633 = sand.u32 %s171, 1
        %s2634 = smul.addr %s2633, 16
        %s2635 = scalar_lea.vmem [#allocation11], %s2634
        // Predicated region
        $region106: #{tpu_custom_call.1} parent=43 // pred_check
          %p2636 = pneg %p181
        $region107: #{tpu_custom_call.1} parent=43 // pred_check_branch
          %2638 = sbr.rel (%p2636) target = $region109
        $region108: #{tpu_custom_call.1} parent=43 // pred_region
          %s2639 = smul.u32 2, %s28
          %s2641 = ssub.s32 256, 256
          %2642 = vsyncadd %s2632, %s2641
          %s2643 = smul.addr %s27, 2
          %s2644 = sadd.s32 %s2639, %s2643
          %s2645 = smul.addr %s2644, 128
          %s2646 = scalar_lea.hbm %s7, %s2645
          %s2647 = sshll.u32 %s2635, 4
          %s2648 = int_to_ptr.vmem [resolvable:$true] %s2647
          %2653 = dma.vmem_to_hbm [thread:$0]  %s2648, 256, %s2646, %s2632, 128, 128, 8
        $region109: #{tpu_custom_call.1} parent=43 // pred_fallthru
          _
      $region44: #{tpu_custom_call.1} parent=5 // pred_fallthru
        _
      %p2654 = scmp.le.s32.totalorder 2, %s18
      // Predicated region
      $region110: #{tpu_custom_call.1} parent=5 // pred_check
        %p2655 = pneg %p2654
      $region111: #{tpu_custom_call.1} parent=5 // pred_check_branch
        %2657 = sbr.rel (%p2655) target = $region113
      $region112: #{tpu_custom_call.1} parent=5 // pred_region
        %s2658 = ssub.s32 %s18, 2
        // Predicated region
        $region114: #{tpu_custom_call.1} parent=112 // pred_check
          %p2659 = pneg %p187
        $region115: #{tpu_custom_call.1} parent=112 // pred_check_branch
          %2661 = sbr.rel (%p2659) target = $region117
        $region116: #{tpu_custom_call.1} parent=112 // pred_region
          %s2662 = sand.u32 %s172, 1
          %s2663 = scalar_lea.sflag [#allocation7], %s2662
          %s2664 = sand.u32 %s172, 1
          %s2665 = smul.addr %s2664, 16
          %s2666 = scalar_lea.vmem [#allocation11], %s2665
          %2667 = dma.done %s2663, 256
        $region117: #{tpu_custom_call.1} parent=112 // pred_fallthru
          _
      $region113: #{tpu_custom_call.1} parent=5 // pred_fallthru
        _
    $region6: #{tpu_custom_call.1} parent=1 // loop_footer
      %s22 = sadd.s32 1, %s18
    $region7: #{tpu_custom_call.1} parent=1 // loop_footer_branch
      %17 = sbr.rel target = $region3
    $region8: #{tpu_custom_call.1} parent=1 // loop_exit
      _
    %2668 = vsyncpa [#allocation6], 1
    %s2669 = scalar_lea.sflag [#allocation6], 1
    %2670 = vsyncpa %s2669, 1
    %2671 = vsyncpa [#allocation9], 1
    %2672 = vsyncpa [#allocation7], 1
    %s2673 = scalar_lea.sflag [#allocation7], 1
    %2674 = vsyncpa %s2673, 1
  %2675 = vsyncmov [#allocation3]
  %s2676 = vpop.sfrf %2675
  %p2677 = scmp.eq.s32.totalorder %s2676, 0
  %p2678 = pneg %p2677
  %2680 = shalt.err (%p2678)
  %s2681 = scalar_lea.sflag [#allocation3], 1
  %2682 = vsyncmov %s2681
  %s2683 = vpop.sfrf %2682
  %p2684 = scmp.eq.s32.totalorder %s2683, 0
  %p2685 = pneg %p2684
  %2687 = shalt.err (%p2685)

// kernel: tpu_custom_call.1
$region0: #{tpu_custom_call.1}
  #allocation0 [shape = 'u32[]', space=smem, size = 0x4, offset = 0x4, fixed_abs, tag = 'smem constant byte address 0x4 - core index']
  #allocation1 [shape = 'u32[144,128]{1,0:T(1,128)}', space=vmem, size = 0x12000, scoped, tag = 'internal scratch']
  #allocation2 [shape = 'f32[2,1,28,128]{3,2,1,0:T(8,128)}', space=vmem, size = 0x8000, scoped, tag = 'scratch operand']
  #allocation3 [shape = 's32[2]{0}', space=sflag, size = 0x8, scoped, tag = 'scratch operand']
  #allocation4 [shape = 'f32[28,128]{1,0:T(8,128)}', space=vmem, size = 0x4000, scoped, tag = 'scratch operand']
  #allocation12 [shape = 's32[]', space=sflag, size = 0x4, offset = 0, fixed_abs, tag = 'sflag constant byte address 0x0 - dummy sync flag']
  %s0 = inlined_call_operand.vmem [shape: f32[2,28,128], index: 0, kind: input, shape index: {}]
  %s1 = inlined_call_operand.hbm [shape: f32[5,128,128], index: 1, kind: input, shape index: {}]
  %s2 = inlined_call_operand.hbm [shape: f32[1,5,128,128], index: 2, kind: input, shape index: {}]
  %s3 = inlined_call_operand.hbm [shape: f32[5,128,128], index: 3, kind: input, shape index: {}]
  %s4 = inlined_call_operand.vmem [shape: f32[2,1,128], index: 4, kind: input, shape index: {}]
  %s5 = inlined_call_operand.vmem [shape: f32[2,1,128], index: 5, kind: input, shape index: {}]
  %s6 = inlined_call_operand.vmem [shape: f32[1,128], index: 6, kind: input, shape index: {}]
  %s7 = inlined_call_operand.hbm [shape: f32[2,16,128], index: 7, kind: output, shape index: {}]
  %s8 = sld [smem:[#allocation0]]
  $region118: #{tpu_custom_call.1} parent=0
    _
  %s10 = ssub.s32 1, %s8
  %s11 = scalar_select 0, %s10, %s8
  $region1: #{tpu_custom_call.1} parent=0
    #allocation5 [shape = 'u8[327680]{0}', space=vmem, size = 0x50000, scoped, tag = 'input window, operand 1, single buffered']
    #allocation6 [shape = 's32[2]{0}', space=sflag, size = 0x8, scoped, tag = 'scoped memory for tpu_custom_call.1']
    #allocation7 [shape = 's32[2]{0}', space=sflag, size = 0x8, scoped, tag = 'scoped memory for tpu_custom_call.1']
    #allocation8 [shape = 'u8[327680]{0}', space=vmem, size = 0x50000, scoped, tag = 'input window, operand 2, single buffered']
    #allocation9 [shape = 's32[1]{0}', space=sflag, size = 0x4, scoped, tag = 'scoped memory for tpu_custom_call.1']
    #allocation10 [shape = 'u8[327680]{0}', space=vmem, size = 0x50000, scoped, tag = 'input window, operand 3, single buffered']
    #allocation11 [shape = 'u8[16384]{0}', space=vmem, size = 0x4000, scoped, tag = 'output window, operand 0']
    %12 = vsyncpa [#allocation6], 0
    %13 = vsyncpa [#allocation9], 0
    %14 = vsyncpa [#allocation7], 0
    %s15 = scalar_lea.sflag [#allocation7], 1
    %16 = vsyncpa %s15, 0
    loop: start=0, step=1, limit=4
    $region2: #{tpu_custom_call.1} parent=1 // loop_pre_header
      _
    $region3: #{tpu_custom_call.1} parent=1 // loop_header
      %s18 = sphi 0, %s22
      %p19 = scmp.ge.s32.totalorder %s18, 4
      %s25 = sphi 0, %s37
      %s26 = sphi 0, %s33
      %s27 = sphi 0, %s25
      %s28 = sphi 0, %s26
      %s29 = sphi 0, %s27
      %s30 = sphi 0, %s28
      %s38 = sphi 0, %s38
      %s40 = sphi 0, %s38
      %s41 = sphi 0, %s40
      %s55 = sphi 0, %s41
      %s59 = sphi 0, %s59
      %s61 = sphi 0, %s59
      %s62 = sphi 0, %s61
      %s76 = sphi 0, %s62
      %s80 = sphi 0, %s80
      %s82 = sphi 0, %s80
      %s83 = sphi 0, %s82
      %s97 = sphi 0, %s83
      %s101 = sphi 0, %s101
      %s103 = sphi 0, %s101
      %s104 = sphi 0, %s103
      %s118 = sphi 0, %s104
      %s122 = sphi 0, %s122
      %s124 = sphi 0, %s122
      %s125 = sphi 0, %s124
      %s139 = sphi 0, %s125
      %s143 = sphi 0, %s143
      %s145 = sphi 0, %s143
      %s146 = sphi 0, %s145
      %s160 = sphi 0, %s146
      %s168 = sphi 0, %s170
      %s171 = sphi 0, %s168
      %s172 = sphi 0, %s171
      %s188 = sphi 0, %s172
    $region4: #{tpu_custom_call.1} parent=1 // loop_header_branch
      %21 = sbr.rel (%p19) target = $region8
    $region5: #{tpu_custom_call.1} parent=1 // loop_body
      %s23 = ssub.s32 %s18, 1
      %s24 = ssub.s32 %s18, 2
      %s31 = sadd.s32 1, %s26
      %p32 = scmp.ge.s32.totalorder %s31, 1
      %s33 = scalar_select %p32, 0, %s31
      %s34 = sadd.s32 1, %s25
      %s35 = scalar_select %p32, %s34, %s25
      %p36 = scmp.ge.s32.totalorder %s35, 2
      %s37 = scalar_select %p36, 0, %s35
      %s39 = sadd.s32 %s38, 1
      %p42 = scmp.eq.s32.totalorder %s18, 1
      %p43 = scmp.ne.s32.totalorder %s38, %s40
      %p44 = scmp.eq.s32.totalorder %s18, 0
      %p45 = por %p43, %p44
      %p46 = scmp.ne.s32.totalorder %s38, %s40
      %p47 = scmp.eq.s32.totalorder %s23, 1
      %p48 = por %p46, %p47
      %p49 = scmp.ne.s32.totalorder %s40, %s41
      %p50 = scmp.eq.s32.totalorder %s23, 0
      %p51 = por %p49, %p50
      %p52 = scmp.ne.s32.totalorder %s40, %s41
      %p53 = scmp.eq.s32.totalorder %s24, 1
      %p54 = por %p52, %p53
      %p56 = scmp.ne.s32.totalorder %s41, %s55
      %p57 = scmp.eq.s32.totalorder %s24, 0
      %p58 = por %p56, %p57
      %s60 = sadd.s32 %s59, 1
      %p63 = scmp.eq.s32.totalorder %s18, 1
      %p64 = scmp.ne.s32.totalorder %s59, %s61
      %p65 = scmp.eq.s32.totalorder %s18, 0
      %p66 = por %p64, %p65
      %p67 = scmp.ne.s32.totalorder %s59, %s61
      %p68 = scmp.eq.s32.totalorder %s23, 1
      %p69 = por %p67, %p68
      %p70 = scmp.ne.s32.totalorder %s61, %s62
      %p71 = scmp.eq.s32.totalorder %s23, 0
      %p72 = por %p70, %p71
      %p73 = scmp.ne.s32.totalorder %s61, %s62
      %p74 = scmp.eq.s32.totalorder %s24, 1
      %p75 = por %p73, %p74
      %p77 = scmp.ne.s32.totalorder %s62, %s76
      %p78 = scmp.eq.s32.totalorder %s24, 0
      %p79 = por %p77, %p78
      %s81 = sadd.s32 %s80, 1
      %p84 = scmp.eq.s32.totalorder %s18, 1
      %p85 = scmp.ne.s32.totalorder %s80, %s82
      %p86 = scmp.eq.s32.totalorder %s18, 0
      %p87 = por %p85, %p86
      %p88 = scmp.ne.s32.totalorder %s80, %s82
      %p89 = scmp.eq.s32.totalorder %s23, 1
      %p90 = por %p88, %p89
      %p91 = scmp.ne.s32.totalorder %s82, %s83
      %p92 = scmp.eq.s32.totalorder %s23, 0
      %p93 = por %p91, %p92
      %p94 = scmp.ne.s32.totalorder %s82, %s83
      %p95 = scmp.eq.s32.totalorder %s24, 1
      %p96 = por %p94, %p95
      %p98 = scmp.ne.s32.totalorder %s83, %s97
      %p99 = scmp.eq.s32.totalorder %s24, 0
      %p100 = por %p98, %p99
      %s102 = sadd.s32 %s101, 1
      %p105 = scmp.eq.s32.totalorder %s18, 1
      %p106 = scmp.ne.s32.totalorder %s101, %s103
      %p107 = scmp.eq.s32.totalorder %s18, 0
      %p108 = por %p106, %p107
      %p109 = scmp.ne.s32.totalorder %s101, %s103
      %p110 = scmp.eq.s32.totalorder %s23, 1
      %p111 = por %p109, %p110
      %p112 = scmp.ne.s32.totalorder %s103, %s104
      %p113 = scmp.eq.s32.totalorder %s23, 0
      %p114 = por %p112, %p113
      %p115 = scmp.ne.s32.totalorder %s103, %s104
      %p116 = scmp.eq.s32.totalorder %s24, 1
      %p117 = por %p115, %p116
      %p119 = scmp.ne.s32.totalorder %s104, %s118
      %p120 = scmp.eq.s32.totalorder %s24, 0
      %p121 = por %p119, %p120
      %s123 = sadd.s32 %s122, 1
      %p126 = scmp.eq.s32.totalorder %s18, 1
      %p127 = scmp.ne.s32.totalorder %s122, %s124
      %p128 = scmp.eq.s32.totalorder %s18, 0
      %p129 = por %p127, %p128
      %p130 = scmp.ne.s32.totalorder %s122, %s124
      %p131 = scmp.eq.s32.totalorder %s23, 1
      %p132 = por %p130, %p131
      %p133 = scmp.ne.s32.totalorder %s124, %s125
      %p134 = scmp.eq.s32.totalorder %s23, 0
      %p135 = por %p133, %p134
      %p136 = scmp.ne.s32.totalorder %s124, %s125
      %p137 = scmp.eq.s32.totalorder %s24, 1
      %p138 = por %p136, %p137
      %p140 = scmp.ne.s32.totalorder %s125, %s139
      %p141 = scmp.eq.s32.totalorder %s24, 0
      %p142 = por %p140, %p141
      %s144 = sadd.s32 %s143, 1
      %p147 = scmp.eq.s32.totalorder %s18, 1
      %p148 = scmp.ne.s32.totalorder %s143, %s145
      %p149 = scmp.eq.s32.totalorder %s18, 0
      %p150 = por %p148, %p149
      %p151 = scmp.ne.s32.totalorder %s143, %s145
      %p152 = scmp.eq.s32.totalorder %s23, 1
      %p153 = por %p151, %p152
      %p154 = scmp.ne.s32.totalorder %s145, %s146
      %p155 = scmp.eq.s32.totalorder %s23, 0
      %p156 = por %p154, %p155
      %p157 = scmp.ne.s32.totalorder %s145, %s146
      %p158 = scmp.eq.s32.totalorder %s24, 1
      %p159 = por %p157, %p158
      %p161 = scmp.ne.s32.totalorder %s146, %s160
      %p162 = scmp.eq.s32.totalorder %s24, 0
      %p163 = por %p161, %p162
      %s164 = ssub.s32 %s25, %s37
      %s165 = ssub.s32 %s26, %s33
      %s166 = sor.u32 %s164, %s165
      %p167 = scmp.eq.s32.totalorder %s166, 0
      %s169 = sadd.s32 %s168, 1
      %s170 = scalar_select %p167, %s168, %s169
      %p173 = pneg %p167
      %p174 = scmp.eq.s32.totalorder %s18, 1
      %p175 = por %p173, %p174
      %p176 = scmp.ne.s32.totalorder %s168, %s171
      %p177 = scmp.eq.s32.totalorder %s18, 0
      %p178 = por %p176, %p177
      %p179 = scmp.ne.s32.totalorder %s168, %s171
      %p180 = scmp.eq.s32.totalorder %s23, 1
      %p181 = por %p179, %p180
      %p182 = scmp.ne.s32.totalorder %s171, %s172
      %p183 = scmp.eq.s32.totalorder %s23, 0
      %p184 = por %p182, %p183
      %p185 = scmp.ne.s32.totalorder %s171, %s172
      %p186 = scmp.eq.s32.totalorder %s24, 1
      %p187 = por %p185, %p186
      %p189 = scmp.ne.s32.totalorder %s172, %s188
      %p190 = scmp.eq.s32.totalorder %s24, 0
      %p191 = por %p189, %p190
      %p192 = scmp.le.s32.totalorder 1, %s18
      %p193 = scmp.lt.s32.totalorder %s18, 3
      %p194 = pnand %p192, %p193
      %p195 = pneg %p194
      // Predicated region
      $region9: #{tpu_custom_call.1} parent=5 // pred_check
        _
      $region10: #{tpu_custom_call.1} parent=5 // pred_check_branch
        %197 = sbr.rel (%p194) target = $region12
      $region11: #{tpu_custom_call.1} parent=5 // pred_region
        %s198 = ssub.s32 %s18, 1
        // Predicated region
        $region13: #{tpu_custom_call.1} parent=11 // pred_check
          %p199 = pneg %p51
        $region14: #{tpu_custom_call.1} parent=11 // pred_check_branch
          %201 = sbr.rel (%p199) target = $region16
        $region15: #{tpu_custom_call.1} parent=11 // pred_region
          %s203 = ssub.s32 10240, 10240
          %204 = vsyncadd [#allocation6], %s203
          %s205 = sshll.u32 [#allocation5], 4
          %s206 = int_to_ptr.vmem [resolvable:$true] %s205
          %211 = dma.hbm_to_vmem [thread:$0]  %s1, 10240, %s206, [#allocation6], 128, 128, 8
        $region16: #{tpu_custom_call.1} parent=11 // pred_fallthru
          _
        // Predicated region
        $region17: #{tpu_custom_call.1} parent=11 // pred_check
          %p212 = pneg %p72
        $region18: #{tpu_custom_call.1} parent=11 // pred_check_branch
          %214 = sbr.rel (%p212) target = $region20
        $region19: #{tpu_custom_call.1} parent=11 // pred_region
          %s216 = ssub.s32 10240, 10240
          %217 = vsyncadd [#allocation9], %s216
          %s218 = sshll.u32 [#allocation8], 4
          %s219 = int_to_ptr.vmem [resolvable:$true] %s218
          %224 = dma.hbm_to_vmem [thread:$0]  %s2, 10240, %s219, [#allocation9], 128, 128, 8
        $region20: #{tpu_custom_call.1} parent=11 // pred_fallthru
          _
        // Predicated region
        $region21: #{tpu_custom_call.1} parent=11 // pred_check
          %p225 = pneg %p93
        $region22: #{tpu_custom_call.1} parent=11 // pred_check_branch
          %227 = sbr.rel (%p225) target = $region24
        $region23: #{tpu_custom_call.1} parent=11 // pred_region
          %s229 = ssub.s32 10240, 10240
          %230 = vsyncadd [#allocation9], %s229
          %s231 = sshll.u32 [#allocation10], 4
          %s232 = int_to_ptr.vmem [resolvable:$true] %s231
          %237 = dma.hbm_to_vmem [thread:$0]  %s3, 10240, %s232, [#allocation9], 128, 128, 8
        $region24: #{tpu_custom_call.1} parent=11 // pred_fallthru
          _
        // Predicated region
        $region25: #{tpu_custom_call.1} parent=11 // pred_check
          %p238 = pneg %p114
        $region26: #{tpu_custom_call.1} parent=11 // pred_check_branch
          %240 = sbr.rel (%p238) target = $region28
        $region27: #{tpu_custom_call.1} parent=11 // pred_region
          _
        $region28: #{tpu_custom_call.1} parent=11 // pred_fallthru
          _
        // Predicated region
        $region29: #{tpu_custom_call.1} parent=11 // pred_check
          %p241 = pneg %p135
        $region30: #{tpu_custom_call.1} parent=11 // pred_check_branch
          %243 = sbr.rel (%p241) target = $region32
        $region31: #{tpu_custom_call.1} parent=11 // pred_region
          _
        $region32: #{tpu_custom_call.1} parent=11 // pred_fallthru
          _
        // Predicated region
        $region33: #{tpu_custom_call.1} parent=11 // pred_check
          %p244 = pneg %p156
        $region34: #{tpu_custom_call.1} parent=11 // pred_check_branch
          %246 = sbr.rel (%p244) target = $region36
        $region35: #{tpu_custom_call.1} parent=11 // pred_region
          _
        $region36: #{tpu_custom_call.1} parent=11 // pred_fallthru
          _
      $region12: #{tpu_custom_call.1} parent=5 // pred_fallthru
        _
      %p247 = scmp.lt.s32.totalorder %s18, 2
      // Predicated region
      $region37: #{tpu_custom_call.1} parent=5 // pred_check
        %p248 = pneg %p247
      $region38: #{tpu_custom_call.1} parent=5 // pred_check_branch
        %250 = sbr.rel (%p248) target = $region40
      $region39: #{tpu_custom_call.1} parent=5 // pred_region
        _
      $region40: #{tpu_custom_call.1} parent=5 // pred_fallthru
        _
      %p251 = scmp.le.s32.totalorder 1, %s18
      %p252 = scmp.lt.s32.totalorder %s18, 3
      %p253 = pnand %p251, %p252
      %p254 = pneg %p253
      // Predicated region
      $region41: #{tpu_custom_call.1} parent=5 // pred_check
        _
      $region42: #{tpu_custom_call.1} parent=5 // pred_check_branch
        %256 = sbr.rel (%p253) target = $region44
      $region43: #{tpu_custom_call.1} parent=5 // pred_region
        %s257 = ssub.s32 %s18, 1
        // Predicated region
        $region45: #{tpu_custom_call.1} parent=43 // pred_check
          %p258 = pneg %p51
        $region46: #{tpu_custom_call.1} parent=43 // pred_check_branch
          %260 = sbr.rel (%p258) target = $region48
        $region47: #{tpu_custom_call.1} parent=43 // pred_region
          %261 = dma.done [#allocation6], 10240
        $region48: #{tpu_custom_call.1} parent=43 // pred_fallthru
          _
        // Predicated region
        $region49: #{tpu_custom_call.1} parent=43 // pred_check
          %p262 = pneg %p72
        $region50: #{tpu_custom_call.1} parent=43 // pred_check_branch
          %264 = sbr.rel (%p262) target = $region52
        $region51: #{tpu_custom_call.1} parent=43 // pred_region
          %265 = dma.done [#allocation9], 10240
        $region52: #{tpu_custom_call.1} parent=43 // pred_fallthru
          _
        // Predicated region
        $region53: #{tpu_custom_call.1} parent=43 // pred_check
          %p266 = pneg %p93
        $region54: #{tpu_custom_call.1} parent=43 // pred_check_branch
          %268 = sbr.rel (%p266) target = $region56
        $region55: #{tpu_custom_call.1} parent=43 // pred_region
          %269 = dma.done [#allocation9], 10240
        $region56: #{tpu_custom_call.1} parent=43 // pred_fallthru
          _
        %p270 = pneg %p51
        %p271 = pneg %p48
        %p272 = pneg %p72
        %p273 = pneg %p69
        %p274 = pneg %p93
        %p275 = pneg %p90
        %p276 = pneg %p114
        %p277 = pneg %p111
        %p278 = pneg %p135
        %p279 = pneg %p132
        %p280 = pneg %p156
        %p281 = pneg %p153
        %p282 = pneg %p184
        %p283 = pneg %p181
        %s284 = sand.u32 %s171, 1
        %s285 = scalar_lea.sflag [#allocation7], %s284
        %s286 = sand.u32 %s171, 1
        %s287 = smul.addr %s286, 16
        %s288 = scalar_lea.vmem [#allocation11], %s287
        %s289 = smul.u32 2, %s28
        %p290 = scmp.lt.s32.totalorder %s28, 0
        %s291 = ssub.s32 0, %s28
        %s292 = scalar_select %p290, %s291, %s28
        %s293 = sand.u32 %s292, 1
        %s294 = ssub.s32 0, %s293
        %s295 = scalar_select %p290, %s294, %s293
        %p296 = scmp.ne.s32.totalorder %s295, 0
        %p297 = scmp.lt.s32.totalorder %s295, 0
        %p298 = pnand %p297, %p296
        %p299 = pneg %p298
        %s300 = sadd.s32 %s295, 2
        %s301 = scalar_select %p299, %s300, %s295
        %p302 = scmp.eq.s32.totalorder %s28, 0
        // Predicated region
        $region57: #{tpu_custom_call.1} parent=43 // pred_check
          %p303 = pneg %p302
        $region58: #{tpu_custom_call.1} parent=43 // pred_check_branch
          %305 = sbr.rel (%p303) target = $region60
        $region59: #{tpu_custom_call.1} parent=43 // pred_region
          %s306 = smul.u32 %s27, 32
          %s307 = scalar_lea.vmem %s0, %s306
          %p309 = scmp.lt.u32.totalorder 28, 8
          %p310 = pneg %p309
          // Predicated region
          $region61: #{tpu_custom_call.1} parent=59 // pred_check
            _
          $region62: #{tpu_custom_call.1} parent=59 // pred_check_branch
            %312 = sbr.rel (%p309) target = $region64
          $region63: #{tpu_custom_call.1} parent=59 // pred_region
            %s328 = sand.u32 28, 7
            %p329 = scmp.eq.s32.totalorder %s328, 0
            %p330 = pneg %p329
            // Predicated region
            $region76: #{tpu_custom_call.1} parent=63 // pred_check
              _
            $region77: #{tpu_custom_call.1} parent=63 // pred_check_branch
              %332 = sbr.rel (%p329) target = $region79
            $region78: #{tpu_custom_call.1} parent=63 // pred_region
              %s333 = sand.u32 28, 7
              %s334 = ssub.s32 28, %s333
              %s335 = scalar_lea.vmem %s307, %s334
              %s336 = ssub.s32 28, %s333
              %s337 = scalar_lea.vmem [#allocation2], %s336
              loop: start=0, step=1, limit=1
              $region80: #{tpu_custom_call.1} parent=78 // loop_pre_header
                _
              $region81: #{tpu_custom_call.1} parent=78 // loop_header
                %s339 = sphi 0, %s343
                %p340 = scmp.ge.s32.totalorder %s339, 1
                %s344 = sphi %s307, %s307
                %s345 = sphi [#allocation2], [#allocation2]
              $region82: #{tpu_custom_call.1} parent=78 // loop_header_branch
                %342 = sbr.rel (%p340) target = $region86
              $region83: #{tpu_custom_call.1} parent=78 // loop_body
                %v346 = vld [vmem:[%s344] sm:$0xff]
                %347 = vst [vmem:[%s345] sm:$0xff] %v346
                %v348 = vld [vmem:[%s344 + $0x8] sm:$0xff]
                %349 = vst [vmem:[%s345 + $0x8] sm:$0xff] %v348
                %v350 = vld [vmem:[%s344 + $0x10] sm:$0xff]
                %351 = vst [vmem:[%s345 + $0x10] sm:$0xff] %v350
              $region84: #{tpu_custom_call.1} parent=78 // loop_footer
                %s343 = sadd.s32 1, %s339
              $region85: #{tpu_custom_call.1} parent=78 // loop_footer_branch
                %338 = sbr.rel target = $region81
              $region86: #{tpu_custom_call.1} parent=78 // loop_exit
                _
              %s352 = sshll.u32 1, %s333
              %s353 = ssub.s32 %s352, 1
              loop: start=0, step=1, limit=1
              $region87: #{tpu_custom_call.1} parent=78 // loop_pre_header
                _
              $region88: #{tpu_custom_call.1} parent=78 // loop_header
                %s355 = sphi 0, %s359
                %p356 = scmp.ge.s32.totalorder %s355, 1
                %s360 = sphi %s335, %s335
                %s361 = sphi %s337, %s337
              $region89: #{tpu_custom_call.1} parent=78 // loop_header_branch
                %358 = sbr.rel (%p356) target = $region93
              $region90: #{tpu_custom_call.1} parent=78 // loop_body
                %v362 = vld [vmem:[%s360] sm:%s353]
                %363 = vst [vmem:[%s361] sm:%s353] %v362
              $region91: #{tpu_custom_call.1} parent=78 // loop_footer
                %s359 = sadd.s32 1, %s355
              $region92: #{tpu_custom_call.1} parent=78 // loop_footer_branch
                %354 = sbr.rel target = $region88
              $region93: #{tpu_custom_call.1} parent=78 // loop_exit
                _
            $region79: #{tpu_custom_call.1} parent=63 // pred_fallthru
              _
          $region64: #{tpu_custom_call.1} parent=59 // pred_fallthru
            _
          // Predicated region
          $region65: #{tpu_custom_call.1} parent=59 // pred_check
            %p313 = pneg %p309
          $region66: #{tpu_custom_call.1} parent=59 // pred_check_branch
            %315 = sbr.rel (%p313) target = $region68
          $region67: #{tpu_custom_call.1} parent=59 // pred_region
            %s316 = sshll.u32 1, 28
            %s317 = ssub.s32 %s316, 1
            loop: start=0, step=1, limit=1
            $region69: #{tpu_custom_call.1} parent=67 // loop_pre_header
              _
            $region70: #{tpu_custom_call.1} parent=67 // loop_header
              %s319 = sphi 0, %s323
              %p320 = scmp.ge.s32.totalorder %s319, 1
              %s324 = sphi %s307, %s307
              %s325 = sphi [#allocation2], [#allocation2]
            $region71: #{tpu_custom_call.1} parent=67 // loop_header_branch
              %322 = sbr.rel (%p320) target = $region75
            $region72: #{tpu_custom_call.1} parent=67 // loop_body
              %v326 = vld [vmem:[%s324] sm:%s317]
              %327 = vst [vmem:[%s325] sm:%s317] %v326
            $region73: #{tpu_custom_call.1} parent=67 // loop_footer
              %s323 = sadd.s32 1, %s319
            $region74: #{tpu_custom_call.1} parent=67 // loop_footer_branch
              %318 = sbr.rel target = $region70
            $region75: #{tpu_custom_call.1} parent=67 // loop_exit
              _
          $region68: #{tpu_custom_call.1} parent=59 // pred_fallthru
            _
          // Predicated region
          $region94: #{tpu_custom_call.1} parent=59 // pred_check
            _
          $region95: #{tpu_custom_call.1} parent=59 // pred_check_branch
            %366 = sbr.rel (0) target = $region97
          $region96: #{tpu_custom_call.1} parent=59 // pred_region
            %367 = vsyncadd [#allocation3], 448
          $region97: #{tpu_custom_call.1} parent=59 // pred_fallthru
            _
        $region60: #{tpu_custom_call.1} parent=43 // pred_fallthru
          _
        %s368 = smul.u32 %s28, 16
        %s369 = smul.u32 %s301, 32
        %s370 = scalar_lea.vmem [#allocation2], %s369
        %s371 = scalar_lea.sflag [#allocation3], %s301
        %s372 = smul.u32 1, 28
        %s373 = smul.u32 %s372, 1
        %s374 = sshll.u32 %s373, 4
        %375 = dma.done %s371, %s374
        %v376 = vld [vmem:[%s370] sm:$0xff]
        %v377 = vld [vmem:[%s370 + $0x8] sm:$0xff]
        %v378 = vld [vmem:[%s370 + $0x10] sm:$0xff]
        %v379 = vld [vmem:[%s370 + $0x18] sm:$0xf]
        %380 = vst [vmem:[#allocation4] sm:$0xff] %v376
        %381 = vst [vmem:[#allocation4 + $0x8] sm:$0xff] %v377
        %382 = vst [vmem:[#allocation4 + $0x10] sm:$0xff] %v378
        %383 = vst [vmem:[#allocation4 + $0x18] sm:$0xf] %v379
        %v384 = vlaneseq
        %v385 = vshrl.u32 %v384, 7
        %v386 = vadd.s32 %v385, 8
        %v387 = vadd.s32 %v385, 16
        %v388 = vld [vmem:[#allocation4] sm:$0xff]
        %v389 = vld [vmem:[#allocation4 + $0x8] sm:$0xff]
        %v390 = vld [vmem:[#allocation4 + $0x10] sm:$0xff]
        %v391 = vld [vmem:[#allocation5] sm:$0xff]
        %v392 = vld [vmem:[#allocation5 + $0x8] sm:$0xff]
        %v393 = vld [vmem:[#allocation5 + $0x10] sm:$0xff]
        %v394 = vld [vmem:[#allocation5 + $0x18] sm:$0xff]
        %v395 = vld [vmem:[#allocation5 + $0x20] sm:$0xff]
        %v396 = vld [vmem:[#allocation5 + $0x28] sm:$0xff]
        %v397 = vld [vmem:[#allocation5 + $0x30] sm:$0xff]
        %v398 = vld [vmem:[#allocation5 + $0x38] sm:$0xff]
        %v399 = vld [vmem:[#allocation5 + $0x40] sm:$0xff]
        %v400 = vld [vmem:[#allocation5 + $0x48] sm:$0xff]
        %v401 = vld [vmem:[#allocation5 + $0x50] sm:$0xff]
        %v402 = vld [vmem:[#allocation5 + $0x58] sm:$0xff]
        %v403 = vld [vmem:[#allocation5 + $0x60] sm:$0xff]
        %v404 = vld [vmem:[#allocation5 + $0x68] sm:$0xff]
        %v405 = vld [vmem:[#allocation5 + $0x70] sm:$0xff]
        %v406 = vld [vmem:[#allocation5 + $0x78] sm:$0xff]
        %v407 = vld [vmem:[#allocation4 + $0x1] sm:$0xff]
        %v408 = vld [vmem:[#allocation4 + $0x9] sm:$0xff]
        %v409 = vld [vmem:[#allocation4 + $0x11] sm:$0xff]
        %s410 = scalar_lea.vmem [#allocation5], 128
        %v411 = vld [vmem:[%s410] sm:$0xff]
        %v412 = vld [vmem:[%s410 + $0x8] sm:$0xff]
        %v413 = vld [vmem:[%s410 + $0x10] sm:$0xff]
        %v414 = vld [vmem:[%s410 + $0x18] sm:$0xff]
        %v415 = vld [vmem:[%s410 + $0x20] sm:$0xff]
        %v416 = vld [vmem:[%s410 + $0x28] sm:$0xff]
        %v417 = vld [vmem:[%s410 + $0x30] sm:$0xff]
        %v418 = vld [vmem:[%s410 + $0x38] sm:$0xff]
        %v419 = vld [vmem:[%s410 + $0x40] sm:$0xff]
        %v420 = vld [vmem:[%s410 + $0x48] sm:$0xff]
        %v421 = vld [vmem:[%s410 + $0x50] sm:$0xff]
        %v422 = vld [vmem:[%s410 + $0x58] sm:$0xff]
        %v423 = vld [vmem:[%s410 + $0x60] sm:$0xff]
        %v424 = vld [vmem:[%s410 + $0x68] sm:$0xff]
        %v425 = vld [vmem:[%s410 + $0x70] sm:$0xff]
        %v426 = vld [vmem:[%s410 + $0x78] sm:$0xff]
        %427 = vmatprep.subr.mxu0 0.0
        %428 = vmatpush1.msra.mxu0 %v426
        %429 = vmatprep.subr.mxu0 0.0
        %430 = vmatpush1.msra.mxu0 %v425
        %431 = vmatprep.subr.mxu0 0.0
        %432 = vmatpush1.msra.mxu0 %v424
        %433 = vmatprep.subr.mxu0 0.0
        %434 = vmatpush1.msra.mxu0 %v423
        %435 = vmatprep.subr.mxu0 0.0
        %436 = vmatpush1.msra.mxu0 %v422
        %437 = vmatprep.subr.mxu0 0.0
        %438 = vmatpush1.msra.mxu0 %v421
        %439 = vmatprep.subr.mxu0 0.0
        %440 = vmatpush1.msra.mxu0 %v420
        %441 = vmatprep.subr.mxu0 0.0
        %442 = vmatpush1.msra.mxu0 %v419
        %443 = vmatprep.subr.mxu0 0.0
        %444 = vmatpush1.msra.mxu0 %v418
        %445 = vmatprep.subr.mxu0 0.0
        %446 = vmatpush1.msra.mxu0 %v417
        %447 = vmatprep.subr.mxu0 0.0
        %448 = vmatpush1.msra.mxu0 %v416
        %449 = vmatprep.subr.mxu0 0.0
        %450 = vmatpush1.msra.mxu0 %v415
        %451 = vmatprep.subr.mxu0 0.0
        %452 = vmatpush1.msra.mxu0 %v414
        %453 = vmatprep.subr.mxu0 0.0
        %454 = vmatpush1.msra.mxu0 %v413
        %455 = vmatprep.subr.mxu0 0.0
        %456 = vmatpush1.msra.mxu0 %v412
        %457 = vmatprep.subr.mxu0 0.0
        %458 = vmatpush1.msra.mxu0 %v411
        %459 = vmatprep.subr.mxu0 0.0
        %460 = vmatpush2.msra.mxu0 0.0
        %461 = vmatprep.subr.mxu0 0.0
        %462 = vmatpush2.msra.mxu0 0.0
        %463 = vmatprep.subr.mxu0 0.0
        %464 = vmatpush2.msra.mxu0 0.0
        %465 = vmatprep.subr.mxu0 0.0
        %466 = vmatpush2.msra.mxu0 0.0
        %467 = vmatprep.subr.mxu0 0.0
        %468 = vmatpush2.msra.mxu0 0.0
        %469 = vmatprep.subr.mxu0 0.0
        %470 = vmatpush2.msra.mxu0 0.0
        %471 = vmatprep.subr.mxu0 0.0
        %472 = vmatpush2.msra.mxu0 0.0
        %473 = vmatprep.subr.mxu0 0.0
        %474 = vmatpush2.msra.mxu0 0.0
        %475 = vmatprep.subr.mxu0 0.0
        %476 = vmatpush2.msra.mxu0 0.0
        %477 = vmatprep.subr.mxu0 0.0
        %478 = vmatpush2.msra.mxu0 0.0
        %479 = vmatprep.subr.mxu0 0.0
        %480 = vmatpush2.msra.mxu0 0.0
        %481 = vmatprep.subr.mxu0 0.0
        %482 = vmatpush2.msra.mxu0 0.0
        %483 = vmatprep.subr.mxu0 0.0
        %484 = vmatpush2.msra.mxu0 0.0
        %485 = vmatprep.subr.mxu0 0.0
        %486 = vmatpush2.msra.mxu0 0.0
        %487 = vmatprep.subr.mxu0 0.0
        %488 = vmatpush2.msra.mxu0 0.0
        %489 = vmatprep.subr.mxu0 0.0
        %490 = vmatpush2.msra.mxu0 0.0
        %491 = vmatprep.mubr.f32.mxu0 0.0
        %492 = vmatmul.mubr.f32.gmra.mxu0 %v407
        %v493 = vpop.f32.mrf.mxu0
        %v494 = vadd.f32 0.0, %v493
        %v495 = vpop.f32.mrf.mxu0
        %496 = vmatprep.mubr.f32.mxu0 0.0
        %497 = vmatmul.mubr.f32.gmra.mxu0 %v408
        %v498 = vpop.f32.mrf.mxu0
        %v499 = vadd.f32 0.0, %v498
        %v500 = vpop.f32.mrf.mxu0
        %501 = vmatprep.mubr.f32.mxu0 0.0
        %502 = vmatmul.mubr.f32.gmra.mxu0 %v409
        %v503 = vpop.f32.mrf.mxu0
        %v504 = vadd.f32 0.0, %v503
        %v505 = vpop.f32.mrf.mxu0
        %506 = vdwg.mxu0
        %507 = vmatprep.subr.mxu0 0.0
        %508 = vmatpush1.msra.mxu0 %v406
        %509 = vmatprep.subr.mxu0 0.0
        %510 = vmatpush1.msra.mxu0 %v405
        %511 = vmatprep.subr.mxu0 0.0
        %512 = vmatpush1.msra.mxu0 %v404
        %513 = vmatprep.subr.mxu0 0.0
        %514 = vmatpush1.msra.mxu0 %v403
        %515 = vmatprep.subr.mxu0 0.0
        %516 = vmatpush1.msra.mxu0 %v402
        %517 = vmatprep.subr.mxu0 0.0
        %518 = vmatpush1.msra.mxu0 %v401
        %519 = vmatprep.subr.mxu0 0.0
        %520 = vmatpush1.msra.mxu0 %v400
        %521 = vmatprep.subr.mxu0 0.0
        %522 = vmatpush1.msra.mxu0 %v399
        %523 = vmatprep.subr.mxu0 0.0
        %524 = vmatpush1.msra.mxu0 %v398
        %525 = vmatprep.subr.mxu0 0.0
        %526 = vmatpush1.msra.mxu0 %v397
        %527 = vmatprep.subr.mxu0 0.0
        %528 = vmatpush1.msra.mxu0 %v396
        %529 = vmatprep.subr.mxu0 0.0
        %530 = vmatpush1.msra.mxu0 %v395
        %531 = vmatprep.subr.mxu0 0.0
        %532 = vmatpush1.msra.mxu0 %v394
        %533 = vmatprep.subr.mxu0 0.0
        %534 = vmatpush1.msra.mxu0 %v393
        %535 = vmatprep.subr.mxu0 0.0
        %536 = vmatpush1.msra.mxu0 %v392
        %537 = vmatprep.subr.mxu0 0.0
        %538 = vmatpush1.msra.mxu0 %v391
        %539 = vmatprep.subr.mxu0 0.0
        %540 = vmatpush2.msra.mxu0 0.0
        %541 = vmatprep.subr.mxu0 0.0
        %542 = vmatpush2.msra.mxu0 0.0
        %543 = vmatprep.subr.mxu0 0.0
        %544 = vmatpush2.msra.mxu0 0.0
        %545 = vmatprep.subr.mxu0 0.0
        %546 = vmatpush2.msra.mxu0 0.0
        %547 = vmatprep.subr.mxu0 0.0
        %548 = vmatpush2.msra.mxu0 0.0
        %549 = vmatprep.subr.mxu0 0.0
        %550 = vmatpush2.msra.mxu0 0.0
        %551 = vmatprep.subr.mxu0 0.0
        %552 = vmatpush2.msra.mxu0 0.0
        %553 = vmatprep.subr.mxu0 0.0
        %554 = vmatpush2.msra.mxu0 0.0
        %555 = vmatprep.subr.mxu0 0.0
        %556 = vmatpush2.msra.mxu0 0.0
        %557 = vmatprep.subr.mxu0 0.0
        %558 = vmatpush2.msra.mxu0 0.0
        %559 = vmatprep.subr.mxu0 0.0
        %560 = vmatpush2.msra.mxu0 0.0
        %561 = vmatprep.subr.mxu0 0.0
        %562 = vmatpush2.msra.mxu0 0.0
        %563 = vmatprep.subr.mxu0 0.0
        %564 = vmatpush2.msra.mxu0 0.0
        %565 = vmatprep.subr.mxu0 0.0
        %566 = vmatpush2.msra.mxu0 0.0
        %567 = vmatprep.subr.mxu0 0.0
        %568 = vmatpush2.msra.mxu0 0.0
        %569 = vmatprep.subr.mxu0 0.0
        %570 = vmatpush2.msra.mxu0 0.0
        %571 = vmatprep.mubr.f32.mxu0 0.0
        %572 = vmatmul.mubr.f32.gmra.mxu0 %v388
        %v573 = vpop.f32.mrf.mxu0
        %v574 = vadd.f32 %v494, %v573
        %v575 = vpop.f32.mrf.mxu0
        %576 = vmatprep.mubr.f32.mxu0 0.0
        %577 = vmatmul.mubr.f32.gmra.mxu0 %v389
        %v578 = vpop.f32.mrf.mxu0
        %v579 = vadd.f32 %v499, %v578
        %v580 = vpop.f32.mrf.mxu0
        %581 = vmatprep.mubr.f32.mxu0 0.0
        %582 = vmatmul.mubr.f32.gmra.mxu0 %v390
        %v583 = vpop.f32.mrf.mxu0
        %v584 = vadd.f32 %v504, %v583
        %v585 = vpop.f32.mrf.mxu0
        %586 = vdwg.mxu0
        %v587 = vld [vmem:[#allocation4 + $0x2] sm:$0xff]
        %v588 = vld [vmem:[#allocation4 + $0xa] sm:$0xff]
        %v589 = vld [vmem:[#allocation4 + $0x12] sm:$0xff]
        %s590 = scalar_lea.vmem [#allocation5], 256
        %v591 = vld [vmem:[%s590] sm:$0xff]
        %v592 = vld [vmem:[%s590 + $0x8] sm:$0xff]
        %v593 = vld [vmem:[%s590 + $0x10] sm:$0xff]
        %v594 = vld [vmem:[%s590 + $0x18] sm:$0xff]
        %v595 = vld [vmem:[%s590 + $0x20] sm:$0xff]
        %v596 = vld [vmem:[%s590 + $0x28] sm:$0xff]
        %v597 = vld [vmem:[%s590 + $0x30] sm:$0xff]
        %v598 = vld [vmem:[%s590 + $0x38] sm:$0xff]
        %v599 = vld [vmem:[%s590 + $0x40] sm:$0xff]
        %v600 = vld [vmem:[%s590 + $0x48] sm:$0xff]
        %v601 = vld [vmem:[%s590 + $0x50] sm:$0xff]
        %v602 = vld [vmem:[%s590 + $0x58] sm:$0xff]
        %v603 = vld [vmem:[%s590 + $0x60] sm:$0xff]
        %v604 = vld [vmem:[%s590 + $0x68] sm:$0xff]
        %v605 = vld [vmem:[%s590 + $0x70] sm:$0xff]
        %v606 = vld [vmem:[%s590 + $0x78] sm:$0xff]
        %607 = vmatprep.subr.mxu0 0.0
        %608 = vmatpush1.msra.mxu0 %v606
        %609 = vmatprep.subr.mxu0 0.0
        %610 = vmatpush1.msra.mxu0 %v605
        %611 = vmatprep.subr.mxu0 0.0
        %612 = vmatpush1.msra.mxu0 %v604
        %613 = vmatprep.subr.mxu0 0.0
        %614 = vmatpush1.msra.mxu0 %v603
        %615 = vmatprep.subr.mxu0 0.0
        %616 = vmatpush1.msra.mxu0 %v602
        %617 = vmatprep.subr.mxu0 0.0
        %618 = vmatpush1.msra.mxu0 %v601
        %619 = vmatprep.subr.mxu0 0.0
        %620 = vmatpush1.msra.mxu0 %v600
        %621 = vmatprep.subr.mxu0 0.0
        %622 = vmatpush1.msra.mxu0 %v599
        %623 = vmatprep.subr.mxu0 0.0
        %624 = vmatpush1.msra.mxu0 %v598
        %625 = vmatprep.subr.mxu0 0.0
        %626 = vmatpush1.msra.mxu0 %v597
        %627 = vmatprep.subr.mxu0 0.0
        %628 = vmatpush1.msra.mxu0 %v596
        %629 = vmatprep.subr.mxu0 0.0
        %630 = vmatpush1.msra.mxu0 %v595
        %631 = vmatprep.subr.mxu0 0.0
        %632 = vmatpush1.msra.mxu0 %v594
        %633 = vmatprep.subr.mxu0 0.0
        %634 = vmatpush1.msra.mxu0 %v593
        %635 = vmatprep.subr.mxu0 0.0
        %636 = vmatpush1.msra.mxu0 %v592
        %637 = vmatprep.subr.mxu0 0.0
        %638 = vmatpush1.msra.mxu0 %v591
        %639 = vmatprep.subr.mxu0 0.0
        %640 = vmatpush2.msra.mxu0 0.0
        %641 = vmatprep.subr.mxu0 0.0
        %642 = vmatpush2.msra.mxu0 0.0
        %643 = vmatprep.subr.mxu0 0.0
        %644 = vmatpush2.msra.mxu0 0.0
        %645 = vmatprep.subr.mxu0 0.0
        %646 = vmatpush2.msra.mxu0 0.0
        %647 = vmatprep.subr.mxu0 0.0
        %648 = vmatpush2.msra.mxu0 0.0
        %649 = vmatprep.subr.mxu0 0.0
        %650 = vmatpush2.msra.mxu0 0.0
        %651 = vmatprep.subr.mxu0 0.0
        %652 = vmatpush2.msra.mxu0 0.0
        %653 = vmatprep.subr.mxu0 0.0
        %654 = vmatpush2.msra.mxu0 0.0
        %655 = vmatprep.subr.mxu0 0.0
        %656 = vmatpush2.msra.mxu0 0.0
        %657 = vmatprep.subr.mxu0 0.0
        %658 = vmatpush2.msra.mxu0 0.0
        %659 = vmatprep.subr.mxu0 0.0
        %660 = vmatpush2.msra.mxu0 0.0
        %661 = vmatprep.subr.mxu0 0.0
        %662 = vmatpush2.msra.mxu0 0.0
        %663 = vmatprep.subr.mxu0 0.0
        %664 = vmatpush2.msra.mxu0 0.0
        %665 = vmatprep.subr.mxu0 0.0
        %666 = vmatpush2.msra.mxu0 0.0
        %667 = vmatprep.subr.mxu0 0.0
        %668 = vmatpush2.msra.mxu0 0.0
        %669 = vmatprep.subr.mxu0 0.0
        %670 = vmatpush2.msra.mxu0 0.0
        %671 = vmatprep.mubr.f32.mxu0 0.0
        %672 = vmatmul.mubr.f32.gmra.mxu0 %v587
        %v673 = vpop.f32.mrf.mxu0
        %v674 = vadd.f32 0.0, %v673
        %v675 = vpop.f32.mrf.mxu0
        %676 = vmatprep.mubr.f32.mxu0 0.0
        %677 = vmatmul.mubr.f32.gmra.mxu0 %v588
        %v678 = vpop.f32.mrf.mxu0
        %v679 = vadd.f32 0.0, %v678
        %v680 = vpop.f32.mrf.mxu0
        %681 = vmatprep.mubr.f32.mxu0 0.0
        %682 = vmatmul.mubr.f32.gmra.mxu0 %v589
        %v683 = vpop.f32.mrf.mxu0
        %v684 = vadd.f32 0.0, %v683
        %v685 = vpop.f32.mrf.mxu0
        %686 = vdwg.mxu0
        %v687 = vadd.f32 %v574, %v674
        %v688 = vadd.f32 %v579, %v679
        %v689 = vadd.f32 %v584, %v684
        %v690 = vld [vmem:[#allocation4 + $0x3] sm:$0xff]
        %v691 = vld [vmem:[#allocation4 + $0xb] sm:$0xff]
        %v692 = vld [vmem:[#allocation4 + $0x13] sm:$0xff]
        %s693 = scalar_lea.vmem [#allocation5], 384
        %v694 = vld [vmem:[%s693] sm:$0xff]
        %v695 = vld [vmem:[%s693 + $0x8] sm:$0xff]
        %v696 = vld [vmem:[%s693 + $0x10] sm:$0xff]
        %v697 = vld [vmem:[%s693 + $0x18] sm:$0xff]
        %v698 = vld [vmem:[%s693 + $0x20] sm:$0xff]
        %v699 = vld [vmem:[%s693 + $0x28] sm:$0xff]
        %v700 = vld [vmem:[%s693 + $0x30] sm:$0xff]
        %v701 = vld [vmem:[%s693 + $0x38] sm:$0xff]
        %v702 = vld [vmem:[%s693 + $0x40] sm:$0xff]
        %v703 = vld [vmem:[%s693 + $0x48] sm:$0xff]
        %v704 = vld [vmem:[%s693 + $0x50] sm:$0xff]
        %v705 = vld [vmem:[%s693 + $0x58] sm:$0xff]
        %v706 = vld [vmem:[%s693 + $0x60] sm:$0xff]
        %v707 = vld [vmem:[%s693 + $0x68] sm:$0xff]
        %v708 = vld [vmem:[%s693 + $0x70] sm:$0xff]
        %v709 = vld [vmem:[%s693 + $0x78] sm:$0xff]
        %710 = vmatprep.subr.mxu0 0.0
        %711 = vmatpush1.msra.mxu0 %v709
        %712 = vmatprep.subr.mxu0 0.0
        %713 = vmatpush1.msra.mxu0 %v708
        %714 = vmatprep.subr.mxu0 0.0
        %715 = vmatpush1.msra.mxu0 %v707
        %716 = vmatprep.subr.mxu0 0.0
        %717 = vmatpush1.msra.mxu0 %v706
        %718 = vmatprep.subr.mxu0 0.0
        %719 = vmatpush1.msra.mxu0 %v705
        %720 = vmatprep.subr.mxu0 0.0
        %721 = vmatpush1.msra.mxu0 %v704
        %722 = vmatprep.subr.mxu0 0.0
        %723 = vmatpush1.msra.mxu0 %v703
        %724 = vmatprep.subr.mxu0 0.0
        %725 = vmatpush1.msra.mxu0 %v702
        %726 = vmatprep.subr.mxu0 0.0
        %727 = vmatpush1.msra.mxu0 %v701
        %728 = vmatprep.subr.mxu0 0.0
        %729 = vmatpush1.msra.mxu0 %v700
        %730 = vmatprep.subr.mxu0 0.0
        %731 = vmatpush1.msra.mxu0 %v699
        %732 = vmatprep.subr.mxu0 0.0
        %733 = vmatpush1.msra.mxu0 %v698
        %734 = vmatprep.subr.mxu0 0.0
        %735 = vmatpush1.msra.mxu0 %v697
        %736 = vmatprep.subr.mxu0 0.0
        %737 = vmatpush1.msra.mxu0 %v696
        %738 = vmatprep.subr.mxu0 0.0
        %739 = vmatpush1.msra.mxu0 %v695
        %740 = vmatprep.subr.mxu0 0.0
        %741 = vmatpush1.msra.mxu0 %v694
        %742 = vmatprep.subr.mxu0 0.0
        %743 = vmatpush2.msra.mxu0 0.0
        %744 = vmatprep.subr.mxu0 0.0
        %745 = vmatpush2.msra.mxu0 0.0
        %746 = vmatprep.subr.mxu0 0.0
        %747 = vmatpush2.msra.mxu0 0.0
        %748 = vmatprep.subr.mxu0 0.0
        %749 = vmatpush2.msra.mxu0 0.0
        %750 = vmatprep.subr.mxu0 0.0
        %751 = vmatpush2.msra.mxu0 0.0
        %752 = vmatprep.subr.mxu0 0.0
        %753 = vmatpush2.msra.mxu0 0.0
        %754 = vmatprep.subr.mxu0 0.0
        %755 = vmatpush2.msra.mxu0 0.0
        %756 = vmatprep.subr.mxu0 0.0
        %757 = vmatpush2.msra.mxu0 0.0
        %758 = vmatprep.subr.mxu0 0.0
        %759 = vmatpush2.msra.mxu0 0.0
        %760 = vmatprep.subr.mxu0 0.0
        %761 = vmatpush2.msra.mxu0 0.0
        %762 = vmatprep.subr.mxu0 0.0
        %763 = vmatpush2.msra.mxu0 0.0
        %764 = vmatprep.subr.mxu0 0.0
        %765 = vmatpush2.msra.mxu0 0.0
        %766 = vmatprep.subr.mxu0 0.0
        %767 = vmatpush2.msra.mxu0 0.0
        %768 = vmatprep.subr.mxu0 0.0
        %769 = vmatpush2.msra.mxu0 0.0
        %770 = vmatprep.subr.mxu0 0.0
        %771 = vmatpush2.msra.mxu0 0.0
        %772 = vmatprep.subr.mxu0 0.0
        %773 = vmatpush2.msra.mxu0 0.0
        %774 = vmatprep.mubr.f32.mxu0 0.0
        %775 = vmatmul.mubr.f32.gmra.mxu0 %v690
        %v776 = vpop.f32.mrf.mxu0
        %v777 = vadd.f32 0.0, %v776
        %v778 = vpop.f32.mrf.mxu0
        %779 = vmatprep.mubr.f32.mxu0 0.0
        %780 = vmatmul.mubr.f32.gmra.mxu0 %v691
        %v781 = vpop.f32.mrf.mxu0
        %v782 = vadd.f32 0.0, %v781
        %v783 = vpop.f32.mrf.mxu0
        %784 = vmatprep.mubr.f32.mxu0 0.0
        %785 = vmatmul.mubr.f32.gmra.mxu0 %v692
        %v786 = vpop.f32.mrf.mxu0
        %v787 = vadd.f32 0.0, %v786
        %v788 = vpop.f32.mrf.mxu0
        %789 = vdwg.mxu0
        %v790 = vadd.f32 %v687, %v777
        %v791 = vadd.f32 %v688, %v782
        %v792 = vadd.f32 %v689, %v787
        %v793 = vld [vmem:[#allocation4 + $0x4] sm:$0xff]
        %v794 = vld [vmem:[#allocation4 + $0xc] sm:$0xff]
        %v795 = vld [vmem:[#allocation4 + $0x14] sm:$0xff]
        %s796 = scalar_lea.vmem [#allocation5], 512
        %v797 = vld [vmem:[%s796] sm:$0xff]
        %v798 = vld [vmem:[%s796 + $0x8] sm:$0xff]
        %v799 = vld [vmem:[%s796 + $0x10] sm:$0xff]
        %v800 = vld [vmem:[%s796 + $0x18] sm:$0xff]
        %v801 = vld [vmem:[%s796 + $0x20] sm:$0xff]
        %v802 = vld [vmem:[%s796 + $0x28] sm:$0xff]
        %v803 = vld [vmem:[%s796 + $0x30] sm:$0xff]
        %v804 = vld [vmem:[%s796 + $0x38] sm:$0xff]
        %v805 = vld [vmem:[%s796 + $0x40] sm:$0xff]
        %v806 = vld [vmem:[%s796 + $0x48] sm:$0xff]
        %v807 = vld [vmem:[%s796 + $0x50] sm:$0xff]
        %v808 = vld [vmem:[%s796 + $0x58] sm:$0xff]
        %v809 = vld [vmem:[%s796 + $0x60] sm:$0xff]
        %v810 = vld [vmem:[%s796 + $0x68] sm:$0xff]
        %v811 = vld [vmem:[%s796 + $0x70] sm:$0xff]
        %v812 = vld [vmem:[%s796 + $0x78] sm:$0xff]
        %813 = vmatprep.subr.mxu0 0.0
        %814 = vmatpush1.msra.mxu0 %v812
        %815 = vmatprep.subr.mxu0 0.0
        %816 = vmatpush1.msra.mxu0 %v811
        %817 = vmatprep.subr.mxu0 0.0
        %818 = vmatpush1.msra.mxu0 %v810
        %819 = vmatprep.subr.mxu0 0.0
        %820 = vmatpush1.msra.mxu0 %v809
        %821 = vmatprep.subr.mxu0 0.0
        %822 = vmatpush1.msra.mxu0 %v808
        %823 = vmatprep.subr.mxu0 0.0
        %824 = vmatpush1.msra.mxu0 %v807
        %825 = vmatprep.subr.mxu0 0.0
        %826 = vmatpush1.msra.mxu0 %v806
        %827 = vmatprep.subr.mxu0 0.0
        %828 = vmatpush1.msra.mxu0 %v805
        %829 = vmatprep.subr.mxu0 0.0
        %830 = vmatpush1.msra.mxu0 %v804
        %831 = vmatprep.subr.mxu0 0.0
        %832 = vmatpush1.msra.mxu0 %v803
        %833 = vmatprep.subr.mxu0 0.0
        %834 = vmatpush1.msra.mxu0 %v802
        %835 = vmatprep.subr.mxu0 0.0
        %836 = vmatpush1.msra.mxu0 %v801
        %837 = vmatprep.subr.mxu0 0.0
        %838 = vmatpush1.msra.mxu0 %v800
        %839 = vmatprep.subr.mxu0 0.0
        %840 = vmatpush1.msra.mxu0 %v799
        %841 = vmatprep.subr.mxu0 0.0
        %842 = vmatpush1.msra.mxu0 %v798
        %843 = vmatprep.subr.mxu0 0.0
        %844 = vmatpush1.msra.mxu0 %v797
        %845 = vmatprep.subr.mxu0 0.0
        %846 = vmatpush2.msra.mxu0 0.0
        %847 = vmatprep.subr.mxu0 0.0
        %848 = vmatpush2.msra.mxu0 0.0
        %849 = vmatprep.subr.mxu0 0.0
        %850 = vmatpush2.msra.mxu0 0.0
        %851 = vmatprep.subr.mxu0 0.0
        %852 = vmatpush2.msra.mxu0 0.0
        %853 = vmatprep.subr.mxu0 0.0
        %854 = vmatpush2.msra.mxu0 0.0
        %855 = vmatprep.subr.mxu0 0.0
        %856 = vmatpush2.msra.mxu0 0.0
        %857 = vmatprep.subr.mxu0 0.0
        %858 = vmatpush2.msra.mxu0 0.0
        %859 = vmatprep.subr.mxu0 0.0
        %860 = vmatpush2.msra.mxu0 0.0
        %861 = vmatprep.subr.mxu0 0.0
        %862 = vmatpush2.msra.mxu0 0.0
        %863 = vmatprep.subr.mxu0 0.0
        %864 = vmatpush2.msra.mxu0 0.0
        %865 = vmatprep.subr.mxu0 0.0
        %866 = vmatpush2.msra.mxu0 0.0
        %867 = vmatprep.subr.mxu0 0.0
        %868 = vmatpush2.msra.mxu0 0.0
        %869 = vmatprep.subr.mxu0 0.0
        %870 = vmatpush2.msra.mxu0 0.0
        %871 = vmatprep.subr.mxu0 0.0
        %872 = vmatpush2.msra.mxu0 0.0
        %873 = vmatprep.subr.mxu0 0.0
        %874 = vmatpush2.msra.mxu0 0.0
        %875 = vmatprep.subr.mxu0 0.0
        %876 = vmatpush2.msra.mxu0 0.0
        %877 = vmatprep.mubr.f32.mxu0 0.0
        %878 = vmatmul.mubr.f32.gmra.mxu0 %v793
        %v879 = vpop.f32.mrf.mxu0
        %v880 = vadd.f32 0.0, %v879
        %v881 = vpop.f32.mrf.mxu0
        %882 = vmatprep.mubr.f32.mxu0 0.0
        %883 = vmatmul.mubr.f32.gmra.mxu0 %v794
        %v884 = vpop.f32.mrf.mxu0
        %v885 = vadd.f32 0.0, %v884
        %v886 = vpop.f32.mrf.mxu0
        %887 = vmatprep.mubr.f32.mxu0 0.0
        %888 = vmatmul.mubr.f32.gmra.mxu0 %v795
        %v889 = vpop.f32.mrf.mxu0
        %v890 = vadd.f32 0.0, %v889
        %v891 = vpop.f32.mrf.mxu0
        %892 = vdwg.mxu0
        %v893 = vadd.f32 %v790, %v880
        %v894 = vadd.f32 %v791, %v885
        %v895 = vadd.f32 %v792, %v890
        %v896 = vld [vmem:[%s4] sm:$0x1]
        %v898 = vlaneseq
        %v899 = vshrl.u32 %v898, 7
        %v900 = vsub.s32 0, %v899
        %v901 = vrot.slane %v896, %v900
        %v903 = vadd.f32 %v893, %v901
        %v904 = vadd.f32 %v894, %v901
        %v905 = vadd.f32 %v895, %v901
        %v906 = vand.u32 2147483647, %v903
        %vm907 = vcmp.le.f32.partialorder %v906, 0.7853982
        %vm908 = vcmp.lt.s32.totalorder %v903, 0
        %v909 = vand.u32 %v903, 2139095040
        %v910 = vshrl.u32 %v909, 23
        %v911 = vsub.s32 %v910, 127
        %v912 = vand.u32 2147483647, %v903
        %v913 = vand.u32 %v912, 8388607
        %v914 = vor.u32 %v913, 8388608
        %v915 = vsub.s32 0, %v914
        %v916 = vadd.s32 %v911, 1
        %vm917 = vcmp.gt.s32.totalorder %v916, 0
        %v918 = vsel %vm917, %v916, 0
        %v919 = vshrl.u32 %v918, 5
        %v920 = vand.u32 %v918, 31
        %v921 = vsub.s32 32, %v920
        %v922 = vshrl.u32 683565275, %v921
        %v923 = vshll.u32 683565275, %v920
        %v924 = vshrl.u32 2475754826, %v921
        %v925 = vor.u32 %v923, %v924
        %v926 = vshll.u32 2475754826, %v920
        %v927 = vshrl.u32 2131351028, %v921
        %v928 = vor.u32 %v926, %v927
        %v929 = vshll.u32 2131351028, %v920
        %v930 = vshrl.u32 2102212464, %v921
        %v931 = vor.u32 %v929, %v930
        %v932 = vshll.u32 2102212464, %v920
        %v933 = vshrl.u32 920167782, %v921
        %v934 = vor.u32 %v932, %v933
        %v935 = vshll.u32 920167782, %v920
        %v936 = vshrl.u32 1326507024, %v921
        %v937 = vor.u32 %v935, %v936
        %vm938 = vcmp.lt.s32.totalorder %v919, 1
        %vm939 = vcmp.lt.s32.totalorder %v919, 2
        %vm940 = vcmp.lt.s32.totalorder %v919, 3
        %vm941 = vcmp.lt.s32.totalorder %v919, 4
        %v942 = vsel %vm938, %v922, %v925
        %v943 = vsel %vm941, %v931, 2102212464
        %v944 = vsel %vm940, %v928, %v943
        %v945 = vsel %vm939, %v942, %v944
        %v946 = vsel %vm938, %v925, %v928
        %v947 = vsel %vm941, %v934, 920167782
        %v948 = vsel %vm940, %v931, %v947
        %v949 = vsel %vm939, %v946, %v948
        %v950 = vsel %vm938, %v928, %v931
        %v951 = vsel %vm941, %v937, 1326507024
        %v952 = vsel %vm940, %v934, %v951
        %v953 = vsel %vm939, %v950, %v952
        %v954 = vshll.u32 %v914, 8
        %v955 = vmul.u32.u64.compose %v954, %v953
        %v956 = vextract.low.u32 %v955
        %v957 = vextract.high.u32 %v955
        %v958 = vmul.u32.u64.compose %v954, %v949
        %v959 = vextract.low.u32 %v958
        %v960 = vextract.high.u32 %v958
        %v961 = vmul.u32 %v954, %v945
        %v962 = vadd.s32 %v957, %v959
        %vm963 = vc.u32 %v957, %v959
        %v964 = vadd.s32 %v960, 1
        %v965 = vsel %vm963, %v964, %v960
        %v966 = vadd.s32 %v961, %v965
        %v967 = vadd.s32 %v966, 536870912
        %v968 = vshrl.u32 %v967, 30
        %v969 = vshll.u32 %v968, 30
        %v970 = vsub.s32 %v966, %v969
        %vm971 = vcmp.lt.s32.totalorder %v970, 0
        %v972 = vsub.s32 0, %v970
        %v973 = vsel %vm971, %v972, %v970
        %v974 = vclz %v973
        %v975 = vsub.s32 %v974, 2
        %vm976 = vcmp.gt.s32.totalorder 0, %v975
        %v977 = vsel %vm976, 0, %v975
        %v978 = vsub.s32 32, %v977
        %v979 = vshll.u32 %v970, %v977
        %v980 = vshrl.u32 %v962, %v978
        %v981 = vor.u32 %v979, %v980
        %v982 = vsub.s32 4294967266, %v977
        %v983 = vadd.s32 %v982, 127
        %v984 = vshll.u32 %v983, 23
        %v985 = vor.u32 4788187, %v984
        %v986 = vand.u32 2147483647, %v985
        %v988 = vcvt.s32.f32 %v981
        %v989 = vmul.f32 %v988, %v986
        %v990 = vxor.u32 %v989, 2147483648
        %v991 = vsel %vm908, %v990, %v989
        %v992 = vsub.s32 4, %v968
        %v993 = vsel %vm908, %v992, %v968
        %v994 = vsel %vm907, %v903, %v991
        %v995 = vsel %vm907, 0, %v993
        %v996 = vcosq.f32.pop %v994
        %v997 = vsinq.f32.pop %v994
        %vm998 = vweird.f32 %v903
        %v999 = vadd.s32 %v995, 3
        %v1000 = vand.u32 %v999, 3
        %vm1001 = vcmp.lt.s32.totalorder %v1000, 2
        %vm1002 = vcmp.eq.s32.totalorder %v1000, 0
        %v1003 = vxor.u32 %v997, 2147483648
        %v1004 = vsel %vm1002, %v996, %v1003
        %vm1005 = vcmp.eq.s32.totalorder %v1000, 2
        %v1006 = vxor.u32 %v996, 2147483648
        %v1007 = vsel %vm1005, %v1006, %v997
        %v1008 = vsel %vm1001, %v1004, %v1007
        %v1009 = vsel %vm998, nan, %v1008
        %v1010 = vand.u32 2147483647, %v904
        %vm1011 = vcmp.le.f32.partialorder %v1010, 0.7853982
        %vm1012 = vcmp.lt.s32.totalorder %v904, 0
        %v1013 = vand.u32 %v904, 2139095040
        %v1014 = vshrl.u32 %v1013, 23
        %v1015 = vsub.s32 %v1014, 127
        %v1016 = vand.u32 2147483647, %v904
        %v1017 = vand.u32 %v1016, 8388607
        %v1018 = vor.u32 %v1017, 8388608
        %v1019 = vsub.s32 0, %v1018
        %v1020 = vadd.s32 %v1015, 1
        %vm1021 = vcmp.gt.s32.totalorder %v1020, 0
        %v1022 = vsel %vm1021, %v1020, 0
        %v1023 = vshrl.u32 %v1022, 5
        %v1024 = vand.u32 %v1022, 31
        %v1025 = vsub.s32 32, %v1024
        %v1026 = vshrl.u32 683565275, %v1025
        %v1027 = vshll.u32 683565275, %v1024
        %v1028 = vshrl.u32 2475754826, %v1025
        %v1029 = vor.u32 %v1027, %v1028
        %v1030 = vshll.u32 2475754826, %v1024
        %v1031 = vshrl.u32 2131351028, %v1025
        %v1032 = vor.u32 %v1030, %v1031
        %v1033 = vshll.u32 2131351028, %v1024
        %v1034 = vshrl.u32 2102212464, %v1025
        %v1035 = vor.u32 %v1033, %v1034
        %v1036 = vshll.u32 2102212464, %v1024
        %v1037 = vshrl.u32 920167782, %v1025
        %v1038 = vor.u32 %v1036, %v1037
        %v1039 = vshll.u32 920167782, %v1024
        %v1040 = vshrl.u32 1326507024, %v1025
        %v1041 = vor.u32 %v1039, %v1040
        %vm1042 = vcmp.lt.s32.totalorder %v1023, 1
        %vm1043 = vcmp.lt.s32.totalorder %v1023, 2
        %vm1044 = vcmp.lt.s32.totalorder %v1023, 3
        %vm1045 = vcmp.lt.s32.totalorder %v1023, 4
        %v1046 = vsel %vm1042, %v1026, %v1029
        %v1047 = vsel %vm1045, %v1035, 2102212464
        %v1048 = vsel %vm1044, %v1032, %v1047
        %v1049 = vsel %vm1043, %v1046, %v1048
        %v1050 = vsel %vm1042, %v1029, %v1032
        %v1051 = vsel %vm1045, %v1038, 920167782
        %v1052 = vsel %vm1044, %v1035, %v1051
        %v1053 = vsel %vm1043, %v1050, %v1052
        %v1054 = vsel %vm1042, %v1032, %v1035
        %v1055 = vsel %vm1045, %v1041, 1326507024
        %v1056 = vsel %vm1044, %v1038, %v1055
        %v1057 = vsel %vm1043, %v1054, %v1056
        %v1058 = vshll.u32 %v1018, 8
        %v1059 = vmul.u32.u64.compose %v1058, %v1057
        %v1060 = vextract.low.u32 %v1059
        %v1061 = vextract.high.u32 %v1059
        %v1062 = vmul.u32.u64.compose %v1058, %v1053
        %v1063 = vextract.low.u32 %v1062
        %v1064 = vextract.high.u32 %v1062
        %v1065 = vmul.u32 %v1058, %v1049
        %v1066 = vadd.s32 %v1061, %v1063
        %vm1067 = vc.u32 %v1061, %v1063
        %v1068 = vadd.s32 %v1064, 1
        %v1069 = vsel %vm1067, %v1068, %v1064
        %v1070 = vadd.s32 %v1065, %v1069
        %v1071 = vadd.s32 %v1070, 536870912
        %v1072 = vshrl.u32 %v1071, 30
        %v1073 = vshll.u32 %v1072, 30
        %v1074 = vsub.s32 %v1070, %v1073
        %vm1075 = vcmp.lt.s32.totalorder %v1074, 0
        %v1076 = vsub.s32 0, %v1074
        %v1077 = vsel %vm1075, %v1076, %v1074
        %v1078 = vclz %v1077
        %v1079 = vsub.s32 %v1078, 2
        %vm1080 = vcmp.gt.s32.totalorder 0, %v1079
        %v1081 = vsel %vm1080, 0, %v1079
        %v1082 = vsub.s32 32, %v1081
        %v1083 = vshll.u32 %v1074, %v1081
        %v1084 = vshrl.u32 %v1066, %v1082
        %v1085 = vor.u32 %v1083, %v1084
        %v1086 = vsub.s32 4294967266, %v1081
        %v1087 = vadd.s32 %v1086, 127
        %v1088 = vshll.u32 %v1087, 23
        %v1089 = vor.u32 4788187, %v1088
        %v1090 = vand.u32 2147483647, %v1089
        %v1092 = vcvt.s32.f32 %v1085
        %v1093 = vmul.f32 %v1092, %v1090
        %v1094 = vxor.u32 %v1093, 2147483648
        %v1095 = vsel %vm1012, %v1094, %v1093
        %v1096 = vsub.s32 4, %v1072
        %v1097 = vsel %vm1012, %v1096, %v1072
        %v1098 = vsel %vm1011, %v904, %v1095
        %v1099 = vsel %vm1011, 0, %v1097
        %v1100 = vcosq.f32.pop %v1098
        %v1101 = vsinq.f32.pop %v1098
        %vm1102 = vweird.f32 %v904
        %v1103 = vadd.s32 %v1099, 3
        %v1104 = vand.u32 %v1103, 3
        %vm1105 = vcmp.lt.s32.totalorder %v1104, 2
        %vm1106 = vcmp.eq.s32.totalorder %v1104, 0
        %v1107 = vxor.u32 %v1101, 2147483648
        %v1108 = vsel %vm1106, %v1100, %v1107
        %vm1109 = vcmp.eq.s32.totalorder %v1104, 2
        %v1110 = vxor.u32 %v1100, 2147483648
        %v1111 = vsel %vm1109, %v1110, %v1101
        %v1112 = vsel %vm1105, %v1108, %v1111
        %v1113 = vsel %vm1102, nan, %v1112
        %v1114 = vand.u32 2147483647, %v905
        %vm1115 = vcmp.le.f32.partialorder %v1114, 0.7853982
        %vm1116 = vcmp.lt.s32.totalorder %v905, 0
        %v1117 = vand.u32 %v905, 2139095040
        %v1118 = vshrl.u32 %v1117, 23
        %v1119 = vsub.s32 %v1118, 127
        %v1120 = vand.u32 2147483647, %v905
        %v1121 = vand.u32 %v1120, 8388607
        %v1122 = vor.u32 %v1121, 8388608
        %v1123 = vsub.s32 0, %v1122
        %v1124 = vadd.s32 %v1119, 1
        %vm1125 = vcmp.gt.s32.totalorder %v1124, 0
        %v1126 = vsel %vm1125, %v1124, 0
        %v1127 = vshrl.u32 %v1126, 5
        %v1128 = vand.u32 %v1126, 31
        %v1129 = vsub.s32 32, %v1128
        %v1130 = vshrl.u32 683565275, %v1129
        %v1131 = vshll.u32 683565275, %v1128
        %v1132 = vshrl.u32 2475754826, %v1129
        %v1133 = vor.u32 %v1131, %v1132
        %v1134 = vshll.u32 2475754826, %v1128
        %v1135 = vshrl.u32 2131351028, %v1129
        %v1136 = vor.u32 %v1134, %v1135
        %v1137 = vshll.u32 2131351028, %v1128
        %v1138 = vshrl.u32 2102212464, %v1129
        %v1139 = vor.u32 %v1137, %v1138
        %v1140 = vshll.u32 2102212464, %v1128
        %v1141 = vshrl.u32 920167782, %v1129
        %v1142 = vor.u32 %v1140, %v1141
        %v1143 = vshll.u32 920167782, %v1128
        %v1144 = vshrl.u32 1326507024, %v1129
        %v1145 = vor.u32 %v1143, %v1144
        %vm1146 = vcmp.lt.s32.totalorder %v1127, 1
        %vm1147 = vcmp.lt.s32.totalorder %v1127, 2
        %vm1148 = vcmp.lt.s32.totalorder %v1127, 3
        %vm1149 = vcmp.lt.s32.totalorder %v1127, 4
        %v1150 = vsel %vm1146, %v1130, %v1133
        %v1151 = vsel %vm1149, %v1139, 2102212464
        %v1152 = vsel %vm1148, %v1136, %v1151
        %v1153 = vsel %vm1147, %v1150, %v1152
        %v1154 = vsel %vm1146, %v1133, %v1136
        %v1155 = vsel %vm1149, %v1142, 920167782
        %v1156 = vsel %vm1148, %v1139, %v1155
        %v1157 = vsel %vm1147, %v1154, %v1156
        %v1158 = vsel %vm1146, %v1136, %v1139
        %v1159 = vsel %vm1149, %v1145, 1326507024
        %v1160 = vsel %vm1148, %v1142, %v1159
        %v1161 = vsel %vm1147, %v1158, %v1160
        %v1162 = vshll.u32 %v1122, 8
        %v1163 = vmul.u32.u64.compose %v1162, %v1161
        %v1164 = vextract.low.u32 %v1163
        %v1165 = vextract.high.u32 %v1163
        %v1166 = vmul.u32.u64.compose %v1162, %v1157
        %v1167 = vextract.low.u32 %v1166
        %v1168 = vextract.high.u32 %v1166
        %v1169 = vmul.u32 %v1162, %v1153
        %v1170 = vadd.s32 %v1165, %v1167
        %vm1171 = vc.u32 %v1165, %v1167
        %v1172 = vadd.s32 %v1168, 1
        %v1173 = vsel %vm1171, %v1172, %v1168
        %v1174 = vadd.s32 %v1169, %v1173
        %v1175 = vadd.s32 %v1174, 536870912
        %v1176 = vshrl.u32 %v1175, 30
        %v1177 = vshll.u32 %v1176, 30
        %v1178 = vsub.s32 %v1174, %v1177
        %vm1179 = vcmp.lt.s32.totalorder %v1178, 0
        %v1180 = vsub.s32 0, %v1178
        %v1181 = vsel %vm1179, %v1180, %v1178
        %v1182 = vclz %v1181
        %v1183 = vsub.s32 %v1182, 2
        %vm1184 = vcmp.gt.s32.totalorder 0, %v1183
        %v1185 = vsel %vm1184, 0, %v1183
        %v1186 = vsub.s32 32, %v1185
        %v1187 = vshll.u32 %v1178, %v1185
        %v1188 = vshrl.u32 %v1170, %v1186
        %v1189 = vor.u32 %v1187, %v1188
        %v1190 = vsub.s32 4294967266, %v1185
        %v1191 = vadd.s32 %v1190, 127
        %v1192 = vshll.u32 %v1191, 23
        %v1193 = vor.u32 4788187, %v1192
        %v1194 = vand.u32 2147483647, %v1193
        %v1196 = vcvt.s32.f32 %v1189
        %v1197 = vmul.f32 %v1196, %v1194
        %v1198 = vxor.u32 %v1197, 2147483648
        %v1199 = vsel %vm1116, %v1198, %v1197
        %v1200 = vsub.s32 4, %v1176
        %v1201 = vsel %vm1116, %v1200, %v1176
        %v1202 = vsel %vm1115, %v905, %v1199
        %v1203 = vsel %vm1115, 0, %v1201
        %v1204 = vcosq.f32.pop %v1202
        %v1205 = vsinq.f32.pop %v1202
        %vm1206 = vweird.f32 %v905
        %v1207 = vadd.s32 %v1203, 3
        %v1208 = vand.u32 %v1207, 3
        %vm1209 = vcmp.lt.s32.totalorder %v1208, 2
        %vm1210 = vcmp.eq.s32.totalorder %v1208, 0
        %v1211 = vxor.u32 %v1205, 2147483648
        %v1212 = vsel %vm1210, %v1204, %v1211
        %vm1213 = vcmp.eq.s32.totalorder %v1208, 2
        %v1214 = vxor.u32 %v1204, 2147483648
        %v1215 = vsel %vm1213, %v1214, %v1205
        %v1216 = vsel %vm1209, %v1212, %v1215
        %v1217 = vsel %vm1206, nan, %v1216
        %v1218 = vld [vmem:[%s5] sm:$0x1]
        %v1220 = vlaneseq
        %v1221 = vshrl.u32 %v1220, 7
        %v1222 = vsub.s32 0, %v1221
        %v1223 = vrot.slane %v1218, %v1222
        %v1225 = vmul.f32 %v1009, %v1223
        %v1226 = vmul.f32 %v1113, %v1223
        %v1227 = vmul.f32 %v1217, %v1223
        %1228 = vst [vmem:[#allocation4] sm:$0xff] %v1225
        %1229 = vst [vmem:[#allocation4 + $0x8] sm:$0xff] %v1226
        %1230 = vst [vmem:[#allocation4 + $0x10] sm:$0xff] %v1227
        %s1231 = sadd.s32 %s368, 4294967292
        %p1232 = scmp.lt.s32.totalorder %s1231, 0
        %s1233 = sadd.s32 %s368, 20
        %p1234 = scmp.gt.s32.totalorder %s1233, 16
        %p1235 = por %p1232, %p1234
        // Predicated region
        $region98: #{tpu_custom_call.1} parent=43 // pred_check
          %p1236 = pneg %p1235
        $region99: #{tpu_custom_call.1} parent=43 // pred_check_branch
          %1238 = sbr.rel (%p1236) target = $region101
        $region100: #{tpu_custom_call.1} parent=43 // pred_region
          %v1239 = vstv %s1231
          %v1240 = vadd.s32 %v1239, %v385
          %v1241 = vadd.s32 %v1239, %v386
          %v1242 = vadd.s32 %v1239, %v387
          %vm1243 = vcmp.ge.s32.totalorder %v1240, 0
          %vm1244 = vcmp.ge.s32.totalorder %v1241, 0
          %vm1245 = vcmp.ge.s32.totalorder %v1242, 0
          %vm1246 = vcmp.lt.s32.totalorder %v1240, 16
          %vm1247 = vcmp.lt.s32.totalorder %v1241, 16
          %vm1248 = vcmp.lt.s32.totalorder %v1242, 16
          %vm1249 = vmand %vm1243, %vm1246
          %vm1250 = vmand %vm1244, %vm1247
          %vm1251 = vmand %vm1245, %vm1248
          %v1252 = vsel %vm1249, 1, 0
          %v1253 = vsel %vm1250, 1, 0
          %v1254 = vsel %vm1251, 1, 0
          %vm1255 = vcmp.eq.s32.totalorder %v1252, 1
          %vm1256 = vcmp.eq.s32.totalorder %v1253, 1
          %vm1257 = vcmp.eq.s32.totalorder %v1254, 1
          %v1258 = vsel %vm1255, %v1225, 0.0
          %v1259 = vsel %vm1256, %v1226, 0.0
          %v1260 = vsel %vm1257, %v1227, 0.0
          %1261 = vst [vmem:[#allocation4] sm:$0xff] %v1258
          %1262 = vst [vmem:[#allocation4 + $0x8] sm:$0xff] %v1259
          %1263 = vst [vmem:[#allocation4 + $0x10] sm:$0xff] %v1260
        $region101: #{tpu_custom_call.1} parent=43 // pred_fallthru
          _
        %v1264 = vld [vmem:[#allocation4] sm:$0xff]
        %v1265 = vld [vmem:[#allocation4 + $0x8] sm:$0xff]
        %v1266 = vld [vmem:[#allocation4 + $0x10] sm:$0xf]
        %v1267 = vld [vmem:[#allocation8] sm:$0xff]
        %v1268 = vld [vmem:[#allocation8 + $0x8] sm:$0xff]
        %v1269 = vld [vmem:[#allocation8 + $0x10] sm:$0xff]
        %v1270 = vld [vmem:[#allocation8 + $0x18] sm:$0xff]
        %v1271 = vld [vmem:[#allocation8 + $0x20] sm:$0xff]
        %v1272 = vld [vmem:[#allocation8 + $0x28] sm:$0xff]
        %v1273 = vld [vmem:[#allocation8 + $0x30] sm:$0xff]
        %v1274 = vld [vmem:[#allocation8 + $0x38] sm:$0xff]
        %v1275 = vld [vmem:[#allocation8 + $0x40] sm:$0xff]
        %v1276 = vld [vmem:[#allocation8 + $0x48] sm:$0xff]
        %v1277 = vld [vmem:[#allocation8 + $0x50] sm:$0xff]
        %v1278 = vld [vmem:[#allocation8 + $0x58] sm:$0xff]
        %v1279 = vld [vmem:[#allocation8 + $0x60] sm:$0xff]
        %v1280 = vld [vmem:[#allocation8 + $0x68] sm:$0xff]
        %v1281 = vld [vmem:[#allocation8 + $0x70] sm:$0xff]
        %v1282 = vld [vmem:[#allocation8 + $0x78] sm:$0xff]
        %v1283 = vld [vmem:[#allocation4 + $0x1] sm:$0xff]
        %v1284 = vld [vmem:[#allocation4 + $0x9] sm:$0xff]
        %v1285 = vld [vmem:[#allocation4 + $0x11] sm:$0xf]
        %s1286 = scalar_lea.vmem [#allocation8], 128
        %v1287 = vld [vmem:[%s1286] sm:$0xff]
        %v1288 = vld [vmem:[%s1286 + $0x8] sm:$0xff]
        %v1289 = vld [vmem:[%s1286 + $0x10] sm:$0xff]
        %v1290 = vld [vmem:[%s1286 + $0x18] sm:$0xff]
        %v1291 = vld [vmem:[%s1286 + $0x20] sm:$0xff]
        %v1292 = vld [vmem:[%s1286 + $0x28] sm:$0xff]
        %v1293 = vld [vmem:[%s1286 + $0x30] sm:$0xff]
        %v1294 = vld [vmem:[%s1286 + $0x38] sm:$0xff]
        %v1295 = vld [vmem:[%s1286 + $0x40] sm:$0xff]
        %v1296 = vld [vmem:[%s1286 + $0x48] sm:$0xff]
        %v1297 = vld [vmem:[%s1286 + $0x50] sm:$0xff]
        %v1298 = vld [vmem:[%s1286 + $0x58] sm:$0xff]
        %v1299 = vld [vmem:[%s1286 + $0x60] sm:$0xff]
        %v1300 = vld [vmem:[%s1286 + $0x68] sm:$0xff]
        %v1301 = vld [vmem:[%s1286 + $0x70] sm:$0xff]
        %v1302 = vld [vmem:[%s1286 + $0x78] sm:$0xff]
        %1303 = vmatprep.subr.mxu0 0.0
        %1304 = vmatpush1.msra.mxu0 %v1302
        %1305 = vmatprep.subr.mxu0 0.0
        %1306 = vmatpush1.msra.mxu0 %v1301
        %1307 = vmatprep.subr.mxu0 0.0
        %1308 = vmatpush1.msra.mxu0 %v1300
        %1309 = vmatprep.subr.mxu0 0.0
        %1310 = vmatpush1.msra.mxu0 %v1299
        %1311 = vmatprep.subr.mxu0 0.0
        %1312 = vmatpush1.msra.mxu0 %v1298
        %1313 = vmatprep.subr.mxu0 0.0
        %1314 = vmatpush1.msra.mxu0 %v1297
        %1315 = vmatprep.subr.mxu0 0.0
        %1316 = vmatpush1.msra.mxu0 %v1296
        %1317 = vmatprep.subr.mxu0 0.0
        %1318 = vmatpush1.msra.mxu0 %v1295
        %1319 = vmatprep.subr.mxu0 0.0
        %1320 = vmatpush1.msra.mxu0 %v1294
        %1321 = vmatprep.subr.mxu0 0.0
        %1322 = vmatpush1.msra.mxu0 %v1293
        %1323 = vmatprep.subr.mxu0 0.0
        %1324 = vmatpush1.msra.mxu0 %v1292
        %1325 = vmatprep.subr.mxu0 0.0
        %1326 = vmatpush1.msra.mxu0 %v1291
        %1327 = vmatprep.subr.mxu0 0.0
        %1328 = vmatpush1.msra.mxu0 %v1290
        %1329 = vmatprep.subr.mxu0 0.0
        %1330 = vmatpush1.msra.mxu0 %v1289
        %1331 = vmatprep.subr.mxu0 0.0
        %1332 = vmatpush1.msra.mxu0 %v1288
        %1333 = vmatprep.subr.mxu0 0.0
        %1334 = vmatpush1.msra.mxu0 %v1287
        %1335 = vmatprep.subr.mxu0 0.0
        %1336 = vmatpush2.msra.mxu0 0.0
        %1337 = vmatprep.subr.mxu0 0.0
        %1338 = vmatpush2.msra.mxu0 0.0
        %1339 = vmatprep.subr.mxu0 0.0
        %1340 = vmatpush2.msra.mxu0 0.0
        %1341 = vmatprep.subr.mxu0 0.0
        %1342 = vmatpush2.msra.mxu0 0.0
        %1343 = vmatprep.subr.mxu0 0.0
        %1344 = vmatpush2.msra.mxu0 0.0
        %1345 = vmatprep.subr.mxu0 0.0
        %1346 = vmatpush2.msra.mxu0 0.0
        %1347 = vmatprep.subr.mxu0 0.0
        %1348 = vmatpush2.msra.mxu0 0.0
        %1349 = vmatprep.subr.mxu0 0.0
        %1350 = vmatpush2.msra.mxu0 0.0
        %1351 = vmatprep.subr.mxu0 0.0
        %1352 = vmatpush2.msra.mxu0 0.0
        %1353 = vmatprep.subr.mxu0 0.0
        %1354 = vmatpush2.msra.mxu0 0.0
        %1355 = vmatprep.subr.mxu0 0.0
        %1356 = vmatpush2.msra.mxu0 0.0
        %1357 = vmatprep.subr.mxu0 0.0
        %1358 = vmatpush2.msra.mxu0 0.0
        %1359 = vmatprep.subr.mxu0 0.0
        %1360 = vmatpush2.msra.mxu0 0.0
        %1361 = vmatprep.subr.mxu0 0.0
        %1362 = vmatpush2.msra.mxu0 0.0
        %1363 = vmatprep.subr.mxu0 0.0
        %1364 = vmatpush2.msra.mxu0 0.0
        %1365 = vmatprep.subr.mxu0 0.0
        %1366 = vmatpush2.msra.mxu0 0.0
        %1367 = vmatprep.mubr.f32.mxu0 0.0
        %1368 = vmatmul.mubr.f32.gmra.mxu0 %v1283
        %v1369 = vpop.f32.mrf.mxu0
        %v1370 = vadd.f32 0.0, %v1369
        %v1371 = vpop.f32.mrf.mxu0
        %1372 = vmatprep.mubr.f32.mxu0 0.0
        %1373 = vmatmul.mubr.f32.gmra.mxu0 %v1284
        %v1374 = vpop.f32.mrf.mxu0
        %v1375 = vadd.f32 0.0, %v1374
        %v1376 = vpop.f32.mrf.mxu0
        %1377 = vmatprep.mubr.f32.mxu0 0.0
        %1378 = vmatmul.mubr.f32.gmra.mxu0 %v1285
        %v1379 = vpop.f32.mrf.mxu0
        %v1380 = vadd.f32 0.0, %v1379
        %v1381 = vpop.f32.mrf.mxu0
        %1382 = vdwg.mxu0
        %1383 = vmatprep.subr.mxu0 0.0
        %1384 = vmatpush1.msra.mxu0 %v1282
        %1385 = vmatprep.subr.mxu0 0.0
        %1386 = vmatpush1.msra.mxu0 %v1281
        %1387 = vmatprep.subr.mxu0 0.0
        %1388 = vmatpush1.msra.mxu0 %v1280
        %1389 = vmatprep.subr.mxu0 0.0
        %1390 = vmatpush1.msra.mxu0 %v1279
        %1391 = vmatprep.subr.mxu0 0.0
        %1392 = vmatpush1.msra.mxu0 %v1278
        %1393 = vmatprep.subr.mxu0 0.0
        %1394 = vmatpush1.msra.mxu0 %v1277
        %1395 = vmatprep.subr.mxu0 0.0
        %1396 = vmatpush1.msra.mxu0 %v1276
        %1397 = vmatprep.subr.mxu0 0.0
        %1398 = vmatpush1.msra.mxu0 %v1275
        %1399 = vmatprep.subr.mxu0 0.0
        %1400 = vmatpush1.msra.mxu0 %v1274
        %1401 = vmatprep.subr.mxu0 0.0
        %1402 = vmatpush1.msra.mxu0 %v1273
        %1403 = vmatprep.subr.mxu0 0.0
        %1404 = vmatpush1.msra.mxu0 %v1272
        %1405 = vmatprep.subr.mxu0 0.0
        %1406 = vmatpush1.msra.mxu0 %v1271
        %1407 = vmatprep.subr.mxu0 0.0
        %1408 = vmatpush1.msra.mxu0 %v1270
        %1409 = vmatprep.subr.mxu0 0.0
        %1410 = vmatpush1.msra.mxu0 %v1269
        %1411 = vmatprep.subr.mxu0 0.0
        %1412 = vmatpush1.msra.mxu0 %v1268
        %1413 = vmatprep.subr.mxu0 0.0
        %1414 = vmatpush1.msra.mxu0 %v1267
        %1415 = vmatprep.subr.mxu0 0.0
        %1416 = vmatpush2.msra.mxu0 0.0
        %1417 = vmatprep.subr.mxu0 0.0
        %1418 = vmatpush2.msra.mxu0 0.0
        %1419 = vmatprep.subr.mxu0 0.0
        %1420 = vmatpush2.msra.mxu0 0.0
        %1421 = vmatprep.subr.mxu0 0.0
        %1422 = vmatpush2.msra.mxu0 0.0
        %1423 = vmatprep.subr.mxu0 0.0
        %1424 = vmatpush2.msra.mxu0 0.0
        %1425 = vmatprep.subr.mxu0 0.0
        %1426 = vmatpush2.msra.mxu0 0.0
        %1427 = vmatprep.subr.mxu0 0.0
        %1428 = vmatpush2.msra.mxu0 0.0
        %1429 = vmatprep.subr.mxu0 0.0
        %1430 = vmatpush2.msra.mxu0 0.0
        %1431 = vmatprep.subr.mxu0 0.0
        %1432 = vmatpush2.msra.mxu0 0.0
        %1433 = vmatprep.subr.mxu0 0.0
        %1434 = vmatpush2.msra.mxu0 0.0
        %1435 = vmatprep.subr.mxu0 0.0
        %1436 = vmatpush2.msra.mxu0 0.0
        %1437 = vmatprep.subr.mxu0 0.0
        %1438 = vmatpush2.msra.mxu0 0.0
        %1439 = vmatprep.subr.mxu0 0.0
        %1440 = vmatpush2.msra.mxu0 0.0
        %1441 = vmatprep.subr.mxu0 0.0
        %1442 = vmatpush2.msra.mxu0 0.0
        %1443 = vmatprep.subr.mxu0 0.0
        %1444 = vmatpush2.msra.mxu0 0.0
        %1445 = vmatprep.subr.mxu0 0.0
        %1446 = vmatpush2.msra.mxu0 0.0
        %1447 = vmatprep.mubr.f32.mxu0 0.0
        %1448 = vmatmul.mubr.f32.gmra.mxu0 %v1264
        %v1449 = vpop.f32.mrf.mxu0
        %v1450 = vadd.f32 %v1370, %v1449
        %v1451 = vpop.f32.mrf.mxu0
        %1452 = vmatprep.mubr.f32.mxu0 0.0
        %1453 = vmatmul.mubr.f32.gmra.mxu0 %v1265
        %v1454 = vpop.f32.mrf.mxu0
        %v1455 = vadd.f32 %v1375, %v1454
        %v1456 = vpop.f32.mrf.mxu0
        %1457 = vmatprep.mubr.f32.mxu0 0.0
        %1458 = vmatmul.mubr.f32.gmra.mxu0 %v1266
        %v1459 = vpop.f32.mrf.mxu0
        %v1460 = vadd.f32 %v1380, %v1459
        %v1461 = vpop.f32.mrf.mxu0
        %1462 = vdwg.mxu0
        %v1463 = vld [vmem:[#allocation4 + $0x2] sm:$0xff]
        %v1464 = vld [vmem:[#allocation4 + $0xa] sm:$0xff]
        %v1465 = vld [vmem:[#allocation4 + $0x12] sm:$0xf]
        %s1466 = scalar_lea.vmem [#allocation8], 256
        %v1467 = vld [vmem:[%s1466] sm:$0xff]
        %v1468 = vld [vmem:[%s1466 + $0x8] sm:$0xff]
        %v1469 = vld [vmem:[%s1466 + $0x10] sm:$0xff]
        %v1470 = vld [vmem:[%s1466 + $0x18] sm:$0xff]
        %v1471 = vld [vmem:[%s1466 + $0x20] sm:$0xff]
        %v1472 = vld [vmem:[%s1466 + $0x28] sm:$0xff]
        %v1473 = vld [vmem:[%s1466 + $0x30] sm:$0xff]
        %v1474 = vld [vmem:[%s1466 + $0x38] sm:$0xff]
        %v1475 = vld [vmem:[%s1466 + $0x40] sm:$0xff]
        %v1476 = vld [vmem:[%s1466 + $0x48] sm:$0xff]
        %v1477 = vld [vmem:[%s1466 + $0x50] sm:$0xff]
        %v1478 = vld [vmem:[%s1466 + $0x58] sm:$0xff]
        %v1479 = vld [vmem:[%s1466 + $0x60] sm:$0xff]
        %v1480 = vld [vmem:[%s1466 + $0x68] sm:$0xff]
        %v1481 = vld [vmem:[%s1466 + $0x70] sm:$0xff]
        %v1482 = vld [vmem:[%s1466 + $0x78] sm:$0xff]
        %1483 = vmatprep.subr.mxu0 0.0
        %1484 = vmatpush1.msra.mxu0 %v1482
        %1485 = vmatprep.subr.mxu0 0.0
        %1486 = vmatpush1.msra.mxu0 %v1481
        %1487 = vmatprep.subr.mxu0 0.0
        %1488 = vmatpush1.msra.mxu0 %v1480
        %1489 = vmatprep.subr.mxu0 0.0
        %1490 = vmatpush1.msra.mxu0 %v1479
        %1491 = vmatprep.subr.mxu0 0.0
        %1492 = vmatpush1.msra.mxu0 %v1478
        %1493 = vmatprep.subr.mxu0 0.0
        %1494 = vmatpush1.msra.mxu0 %v1477
        %1495 = vmatprep.subr.mxu0 0.0
        %1496 = vmatpush1.msra.mxu0 %v1476
        %1497 = vmatprep.subr.mxu0 0.0
        %1498 = vmatpush1.msra.mxu0 %v1475
        %1499 = vmatprep.subr.mxu0 0.0
        %1500 = vmatpush1.msra.mxu0 %v1474
        %1501 = vmatprep.subr.mxu0 0.0
        %1502 = vmatpush1.msra.mxu0 %v1473
        %1503 = vmatprep.subr.mxu0 0.0
        %1504 = vmatpush1.msra.mxu0 %v1472
        %1505 = vmatprep.subr.mxu0 0.0
        %1506 = vmatpush1.msra.mxu0 %v1471
        %1507 = vmatprep.subr.mxu0 0.0
        %1508 = vmatpush1.msra.mxu0 %v1470
        %1509 = vmatprep.subr.mxu0 0.0
        %1510 = vmatpush1.msra.mxu0 %v1469
        %1511 = vmatprep.subr.mxu0 0.0
        %1512 = vmatpush1.msra.mxu0 %v1468
        %1513 = vmatprep.subr.mxu0 0.0
        %1514 = vmatpush1.msra.mxu0 %v1467
        %1515 = vmatprep.subr.mxu0 0.0
        %1516 = vmatpush2.msra.mxu0 0.0
        %1517 = vmatprep.subr.mxu0 0.0
        %1518 = vmatpush2.msra.mxu0 0.0
        %1519 = vmatprep.subr.mxu0 0.0
        %1520 = vmatpush2.msra.mxu0 0.0
        %1521 = vmatprep.subr.mxu0 0.0
        %1522 = vmatpush2.msra.mxu0 0.0
        %1523 = vmatprep.subr.mxu0 0.0
        %1524 = vmatpush2.msra.mxu0 0.0
        %1525 = vmatprep.subr.mxu0 0.0
        %1526 = vmatpush2.msra.mxu0 0.0
        %1527 = vmatprep.subr.mxu0 0.0
        %1528 = vmatpush2.msra.mxu0 0.0
        %1529 = vmatprep.subr.mxu0 0.0
        %1530 = vmatpush2.msra.mxu0 0.0
        %1531 = vmatprep.subr.mxu0 0.0
        %1532 = vmatpush2.msra.mxu0 0.0
        %1533 = vmatprep.subr.mxu0 0.0
        %1534 = vmatpush2.msra.mxu0 0.0
        %1535 = vmatprep.subr.mxu0 0.0
        %1536 = vmatpush2.msra.mxu0 0.0
        %1537 = vmatprep.subr.mxu0 0.0
        %1538 = vmatpush2.msra.mxu0 0.0
        %1539 = vmatprep.subr.mxu0 0.0
        %1540 = vmatpush2.msra.mxu0 0.0
        %1541 = vmatprep.subr.mxu0 0.0
        %1542 = vmatpush2.msra.mxu0 0.0
        %1543 = vmatprep.subr.mxu0 0.0
        %1544 = vmatpush2.msra.mxu0 0.0
        %1545 = vmatprep.subr.mxu0 0.0
        %1546 = vmatpush2.msra.mxu0 0.0
        %1547 = vmatprep.mubr.f32.mxu0 0.0
        %1548 = vmatmul.mubr.f32.gmra.mxu0 %v1463
        %v1549 = vpop.f32.mrf.mxu0
        %v1550 = vadd.f32 0.0, %v1549
        %v1551 = vpop.f32.mrf.mxu0
        %1552 = vmatprep.mubr.f32.mxu0 0.0
        %1553 = vmatmul.mubr.f32.gmra.mxu0 %v1464
        %v1554 = vpop.f32.mrf.mxu0
        %v1555 = vadd.f32 0.0, %v1554
        %v1556 = vpop.f32.mrf.mxu0
        %1557 = vmatprep.mubr.f32.mxu0 0.0
        %1558 = vmatmul.mubr.f32.gmra.mxu0 %v1465
        %v1559 = vpop.f32.mrf.mxu0
        %v1560 = vadd.f32 0.0, %v1559
        %v1561 = vpop.f32.mrf.mxu0
        %1562 = vdwg.mxu0
        %v1563 = vadd.f32 %v1450, %v1550
        %v1564 = vadd.f32 %v1455, %v1555
        %v1565 = vadd.f32 %v1460, %v1560
        %v1566 = vld [vmem:[#allocation4 + $0x3] sm:$0xff]
        %v1567 = vld [vmem:[#allocation4 + $0xb] sm:$0xff]
        %v1568 = vld [vmem:[#allocation4 + $0x13] sm:$0xf]
        %s1569 = scalar_lea.vmem [#allocation8], 384
        %v1570 = vld [vmem:[%s1569] sm:$0xff]
        %v1571 = vld [vmem:[%s1569 + $0x8] sm:$0xff]
        %v1572 = vld [vmem:[%s1569 + $0x10] sm:$0xff]
        %v1573 = vld [vmem:[%s1569 + $0x18] sm:$0xff]
        %v1574 = vld [vmem:[%s1569 + $0x20] sm:$0xff]
        %v1575 = vld [vmem:[%s1569 + $0x28] sm:$0xff]
        %v1576 = vld [vmem:[%s1569 + $0x30] sm:$0xff]
        %v1577 = vld [vmem:[%s1569 + $0x38] sm:$0xff]
        %v1578 = vld [vmem:[%s1569 + $0x40] sm:$0xff]
        %v1579 = vld [vmem:[%s1569 + $0x48] sm:$0xff]
        %v1580 = vld [vmem:[%s1569 + $0x50] sm:$0xff]
        %v1581 = vld [vmem:[%s1569 + $0x58] sm:$0xff]
        %v1582 = vld [vmem:[%s1569 + $0x60] sm:$0xff]
        %v1583 = vld [vmem:[%s1569 + $0x68] sm:$0xff]
        %v1584 = vld [vmem:[%s1569 + $0x70] sm:$0xff]
        %v1585 = vld [vmem:[%s1569 + $0x78] sm:$0xff]
        %1586 = vmatprep.subr.mxu0 0.0
        %1587 = vmatpush1.msra.mxu0 %v1585
        %1588 = vmatprep.subr.mxu0 0.0
        %1589 = vmatpush1.msra.mxu0 %v1584
        %1590 = vmatprep.subr.mxu0 0.0
        %1591 = vmatpush1.msra.mxu0 %v1583
        %1592 = vmatprep.subr.mxu0 0.0
        %1593 = vmatpush1.msra.mxu0 %v1582
        %1594 = vmatprep.subr.mxu0 0.0
        %1595 = vmatpush1.msra.mxu0 %v1581
        %1596 = vmatprep.subr.mxu0 0.0
        %1597 = vmatpush1.msra.mxu0 %v1580
        %1598 = vmatprep.subr.mxu0 0.0
        %1599 = vmatpush1.msra.mxu0 %v1579
        %1600 = vmatprep.subr.mxu0 0.0
        %1601 = vmatpush1.msra.mxu0 %v1578
        %1602 = vmatprep.subr.mxu0 0.0
        %1603 = vmatpush1.msra.mxu0 %v1577
        %1604 = vmatprep.subr.mxu0 0.0
        %1605 = vmatpush1.msra.mxu0 %v1576
        %1606 = vmatprep.subr.mxu0 0.0
        %1607 = vmatpush1.msra.mxu0 %v1575
        %1608 = vmatprep.subr.mxu0 0.0
        %1609 = vmatpush1.msra.mxu0 %v1574
        %1610 = vmatprep.subr.mxu0 0.0
        %1611 = vmatpush1.msra.mxu0 %v1573
        %1612 = vmatprep.subr.mxu0 0.0
        %1613 = vmatpush1.msra.mxu0 %v1572
        %1614 = vmatprep.subr.mxu0 0.0
        %1615 = vmatpush1.msra.mxu0 %v1571
        %1616 = vmatprep.subr.mxu0 0.0
        %1617 = vmatpush1.msra.mxu0 %v1570
        %1618 = vmatprep.subr.mxu0 0.0
        %1619 = vmatpush2.msra.mxu0 0.0
        %1620 = vmatprep.subr.mxu0 0.0
        %1621 = vmatpush2.msra.mxu0 0.0
        %1622 = vmatprep.subr.mxu0 0.0
        %1623 = vmatpush2.msra.mxu0 0.0
        %1624 = vmatprep.subr.mxu0 0.0
        %1625 = vmatpush2.msra.mxu0 0.0
        %1626 = vmatprep.subr.mxu0 0.0
        %1627 = vmatpush2.msra.mxu0 0.0
        %1628 = vmatprep.subr.mxu0 0.0
        %1629 = vmatpush2.msra.mxu0 0.0
        %1630 = vmatprep.subr.mxu0 0.0
        %1631 = vmatpush2.msra.mxu0 0.0
        %1632 = vmatprep.subr.mxu0 0.0
        %1633 = vmatpush2.msra.mxu0 0.0
        %1634 = vmatprep.subr.mxu0 0.0
        %1635 = vmatpush2.msra.mxu0 0.0
        %1636 = vmatprep.subr.mxu0 0.0
        %1637 = vmatpush2.msra.mxu0 0.0
        %1638 = vmatprep.subr.mxu0 0.0
        %1639 = vmatpush2.msra.mxu0 0.0
        %1640 = vmatprep.subr.mxu0 0.0
        %1641 = vmatpush2.msra.mxu0 0.0
        %1642 = vmatprep.subr.mxu0 0.0
        %1643 = vmatpush2.msra.mxu0 0.0
        %1644 = vmatprep.subr.mxu0 0.0
        %1645 = vmatpush2.msra.mxu0 0.0
        %1646 = vmatprep.subr.mxu0 0.0
        %1647 = vmatpush2.msra.mxu0 0.0
        %1648 = vmatprep.subr.mxu0 0.0
        %1649 = vmatpush2.msra.mxu0 0.0
        %1650 = vmatprep.mubr.f32.mxu0 0.0
        %1651 = vmatmul.mubr.f32.gmra.mxu0 %v1566
        %v1652 = vpop.f32.mrf.mxu0
        %v1653 = vadd.f32 0.0, %v1652
        %v1654 = vpop.f32.mrf.mxu0
        %1655 = vmatprep.mubr.f32.mxu0 0.0
        %1656 = vmatmul.mubr.f32.gmra.mxu0 %v1567
        %v1657 = vpop.f32.mrf.mxu0
        %v1658 = vadd.f32 0.0, %v1657
        %v1659 = vpop.f32.mrf.mxu0
        %1660 = vmatprep.mubr.f32.mxu0 0.0
        %1661 = vmatmul.mubr.f32.gmra.mxu0 %v1568
        %v1662 = vpop.f32.mrf.mxu0
        %v1663 = vadd.f32 0.0, %v1662
        %v1664 = vpop.f32.mrf.mxu0
        %1665 = vdwg.mxu0
        %v1666 = vadd.f32 %v1563, %v1653
        %v1667 = vadd.f32 %v1564, %v1658
        %v1668 = vadd.f32 %v1565, %v1663
        %v1669 = vld [vmem:[#allocation4 + $0x4] sm:$0xff]
        %v1670 = vld [vmem:[#allocation4 + $0xc] sm:$0xff]
        %v1671 = vld [vmem:[#allocation4 + $0x14] sm:$0xf]
        %s1672 = scalar_lea.vmem [#allocation8], 512
        %v1673 = vld [vmem:[%s1672] sm:$0xff]
        %v1674 = vld [vmem:[%s1672 + $0x8] sm:$0xff]
        %v1675 = vld [vmem:[%s1672 + $0x10] sm:$0xff]
        %v1676 = vld [vmem:[%s1672 + $0x18] sm:$0xff]
        %v1677 = vld [vmem:[%s1672 + $0x20] sm:$0xff]
        %v1678 = vld [vmem:[%s1672 + $0x28] sm:$0xff]
        %v1679 = vld [vmem:[%s1672 + $0x30] sm:$0xff]
        %v1680 = vld [vmem:[%s1672 + $0x38] sm:$0xff]
        %v1681 = vld [vmem:[%s1672 + $0x40] sm:$0xff]
        %v1682 = vld [vmem:[%s1672 + $0x48] sm:$0xff]
        %v1683 = vld [vmem:[%s1672 + $0x50] sm:$0xff]
        %v1684 = vld [vmem:[%s1672 + $0x58] sm:$0xff]
        %v1685 = vld [vmem:[%s1672 + $0x60] sm:$0xff]
        %v1686 = vld [vmem:[%s1672 + $0x68] sm:$0xff]
        %v1687 = vld [vmem:[%s1672 + $0x70] sm:$0xff]
        %v1688 = vld [vmem:[%s1672 + $0x78] sm:$0xff]
        %1689 = vmatprep.subr.mxu0 0.0
        %1690 = vmatpush1.msra.mxu0 %v1688
        %1691 = vmatprep.subr.mxu0 0.0
        %1692 = vmatpush1.msra.mxu0 %v1687
        %1693 = vmatprep.subr.mxu0 0.0
        %1694 = vmatpush1.msra.mxu0 %v1686
        %1695 = vmatprep.subr.mxu0 0.0
        %1696 = vmatpush1.msra.mxu0 %v1685
        %1697 = vmatprep.subr.mxu0 0.0
        %1698 = vmatpush1.msra.mxu0 %v1684
        %1699 = vmatprep.subr.mxu0 0.0
        %1700 = vmatpush1.msra.mxu0 %v1683
        %1701 = vmatprep.subr.mxu0 0.0
        %1702 = vmatpush1.msra.mxu0 %v1682
        %1703 = vmatprep.subr.mxu0 0.0
        %1704 = vmatpush1.msra.mxu0 %v1681
        %1705 = vmatprep.subr.mxu0 0.0
        %1706 = vmatpush1.msra.mxu0 %v1680
        %1707 = vmatprep.subr.mxu0 0.0
        %1708 = vmatpush1.msra.mxu0 %v1679
        %1709 = vmatprep.subr.mxu0 0.0
        %1710 = vmatpush1.msra.mxu0 %v1678
        %1711 = vmatprep.subr.mxu0 0.0
        %1712 = vmatpush1.msra.mxu0 %v1677
        %1713 = vmatprep.subr.mxu0 0.0
        %1714 = vmatpush1.msra.mxu0 %v1676
        %1715 = vmatprep.subr.mxu0 0.0
        %1716 = vmatpush1.msra.mxu0 %v1675
        %1717 = vmatprep.subr.mxu0 0.0
        %1718 = vmatpush1.msra.mxu0 %v1674
        %1719 = vmatprep.subr.mxu0 0.0
        %1720 = vmatpush1.msra.mxu0 %v1673
        %1721 = vmatprep.subr.mxu0 0.0
        %1722 = vmatpush2.msra.mxu0 0.0
        %1723 = vmatprep.subr.mxu0 0.0
        %1724 = vmatpush2.msra.mxu0 0.0
        %1725 = vmatprep.subr.mxu0 0.0
        %1726 = vmatpush2.msra.mxu0 0.0
        %1727 = vmatprep.subr.mxu0 0.0
        %1728 = vmatpush2.msra.mxu0 0.0
        %1729 = vmatprep.subr.mxu0 0.0
        %1730 = vmatpush2.msra.mxu0 0.0
        %1731 = vmatprep.subr.mxu0 0.0
        %1732 = vmatpush2.msra.mxu0 0.0
        %1733 = vmatprep.subr.mxu0 0.0
        %1734 = vmatpush2.msra.mxu0 0.0
        %1735 = vmatprep.subr.mxu0 0.0
        %1736 = vmatpush2.msra.mxu0 0.0
        %1737 = vmatprep.subr.mxu0 0.0
        %1738 = vmatpush2.msra.mxu0 0.0
        %1739 = vmatprep.subr.mxu0 0.0
        %1740 = vmatpush2.msra.mxu0 0.0
        %1741 = vmatprep.subr.mxu0 0.0
        %1742 = vmatpush2.msra.mxu0 0.0
        %1743 = vmatprep.subr.mxu0 0.0
        %1744 = vmatpush2.msra.mxu0 0.0
        %1745 = vmatprep.subr.mxu0 0.0
        %1746 = vmatpush2.msra.mxu0 0.0
        %1747 = vmatprep.subr.mxu0 0.0
        %1748 = vmatpush2.msra.mxu0 0.0
        %1749 = vmatprep.subr.mxu0 0.0
        %1750 = vmatpush2.msra.mxu0 0.0
        %1751 = vmatprep.subr.mxu0 0.0
        %1752 = vmatpush2.msra.mxu0 0.0
        %1753 = vmatprep.mubr.f32.mxu0 0.0
        %1754 = vmatmul.mubr.f32.gmra.mxu0 %v1669
        %v1755 = vpop.f32.mrf.mxu0
        %v1756 = vadd.f32 0.0, %v1755
        %v1757 = vpop.f32.mrf.mxu0
        %1758 = vmatprep.mubr.f32.mxu0 0.0
        %1759 = vmatmul.mubr.f32.gmra.mxu0 %v1670
        %v1760 = vpop.f32.mrf.mxu0
        %v1761 = vadd.f32 0.0, %v1760
        %v1762 = vpop.f32.mrf.mxu0
        %1763 = vmatprep.mubr.f32.mxu0 0.0
        %1764 = vmatmul.mubr.f32.gmra.mxu0 %v1671
        %v1765 = vpop.f32.mrf.mxu0
        %v1766 = vadd.f32 0.0, %v1765
        %v1767 = vpop.f32.mrf.mxu0
        %1768 = vdwg.mxu0
        %v1769 = vadd.f32 %v1666, %v1756
        %v1770 = vadd.f32 %v1667, %v1761
        %v1771 = vadd.f32 %v1668, %v1766
        %s1772 = scalar_lea.vmem %s4, 1
        %v1773 = vld [vmem:[%s1772] sm:$0x1]
        %v1775 = vlaneseq
        %v1776 = vshrl.u32 %v1775, 7
        %v1777 = vsub.s32 0, %v1776
        %v1778 = vrot.slane %v1773, %v1777
        %v1780 = vadd.f32 %v1769, %v1778
        %v1781 = vadd.f32 %v1770, %v1778
        %v1782 = vadd.f32 %v1771, %v1778
        %v1783 = vand.u32 2147483647, %v1780
        %vm1784 = vcmp.le.f32.partialorder %v1783, 0.7853982
        %vm1785 = vcmp.lt.s32.totalorder %v1780, 0
        %v1786 = vand.u32 %v1780, 2139095040
        %v1787 = vshrl.u32 %v1786, 23
        %v1788 = vsub.s32 %v1787, 127
        %v1789 = vand.u32 2147483647, %v1780
        %v1790 = vand.u32 %v1789, 8388607
        %v1791 = vor.u32 %v1790, 8388608
        %v1792 = vsub.s32 0, %v1791
        %v1793 = vadd.s32 %v1788, 1
        %vm1794 = vcmp.gt.s32.totalorder %v1793, 0
        %v1795 = vsel %vm1794, %v1793, 0
        %v1796 = vshrl.u32 %v1795, 5
        %v1797 = vand.u32 %v1795, 31
        %v1798 = vsub.s32 32, %v1797
        %v1799 = vshrl.u32 683565275, %v1798
        %v1800 = vshll.u32 683565275, %v1797
        %v1801 = vshrl.u32 2475754826, %v1798
        %v1802 = vor.u32 %v1800, %v1801
        %v1803 = vshll.u32 2475754826, %v1797
        %v1804 = vshrl.u32 2131351028, %v1798
        %v1805 = vor.u32 %v1803, %v1804
        %v1806 = vshll.u32 2131351028, %v1797
        %v1807 = vshrl.u32 2102212464, %v1798
        %v1808 = vor.u32 %v1806, %v1807
        %v1809 = vshll.u32 2102212464, %v1797
        %v1810 = vshrl.u32 920167782, %v1798
        %v1811 = vor.u32 %v1809, %v1810
        %v1812 = vshll.u32 920167782, %v1797
        %v1813 = vshrl.u32 1326507024, %v1798
        %v1814 = vor.u32 %v1812, %v1813
        %vm1815 = vcmp.lt.s32.totalorder %v1796, 1
        %vm1816 = vcmp.lt.s32.totalorder %v1796, 2
        %vm1817 = vcmp.lt.s32.totalorder %v1796, 3
        %vm1818 = vcmp.lt.s32.totalorder %v1796, 4
        %v1819 = vsel %vm1815, %v1799, %v1802
        %v1820 = vsel %vm1818, %v1808, 2102212464
        %v1821 = vsel %vm1817, %v1805, %v1820
        %v1822 = vsel %vm1816, %v1819, %v1821
        %v1823 = vsel %vm1815, %v1802, %v1805
        %v1824 = vsel %vm1818, %v1811, 920167782
        %v1825 = vsel %vm1817, %v1808, %v1824
        %v1826 = vsel %vm1816, %v1823, %v1825
        %v1827 = vsel %vm1815, %v1805, %v1808
        %v1828 = vsel %vm1818, %v1814, 1326507024
        %v1829 = vsel %vm1817, %v1811, %v1828
        %v1830 = vsel %vm1816, %v1827, %v1829
        %v1831 = vshll.u32 %v1791, 8
        %v1832 = vmul.u32.u64.compose %v1831, %v1830
        %v1833 = vextract.low.u32 %v1832
        %v1834 = vextract.high.u32 %v1832
        %v1835 = vmul.u32.u64.compose %v1831, %v1826
        %v1836 = vextract.low.u32 %v1835
        %v1837 = vextract.high.u32 %v1835
        %v1838 = vmul.u32 %v1831, %v1822
        %v1839 = vadd.s32 %v1834, %v1836
        %vm1840 = vc.u32 %v1834, %v1836
        %v1841 = vadd.s32 %v1837, 1
        %v1842 = vsel %vm1840, %v1841, %v1837
        %v1843 = vadd.s32 %v1838, %v1842
        %v1844 = vadd.s32 %v1843, 536870912
        %v1845 = vshrl.u32 %v1844, 30
        %v1846 = vshll.u32 %v1845, 30
        %v1847 = vsub.s32 %v1843, %v1846
        %vm1848 = vcmp.lt.s32.totalorder %v1847, 0
        %v1849 = vsub.s32 0, %v1847
        %v1850 = vsel %vm1848, %v1849, %v1847
        %v1851 = vclz %v1850
        %v1852 = vsub.s32 %v1851, 2
        %vm1853 = vcmp.gt.s32.totalorder 0, %v1852
        %v1854 = vsel %vm1853, 0, %v1852
        %v1855 = vsub.s32 32, %v1854
        %v1856 = vshll.u32 %v1847, %v1854
        %v1857 = vshrl.u32 %v1839, %v1855
        %v1858 = vor.u32 %v1856, %v1857
        %v1859 = vsub.s32 4294967266, %v1854
        %v1860 = vadd.s32 %v1859, 127
        %v1861 = vshll.u32 %v1860, 23
        %v1862 = vor.u32 4788187, %v1861
        %v1863 = vand.u32 2147483647, %v1862
        %v1865 = vcvt.s32.f32 %v1858
        %v1866 = vmul.f32 %v1865, %v1863
        %v1867 = vxor.u32 %v1866, 2147483648
        %v1868 = vsel %vm1785, %v1867, %v1866
        %v1869 = vsub.s32 4, %v1845
        %v1870 = vsel %vm1785, %v1869, %v1845
        %v1871 = vsel %vm1784, %v1780, %v1868
        %v1872 = vsel %vm1784, 0, %v1870
        %v1873 = vcosq.f32.pop %v1871
        %v1874 = vsinq.f32.pop %v1871
        %vm1875 = vweird.f32 %v1780
        %v1876 = vadd.s32 %v1872, 3
        %v1877 = vand.u32 %v1876, 3
        %vm1878 = vcmp.lt.s32.totalorder %v1877, 2
        %vm1879 = vcmp.eq.s32.totalorder %v1877, 0
        %v1880 = vxor.u32 %v1874, 2147483648
        %v1881 = vsel %vm1879, %v1873, %v1880
        %vm1882 = vcmp.eq.s32.totalorder %v1877, 2
        %v1883 = vxor.u32 %v1873, 2147483648
        %v1884 = vsel %vm1882, %v1883, %v1874
        %v1885 = vsel %vm1878, %v1881, %v1884
        %v1886 = vsel %vm1875, nan, %v1885
        %v1887 = vand.u32 2147483647, %v1781
        %vm1888 = vcmp.le.f32.partialorder %v1887, 0.7853982
        %vm1889 = vcmp.lt.s32.totalorder %v1781, 0
        %v1890 = vand.u32 %v1781, 2139095040
        %v1891 = vshrl.u32 %v1890, 23
        %v1892 = vsub.s32 %v1891, 127
        %v1893 = vand.u32 2147483647, %v1781
        %v1894 = vand.u32 %v1893, 8388607
        %v1895 = vor.u32 %v1894, 8388608
        %v1896 = vsub.s32 0, %v1895
        %v1897 = vadd.s32 %v1892, 1
        %vm1898 = vcmp.gt.s32.totalorder %v1897, 0
        %v1899 = vsel %vm1898, %v1897, 0
        %v1900 = vshrl.u32 %v1899, 5
        %v1901 = vand.u32 %v1899, 31
        %v1902 = vsub.s32 32, %v1901
        %v1903 = vshrl.u32 683565275, %v1902
        %v1904 = vshll.u32 683565275, %v1901
        %v1905 = vshrl.u32 2475754826, %v1902
        %v1906 = vor.u32 %v1904, %v1905
        %v1907 = vshll.u32 2475754826, %v1901
        %v1908 = vshrl.u32 2131351028, %v1902
        %v1909 = vor.u32 %v1907, %v1908
        %v1910 = vshll.u32 2131351028, %v1901
        %v1911 = vshrl.u32 2102212464, %v1902
        %v1912 = vor.u32 %v1910, %v1911
        %v1913 = vshll.u32 2102212464, %v1901
        %v1914 = vshrl.u32 920167782, %v1902
        %v1915 = vor.u32 %v1913, %v1914
        %v1916 = vshll.u32 920167782, %v1901
        %v1917 = vshrl.u32 1326507024, %v1902
        %v1918 = vor.u32 %v1916, %v1917
        %vm1919 = vcmp.lt.s32.totalorder %v1900, 1
        %vm1920 = vcmp.lt.s32.totalorder %v1900, 2
        %vm1921 = vcmp.lt.s32.totalorder %v1900, 3
        %vm1922 = vcmp.lt.s32.totalorder %v1900, 4
        %v1923 = vsel %vm1919, %v1903, %v1906
        %v1924 = vsel %vm1922, %v1912, 2102212464
        %v1925 = vsel %vm1921, %v1909, %v1924
        %v1926 = vsel %vm1920, %v1923, %v1925
        %v1927 = vsel %vm1919, %v1906, %v1909
        %v1928 = vsel %vm1922, %v1915, 920167782
        %v1929 = vsel %vm1921, %v1912, %v1928
        %v1930 = vsel %vm1920, %v1927, %v1929
        %v1931 = vsel %vm1919, %v1909, %v1912
        %v1932 = vsel %vm1922, %v1918, 1326507024
        %v1933 = vsel %vm1921, %v1915, %v1932
        %v1934 = vsel %vm1920, %v1931, %v1933
        %v1935 = vshll.u32 %v1895, 8
        %v1936 = vmul.u32.u64.compose %v1935, %v1934
        %v1937 = vextract.low.u32 %v1936
        %v1938 = vextract.high.u32 %v1936
        %v1939 = vmul.u32.u64.compose %v1935, %v1930
        %v1940 = vextract.low.u32 %v1939
        %v1941 = vextract.high.u32 %v1939
        %v1942 = vmul.u32 %v1935, %v1926
        %v1943 = vadd.s32 %v1938, %v1940
        %vm1944 = vc.u32 %v1938, %v1940
        %v1945 = vadd.s32 %v1941, 1
        %v1946 = vsel %vm1944, %v1945, %v1941
        %v1947 = vadd.s32 %v1942, %v1946
        %v1948 = vadd.s32 %v1947, 536870912
        %v1949 = vshrl.u32 %v1948, 30
        %v1950 = vshll.u32 %v1949, 30
        %v1951 = vsub.s32 %v1947, %v1950
        %vm1952 = vcmp.lt.s32.totalorder %v1951, 0
        %v1953 = vsub.s32 0, %v1951
        %v1954 = vsel %vm1952, %v1953, %v1951
        %v1955 = vclz %v1954
        %v1956 = vsub.s32 %v1955, 2
        %vm1957 = vcmp.gt.s32.totalorder 0, %v1956
        %v1958 = vsel %vm1957, 0, %v1956
        %v1959 = vsub.s32 32, %v1958
        %v1960 = vshll.u32 %v1951, %v1958
        %v1961 = vshrl.u32 %v1943, %v1959
        %v1962 = vor.u32 %v1960, %v1961
        %v1963 = vsub.s32 4294967266, %v1958
        %v1964 = vadd.s32 %v1963, 127
        %v1965 = vshll.u32 %v1964, 23
        %v1966 = vor.u32 4788187, %v1965
        %v1967 = vand.u32 2147483647, %v1966
        %v1969 = vcvt.s32.f32 %v1962
        %v1970 = vmul.f32 %v1969, %v1967
        %v1971 = vxor.u32 %v1970, 2147483648
        %v1972 = vsel %vm1889, %v1971, %v1970
        %v1973 = vsub.s32 4, %v1949
        %v1974 = vsel %vm1889, %v1973, %v1949
        %v1975 = vsel %vm1888, %v1781, %v1972
        %v1976 = vsel %vm1888, 0, %v1974
        %v1977 = vcosq.f32.pop %v1975
        %v1978 = vsinq.f32.pop %v1975
        %vm1979 = vweird.f32 %v1781
        %v1980 = vadd.s32 %v1976, 3
        %v1981 = vand.u32 %v1980, 3
        %vm1982 = vcmp.lt.s32.totalorder %v1981, 2
        %vm1983 = vcmp.eq.s32.totalorder %v1981, 0
        %v1984 = vxor.u32 %v1978, 2147483648
        %v1985 = vsel %vm1983, %v1977, %v1984
        %vm1986 = vcmp.eq.s32.totalorder %v1981, 2
        %v1987 = vxor.u32 %v1977, 2147483648
        %v1988 = vsel %vm1986, %v1987, %v1978
        %v1989 = vsel %vm1982, %v1985, %v1988
        %v1990 = vsel %vm1979, nan, %v1989
        %v1991 = vand.u32 2147483647, %v1782
        %vm1992 = vcmp.le.f32.partialorder %v1991, 0.7853982
        %vm1993 = vcmp.lt.s32.totalorder %v1782, 0
        %v1994 = vand.u32 %v1782, 2139095040
        %v1995 = vshrl.u32 %v1994, 23
        %v1996 = vsub.s32 %v1995, 127
        %v1997 = vand.u32 2147483647, %v1782
        %v1998 = vand.u32 %v1997, 8388607
        %v1999 = vor.u32 %v1998, 8388608
        %v2000 = vsub.s32 0, %v1999
        %v2001 = vadd.s32 %v1996, 1
        %vm2002 = vcmp.gt.s32.totalorder %v2001, 0
        %v2003 = vsel %vm2002, %v2001, 0
        %v2004 = vshrl.u32 %v2003, 5
        %v2005 = vand.u32 %v2003, 31
        %v2006 = vsub.s32 32, %v2005
        %v2007 = vshrl.u32 683565275, %v2006
        %v2008 = vshll.u32 683565275, %v2005
        %v2009 = vshrl.u32 2475754826, %v2006
        %v2010 = vor.u32 %v2008, %v2009
        %v2011 = vshll.u32 2475754826, %v2005
        %v2012 = vshrl.u32 2131351028, %v2006
        %v2013 = vor.u32 %v2011, %v2012
        %v2014 = vshll.u32 2131351028, %v2005
        %v2015 = vshrl.u32 2102212464, %v2006
        %v2016 = vor.u32 %v2014, %v2015
        %v2017 = vshll.u32 2102212464, %v2005
        %v2018 = vshrl.u32 920167782, %v2006
        %v2019 = vor.u32 %v2017, %v2018
        %v2020 = vshll.u32 920167782, %v2005
        %v2021 = vshrl.u32 1326507024, %v2006
        %v2022 = vor.u32 %v2020, %v2021
        %vm2023 = vcmp.lt.s32.totalorder %v2004, 1
        %vm2024 = vcmp.lt.s32.totalorder %v2004, 2
        %vm2025 = vcmp.lt.s32.totalorder %v2004, 3
        %vm2026 = vcmp.lt.s32.totalorder %v2004, 4
        %v2027 = vsel %vm2023, %v2007, %v2010
        %v2028 = vsel %vm2026, %v2016, 2102212464
        %v2029 = vsel %vm2025, %v2013, %v2028
        %v2030 = vsel %vm2024, %v2027, %v2029
        %v2031 = vsel %vm2023, %v2010, %v2013
        %v2032 = vsel %vm2026, %v2019, 920167782
        %v2033 = vsel %vm2025, %v2016, %v2032
        %v2034 = vsel %vm2024, %v2031, %v2033
        %v2035 = vsel %vm2023, %v2013, %v2016
        %v2036 = vsel %vm2026, %v2022, 1326507024
        %v2037 = vsel %vm2025, %v2019, %v2036
        %v2038 = vsel %vm2024, %v2035, %v2037
        %v2039 = vshll.u32 %v1999, 8
        %v2040 = vmul.u32.u64.compose %v2039, %v2038
        %v2041 = vextract.low.u32 %v2040
        %v2042 = vextract.high.u32 %v2040
        %v2043 = vmul.u32.u64.compose %v2039, %v2034
        %v2044 = vextract.low.u32 %v2043
        %v2045 = vextract.high.u32 %v2043
        %v2046 = vmul.u32 %v2039, %v2030
        %v2047 = vadd.s32 %v2042, %v2044
        %vm2048 = vc.u32 %v2042, %v2044
        %v2049 = vadd.s32 %v2045, 1
        %v2050 = vsel %vm2048, %v2049, %v2045
        %v2051 = vadd.s32 %v2046, %v2050
        %v2052 = vadd.s32 %v2051, 536870912
        %v2053 = vshrl.u32 %v2052, 30
        %v2054 = vshll.u32 %v2053, 30
        %v2055 = vsub.s32 %v2051, %v2054
        %vm2056 = vcmp.lt.s32.totalorder %v2055, 0
        %v2057 = vsub.s32 0, %v2055
        %v2058 = vsel %vm2056, %v2057, %v2055
        %v2059 = vclz %v2058
        %v2060 = vsub.s32 %v2059, 2
        %vm2061 = vcmp.gt.s32.totalorder 0, %v2060
        %v2062 = vsel %vm2061, 0, %v2060
        %v2063 = vsub.s32 32, %v2062
        %v2064 = vshll.u32 %v2055, %v2062
        %v2065 = vshrl.u32 %v2047, %v2063
        %v2066 = vor.u32 %v2064, %v2065
        %v2067 = vsub.s32 4294967266, %v2062
        %v2068 = vadd.s32 %v2067, 127
        %v2069 = vshll.u32 %v2068, 23
        %v2070 = vor.u32 4788187, %v2069
        %v2071 = vand.u32 2147483647, %v2070
        %v2073 = vcvt.s32.f32 %v2066
        %v2074 = vmul.f32 %v2073, %v2071
        %v2075 = vxor.u32 %v2074, 2147483648
        %v2076 = vsel %vm1993, %v2075, %v2074
        %v2077 = vsub.s32 4, %v2053
        %v2078 = vsel %vm1993, %v2077, %v2053
        %v2079 = vsel %vm1992, %v1782, %v2076
        %v2080 = vsel %vm1992, 0, %v2078
        %v2081 = vcosq.f32.pop %v2079
        %v2082 = vsinq.f32.pop %v2079
        %vm2083 = vweird.f32 %v1782
        %v2084 = vadd.s32 %v2080, 3
        %v2085 = vand.u32 %v2084, 3
        %vm2086 = vcmp.lt.s32.totalorder %v2085, 2
        %vm2087 = vcmp.eq.s32.totalorder %v2085, 0
        %v2088 = vxor.u32 %v2082, 2147483648
        %v2089 = vsel %vm2087, %v2081, %v2088
        %vm2090 = vcmp.eq.s32.totalorder %v2085, 2
        %v2091 = vxor.u32 %v2081, 2147483648
        %v2092 = vsel %vm2090, %v2091, %v2082
        %v2093 = vsel %vm2086, %v2089, %v2092
        %v2094 = vsel %vm2083, nan, %v2093
        %s2095 = scalar_lea.vmem %s5, 1
        %v2096 = vld [vmem:[%s2095] sm:$0x1]
        %v2098 = vlaneseq
        %v2099 = vshrl.u32 %v2098, 7
        %v2100 = vsub.s32 0, %v2099
        %v2101 = vrot.slane %v2096, %v2100
        %v2103 = vmul.f32 %v1886, %v2101
        %v2104 = vmul.f32 %v1990, %v2101
        %v2105 = vmul.f32 %v2094, %v2101
        %v2106 = vadd.f32 %v2103, %v1463
        %v2107 = vadd.f32 %v2104, %v1464
        %v2108 = vadd.f32 %v2105, %v1465
        %2109 = vst [vmem:[#allocation4] sm:$0xff] %v2106
        %2110 = vst [vmem:[#allocation4 + $0x8] sm:$0xff] %v2107
        %2111 = vst [vmem:[#allocation4 + $0x10] sm:$0xf] %v2108
        %s2112 = sadd.s32 %s368, 4294967294
        %p2113 = scmp.lt.s32.totalorder %s2112, 0
        %s2114 = sadd.s32 %s368, 18
        %p2115 = scmp.gt.s32.totalorder %s2114, 16
        %p2116 = por %p2113, %p2115
        // Predicated region
        $region102: #{tpu_custom_call.1} parent=43 // pred_check
          %p2117 = pneg %p2116
        $region103: #{tpu_custom_call.1} parent=43 // pred_check_branch
          %2119 = sbr.rel (%p2117) target = $region105
        $region104: #{tpu_custom_call.1} parent=43 // pred_region
          %v2120 = vstv %s2112
          %v2121 = vadd.s32 %v2120, %v385
          %v2122 = vadd.s32 %v2120, %v386
          %v2123 = vadd.s32 %v2120, %v387
          %vm2124 = vcmp.ge.s32.totalorder %v2121, 0
          %vm2125 = vcmp.ge.s32.totalorder %v2122, 0
          %vm2126 = vcmp.ge.s32.totalorder %v2123, 0
          %vm2127 = vcmp.lt.s32.totalorder %v2121, 16
          %vm2128 = vcmp.lt.s32.totalorder %v2122, 16
          %vm2129 = vcmp.lt.s32.totalorder %v2123, 16
          %vm2130 = vmand %vm2124, %vm2127
          %vm2131 = vmand %vm2125, %vm2128
          %vm2132 = vmand %vm2126, %vm2129
          %v2133 = vsel %vm2130, 1, 0
          %v2134 = vsel %vm2131, 1, 0
          %v2135 = vsel %vm2132, 1, 0
          %vm2136 = vcmp.eq.s32.totalorder %v2133, 1
          %vm2137 = vcmp.eq.s32.totalorder %v2134, 1
          %vm2138 = vcmp.eq.s32.totalorder %v2135, 1
          %v2139 = vsel %vm2136, %v2106, 0.0
          %v2140 = vsel %vm2137, %v2107, 0.0
          %v2141 = vsel %vm2138, %v2108, 0.0
          %2142 = vst [vmem:[#allocation4] sm:$0xff] %v2139
          %2143 = vst [vmem:[#allocation4 + $0x8] sm:$0xff] %v2140
          %2144 = vst [vmem:[#allocation4 + $0x10] sm:$0xf] %v2141
        $region105: #{tpu_custom_call.1} parent=43 // pred_fallthru
          _
        %v2145 = vld [vmem:[#allocation4] sm:$0xff]
        %v2146 = vld [vmem:[#allocation4 + $0x8] sm:$0xff]
        %v2147 = vld [vmem:[#allocation10] sm:$0xff]
        %v2148 = vld [vmem:[#allocation10 + $0x8] sm:$0xff]
        %v2149 = vld [vmem:[#allocation10 + $0x10] sm:$0xff]
        %v2150 = vld [vmem:[#allocation10 + $0x18] sm:$0xff]
        %v2151 = vld [vmem:[#allocation10 + $0x20] sm:$0xff]
        %v2152 = vld [vmem:[#allocation10 + $0x28] sm:$0xff]
        %v2153 = vld [vmem:[#allocation10 + $0x30] sm:$0xff]
        %v2154 = vld [vmem:[#allocation10 + $0x38] sm:$0xff]
        %v2155 = vld [vmem:[#allocation10 + $0x40] sm:$0xff]
        %v2156 = vld [vmem:[#allocation10 + $0x48] sm:$0xff]
        %v2157 = vld [vmem:[#allocation10 + $0x50] sm:$0xff]
        %v2158 = vld [vmem:[#allocation10 + $0x58] sm:$0xff]
        %v2159 = vld [vmem:[#allocation10 + $0x60] sm:$0xff]
        %v2160 = vld [vmem:[#allocation10 + $0x68] sm:$0xff]
        %v2161 = vld [vmem:[#allocation10 + $0x70] sm:$0xff]
        %v2162 = vld [vmem:[#allocation10 + $0x78] sm:$0xff]
        %v2163 = vld [vmem:[#allocation4 + $0x1] sm:$0xff]
        %v2164 = vld [vmem:[#allocation4 + $0x9] sm:$0xff]
        %s2165 = scalar_lea.vmem [#allocation10], 128
        %v2166 = vld [vmem:[%s2165] sm:$0xff]
        %v2167 = vld [vmem:[%s2165 + $0x8] sm:$0xff]
        %v2168 = vld [vmem:[%s2165 + $0x10] sm:$0xff]
        %v2169 = vld [vmem:[%s2165 + $0x18] sm:$0xff]
        %v2170 = vld [vmem:[%s2165 + $0x20] sm:$0xff]
        %v2171 = vld [vmem:[%s2165 + $0x28] sm:$0xff]
        %v2172 = vld [vmem:[%s2165 + $0x30] sm:$0xff]
        %v2173 = vld [vmem:[%s2165 + $0x38] sm:$0xff]
        %v2174 = vld [vmem:[%s2165 + $0x40] sm:$0xff]
        %v2175 = vld [vmem:[%s2165 + $0x48] sm:$0xff]
        %v2176 = vld [vmem:[%s2165 + $0x50] sm:$0xff]
        %v2177 = vld [vmem:[%s2165 + $0x58] sm:$0xff]
        %v2178 = vld [vmem:[%s2165 + $0x60] sm:$0xff]
        %v2179 = vld [vmem:[%s2165 + $0x68] sm:$0xff]
        %v2180 = vld [vmem:[%s2165 + $0x70] sm:$0xff]
        %v2181 = vld [vmem:[%s2165 + $0x78] sm:$0xff]
        %2182 = vmatprep.subr.mxu0 0.0
        %2183 = vmatpush1.msra.mxu0 %v2181
        %2184 = vmatprep.subr.mxu0 0.0
        %2185 = vmatpush1.msra.mxu0 %v2180
        %2186 = vmatprep.subr.mxu0 0.0
        %2187 = vmatpush1.msra.mxu0 %v2179
        %2188 = vmatprep.subr.mxu0 0.0
        %2189 = vmatpush1.msra.mxu0 %v2178
        %2190 = vmatprep.subr.mxu0 0.0
        %2191 = vmatpush1.msra.mxu0 %v2177
        %2192 = vmatprep.subr.mxu0 0.0
        %2193 = vmatpush1.msra.mxu0 %v2176
        %2194 = vmatprep.subr.mxu0 0.0
        %2195 = vmatpush1.msra.mxu0 %v2175
        %2196 = vmatprep.subr.mxu0 0.0
        %2197 = vmatpush1.msra.mxu0 %v2174
        %2198 = vmatprep.subr.mxu0 0.0
        %2199 = vmatpush1.msra.mxu0 %v2173
        %2200 = vmatprep.subr.mxu0 0.0
        %2201 = vmatpush1.msra.mxu0 %v2172
        %2202 = vmatprep.subr.mxu0 0.0
        %2203 = vmatpush1.msra.mxu0 %v2171
        %2204 = vmatprep.subr.mxu0 0.0
        %2205 = vmatpush1.msra.mxu0 %v2170
        %2206 = vmatprep.subr.mxu0 0.0
        %2207 = vmatpush1.msra.mxu0 %v2169
        %2208 = vmatprep.subr.mxu0 0.0
        %2209 = vmatpush1.msra.mxu0 %v2168
        %2210 = vmatprep.subr.mxu0 0.0
        %2211 = vmatpush1.msra.mxu0 %v2167
        %2212 = vmatprep.subr.mxu0 0.0
        %2213 = vmatpush1.msra.mxu0 %v2166
        %2214 = vmatprep.subr.mxu0 0.0
        %2215 = vmatpush2.msra.mxu0 0.0
        %2216 = vmatprep.subr.mxu0 0.0
        %2217 = vmatpush2.msra.mxu0 0.0
        %2218 = vmatprep.subr.mxu0 0.0
        %2219 = vmatpush2.msra.mxu0 0.0
        %2220 = vmatprep.subr.mxu0 0.0
        %2221 = vmatpush2.msra.mxu0 0.0
        %2222 = vmatprep.subr.mxu0 0.0
        %2223 = vmatpush2.msra.mxu0 0.0
        %2224 = vmatprep.subr.mxu0 0.0
        %2225 = vmatpush2.msra.mxu0 0.0
        %2226 = vmatprep.subr.mxu0 0.0
        %2227 = vmatpush2.msra.mxu0 0.0
        %2228 = vmatprep.subr.mxu0 0.0
        %2229 = vmatpush2.msra.mxu0 0.0
        %2230 = vmatprep.subr.mxu0 0.0
        %2231 = vmatpush2.msra.mxu0 0.0
        %2232 = vmatprep.subr.mxu0 0.0
        %2233 = vmatpush2.msra.mxu0 0.0
        %2234 = vmatprep.subr.mxu0 0.0
        %2235 = vmatpush2.msra.mxu0 0.0
        %2236 = vmatprep.subr.mxu0 0.0
        %2237 = vmatpush2.msra.mxu0 0.0
        %2238 = vmatprep.subr.mxu0 0.0
        %2239 = vmatpush2.msra.mxu0 0.0
        %2240 = vmatprep.subr.mxu0 0.0
        %2241 = vmatpush2.msra.mxu0 0.0
        %2242 = vmatprep.subr.mxu0 0.0
        %2243 = vmatpush2.msra.mxu0 0.0
        %2244 = vmatprep.subr.mxu0 0.0
        %2245 = vmatpush2.msra.mxu0 0.0
        %2246 = vmatprep.mubr.f32.mxu0 0.0
        %2247 = vmatmul.mubr.f32.gmra.mxu0 %v2163
        %v2248 = vpop.f32.mrf.mxu0
        %v2249 = vadd.f32 0.0, %v2248
        %v2250 = vpop.f32.mrf.mxu0
        %2251 = vmatprep.mubr.f32.mxu0 0.0
        %2252 = vmatmul.mubr.f32.gmra.mxu0 %v2164
        %v2253 = vpop.f32.mrf.mxu0
        %v2254 = vadd.f32 0.0, %v2253
        %v2255 = vpop.f32.mrf.mxu0
        %2256 = vdwg.mxu0
        %2257 = vmatprep.subr.mxu0 0.0
        %2258 = vmatpush1.msra.mxu0 %v2162
        %2259 = vmatprep.subr.mxu0 0.0
        %2260 = vmatpush1.msra.mxu0 %v2161
        %2261 = vmatprep.subr.mxu0 0.0
        %2262 = vmatpush1.msra.mxu0 %v2160
        %2263 = vmatprep.subr.mxu0 0.0
        %2264 = vmatpush1.msra.mxu0 %v2159
        %2265 = vmatprep.subr.mxu0 0.0
        %2266 = vmatpush1.msra.mxu0 %v2158
        %2267 = vmatprep.subr.mxu0 0.0
        %2268 = vmatpush1.msra.mxu0 %v2157
        %2269 = vmatprep.subr.mxu0 0.0
        %2270 = vmatpush1.msra.mxu0 %v2156
        %2271 = vmatprep.subr.mxu0 0.0
        %2272 = vmatpush1.msra.mxu0 %v2155
        %2273 = vmatprep.subr.mxu0 0.0
        %2274 = vmatpush1.msra.mxu0 %v2154
        %2275 = vmatprep.subr.mxu0 0.0
        %2276 = vmatpush1.msra.mxu0 %v2153
        %2277 = vmatprep.subr.mxu0 0.0
        %2278 = vmatpush1.msra.mxu0 %v2152
        %2279 = vmatprep.subr.mxu0 0.0
        %2280 = vmatpush1.msra.mxu0 %v2151
        %2281 = vmatprep.subr.mxu0 0.0
        %2282 = vmatpush1.msra.mxu0 %v2150
        %2283 = vmatprep.subr.mxu0 0.0
        %2284 = vmatpush1.msra.mxu0 %v2149
        %2285 = vmatprep.subr.mxu0 0.0
        %2286 = vmatpush1.msra.mxu0 %v2148
        %2287 = vmatprep.subr.mxu0 0.0
        %2288 = vmatpush1.msra.mxu0 %v2147
        %2289 = vmatprep.subr.mxu0 0.0
        %2290 = vmatpush2.msra.mxu0 0.0
        %2291 = vmatprep.subr.mxu0 0.0
        %2292 = vmatpush2.msra.mxu0 0.0
        %2293 = vmatprep.subr.mxu0 0.0
        %2294 = vmatpush2.msra.mxu0 0.0
        %2295 = vmatprep.subr.mxu0 0.0
        %2296 = vmatpush2.msra.mxu0 0.0
        %2297 = vmatprep.subr.mxu0 0.0
        %2298 = vmatpush2.msra.mxu0 0.0
        %2299 = vmatprep.subr.mxu0 0.0
        %2300 = vmatpush2.msra.mxu0 0.0
        %2301 = vmatprep.subr.mxu0 0.0
        %2302 = vmatpush2.msra.mxu0 0.0
        %2303 = vmatprep.subr.mxu0 0.0
        %2304 = vmatpush2.msra.mxu0 0.0
        %2305 = vmatprep.subr.mxu0 0.0
        %2306 = vmatpush2.msra.mxu0 0.0
        %2307 = vmatprep.subr.mxu0 0.0
        %2308 = vmatpush2.msra.mxu0 0.0
        %2309 = vmatprep.subr.mxu0 0.0
        %2310 = vmatpush2.msra.mxu0 0.0
        %2311 = vmatprep.subr.mxu0 0.0
        %2312 = vmatpush2.msra.mxu0 0.0
        %2313 = vmatprep.subr.mxu0 0.0
        %2314 = vmatpush2.msra.mxu0 0.0
        %2315 = vmatprep.subr.mxu0 0.0
        %2316 = vmatpush2.msra.mxu0 0.0
        %2317 = vmatprep.subr.mxu0 0.0
        %2318 = vmatpush2.msra.mxu0 0.0
        %2319 = vmatprep.subr.mxu0 0.0
        %2320 = vmatpush2.msra.mxu0 0.0
        %2321 = vmatprep.mubr.f32.mxu0 0.0
        %2322 = vmatmul.mubr.f32.gmra.mxu0 %v2145
        %v2323 = vpop.f32.mrf.mxu0
        %v2324 = vadd.f32 %v2249, %v2323
        %v2325 = vpop.f32.mrf.mxu0
        %2326 = vmatprep.mubr.f32.mxu0 0.0
        %2327 = vmatmul.mubr.f32.gmra.mxu0 %v2146
        %v2328 = vpop.f32.mrf.mxu0
        %v2329 = vadd.f32 %v2254, %v2328
        %v2330 = vpop.f32.mrf.mxu0
        %2331 = vdwg.mxu0
        %v2332 = vld [vmem:[#allocation4 + $0x2] sm:$0xff]
        %v2333 = vld [vmem:[#allocation4 + $0xa] sm:$0xff]
        %s2334 = scalar_lea.vmem [#allocation10], 256
        %v2335 = vld [vmem:[%s2334] sm:$0xff]
        %v2336 = vld [vmem:[%s2334 + $0x8] sm:$0xff]
        %v2337 = vld [vmem:[%s2334 + $0x10] sm:$0xff]
        %v2338 = vld [vmem:[%s2334 + $0x18] sm:$0xff]
        %v2339 = vld [vmem:[%s2334 + $0x20] sm:$0xff]
        %v2340 = vld [vmem:[%s2334 + $0x28] sm:$0xff]
        %v2341 = vld [vmem:[%s2334 + $0x30] sm:$0xff]
        %v2342 = vld [vmem:[%s2334 + $0x38] sm:$0xff]
        %v2343 = vld [vmem:[%s2334 + $0x40] sm:$0xff]
        %v2344 = vld [vmem:[%s2334 + $0x48] sm:$0xff]
        %v2345 = vld [vmem:[%s2334 + $0x50] sm:$0xff]
        %v2346 = vld [vmem:[%s2334 + $0x58] sm:$0xff]
        %v2347 = vld [vmem:[%s2334 + $0x60] sm:$0xff]
        %v2348 = vld [vmem:[%s2334 + $0x68] sm:$0xff]
        %v2349 = vld [vmem:[%s2334 + $0x70] sm:$0xff]
        %v2350 = vld [vmem:[%s2334 + $0x78] sm:$0xff]
        %2351 = vmatprep.subr.mxu0 0.0
        %2352 = vmatpush1.msra.mxu0 %v2350
        %2353 = vmatprep.subr.mxu0 0.0
        %2354 = vmatpush1.msra.mxu0 %v2349
        %2355 = vmatprep.subr.mxu0 0.0
        %2356 = vmatpush1.msra.mxu0 %v2348
        %2357 = vmatprep.subr.mxu0 0.0
        %2358 = vmatpush1.msra.mxu0 %v2347
        %2359 = vmatprep.subr.mxu0 0.0
        %2360 = vmatpush1.msra.mxu0 %v2346
        %2361 = vmatprep.subr.mxu0 0.0
        %2362 = vmatpush1.msra.mxu0 %v2345
        %2363 = vmatprep.subr.mxu0 0.0
        %2364 = vmatpush1.msra.mxu0 %v2344
        %2365 = vmatprep.subr.mxu0 0.0
        %2366 = vmatpush1.msra.mxu0 %v2343
        %2367 = vmatprep.subr.mxu0 0.0
        %2368 = vmatpush1.msra.mxu0 %v2342
        %2369 = vmatprep.subr.mxu0 0.0
        %2370 = vmatpush1.msra.mxu0 %v2341
        %2371 = vmatprep.subr.mxu0 0.0
        %2372 = vmatpush1.msra.mxu0 %v2340
        %2373 = vmatprep.subr.mxu0 0.0
        %2374 = vmatpush1.msra.mxu0 %v2339
        %2375 = vmatprep.subr.mxu0 0.0
        %2376 = vmatpush1.msra.mxu0 %v2338
        %2377 = vmatprep.subr.mxu0 0.0
        %2378 = vmatpush1.msra.mxu0 %v2337
        %2379 = vmatprep.subr.mxu0 0.0
        %2380 = vmatpush1.msra.mxu0 %v2336
        %2381 = vmatprep.subr.mxu0 0.0
        %2382 = vmatpush1.msra.mxu0 %v2335
        %2383 = vmatprep.subr.mxu0 0.0
        %2384 = vmatpush2.msra.mxu0 0.0
        %2385 = vmatprep.subr.mxu0 0.0
        %2386 = vmatpush2.msra.mxu0 0.0
        %2387 = vmatprep.subr.mxu0 0.0
        %2388 = vmatpush2.msra.mxu0 0.0
        %2389 = vmatprep.subr.mxu0 0.0
        %2390 = vmatpush2.msra.mxu0 0.0
        %2391 = vmatprep.subr.mxu0 0.0
        %2392 = vmatpush2.msra.mxu0 0.0
        %2393 = vmatprep.subr.mxu0 0.0
        %2394 = vmatpush2.msra.mxu0 0.0
        %2395 = vmatprep.subr.mxu0 0.0
        %2396 = vmatpush2.msra.mxu0 0.0
        %2397 = vmatprep.subr.mxu0 0.0
        %2398 = vmatpush2.msra.mxu0 0.0
        %2399 = vmatprep.subr.mxu0 0.0
        %2400 = vmatpush2.msra.mxu0 0.0
        %2401 = vmatprep.subr.mxu0 0.0
        %2402 = vmatpush2.msra.mxu0 0.0
        %2403 = vmatprep.subr.mxu0 0.0
        %2404 = vmatpush2.msra.mxu0 0.0
        %2405 = vmatprep.subr.mxu0 0.0
        %2406 = vmatpush2.msra.mxu0 0.0
        %2407 = vmatprep.subr.mxu0 0.0
        %2408 = vmatpush2.msra.mxu0 0.0
        %2409 = vmatprep.subr.mxu0 0.0
        %2410 = vmatpush2.msra.mxu0 0.0
        %2411 = vmatprep.subr.mxu0 0.0
        %2412 = vmatpush2.msra.mxu0 0.0
        %2413 = vmatprep.subr.mxu0 0.0
        %2414 = vmatpush2.msra.mxu0 0.0
        %2415 = vmatprep.mubr.f32.mxu0 0.0
        %2416 = vmatmul.mubr.f32.gmra.mxu0 %v2332
        %v2417 = vpop.f32.mrf.mxu0
        %v2418 = vadd.f32 0.0, %v2417
        %v2419 = vpop.f32.mrf.mxu0
        %2420 = vmatprep.mubr.f32.mxu0 0.0
        %2421 = vmatmul.mubr.f32.gmra.mxu0 %v2333
        %v2422 = vpop.f32.mrf.mxu0
        %v2423 = vadd.f32 0.0, %v2422
        %v2424 = vpop.f32.mrf.mxu0
        %2425 = vdwg.mxu0
        %v2426 = vadd.f32 %v2324, %v2418
        %v2427 = vadd.f32 %v2329, %v2423
        %v2428 = vld [vmem:[#allocation4 + $0x3] sm:$0xff]
        %v2429 = vld [vmem:[#allocation4 + $0xb] sm:$0xff]
        %s2430 = scalar_lea.vmem [#allocation10], 384
        %v2431 = vld [vmem:[%s2430] sm:$0xff]
        %v2432 = vld [vmem:[%s2430 + $0x8] sm:$0xff]
        %v2433 = vld [vmem:[%s2430 + $0x10] sm:$0xff]
        %v2434 = vld [vmem:[%s2430 + $0x18] sm:$0xff]
        %v2435 = vld [vmem:[%s2430 + $0x20] sm:$0xff]
        %v2436 = vld [vmem:[%s2430 + $0x28] sm:$0xff]
        %v2437 = vld [vmem:[%s2430 + $0x30] sm:$0xff]
        %v2438 = vld [vmem:[%s2430 + $0x38] sm:$0xff]
        %v2439 = vld [vmem:[%s2430 + $0x40] sm:$0xff]
        %v2440 = vld [vmem:[%s2430 + $0x48] sm:$0xff]
        %v2441 = vld [vmem:[%s2430 + $0x50] sm:$0xff]
        %v2442 = vld [vmem:[%s2430 + $0x58] sm:$0xff]
        %v2443 = vld [vmem:[%s2430 + $0x60] sm:$0xff]
        %v2444 = vld [vmem:[%s2430 + $0x68] sm:$0xff]
        %v2445 = vld [vmem:[%s2430 + $0x70] sm:$0xff]
        %v2446 = vld [vmem:[%s2430 + $0x78] sm:$0xff]
        %2447 = vmatprep.subr.mxu0 0.0
        %2448 = vmatpush1.msra.mxu0 %v2446
        %2449 = vmatprep.subr.mxu0 0.0
        %2450 = vmatpush1.msra.mxu0 %v2445
        %2451 = vmatprep.subr.mxu0 0.0
        %2452 = vmatpush1.msra.mxu0 %v2444
        %2453 = vmatprep.subr.mxu0 0.0
        %2454 = vmatpush1.msra.mxu0 %v2443
        %2455 = vmatprep.subr.mxu0 0.0
        %2456 = vmatpush1.msra.mxu0 %v2442
        %2457 = vmatprep.subr.mxu0 0.0
        %2458 = vmatpush1.msra.mxu0 %v2441
        %2459 = vmatprep.subr.mxu0 0.0
        %2460 = vmatpush1.msra.mxu0 %v2440
        %2461 = vmatprep.subr.mxu0 0.0
        %2462 = vmatpush1.msra.mxu0 %v2439
        %2463 = vmatprep.subr.mxu0 0.0
        %2464 = vmatpush1.msra.mxu0 %v2438
        %2465 = vmatprep.subr.mxu0 0.0
        %2466 = vmatpush1.msra.mxu0 %v2437
        %2467 = vmatprep.subr.mxu0 0.0
        %2468 = vmatpush1.msra.mxu0 %v2436
        %2469 = vmatprep.subr.mxu0 0.0
        %2470 = vmatpush1.msra.mxu0 %v2435
        %2471 = vmatprep.subr.mxu0 0.0
        %2472 = vmatpush1.msra.mxu0 %v2434
        %2473 = vmatprep.subr.mxu0 0.0
        %2474 = vmatpush1.msra.mxu0 %v2433
        %2475 = vmatprep.subr.mxu0 0.0
        %2476 = vmatpush1.msra.mxu0 %v2432
        %2477 = vmatprep.subr.mxu0 0.0
        %2478 = vmatpush1.msra.mxu0 %v2431
        %2479 = vmatprep.subr.mxu0 0.0
        %2480 = vmatpush2.msra.mxu0 0.0
        %2481 = vmatprep.subr.mxu0 0.0
        %2482 = vmatpush2.msra.mxu0 0.0
        %2483 = vmatprep.subr.mxu0 0.0
        %2484 = vmatpush2.msra.mxu0 0.0
        %2485 = vmatprep.subr.mxu0 0.0
        %2486 = vmatpush2.msra.mxu0 0.0
        %2487 = vmatprep.subr.mxu0 0.0
        %2488 = vmatpush2.msra.mxu0 0.0
        %2489 = vmatprep.subr.mxu0 0.0
        %2490 = vmatpush2.msra.mxu0 0.0
        %2491 = vmatprep.subr.mxu0 0.0
        %2492 = vmatpush2.msra.mxu0 0.0
        %2493 = vmatprep.subr.mxu0 0.0
        %2494 = vmatpush2.msra.mxu0 0.0
        %2495 = vmatprep.subr.mxu0 0.0
        %2496 = vmatpush2.msra.mxu0 0.0
        %2497 = vmatprep.subr.mxu0 0.0
        %2498 = vmatpush2.msra.mxu0 0.0
        %2499 = vmatprep.subr.mxu0 0.0
        %2500 = vmatpush2.msra.mxu0 0.0
        %2501 = vmatprep.subr.mxu0 0.0
        %2502 = vmatpush2.msra.mxu0 0.0
        %2503 = vmatprep.subr.mxu0 0.0
        %2504 = vmatpush2.msra.mxu0 0.0
        %2505 = vmatprep.subr.mxu0 0.0
        %2506 = vmatpush2.msra.mxu0 0.0
        %2507 = vmatprep.subr.mxu0 0.0
        %2508 = vmatpush2.msra.mxu0 0.0
        %2509 = vmatprep.subr.mxu0 0.0
        %2510 = vmatpush2.msra.mxu0 0.0
        %2511 = vmatprep.mubr.f32.mxu0 0.0
        %2512 = vmatmul.mubr.f32.gmra.mxu0 %v2428
        %v2513 = vpop.f32.mrf.mxu0
        %v2514 = vadd.f32 0.0, %v2513
        %v2515 = vpop.f32.mrf.mxu0
        %2516 = vmatprep.mubr.f32.mxu0 0.0
        %2517 = vmatmul.mubr.f32.gmra.mxu0 %v2429
        %v2518 = vpop.f32.mrf.mxu0
        %v2519 = vadd.f32 0.0, %v2518
        %v2520 = vpop.f32.mrf.mxu0
        %2521 = vdwg.mxu0
        %v2522 = vadd.f32 %v2426, %v2514
        %v2523 = vadd.f32 %v2427, %v2519
        %v2524 = vld [vmem:[#allocation4 + $0x4] sm:$0xff]
        %v2525 = vld [vmem:[#allocation4 + $0xc] sm:$0xff]
        %s2526 = scalar_lea.vmem [#allocation10], 512
        %v2527 = vld [vmem:[%s2526] sm:$0xff]
        %v2528 = vld [vmem:[%s2526 + $0x8] sm:$0xff]
        %v2529 = vld [vmem:[%s2526 + $0x10] sm:$0xff]
        %v2530 = vld [vmem:[%s2526 + $0x18] sm:$0xff]
        %v2531 = vld [vmem:[%s2526 + $0x20] sm:$0xff]
        %v2532 = vld [vmem:[%s2526 + $0x28] sm:$0xff]
        %v2533 = vld [vmem:[%s2526 + $0x30] sm:$0xff]
        %v2534 = vld [vmem:[%s2526 + $0x38] sm:$0xff]
        %v2535 = vld [vmem:[%s2526 + $0x40] sm:$0xff]
        %v2536 = vld [vmem:[%s2526 + $0x48] sm:$0xff]
        %v2537 = vld [vmem:[%s2526 + $0x50] sm:$0xff]
        %v2538 = vld [vmem:[%s2526 + $0x58] sm:$0xff]
        %v2539 = vld [vmem:[%s2526 + $0x60] sm:$0xff]
        %v2540 = vld [vmem:[%s2526 + $0x68] sm:$0xff]
        %v2541 = vld [vmem:[%s2526 + $0x70] sm:$0xff]
        %v2542 = vld [vmem:[%s2526 + $0x78] sm:$0xff]
        %2543 = vmatprep.subr.mxu0 0.0
        %2544 = vmatpush1.msra.mxu0 %v2542
        %2545 = vmatprep.subr.mxu0 0.0
        %2546 = vmatpush1.msra.mxu0 %v2541
        %2547 = vmatprep.subr.mxu0 0.0
        %2548 = vmatpush1.msra.mxu0 %v2540
        %2549 = vmatprep.subr.mxu0 0.0
        %2550 = vmatpush1.msra.mxu0 %v2539
        %2551 = vmatprep.subr.mxu0 0.0
        %2552 = vmatpush1.msra.mxu0 %v2538
        %2553 = vmatprep.subr.mxu0 0.0
        %2554 = vmatpush1.msra.mxu0 %v2537
        %2555 = vmatprep.subr.mxu0 0.0
        %2556 = vmatpush1.msra.mxu0 %v2536
        %2557 = vmatprep.subr.mxu0 0.0
        %2558 = vmatpush1.msra.mxu0 %v2535
        %2559 = vmatprep.subr.mxu0 0.0
        %2560 = vmatpush1.msra.mxu0 %v2534
        %2561 = vmatprep.subr.mxu0 0.0
        %2562 = vmatpush1.msra.mxu0 %v2533
        %2563 = vmatprep.subr.mxu0 0.0
        %2564 = vmatpush1.msra.mxu0 %v2532
        %2565 = vmatprep.subr.mxu0 0.0
        %2566 = vmatpush1.msra.mxu0 %v2531
        %2567 = vmatprep.subr.mxu0 0.0
        %2568 = vmatpush1.msra.mxu0 %v2530
        %2569 = vmatprep.subr.mxu0 0.0
        %2570 = vmatpush1.msra.mxu0 %v2529
        %2571 = vmatprep.subr.mxu0 0.0
        %2572 = vmatpush1.msra.mxu0 %v2528
        %2573 = vmatprep.subr.mxu0 0.0
        %2574 = vmatpush1.msra.mxu0 %v2527
        %2575 = vmatprep.subr.mxu0 0.0
        %2576 = vmatpush2.msra.mxu0 0.0
        %2577 = vmatprep.subr.mxu0 0.0
        %2578 = vmatpush2.msra.mxu0 0.0
        %2579 = vmatprep.subr.mxu0 0.0
        %2580 = vmatpush2.msra.mxu0 0.0
        %2581 = vmatprep.subr.mxu0 0.0
        %2582 = vmatpush2.msra.mxu0 0.0
        %2583 = vmatprep.subr.mxu0 0.0
        %2584 = vmatpush2.msra.mxu0 0.0
        %2585 = vmatprep.subr.mxu0 0.0
        %2586 = vmatpush2.msra.mxu0 0.0
        %2587 = vmatprep.subr.mxu0 0.0
        %2588 = vmatpush2.msra.mxu0 0.0
        %2589 = vmatprep.subr.mxu0 0.0
        %2590 = vmatpush2.msra.mxu0 0.0
        %2591 = vmatprep.subr.mxu0 0.0
        %2592 = vmatpush2.msra.mxu0 0.0
        %2593 = vmatprep.subr.mxu0 0.0
        %2594 = vmatpush2.msra.mxu0 0.0
        %2595 = vmatprep.subr.mxu0 0.0
        %2596 = vmatpush2.msra.mxu0 0.0
        %2597 = vmatprep.subr.mxu0 0.0
        %2598 = vmatpush2.msra.mxu0 0.0
        %2599 = vmatprep.subr.mxu0 0.0
        %2600 = vmatpush2.msra.mxu0 0.0
        %2601 = vmatprep.subr.mxu0 0.0
        %2602 = vmatpush2.msra.mxu0 0.0
        %2603 = vmatprep.subr.mxu0 0.0
        %2604 = vmatpush2.msra.mxu0 0.0
        %2605 = vmatprep.subr.mxu0 0.0
        %2606 = vmatpush2.msra.mxu0 0.0
        %2607 = vmatprep.mubr.f32.mxu0 0.0
        %2608 = vmatmul.mubr.f32.gmra.mxu0 %v2524
        %v2609 = vpop.f32.mrf.mxu0
        %v2610 = vadd.f32 0.0, %v2609
        %v2611 = vpop.f32.mrf.mxu0
        %2612 = vmatprep.mubr.f32.mxu0 0.0
        %2613 = vmatmul.mubr.f32.gmra.mxu0 %v2525
        %v2614 = vpop.f32.mrf.mxu0
        %v2615 = vadd.f32 0.0, %v2614
        %v2616 = vpop.f32.mrf.mxu0
        %2617 = vdwg.mxu0
        %v2618 = vadd.f32 %v2522, %v2610
        %v2619 = vadd.f32 %v2523, %v2615
        %v2620 = vld [vmem:[%s6] sm:$0x1]
        %v2622 = vlaneseq
        %v2623 = vshrl.u32 %v2622, 7
        %v2624 = vsub.s32 0, %v2623
        %v2625 = vrot.slane %v2620, %v2624
        %v2627 = vadd.f32 %v2618, %v2625
        %v2628 = vadd.f32 %v2619, %v2625
        %2629 = vst [vmem:[%s288] sm:$0xff] %v2627
        %2630 = vst [vmem:[%s288 + $0x8] sm:$0xff] %v2628
        %s2631 = sand.u32 %s171, 1
        %s2632 = scalar_lea.sflag [#allocation7], %s2631
        %s2633 = sand.u32 %s171, 1
        %s2634 = smul.addr %s2633, 16
        %s2635 = scalar_lea.vmem [#allocation11], %s2634
        // Predicated region
        $region106: #{tpu_custom_call.1} parent=43 // pred_check
          %p2636 = pneg %p181
        $region107: #{tpu_custom_call.1} parent=43 // pred_check_branch
          %2638 = sbr.rel (%p2636) target = $region109
        $region108: #{tpu_custom_call.1} parent=43 // pred_region
          %s2639 = smul.u32 2, %s28
          %s2641 = ssub.s32 256, 256
          %2642 = vsyncadd %s2632, %s2641
          %s2643 = smul.addr %s27, 2
          %s2644 = sadd.s32 %s2639, %s2643
          %s2645 = smul.addr %s2644, 128
          %s2646 = scalar_lea.hbm %s7, %s2645
          %s2647 = sshll.u32 %s2635, 4
          %s2648 = int_to_ptr.vmem [resolvable:$true] %s2647
          %2653 = dma.vmem_to_hbm [thread:$0]  %s2648, 256, %s2646, %s2632, 128, 128, 8
        $region109: #{tpu_custom_call.1} parent=43 // pred_fallthru
          _
      $region44: #{tpu_custom_call.1} parent=5 // pred_fallthru
        _
      %p2654 = scmp.le.s32.totalorder 2, %s18
      // Predicated region
      $region110: #{tpu_custom_call.1} parent=5 // pred_check
        %p2655 = pneg %p2654
      $region111: #{tpu_custom_call.1} parent=5 // pred_check_branch
        %2657 = sbr.rel (%p2655) target = $region113
      $region112: #{tpu_custom_call.1} parent=5 // pred_region
        %s2658 = ssub.s32 %s18, 2
        // Predicated region
        $region114: #{tpu_custom_call.1} parent=112 // pred_check
          %p2659 = pneg %p187
        $region115: #{tpu_custom_call.1} parent=112 // pred_check_branch
          %2661 = sbr.rel (%p2659) target = $region117
        $region116: #{tpu_custom_call.1} parent=112 // pred_region
          %s2662 = sand.u32 %s172, 1
          %s2663 = scalar_lea.sflag [#allocation7], %s2662
          %s2664 = sand.u32 %s172, 1
          %s2665 = smul.addr %s2664, 16
          %s2666 = scalar_lea.vmem [#allocation11], %s2665
          %2667 = dma.done %s2663, 256
        $region117: #{tpu_custom_call.1} parent=112 // pred_fallthru
          _
      $region113: #{tpu_custom_call.1} parent=5 // pred_fallthru
        _
    $region6: #{tpu_custom_call.1} parent=1 // loop_footer
      %s22 = sadd.s32 1, %s18
    $region7: #{tpu_custom_call.1} parent=1 // loop_footer_branch
      %17 = sbr.rel target = $region3
    $region8: #{tpu_custom_call.1} parent=1 // loop_exit
      _
    %2668 = vsyncpa [#allocation6], 1
    %s2669 = scalar_lea.sflag [#allocation6], 1
    %2670 = vsyncpa %s2669, 1
    %2671 = vsyncpa [#allocation9], 1
    %2672 = vsyncpa [#allocation7], 1
    %s2673 = scalar_lea.sflag [#allocation7], 1
    %2674 = vsyncpa %s2673, 1
  %2675 = vsyncmov [#allocation3]
  %s2676 = vpop.sfrf %2675
  %p2677 = scmp.eq.s32.totalorder %s2676, 0
  %p2678 = pneg %p2677
  %2680 = shalt.err (%p2678)
  %s2681 = scalar_lea.sflag [#allocation3], 1
  %2682 = vsyncmov %s2681
  %s2683 = vpop.sfrf %2682
  %p2684 = scmp.eq.s32.totalorder %s2683, 0
  %p2685 = pneg %p2684
  %2687 = shalt.err (%p2685)

</llo_original>
